<compile_context>
chip_gen: v7x
topology: tpu7x:2x2x1
jax: 0.10.0
libtpu: 0.0.40
codegen_flags: <defaults>
</compile_context>

<pallas_src>
import jax
import jax.numpy as jnp
import numpy as np
from jax.experimental import pallas as pl
from jax.experimental.pallas import tpu as pltpu


def lstm_kernel(x_ref, wih0_ref, whh0_ref, b0_ref, w1_ref, b1_ref,
                wfc_ref, bfc_ref, wt_ref, bt_ref, out_ref,
                xw0_ref, hall_ref):
    """2-layer LSTM recurrence + fc/relu + temporal linear, one batch tile per call.

    x_ref    : (T, B, C)        input sequence tile
    wih0_ref : (C, 4*HP)        layer-0 input weights (gate-padded, pre-transposed)
    whh0_ref : (HP, 4*HP)       layer-0 recurrent weights
    b0_ref   : (1, 4*HP)        layer-0 combined bias (b_ih + b_hh)
    w1_ref   : (2*HP, 4*HP)     layer-1 fused [Wih1.T ; Whh1.T]
    b1_ref   : (1, 4*HP)        layer-1 combined bias
    wfc_ref  : (HP, O), bfc_ref (1, O)
    wt_ref   : (T_out, T), bt_ref (T_out, 1)
    out_ref  : (T_out, B*O)     lane-dense output tile
    xw0_ref  : (T*B, 4*HP)      VMEM scratch: hoisted layer-0 input projection
    hall_ref : (T*B, HP)        VMEM scratch: layer-1 hidden states for all t
    """
    T, B, C = x_ref.shape
    HP = whh0_ref.shape[0]           # lane-padded hidden size (multiple of 128)
    G = 4 * HP
    O = wfc_ref.shape[1]

    # --- layer-0 input projection hoisted over all timesteps (one MXU matmul),
    #     bias b0 folded in once (not re-broadcast per step). ---
    xw0_ref[...] = jnp.dot(x_ref[...].reshape(T * B, C), wih0_ref[...],
                           preferred_element_type=jnp.float32) + b0_ref[...]

    b1 = b1_ref[...]                 # (1, G), read once outside the loop

    def gates_to_hc(gates, c):
        # Gate blocks are padded to HP (multiple of 128) -> all slices lane-aligned.
        # sigmoid over the contiguous [i, f] block in a single EUP pass.
        i_f = jax.nn.sigmoid(gates[:, 0:2 * HP])
        i = i_f[:, 0:HP]
        f = i_f[:, HP:2 * HP]
        g = jnp.tanh(gates[:, 2 * HP:3 * HP])
        o = jax.nn.sigmoid(gates[:, 3 * HP:4 * HP])
        c_new = f * c + i * g
        h_new = o * jnp.tanh(c_new)
        return h_new, c_new

    h0 = jnp.zeros((B, HP), jnp.float32)
    c0 = jnp.zeros((B, HP), jnp.float32)
    h1 = jnp.zeros((B, HP), jnp.float32)
    c1 = jnp.zeros((B, HP), jnp.float32)

    # T is small and static -> unrolled sequential recurrence.
    # TODO(synk): switch to lax.fori_loop carrying (h0,c0,h1,c1) for large T.
    for t in range(T):
        # layer 0: precomputed input term + recurrent matmul
        gates0 = xw0_ref[pl.ds(t * B, B), :] + jnp.dot(
            h0, whh0_ref[...], preferred_element_type=jnp.float32)
        h0, c0 = gates_to_hc(gates0, c0)
        # layer 1: single fused K = 2*HP matmul over [h0_t, h1_{t-1}]
        gates1 = jnp.dot(jnp.concatenate([h0, h1], axis=1), w1_ref[...],
                         preferred_element_type=jnp.float32) + b1
        h1, c1 = gates_to_hc(gates1, c1)
        hall_ref[pl.ds(t * B, B), :] = h1

    # --- fc + relu over all timesteps at once ---
    fc = jnp.dot(hall_ref[...], wfc_ref[...],
                 preferred_element_type=jnp.float32) + bfc_ref[...]
    fc = jnp.maximum(fc, 0.0)                               # (T*B, O)

    # --- temporal projection with a lane-dense (T_out, B*O) output ---
    fc = jnp.transpose(fc.reshape(T, B, O), (1, 2, 0))      # (B, O, T)
    fc = fc.reshape(B * O, T).T                             # (T, B*O)
    out_ref[...] = jnp.dot(wt_ref[...], fc,
                           preferred_element_type=jnp.float32) + bt_ref[...]


def _pad_gate_cols(w_t, H, HP):
    """(K, 4H) -> (K, 4*HP): each H-wide gate block placed at column g*HP, zero pad."""
    if HP == H:
        return w_t
    K = w_t.shape[0]
    zpad = jnp.zeros((K, HP - H), w_t.dtype)
    blocks = []
    for g in range(4):
        blocks.append(w_t[:, g * H:(g + 1) * H])
        blocks.append(zpad)
    return jnp.concatenate(blocks, axis=1)


def _pad_rows(w, HP):
    K, N = w.shape
    if K == HP:
        return w
    return jnp.concatenate([w, jnp.zeros((HP - K, N), w.dtype)], axis=0)


def _pick_tile_b(B_eff, O):
    # Keep (tile*O) lane-dense (multiple of 128) and the tile a sublane multiple;
    # otherwise fall back to a single whole-array tile (always block-legal).
    for cand in (512, 256, 128):
        if cand < B_eff and B_eff % cand == 0 and (cand * O) % 128 == 0:
            return cand
    return B_eff


@jax.jit
def lstm_forward(x, wih0, whh0, bih0, bhh0, wih1, whh1, bih1, bhh1,
                 wfc, bfc, wt, bt):
    """x: (batch, T_in, num_nodes, C) -> (batch, T_out, num_nodes, out_channels)."""
    batch, T, N, C = x.shape
    H = whh0.shape[1]
    O = wfc.shape[0]
    T_out = wt.shape[0]
    B_eff = N * batch
    HP = ((H + 127) // 128) * 128      # lane-pad hidden to a multiple of 128
    G = 4 * HP

    # Fold nodes into the LSTM batch dimension: (T, N*batch, C)
    xs = jnp.transpose(x, (1, 2, 0, 3)).reshape(T, B_eff, C).astype(jnp.float32)

    f32 = lambda a: a.astype(jnp.float32)
    # layer 0: pre-transpose, lane-pad gate blocks, fold b_ih + b_hh
    wih0p = _pad_gate_cols(f32(wih0).T, H, HP)                          # (C, G)
    whh0p = _pad_rows(_pad_gate_cols(f32(whh0).T, H, HP), HP)           # (HP, G)
    b0p = _pad_gate_cols(f32(bih0 + bhh0).reshape(1, 4 * H), H, HP)     # (1, G)
    # layer 1: fuse [Wih1.T ; Whh1.T] into one (2*HP, G) weight
    wih1p = _pad_rows(_pad_gate_cols(f32(wih1).T, H, HP), HP)
    whh1p = _pad_rows(_pad_gate_cols(f32(whh1).T, H, HP), HP)
    w1p = jnp.concatenate([wih1p, whh1p], axis=0)                       # (2*HP, G)
    b1p = _pad_gate_cols(f32(bih1 + bhh1).reshape(1, 4 * H), H, HP)     # (1, G)
    # heads
    wfcp = _pad_rows(f32(wfc).T, HP)                                    # (HP, O)
    bfcp = f32(bfc).reshape(1, O)
    wtp = f32(wt)                                                       # (T_out, T)
    btp = f32(bt).reshape(T_out, 1)

    tile_b = _pick_tile_b(B_eff, O)
    n_tiles = B_eff // tile_b

    const2 = lambda i: (0, 0)
    in_specs = [
        pl.BlockSpec((T, tile_b, C), lambda i: (0, i, 0)),   # x tile
        pl.BlockSpec((C, G), const2),                        # resident weights ...
        pl.BlockSpec((HP, G), const2),
        pl.BlockSpec((1, G), const2),
        pl.BlockSpec((2 * HP, G), const2),
        pl.BlockSpec((1, G), const2),
        pl.BlockSpec((HP, O), const2),
        pl.BlockSpec((1, O), const2),
        pl.BlockSpec((T_out, T), const2),
        pl.BlockSpec((T_out, 1), const2),
    ]
    out_specs = pl.BlockSpec((T_out, tile_b * O), lambda i: (0, i))

    out_flat = pl.pallas_call(
        lstm_kernel,
        out_shape=jax.ShapeDtypeStruct((T_out, B_eff * O), jnp.float32),
        grid=(n_tiles,),
        in_specs=in_specs,
        out_specs=out_specs,
        scratch_shapes=[
            pltpu.VMEM((T * tile_b, G), jnp.float32),    # xw0: hoisted layer-0 proj
            pltpu.VMEM((T * tile_b, HP), jnp.float32),   # h_all: layer-1 hidden states
        ],
        compiler_params=pltpu.CompilerParams(
            dimension_semantics=("parallel",),           # megacore-shard batch tiles
            vmem_limit_bytes=48 * 1024 * 1024,
        ),
    )(xs, wih0p, whh0p, b0p, w1p, b1p, wfcp, bfcp, wtp, btp)

    # out_flat[u, b*O + o] with b = n*batch + bb  ->  (batch, T_out, N, O)
    out = out_flat.reshape(T_out, N, batch, O)
    out = jnp.transpose(out, (2, 0, 1, 3))
    return out


def make_params(key, in_channels, hidden_size, out_channels, t_in, t_out):
    H = hidden_size
    ks = jax.random.split(key, 14)
    std = 1.0 / float(np.sqrt(H))

    def u(k, shape, s):
        return jax.random.uniform(k, shape, jnp.float32, minval=-s, maxval=s)

    p = {}
    p["wih0"] = u(ks[0], (4 * H, in_channels), std)
    p["whh0"] = u(ks[1], (4 * H, H), std)
    p["bih0"] = u(ks[2], (4 * H,), std)
    p["bhh0"] = u(ks[3], (4 * H,), std)
    p["wih1"] = u(ks[4], (4 * H, H), std)
    p["whh1"] = u(ks[5], (4 * H, H), std)
    p["bih1"] = u(ks[6], (4 * H,), std)
    p["bhh1"] = u(ks[7], (4 * H,), std)
    s_fc = 1.0 / float(np.sqrt(H))
    p["wfc"] = u(ks[8], (out_channels, H), s_fc)
    p["bfc"] = u(ks[9], (out_channels,), s_fc)
    s_t = 1.0 / float(np.sqrt(t_in))
    p["wt"] = u(ks[10], (t_out, t_in), s_t)
    p["bt"] = u(ks[11], (t_out,), s_t)
    return p


def lstm_forward_ref(x, p):
    """Pure-JAX reference with identical semantics (correctness check)."""
    batch, T, N, C = x.shape
    H = p["whh0"].shape[1]
    B_eff = N * batch
    xs = jnp.transpose(x, (1, 2, 0, 3)).reshape(T, B_eff, C).astype(jnp.float32)

    def cell(x_t, h, c, wih, whh, bih, bhh):
        g = x_t @ wih.T + bih + h @ whh.T + bhh
        i = jax.nn.sigmoid(g[:, :H])
        f = jax.nn.sigmoid(g[:, H:2 * H])
        gg = jnp.tanh(g[:, 2 * H:3 * H])
        o = jax.nn.sigmoid(g[:, 3 * H:])
        c = f * c + i * gg
        return o * jnp.tanh(c), c

    h0 = c0 = h1 = c1 = jnp.zeros((B_eff, H), jnp.float32)
    hs = []
    for t in range(T):
        h0, c0 = cell(xs[t], h0, c0, p["wih0"], p["whh0"], p["bih0"], p["bhh0"])
        h1, c1 = cell(h0, h1, c1, p["wih1"], p["whh1"], p["bih1"], p["bhh1"])
        hs.append(h1)
    h_all = jnp.stack(hs, 0)                                    # (T, B, H)
    fc = jnp.maximum(h_all @ p["wfc"].T + p["bfc"], 0.0)        # (T, B, O)
    fc = jnp.transpose(fc, (1, 2, 0))                           # (B, O, T)
    t_out = fc @ p["wt"].T + p["bt"]                            # (B, O, T_out)
    out = t_out.reshape(N, batch, p["wfc"].shape[0], -1)
    return jnp.transpose(out, (1, 3, 0, 2))


if __name__ == "__main__":
    # Small but module-consistent shapes (module defaults).
    batch, T_in, T_out = 2, 12, 3
    num_nodes, in_channels, hidden_size, out_channels = 4, 3, 64, 1

    key = jax.random.PRNGKey(0)
    k_x, k_p = jax.random.split(key)
    x = jax.random.normal(k_x, (batch, T_in, num_nodes, in_channels), jnp.float32)
    p = make_params(k_p, in_channels, hidden_size, out_channels, T_in, T_out)

    out = lstm_forward(
        x,
        p["wih0"], p["whh0"], p["bih0"], p["bhh0"],
        p["wih1"], p["whh1"], p["bih1"], p["bhh1"],
        p["wfc"], p["bfc"], p["wt"], p["bt"],
    )
    out = jax.block_until_ready(out)

    ref = jax.block_until_ready(lstm_forward_ref(x, p))
    assert out.shape == (batch, T_out, num_nodes, out_channels), out.shape
    np.testing.assert_allclose(np.asarray(out), np.asarray(ref), rtol=1e-3, atol=1e-4)

    print("KERNEL_OK")
</pallas_src>

<mosaic_0001>
module attributes {stable_mosaic.version = 11 : i64} {
  func.func @lstm_kernel(%arg0: i32, %arg1: memref<12x8x3xf32, #tpu.memory_space<vmem>>, %arg2: memref<3x512xf32, #tpu.memory_space<vmem>>, %arg3: memref<128x512xf32, #tpu.memory_space<vmem>>, %arg4: memref<1x512xf32, #tpu.memory_space<vmem>>, %arg5: memref<256x512xf32, #tpu.memory_space<vmem>>, %arg6: memref<1x512xf32, #tpu.memory_space<vmem>>, %arg7: memref<128x1xf32, #tpu.memory_space<vmem>>, %arg8: memref<1x1xf32, #tpu.memory_space<vmem>>, %arg9: memref<3x12xf32, #tpu.memory_space<vmem>>, %arg10: memref<3x1xf32, #tpu.memory_space<vmem>>, %arg11: memref<3x8xf32, #tpu.memory_space<vmem>>, %arg12: memref<96x512xf32, #tpu.memory_space<vmem>>, %arg13: memref<96x128xf32, #tpu.memory_space<vmem>>) attributes {dimension_semantics = [#tpu.dimension_semantics<parallel>], iteration_bounds = array<i64: 1>, scalar_prefetch = 0 : i64, scratch_operands = 2 : i64, tpu.core_type = #tpu.core_type<tc>, window_params = [{transform_indices = @transform_0, window_bounds = array<i64: 12, 8, 3>}, {pipeline_mode = #tpu.pipeline_mode<synchronous>, transform_indices = @transform_1, window_bounds = array<i64: 3, 512>}, {pipeline_mode = #tpu.pipeline_mode<synchronous>, transform_indices = @transform_2, window_bounds = array<i64: 128, 512>}, {pipeline_mode = #tpu.pipeline_mode<synchronous>, transform_indices = @transform_3, window_bounds = array<i64: 1, 512>}, {pipeline_mode = #tpu.pipeline_mode<synchronous>, transform_indices = @transform_4, window_bounds = array<i64: 256, 512>}, {pipeline_mode = #tpu.pipeline_mode<synchronous>, transform_indices = @transform_5, window_bounds = array<i64: 1, 512>}, {pipeline_mode = #tpu.pipeline_mode<synchronous>, transform_indices = @transform_6, window_bounds = array<i64: 128, 1>}, {pipeline_mode = #tpu.pipeline_mode<synchronous>, transform_indices = @transform_7, window_bounds = array<i64: 1, 1>}, {pipeline_mode = #tpu.pipeline_mode<synchronous>, transform_indices = @transform_8, window_bounds = array<i64: 3, 12>}, {pipeline_mode = #tpu.pipeline_mode<synchronous>, transform_indices = @transform_9, window_bounds = array<i64: 3, 1>}, {transform_indices = @transform_10, window_bounds = array<i64: 3, 8>}]} {
    %c0 = arith.constant 0 : index
    %c0_0 = arith.constant 0 : index
    %c0_1 = arith.constant 0 : index
    %0 = vector.load %arg1[%c0, %c0_0, %c0_1] : memref<12x8x3xf32, #tpu.memory_space<vmem>>, vector<12x8x3xf32>
    %1 = vector.shape_cast %0 : vector<12x8x3xf32> to vector<96x3xf32>
    %c0_2 = arith.constant 0 : index
    %c0_3 = arith.constant 0 : index
    %2 = vector.load %arg2[%c0_2, %c0_3] : memref<3x512xf32, #tpu.memory_space<vmem>>, vector<3x512xf32>
    %cst = arith.constant dense<0.000000e+00> : vector<96x512xf32>
    %3 = tpu.matmul %1, %2, %cst {dimension_numbers = #tpu.dot_dimension_numbers<[1], [0], [0], [1], [0, 0, 1, 1], [], []>} : vector<96x3xf32>, vector<3x512xf32>, vector<96x512xf32> -> vector<96x512xf32>
    %c0_4 = arith.constant 0 : index
    %c0_5 = arith.constant 0 : index
    %4 = vector.load %arg4[%c0_4, %c0_5] : memref<1x512xf32, #tpu.memory_space<vmem>>, vector<1x512xf32>
    %5 = vector.broadcast %4 : vector<1x512xf32> to vector<96x512xf32>
    %6 = arith.addf %3, %5 : vector<96x512xf32>
    %c0_6 = arith.constant 0 : index
    %c0_7 = arith.constant 0 : index
    %7 = vector.load %arg12[%c0_6, %c0_7] : memref<96x512xf32, #tpu.memory_space<vmem>>, vector<96x512xf32>
    tpu.vector_store %arg12[%c0_6, %c0_7], %6 {strides = array<i32>} : memref<96x512xf32, #tpu.memory_space<vmem>>, vector<96x512xf32>,
    %c0_8 = arith.constant 0 : index
    %c0_9 = arith.constant 0 : index
    %8 = vector.load %arg6[%c0_8, %c0_9] : memref<1x512xf32, #tpu.memory_space<vmem>>, vector<1x512xf32>
    %cst_10 = arith.constant 0.000000e+00 : f32
    %9 = vector.broadcast %cst_10 : f32 to vector<8x128xf32>
    %cst_11 = arith.constant 0.000000e+00 : f32
    %10 = vector.broadcast %cst_11 : f32 to vector<8x128xf32>
    %cst_12 = arith.constant 0.000000e+00 : f32
    %11 = vector.broadcast %cst_12 : f32 to vector<8x128xf32>
    %cst_13 = arith.constant 0.000000e+00 : f32
    %12 = vector.broadcast %cst_13 : f32 to vector<8x128xf32>
    %c0_14 = arith.constant 0 : index
    %c0_15 = arith.constant 0 : index
    %13 = vector.load %arg12[%c0_14, %c0_15] : memref<96x512xf32, #tpu.memory_space<vmem>>, vector<8x512xf32>
    %c0_16 = arith.constant 0 : index
    %c0_17 = arith.constant 0 : index
    %14 = vector.load %arg3[%c0_16, %c0_17] : memref<128x512xf32, #tpu.memory_space<vmem>>, vector<128x512xf32>
    %cst_18 = arith.constant dense<0.000000e+00> : vector<8x512xf32>
    %15 = tpu.matmul %9, %14, %cst_18 {dimension_numbers = #tpu.dot_dimension_numbers<[1], [0], [0], [1], [0, 0, 1, 1], [], []>} : vector<8x128xf32>, vector<128x512xf32>, vector<8x512xf32> -> vector<8x512xf32>
    %16 = arith.addf %13, %15 : vector<8x512xf32>
    %17 = vector.extract_strided_slice %16 {offsets = [0, 0], sizes = [8, 256], strides = [1, 1]} : vector<8x512xf32> to vector<8x256xf32>
    %18 = arith.negf %17 : vector<8x256xf32>
    %19 = math.exp %18 : vector<8x256xf32>
    %cst_19 = arith.constant 1.000000e+00 : f32
    %20 = vector.broadcast %cst_19 : f32 to vector<8x256xf32>
    %21 = arith.addf %20, %19 : vector<8x256xf32>
    %22 = arith.divf %20, %21 : vector<8x256xf32>
    %23 = vector.extract_strided_slice %22 {offsets = [0, 0], sizes = [8, 128], strides = [1, 1]} : vector<8x256xf32> to vector<8x128xf32>
    %24 = vector.extract_strided_slice %22 {offsets = [0, 128], sizes = [8, 128], strides = [1, 1]} : vector<8x256xf32> to vector<8x128xf32>
    %25 = vector.extract_strided_slice %16 {offsets = [0, 256], sizes = [8, 128], strides = [1, 1]} : vector<8x512xf32> to vector<8x128xf32>
    %26 = math.tanh %25 : vector<8x128xf32>
    %27 = vector.extract_strided_slice %16 {offsets = [0, 384], sizes = [8, 128], strides = [1, 1]} : vector<8x512xf32> to vector<8x128xf32>
    %28 = arith.negf %27 : vector<8x128xf32>
    %29 = math.exp %28 : vector<8x128xf32>
    %cst_20 = arith.constant 1.000000e+00 : f32
    %30 = vector.broadcast %cst_20 : f32 to vector<8x128xf32>
    %31 = arith.addf %30, %29 : vector<8x128xf32>
    %32 = arith.divf %30, %31 : vector<8x128xf32>
    %33 = arith.mulf %24, %10 : vector<8x128xf32>
    %34 = arith.mulf %23, %26 : vector<8x128xf32>
    %35 = arith.addf %33, %34 : vector<8x128xf32>
    %36 = math.tanh %35 : vector<8x128xf32>
    %37 = arith.mulf %32, %36 : vector<8x128xf32>
    %38 = tpu.concatenate %37, %11 in 1 : vector<8x128xf32>, vector<8x128xf32> -> vector<8x256xf32>
    %c0_21 = arith.constant 0 : index
    %c0_22 = arith.constant 0 : index
    %39 = vector.load %arg5[%c0_21, %c0_22] : memref<256x512xf32, #tpu.memory_space<vmem>>, vector<256x512xf32>
    %cst_23 = arith.constant dense<0.000000e+00> : vector<8x512xf32>
    %40 = tpu.matmul %38, %39, %cst_23 {dimension_numbers = #tpu.dot_dimension_numbers<[1], [0], [0], [1], [0, 0, 1, 1], [], []>} : vector<8x256xf32>, vector<256x512xf32>, vector<8x512xf32> -> vector<8x512xf32>
    %41 = vector.broadcast %8 : vector<1x512xf32> to vector<8x512xf32>
    %42 = arith.addf %40, %41 : vector<8x512xf32>
    %43 = vector.extract_strided_slice %42 {offsets = [0, 0], sizes = [8, 256], strides = [1, 1]} : vector<8x512xf32> to vector<8x256xf32>
    %44 = arith.negf %43 : vector<8x256xf32>
    %45 = math.exp %44 : vector<8x256xf32>
    %cst_24 = arith.constant 1.000000e+00 : f32
    %46 = vector.broadcast %cst_24 : f32 to vector<8x256xf32>
    %47 = arith.addf %46, %45 : vector<8x256xf32>
    %48 = arith.divf %46, %47 : vector<8x256xf32>
    %49 = vector.extract_strided_slice %48 {offsets = [0, 0], sizes = [8, 128], strides = [1, 1]} : vector<8x256xf32> to vector<8x128xf32>
    %50 = vector.extract_strided_slice %48 {offsets = [0, 128], sizes = [8, 128], strides = [1, 1]} : vector<8x256xf32> to vector<8x128xf32>
    %51 = vector.extract_strided_slice %42 {offsets = [0, 256], sizes = [8, 128], strides = [1, 1]} : vector<8x512xf32> to vector<8x128xf32>
    %52 = math.tanh %51 : vector<8x128xf32>
    %53 = vector.extract_strided_slice %42 {offsets = [0, 384], sizes = [8, 128], strides = [1, 1]} : vector<8x512xf32> to vector<8x128xf32>
    %54 = arith.negf %53 : vector<8x128xf32>
    %55 = math.exp %54 : vector<8x128xf32>
    %cst_25 = arith.constant 1.000000e+00 : f32
    %56 = vector.broadcast %cst_25 : f32 to vector<8x128xf32>
    %57 = arith.addf %56, %55 : vector<8x128xf32>
    %58 = arith.divf %56, %57 : vector<8x128xf32>
    %59 = arith.mulf %50, %12 : vector<8x128xf32>
    %60 = arith.mulf %49, %52 : vector<8x128xf32>
    %61 = arith.addf %59, %60 : vector<8x128xf32>
    %62 = math.tanh %61 : vector<8x128xf32>
    %63 = arith.mulf %58, %62 : vector<8x128xf32>
    %c0_26 = arith.constant 0 : index
    %c0_27 = arith.constant 0 : index
    %64 = vector.load %arg13[%c0_26, %c0_27] : memref<96x128xf32, #tpu.memory_space<vmem>>, vector<8x128xf32>
    tpu.vector_store %arg13[%c0_26, %c0_27], %63 {strides = array<i32>} : memref<96x128xf32, #tpu.memory_space<vmem>>, vector<8x128xf32>,
    %c8 = arith.constant 8 : index
    %c0_28 = arith.constant 0 : index
    %65 = vector.load %arg12[%c8, %c0_28] : memref<96x512xf32, #tpu.memory_space<vmem>>, vector<8x512xf32>
    %c0_29 = arith.constant 0 : index
    %c0_30 = arith.constant 0 : index
    %66 = vector.load %arg3[%c0_29, %c0_30] : memref<128x512xf32, #tpu.memory_space<vmem>>, vector<128x512xf32>
    %cst_31 = arith.constant dense<0.000000e+00> : vector<8x512xf32>
    %67 = tpu.matmul %37, %66, %cst_31 {dimension_numbers = #tpu.dot_dimension_numbers<[1], [0], [0], [1], [0, 0, 1, 1], [], []>} : vector<8x128xf32>, vector<128x512xf32>, vector<8x512xf32> -> vector<8x512xf32>
    %68 = arith.addf %65, %67 : vector<8x512xf32>
    %69 = vector.extract_strided_slice %68 {offsets = [0, 0], sizes = [8, 256], strides = [1, 1]} : vector<8x512xf32> to vector<8x256xf32>
    %70 = arith.negf %69 : vector<8x256xf32>
    %71 = math.exp %70 : vector<8x256xf32>
    %cst_32 = arith.constant 1.000000e+00 : f32
    %72 = vector.broadcast %cst_32 : f32 to vector<8x256xf32>
    %73 = arith.addf %72, %71 : vector<8x256xf32>
    %74 = arith.divf %72, %73 : vector<8x256xf32>
    %75 = vector.extract_strided_slice %74 {offsets = [0, 0], sizes = [8, 128], strides = [1, 1]} : vector<8x256xf32> to vector<8x128xf32>
    %76 = vector.extract_strided_slice %74 {offsets = [0, 128], sizes = [8, 128], strides = [1, 1]} : vector<8x256xf32> to vector<8x128xf32>
    %77 = vector.extract_strided_slice %68 {offsets = [0, 256], sizes = [8, 128], strides = [1, 1]} : vector<8x512xf32> to vector<8x128xf32>
    %78 = math.tanh %77 : vector<8x128xf32>
    %79 = vector.extract_strided_slice %68 {offsets = [0, 384], sizes = [8, 128], strides = [1, 1]} : vector<8x512xf32> to vector<8x128xf32>
    %80 = arith.negf %79 : vector<8x128xf32>
    %81 = math.exp %80 : vector<8x128xf32>
    %cst_33 = arith.constant 1.000000e+00 : f32
    %82 = vector.broadcast %cst_33 : f32 to vector<8x128xf32>
    %83 = arith.addf %82, %81 : vector<8x128xf32>
    %84 = arith.divf %82, %83 : vector<8x128xf32>
    %85 = arith.mulf %76, %35 : vector<8x128xf32>
    %86 = arith.mulf %75, %78 : vector<8x128xf32>
    %87 = arith.addf %85, %86 : vector<8x128xf32>
    %88 = math.tanh %87 : vector<8x128xf32>
    %89 = arith.mulf %84, %88 : vector<8x128xf32>
    %90 = tpu.concatenate %89, %63 in 1 : vector<8x128xf32>, vector<8x128xf32> -> vector<8x256xf32>
    %c0_34 = arith.constant 0 : index
    %c0_35 = arith.constant 0 : index
    %91 = vector.load %arg5[%c0_34, %c0_35] : memref<256x512xf32, #tpu.memory_space<vmem>>, vector<256x512xf32>
    %cst_36 = arith.constant dense<0.000000e+00> : vector<8x512xf32>
    %92 = tpu.matmul %90, %91, %cst_36 {dimension_numbers = #tpu.dot_dimension_numbers<[1], [0], [0], [1], [0, 0, 1, 1], [], []>} : vector<8x256xf32>, vector<256x512xf32>, vector<8x512xf32> -> vector<8x512xf32>
    %93 = vector.broadcast %8 : vector<1x512xf32> to vector<8x512xf32>
    %94 = arith.addf %92, %93 : vector<8x512xf32>
    %95 = vector.extract_strided_slice %94 {offsets = [0, 0], sizes = [8, 256], strides = [1, 1]} : vector<8x512xf32> to vector<8x256xf32>
    %96 = arith.negf %95 : vector<8x256xf32>
    %97 = math.exp %96 : vector<8x256xf32>
    %cst_37 = arith.constant 1.000000e+00 : f32
    %98 = vector.broadcast %cst_37 : f32 to vector<8x256xf32>
    %99 = arith.addf %98, %97 : vector<8x256xf32>
    %100 = arith.divf %98, %99 : vector<8x256xf32>
    %101 = vector.extract_strided_slice %100 {offsets = [0, 0], sizes = [8, 128], strides = [1, 1]} : vector<8x256xf32> to vector<8x128xf32>
    %102 = vector.extract_strided_slice %100 {offsets = [0, 128], sizes = [8, 128], strides = [1, 1]} : vector<8x256xf32> to vector<8x128xf32>
    %103 = vector.extract_strided_slice %94 {offsets = [0, 256], sizes = [8, 128], strides = [1, 1]} : vector<8x512xf32> to vector<8x128xf32>
    %104 = math.tanh %103 : vector<8x128xf32>
    %105 = vector.extract_strided_slice %94 {offsets = [0, 384], sizes = [8, 128], strides = [1, 1]} : vector<8x512xf32> to vector<8x128xf32>
    %106 = arith.negf %105 : vector<8x128xf32>
    %107 = math.exp %106 : vector<8x128xf32>
    %cst_38 = arith.constant 1.000000e+00 : f32
    %108 = vector.broadcast %cst_38 : f32 to vector<8x128xf32>
    %109 = arith.addf %108, %107 : vector<8x128xf32>
    %110 = arith.divf %108, %109 : vector<8x128xf32>
    %111 = arith.mulf %102, %61 : vector<8x128xf32>
    %112 = arith.mulf %101, %104 : vector<8x128xf32>
    %113 = arith.addf %111, %112 : vector<8x128xf32>
    %114 = math.tanh %113 : vector<8x128xf32>
    %115 = arith.mulf %110, %114 : vector<8x128xf32>
    %c8_39 = arith.constant 8 : index
    %c0_40 = arith.constant 0 : index
    %116 = vector.load %arg13[%c8_39, %c0_40] : memref<96x128xf32, #tpu.memory_space<vmem>>, vector<8x128xf32>
    tpu.vector_store %arg13[%c8_39, %c0_40], %115 {strides = array<i32>} : memref<96x128xf32, #tpu.memory_space<vmem>>, vector<8x128xf32>,
    %c16 = arith.constant 16 : index
    %c0_41 = arith.constant 0 : index
    %117 = vector.load %arg12[%c16, %c0_41] : memref<96x512xf32, #tpu.memory_space<vmem>>, vector<8x512xf32>
    %c0_42 = arith.constant 0 : index
    %c0_43 = arith.constant 0 : index
    %118 = vector.load %arg3[%c0_42, %c0_43] : memref<128x512xf32, #tpu.memory_space<vmem>>, vector<128x512xf32>
    %cst_44 = arith.constant dense<0.000000e+00> : vector<8x512xf32>
    %119 = tpu.matmul %89, %118, %cst_44 {dimension_numbers = #tpu.dot_dimension_numbers<[1], [0], [0], [1], [0, 0, 1, 1], [], []>} : vector<8x128xf32>, vector<128x512xf32>, vector<8x512xf32> -> vector<8x512xf32>
    %120 = arith.addf %117, %119 : vector<8x512xf32>
    %121 = vector.extract_strided_slice %120 {offsets = [0, 0], sizes = [8, 256], strides = [1, 1]} : vector<8x512xf32> to vector<8x256xf32>
    %122 = arith.negf %121 : vector<8x256xf32>
    %123 = math.exp %122 : vector<8x256xf32>
    %cst_45 = arith.constant 1.000000e+00 : f32
    %124 = vector.broadcast %cst_45 : f32 to vector<8x256xf32>
    %125 = arith.addf %124, %123 : vector<8x256xf32>
    %126 = arith.divf %124, %125 : vector<8x256xf32>
    %127 = vector.extract_strided_slice %126 {offsets = [0, 0], sizes = [8, 128], strides = [1, 1]} : vector<8x256xf32> to vector<8x128xf32>
    %128 = vector.extract_strided_slice %126 {offsets = [0, 128], sizes = [8, 128], strides = [1, 1]} : vector<8x256xf32> to vector<8x128xf32>
    %129 = vector.extract_strided_slice %120 {offsets = [0, 256], sizes = [8, 128], strides = [1, 1]} : vector<8x512xf32> to vector<8x128xf32>
    %130 = math.tanh %129 : vector<8x128xf32>
    %131 = vector.extract_strided_slice %120 {offsets = [0, 384], sizes = [8, 128], strides = [1, 1]} : vector<8x512xf32> to vector<8x128xf32>
    %132 = arith.negf %131 : vector<8x128xf32>
    %133 = math.exp %132 : vector<8x128xf32>
    %cst_46 = arith.constant 1.000000e+00 : f32
    %134 = vector.broadcast %cst_46 : f32 to vector<8x128xf32>
    %135 = arith.addf %134, %133 : vector<8x128xf32>
    %136 = arith.divf %134, %135 : vector<8x128xf32>
    %137 = arith.mulf %128, %87 : vector<8x128xf32>
    %138 = arith.mulf %127, %130 : vector<8x128xf32>
    %139 = arith.addf %137, %138 : vector<8x128xf32>
    %140 = math.tanh %139 : vector<8x128xf32>
    %141 = arith.mulf %136, %140 : vector<8x128xf32>
    %142 = tpu.concatenate %141, %115 in 1 : vector<8x128xf32>, vector<8x128xf32> -> vector<8x256xf32>
    %c0_47 = arith.constant 0 : index
    %c0_48 = arith.constant 0 : index
    %143 = vector.load %arg5[%c0_47, %c0_48] : memref<256x512xf32, #tpu.memory_space<vmem>>, vector<256x512xf32>
    %cst_49 = arith.constant dense<0.000000e+00> : vector<8x512xf32>
    %144 = tpu.matmul %142, %143, %cst_49 {dimension_numbers = #tpu.dot_dimension_numbers<[1], [0], [0], [1], [0, 0, 1, 1], [], []>} : vector<8x256xf32>, vector<256x512xf32>, vector<8x512xf32> -> vector<8x512xf32>
    %145 = vector.broadcast %8 : vector<1x512xf32> to vector<8x512xf32>
    %146 = arith.addf %144, %145 : vector<8x512xf32>
    %147 = vector.extract_strided_slice %146 {offsets = [0, 0], sizes = [8, 256], strides = [1, 1]} : vector<8x512xf32> to vector<8x256xf32>
    %148 = arith.negf %147 : vector<8x256xf32>
    %149 = math.exp %148 : vector<8x256xf32>
    %cst_50 = arith.constant 1.000000e+00 : f32
    %150 = vector.broadcast %cst_50 : f32 to vector<8x256xf32>
    %151 = arith.addf %150, %149 : vector<8x256xf32>
    %152 = arith.divf %150, %151 : vector<8x256xf32>
    %153 = vector.extract_strided_slice %152 {offsets = [0, 0], sizes = [8, 128], strides = [1, 1]} : vector<8x256xf32> to vector<8x128xf32>
    %154 = vector.extract_strided_slice %152 {offsets = [0, 128], sizes = [8, 128], strides = [1, 1]} : vector<8x256xf32> to vector<8x128xf32>
    %155 = vector.extract_strided_slice %146 {offsets = [0, 256], sizes = [8, 128], strides = [1, 1]} : vector<8x512xf32> to vector<8x128xf32>
    %156 = math.tanh %155 : vector<8x128xf32>
    %157 = vector.extract_strided_slice %146 {offsets = [0, 384], sizes = [8, 128], strides = [1, 1]} : vector<8x512xf32> to vector<8x128xf32>
    %158 = arith.negf %157 : vector<8x128xf32>
    %159 = math.exp %158 : vector<8x128xf32>
    %cst_51 = arith.constant 1.000000e+00 : f32
    %160 = vector.broadcast %cst_51 : f32 to vector<8x128xf32>
    %161 = arith.addf %160, %159 : vector<8x128xf32>
    %162 = arith.divf %160, %161 : vector<8x128xf32>
    %163 = arith.mulf %154, %113 : vector<8x128xf32>
    %164 = arith.mulf %153, %156 : vector<8x128xf32>
    %165 = arith.addf %163, %164 : vector<8x128xf32>
    %166 = math.tanh %165 : vector<8x128xf32>
    %167 = arith.mulf %162, %166 : vector<8x128xf32>
    %c16_52 = arith.constant 16 : index
    %c0_53 = arith.constant 0 : index
    %168 = vector.load %arg13[%c16_52, %c0_53] : memref<96x128xf32, #tpu.memory_space<vmem>>, vector<8x128xf32>
    tpu.vector_store %arg13[%c16_52, %c0_53], %167 {strides = array<i32>} : memref<96x128xf32, #tpu.memory_space<vmem>>, vector<8x128xf32>,
    %c24 = arith.constant 24 : index
    %c0_54 = arith.constant 0 : index
    %169 = vector.load %arg12[%c24, %c0_54] : memref<96x512xf32, #tpu.memory_space<vmem>>, vector<8x512xf32>
    %c0_55 = arith.constant 0 : index
    %c0_56 = arith.constant 0 : index
    %170 = vector.load %arg3[%c0_55, %c0_56] : memref<128x512xf32, #tpu.memory_space<vmem>>, vector<128x512xf32>
    %cst_57 = arith.constant dense<0.000000e+00> : vector<8x512xf32>
    %171 = tpu.matmul %141, %170, %cst_57 {dimension_numbers = #tpu.dot_dimension_numbers<[1], [0], [0], [1], [0, 0, 1, 1], [], []>} : vector<8x128xf32>, vector<128x512xf32>, vector<8x512xf32> -> vector<8x512xf32>
    %172 = arith.addf %169, %171 : vector<8x512xf32>
    %173 = vector.extract_strided_slice %172 {offsets = [0, 0], sizes = [8, 256], strides = [1, 1]} : vector<8x512xf32> to vector<8x256xf32>
    %174 = arith.negf %173 : vector<8x256xf32>
    %175 = math.exp %174 : vector<8x256xf32>
    %cst_58 = arith.constant 1.000000e+00 : f32
    %176 = vector.broadcast %cst_58 : f32 to vector<8x256xf32>
    %177 = arith.addf %176, %175 : vector<8x256xf32>
    %178 = arith.divf %176, %177 : vector<8x256xf32>
    %179 = vector.extract_strided_slice %178 {offsets = [0, 0], sizes = [8, 128], strides = [1, 1]} : vector<8x256xf32> to vector<8x128xf32>
    %180 = vector.extract_strided_slice %178 {offsets = [0, 128], sizes = [8, 128], strides = [1, 1]} : vector<8x256xf32> to vector<8x128xf32>
    %181 = vector.extract_strided_slice %172 {offsets = [0, 256], sizes = [8, 128], strides = [1, 1]} : vector<8x512xf32> to vector<8x128xf32>
    %182 = math.tanh %181 : vector<8x128xf32>
    %183 = vector.extract_strided_slice %172 {offsets = [0, 384], sizes = [8, 128], strides = [1, 1]} : vector<8x512xf32> to vector<8x128xf32>
    %184 = arith.negf %183 : vector<8x128xf32>
    %185 = math.exp %184 : vector<8x128xf32>
    %cst_59 = arith.constant 1.000000e+00 : f32
    %186 = vector.broadcast %cst_59 : f32 to vector<8x128xf32>
    %187 = arith.addf %186, %185 : vector<8x128xf32>
    %188 = arith.divf %186, %187 : vector<8x128xf32>
    %189 = arith.mulf %180, %139 : vector<8x128xf32>
    %190 = arith.mulf %179, %182 : vector<8x128xf32>
    %191 = arith.addf %189, %190 : vector<8x128xf32>
    %192 = math.tanh %191 : vector<8x128xf32>
    %193 = arith.mulf %188, %192 : vector<8x128xf32>
    %194 = tpu.concatenate %193, %167 in 1 : vector<8x128xf32>, vector<8x128xf32> -> vector<8x256xf32>
    %c0_60 = arith.constant 0 : index
    %c0_61 = arith.constant 0 : index
    %195 = vector.load %arg5[%c0_60, %c0_61] : memref<256x512xf32, #tpu.memory_space<vmem>>, vector<256x512xf32>
    %cst_62 = arith.constant dense<0.000000e+00> : vector<8x512xf32>
    %196 = tpu.matmul %194, %195, %cst_62 {dimension_numbers = #tpu.dot_dimension_numbers<[1], [0], [0], [1], [0, 0, 1, 1], [], []>} : vector<8x256xf32>, vector<256x512xf32>, vector<8x512xf32> -> vector<8x512xf32>
    %197 = vector.broadcast %8 : vector<1x512xf32> to vector<8x512xf32>
    %198 = arith.addf %196, %197 : vector<8x512xf32>
    %199 = vector.extract_strided_slice %198 {offsets = [0, 0], sizes = [8, 256], strides = [1, 1]} : vector<8x512xf32> to vector<8x256xf32>
    %200 = arith.negf %199 : vector<8x256xf32>
    %201 = math.exp %200 : vector<8x256xf32>
    %cst_63 = arith.constant 1.000000e+00 : f32
    %202 = vector.broadcast %cst_63 : f32 to vector<8x256xf32>
    %203 = arith.addf %202, %201 : vector<8x256xf32>
    %204 = arith.divf %202, %203 : vector<8x256xf32>
    %205 = vector.extract_strided_slice %204 {offsets = [0, 0], sizes = [8, 128], strides = [1, 1]} : vector<8x256xf32> to vector<8x128xf32>
    %206 = vector.extract_strided_slice %204 {offsets = [0, 128], sizes = [8, 128], strides = [1, 1]} : vector<8x256xf32> to vector<8x128xf32>
    %207 = vector.extract_strided_slice %198 {offsets = [0, 256], sizes = [8, 128], strides = [1, 1]} : vector<8x512xf32> to vector<8x128xf32>
    %208 = math.tanh %207 : vector<8x128xf32>
    %209 = vector.extract_strided_slice %198 {offsets = [0, 384], sizes = [8, 128], strides = [1, 1]} : vector<8x512xf32> to vector<8x128xf32>
    %210 = arith.negf %209 : vector<8x128xf32>
    %211 = math.exp %210 : vector<8x128xf32>
    %cst_64 = arith.constant 1.000000e+00 : f32
    %212 = vector.broadcast %cst_64 : f32 to vector<8x128xf32>
    %213 = arith.addf %212, %211 : vector<8x128xf32>
    %214 = arith.divf %212, %213 : vector<8x128xf32>
    %215 = arith.mulf %206, %165 : vector<8x128xf32>
    %216 = arith.mulf %205, %208 : vector<8x128xf32>
    %217 = arith.addf %215, %216 : vector<8x128xf32>
    %218 = math.tanh %217 : vector<8x128xf32>
    %219 = arith.mulf %214, %218 : vector<8x128xf32>
    %c24_65 = arith.constant 24 : index
    %c0_66 = arith.constant 0 : index
    %220 = vector.load %arg13[%c24_65, %c0_66] : memref<96x128xf32, #tpu.memory_space<vmem>>, vector<8x128xf32>
    tpu.vector_store %arg13[%c24_65, %c0_66], %219 {strides = array<i32>} : memref<96x128xf32, #tpu.memory_space<vmem>>, vector<8x128xf32>,
    %c32 = arith.constant 32 : index
    %c0_67 = arith.constant 0 : index
    %221 = vector.load %arg12[%c32, %c0_67] : memref<96x512xf32, #tpu.memory_space<vmem>>, vector<8x512xf32>
    %c0_68 = arith.constant 0 : index
    %c0_69 = arith.constant 0 : index
    %222 = vector.load %arg3[%c0_68, %c0_69] : memref<128x512xf32, #tpu.memory_space<vmem>>, vector<128x512xf32>
    %cst_70 = arith.constant dense<0.000000e+00> : vector<8x512xf32>
    %223 = tpu.matmul %193, %222, %cst_70 {dimension_numbers = #tpu.dot_dimension_numbers<[1], [0], [0], [1], [0, 0, 1, 1], [], []>} : vector<8x128xf32>, vector<128x512xf32>, vector<8x512xf32> -> vector<8x512xf32>
    %224 = arith.addf %221, %223 : vector<8x512xf32>
    %225 = vector.extract_strided_slice %224 {offsets = [0, 0], sizes = [8, 256], strides = [1, 1]} : vector<8x512xf32> to vector<8x256xf32>
    %226 = arith.negf %225 : vector<8x256xf32>
    %227 = math.exp %226 : vector<8x256xf32>
    %cst_71 = arith.constant 1.000000e+00 : f32
    %228 = vector.broadcast %cst_71 : f32 to vector<8x256xf32>
    %229 = arith.addf %228, %227 : vector<8x256xf32>
    %230 = arith.divf %228, %229 : vector<8x256xf32>
    %231 = vector.extract_strided_slice %230 {offsets = [0, 0], sizes = [8, 128], strides = [1, 1]} : vector<8x256xf32> to vector<8x128xf32>
    %232 = vector.extract_strided_slice %230 {offsets = [0, 128], sizes = [8, 128], strides = [1, 1]} : vector<8x256xf32> to vector<8x128xf32>
    %233 = vector.extract_strided_slice %224 {offsets = [0, 256], sizes = [8, 128], strides = [1, 1]} : vector<8x512xf32> to vector<8x128xf32>
    %234 = math.tanh %233 : vector<8x128xf32>
    %235 = vector.extract_strided_slice %224 {offsets = [0, 384], sizes = [8, 128], strides = [1, 1]} : vector<8x512xf32> to vector<8x128xf32>
    %236 = arith.negf %235 : vector<8x128xf32>
    %237 = math.exp %236 : vector<8x128xf32>
    %cst_72 = arith.constant 1.000000e+00 : f32
    %238 = vector.broadcast %cst_72 : f32 to vector<8x128xf32>
    %239 = arith.addf %238, %237 : vector<8x128xf32>
    %240 = arith.divf %238, %239 : vector<8x128xf32>
    %241 = arith.mulf %232, %191 : vector<8x128xf32>
    %242 = arith.mulf %231, %234 : vector<8x128xf32>
    %243 = arith.addf %241, %242 : vector<8x128xf32>
    %244 = math.tanh %243 : vector<8x128xf32>
    %245 = arith.mulf %240, %244 : vector<8x128xf32>
    %246 = tpu.concatenate %245, %219 in 1 : vector<8x128xf32>, vector<8x128xf32> -> vector<8x256xf32>
    %c0_73 = arith.constant 0 : index
    %c0_74 = arith.constant 0 : index
    %247 = vector.load %arg5[%c0_73, %c0_74] : memref<256x512xf32, #tpu.memory_space<vmem>>, vector<256x512xf32>
    %cst_75 = arith.constant dense<0.000000e+00> : vector<8x512xf32>
    %248 = tpu.matmul %246, %247, %cst_75 {dimension_numbers = #tpu.dot_dimension_numbers<[1], [0], [0], [1], [0, 0, 1, 1], [], []>} : vector<8x256xf32>, vector<256x512xf32>, vector<8x512xf32> -> vector<8x512xf32>
    %249 = vector.broadcast %8 : vector<1x512xf32> to vector<8x512xf32>
    %250 = arith.addf %248, %249 : vector<8x512xf32>
    %251 = vector.extract_strided_slice %250 {offsets = [0, 0], sizes = [8, 256], strides = [1, 1]} : vector<8x512xf32> to vector<8x256xf32>
    %252 = arith.negf %251 : vector<8x256xf32>
    %253 = math.exp %252 : vector<8x256xf32>
    %cst_76 = arith.constant 1.000000e+00 : f32
    %254 = vector.broadcast %cst_76 : f32 to vector<8x256xf32>
    %255 = arith.addf %254, %253 : vector<8x256xf32>
    %256 = arith.divf %254, %255 : vector<8x256xf32>
    %257 = vector.extract_strided_slice %256 {offsets = [0, 0], sizes = [8, 128], strides = [1, 1]} : vector<8x256xf32> to vector<8x128xf32>
    %258 = vector.extract_strided_slice %256 {offsets = [0, 128], sizes = [8, 128], strides = [1, 1]} : vector<8x256xf32> to vector<8x128xf32>
    %259 = vector.extract_strided_slice %250 {offsets = [0, 256], sizes = [8, 128], strides = [1, 1]} : vector<8x512xf32> to vector<8x128xf32>
    %260 = math.tanh %259 : vector<8x128xf32>
    %261 = vector.extract_strided_slice %250 {offsets = [0, 384], sizes = [8, 128], strides = [1, 1]} : vector<8x512xf32> to vector<8x128xf32>
    %262 = arith.negf %261 : vector<8x128xf32>
    %263 = math.exp %262 : vector<8x128xf32>
    %cst_77 = arith.constant 1.000000e+00 : f32
    %264 = vector.broadcast %cst_77 : f32 to vector<8x128xf32>
    %265 = arith.addf %264, %263 : vector<8x128xf32>
    %266 = arith.divf %264, %265 : vector<8x128xf32>
    %267 = arith.mulf %258, %217 : vector<8x128xf32>
    %268 = arith.mulf %257, %260 : vector<8x128xf32>
    %269 = arith.addf %267, %268 : vector<8x128xf32>
    %270 = math.tanh %269 : vector<8x128xf32>
    %271 = arith.mulf %266, %270 : vector<8x128xf32>
    %c32_78 = arith.constant 32 : index
    %c0_79 = arith.constant 0 : index
    %272 = vector.load %arg13[%c32_78, %c0_79] : memref<96x128xf32, #tpu.memory_space<vmem>>, vector<8x128xf32>
    tpu.vector_store %arg13[%c32_78, %c0_79], %271 {strides = array<i32>} : memref<96x128xf32, #tpu.memory_space<vmem>>, vector<8x128xf32>,
    %c40 = arith.constant 40 : index
    %c0_80 = arith.constant 0 : index
    %273 = vector.load %arg12[%c40, %c0_80] : memref<96x512xf32, #tpu.memory_space<vmem>>, vector<8x512xf32>
    %c0_81 = arith.constant 0 : index
    %c0_82 = arith.constant 0 : index
    %274 = vector.load %arg3[%c0_81, %c0_82] : memref<128x512xf32, #tpu.memory_space<vmem>>, vector<128x512xf32>
    %cst_83 = arith.constant dense<0.000000e+00> : vector<8x512xf32>
    %275 = tpu.matmul %245, %274, %cst_83 {dimension_numbers = #tpu.dot_dimension_numbers<[1], [0], [0], [1], [0, 0, 1, 1], [], []>} : vector<8x128xf32>, vector<128x512xf32>, vector<8x512xf32> -> vector<8x512xf32>
    %276 = arith.addf %273, %275 : vector<8x512xf32>
    %277 = vector.extract_strided_slice %276 {offsets = [0, 0], sizes = [8, 256], strides = [1, 1]} : vector<8x512xf32> to vector<8x256xf32>
    %278 = arith.negf %277 : vector<8x256xf32>
    %279 = math.exp %278 : vector<8x256xf32>
    %cst_84 = arith.constant 1.000000e+00 : f32
    %280 = vector.broadcast %cst_84 : f32 to vector<8x256xf32>
    %281 = arith.addf %280, %279 : vector<8x256xf32>
    %282 = arith.divf %280, %281 : vector<8x256xf32>
    %283 = vector.extract_strided_slice %282 {offsets = [0, 0], sizes = [8, 128], strides = [1, 1]} : vector<8x256xf32> to vector<8x128xf32>
    %284 = vector.extract_strided_slice %282 {offsets = [0, 128], sizes = [8, 128], strides = [1, 1]} : vector<8x256xf32> to vector<8x128xf32>
    %285 = vector.extract_strided_slice %276 {offsets = [0, 256], sizes = [8, 128], strides = [1, 1]} : vector<8x512xf32> to vector<8x128xf32>
    %286 = math.tanh %285 : vector<8x128xf32>
    %287 = vector.extract_strided_slice %276 {offsets = [0, 384], sizes = [8, 128], strides = [1, 1]} : vector<8x512xf32> to vector<8x128xf32>
    %288 = arith.negf %287 : vector<8x128xf32>
    %289 = math.exp %288 : vector<8x128xf32>
    %cst_85 = arith.constant 1.000000e+00 : f32
    %290 = vector.broadcast %cst_85 : f32 to vector<8x128xf32>
    %291 = arith.addf %290, %289 : vector<8x128xf32>
    %292 = arith.divf %290, %291 : vector<8x128xf32>
    %293 = arith.mulf %284, %243 : vector<8x128xf32>
    %294 = arith.mulf %283, %286 : vector<8x128xf32>
    %295 = arith.addf %293, %294 : vector<8x128xf32>
    %296 = math.tanh %295 : vector<8x128xf32>
    %297 = arith.mulf %292, %296 : vector<8x128xf32>
    %298 = tpu.concatenate %297, %271 in 1 : vector<8x128xf32>, vector<8x128xf32> -> vector<8x256xf32>
    %c0_86 = arith.constant 0 : index
    %c0_87 = arith.constant 0 : index
    %299 = vector.load %arg5[%c0_86, %c0_87] : memref<256x512xf32, #tpu.memory_space<vmem>>, vector<256x512xf32>
    %cst_88 = arith.constant dense<0.000000e+00> : vector<8x512xf32>
    %300 = tpu.matmul %298, %299, %cst_88 {dimension_numbers = #tpu.dot_dimension_numbers<[1], [0], [0], [1], [0, 0, 1, 1], [], []>} : vector<8x256xf32>, vector<256x512xf32>, vector<8x512xf32> -> vector<8x512xf32>
    %301 = vector.broadcast %8 : vector<1x512xf32> to vector<8x512xf32>
    %302 = arith.addf %300, %301 : vector<8x512xf32>
    %303 = vector.extract_strided_slice %302 {offsets = [0, 0], sizes = [8, 256], strides = [1, 1]} : vector<8x512xf32> to vector<8x256xf32>
    %304 = arith.negf %303 : vector<8x256xf32>
    %305 = math.exp %304 : vector<8x256xf32>
    %cst_89 = arith.constant 1.000000e+00 : f32
    %306 = vector.broadcast %cst_89 : f32 to vector<8x256xf32>
    %307 = arith.addf %306, %305 : vector<8x256xf32>
    %308 = arith.divf %306, %307 : vector<8x256xf32>
    %309 = vector.extract_strided_slice %308 {offsets = [0, 0], sizes = [8, 128], strides = [1, 1]} : vector<8x256xf32> to vector<8x128xf32>
    %310 = vector.extract_strided_slice %308 {offsets = [0, 128], sizes = [8, 128], strides = [1, 1]} : vector<8x256xf32> to vector<8x128xf32>
    %311 = vector.extract_strided_slice %302 {offsets = [0, 256], sizes = [8, 128], strides = [1, 1]} : vector<8x512xf32> to vector<8x128xf32>
    %312 = math.tanh %311 : vector<8x128xf32>
    %313 = vector.extract_strided_slice %302 {offsets = [0, 384], sizes = [8, 128], strides = [1, 1]} : vector<8x512xf32> to vector<8x128xf32>
    %314 = arith.negf %313 : vector<8x128xf32>
    %315 = math.exp %314 : vector<8x128xf32>
    %cst_90 = arith.constant 1.000000e+00 : f32
    %316 = vector.broadcast %cst_90 : f32 to vector<8x128xf32>
    %317 = arith.addf %316, %315 : vector<8x128xf32>
    %318 = arith.divf %316, %317 : vector<8x128xf32>
    %319 = arith.mulf %310, %269 : vector<8x128xf32>
    %320 = arith.mulf %309, %312 : vector<8x128xf32>
    %321 = arith.addf %319, %320 : vector<8x128xf32>
    %322 = math.tanh %321 : vector<8x128xf32>
    %323 = arith.mulf %318, %322 : vector<8x128xf32>
    %c40_91 = arith.constant 40 : index
    %c0_92 = arith.constant 0 : index
    %324 = vector.load %arg13[%c40_91, %c0_92] : memref<96x128xf32, #tpu.memory_space<vmem>>, vector<8x128xf32>
    tpu.vector_store %arg13[%c40_91, %c0_92], %323 {strides = array<i32>} : memref<96x128xf32, #tpu.memory_space<vmem>>, vector<8x128xf32>,
    %c48 = arith.constant 48 : index
    %c0_93 = arith.constant 0 : index
    %325 = vector.load %arg12[%c48, %c0_93] : memref<96x512xf32, #tpu.memory_space<vmem>>, vector<8x512xf32>
    %c0_94 = arith.constant 0 : index
    %c0_95 = arith.constant 0 : index
    %326 = vector.load %arg3[%c0_94, %c0_95] : memref<128x512xf32, #tpu.memory_space<vmem>>, vector<128x512xf32>
    %cst_96 = arith.constant dense<0.000000e+00> : vector<8x512xf32>
    %327 = tpu.matmul %297, %326, %cst_96 {dimension_numbers = #tpu.dot_dimension_numbers<[1], [0], [0], [1], [0, 0, 1, 1], [], []>} : vector<8x128xf32>, vector<128x512xf32>, vector<8x512xf32> -> vector<8x512xf32>
    %328 = arith.addf %325, %327 : vector<8x512xf32>
    %329 = vector.extract_strided_slice %328 {offsets = [0, 0], sizes = [8, 256], strides = [1, 1]} : vector<8x512xf32> to vector<8x256xf32>
    %330 = arith.negf %329 : vector<8x256xf32>
    %331 = math.exp %330 : vector<8x256xf32>
    %cst_97 = arith.constant 1.000000e+00 : f32
    %332 = vector.broadcast %cst_97 : f32 to vector<8x256xf32>
    %333 = arith.addf %332, %331 : vector<8x256xf32>
    %334 = arith.divf %332, %333 : vector<8x256xf32>
    %335 = vector.extract_strided_slice %334 {offsets = [0, 0], sizes = [8, 128], strides = [1, 1]} : vector<8x256xf32> to vector<8x128xf32>
    %336 = vector.extract_strided_slice %334 {offsets = [0, 128], sizes = [8, 128], strides = [1, 1]} : vector<8x256xf32> to vector<8x128xf32>
    %337 = vector.extract_strided_slice %328 {offsets = [0, 256], sizes = [8, 128], strides = [1, 1]} : vector<8x512xf32> to vector<8x128xf32>
    %338 = math.tanh %337 : vector<8x128xf32>
    %339 = vector.extract_strided_slice %328 {offsets = [0, 384], sizes = [8, 128], strides = [1, 1]} : vector<8x512xf32> to vector<8x128xf32>
    %340 = arith.negf %339 : vector<8x128xf32>
    %341 = math.exp %340 : vector<8x128xf32>
    %cst_98 = arith.constant 1.000000e+00 : f32
    %342 = vector.broadcast %cst_98 : f32 to vector<8x128xf32>
    %343 = arith.addf %342, %341 : vector<8x128xf32>
    %344 = arith.divf %342, %343 : vector<8x128xf32>
    %345 = arith.mulf %336, %295 : vector<8x128xf32>
    %346 = arith.mulf %335, %338 : vector<8x128xf32>
    %347 = arith.addf %345, %346 : vector<8x128xf32>
    %348 = math.tanh %347 : vector<8x128xf32>
    %349 = arith.mulf %344, %348 : vector<8x128xf32>
    %350 = tpu.concatenate %349, %323 in 1 : vector<8x128xf32>, vector<8x128xf32> -> vector<8x256xf32>
    %c0_99 = arith.constant 0 : index
    %c0_100 = arith.constant 0 : index
    %351 = vector.load %arg5[%c0_99, %c0_100] : memref<256x512xf32, #tpu.memory_space<vmem>>, vector<256x512xf32>
    %cst_101 = arith.constant dense<0.000000e+00> : vector<8x512xf32>
    %352 = tpu.matmul %350, %351, %cst_101 {dimension_numbers = #tpu.dot_dimension_numbers<[1], [0], [0], [1], [0, 0, 1, 1], [], []>} : vector<8x256xf32>, vector<256x512xf32>, vector<8x512xf32> -> vector<8x512xf32>
    %353 = vector.broadcast %8 : vector<1x512xf32> to vector<8x512xf32>
    %354 = arith.addf %352, %353 : vector<8x512xf32>
    %355 = vector.extract_strided_slice %354 {offsets = [0, 0], sizes = [8, 256], strides = [1, 1]} : vector<8x512xf32> to vector<8x256xf32>
    %356 = arith.negf %355 : vector<8x256xf32>
    %357 = math.exp %356 : vector<8x256xf32>
    %cst_102 = arith.constant 1.000000e+00 : f32
    %358 = vector.broadcast %cst_102 : f32 to vector<8x256xf32>
    %359 = arith.addf %358, %357 : vector<8x256xf32>
    %360 = arith.divf %358, %359 : vector<8x256xf32>
    %361 = vector.extract_strided_slice %360 {offsets = [0, 0], sizes = [8, 128], strides = [1, 1]} : vector<8x256xf32> to vector<8x128xf32>
    %362 = vector.extract_strided_slice %360 {offsets = [0, 128], sizes = [8, 128], strides = [1, 1]} : vector<8x256xf32> to vector<8x128xf32>
    %363 = vector.extract_strided_slice %354 {offsets = [0, 256], sizes = [8, 128], strides = [1, 1]} : vector<8x512xf32> to vector<8x128xf32>
    %364 = math.tanh %363 : vector<8x128xf32>
    %365 = vector.extract_strided_slice %354 {offsets = [0, 384], sizes = [8, 128], strides = [1, 1]} : vector<8x512xf32> to vector<8x128xf32>
    %366 = arith.negf %365 : vector<8x128xf32>
    %367 = math.exp %366 : vector<8x128xf32>
    %cst_103 = arith.constant 1.000000e+00 : f32
    %368 = vector.broadcast %cst_103 : f32 to vector<8x128xf32>
    %369 = arith.addf %368, %367 : vector<8x128xf32>
    %370 = arith.divf %368, %369 : vector<8x128xf32>
    %371 = arith.mulf %362, %321 : vector<8x128xf32>
    %372 = arith.mulf %361, %364 : vector<8x128xf32>
    %373 = arith.addf %371, %372 : vector<8x128xf32>
    %374 = math.tanh %373 : vector<8x128xf32>
    %375 = arith.mulf %370, %374 : vector<8x128xf32>
    %c48_104 = arith.constant 48 : index
    %c0_105 = arith.constant 0 : index
    %376 = vector.load %arg13[%c48_104, %c0_105] : memref<96x128xf32, #tpu.memory_space<vmem>>, vector<8x128xf32>
    tpu.vector_store %arg13[%c48_104, %c0_105], %375 {strides = array<i32>} : memref<96x128xf32, #tpu.memory_space<vmem>>, vector<8x128xf32>,
    %c56 = arith.constant 56 : index
    %c0_106 = arith.constant 0 : index
    %377 = vector.load %arg12[%c56, %c0_106] : memref<96x512xf32, #tpu.memory_space<vmem>>, vector<8x512xf32>
    %c0_107 = arith.constant 0 : index
    %c0_108 = arith.constant 0 : index
    %378 = vector.load %arg3[%c0_107, %c0_108] : memref<128x512xf32, #tpu.memory_space<vmem>>, vector<128x512xf32>
    %cst_109 = arith.constant dense<0.000000e+00> : vector<8x512xf32>
    %379 = tpu.matmul %349, %378, %cst_109 {dimension_numbers = #tpu.dot_dimension_numbers<[1], [0], [0], [1], [0, 0, 1, 1], [], []>} : vector<8x128xf32>, vector<128x512xf32>, vector<8x512xf32> -> vector<8x512xf32>
    %380 = arith.addf %377, %379 : vector<8x512xf32>
    %381 = vector.extract_strided_slice %380 {offsets = [0, 0], sizes = [8, 256], strides = [1, 1]} : vector<8x512xf32> to vector<8x256xf32>
    %382 = arith.negf %381 : vector<8x256xf32>
    %383 = math.exp %382 : vector<8x256xf32>
    %cst_110 = arith.constant 1.000000e+00 : f32
    %384 = vector.broadcast %cst_110 : f32 to vector<8x256xf32>
    %385 = arith.addf %384, %383 : vector<8x256xf32>
    %386 = arith.divf %384, %385 : vector<8x256xf32>
    %387 = vector.extract_strided_slice %386 {offsets = [0, 0], sizes = [8, 128], strides = [1, 1]} : vector<8x256xf32> to vector<8x128xf32>
    %388 = vector.extract_strided_slice %386 {offsets = [0, 128], sizes = [8, 128], strides = [1, 1]} : vector<8x256xf32> to vector<8x128xf32>
    %389 = vector.extract_strided_slice %380 {offsets = [0, 256], sizes = [8, 128], strides = [1, 1]} : vector<8x512xf32> to vector<8x128xf32>
    %390 = math.tanh %389 : vector<8x128xf32>
    %391 = vector.extract_strided_slice %380 {offsets = [0, 384], sizes = [8, 128], strides = [1, 1]} : vector<8x512xf32> to vector<8x128xf32>
    %392 = arith.negf %391 : vector<8x128xf32>
    %393 = math.exp %392 : vector<8x128xf32>
    %cst_111 = arith.constant 1.000000e+00 : f32
    %394 = vector.broadcast %cst_111 : f32 to vector<8x128xf32>
    %395 = arith.addf %394, %393 : vector<8x128xf32>
    %396 = arith.divf %394, %395 : vector<8x128xf32>
    %397 = arith.mulf %388, %347 : vector<8x128xf32>
    %398 = arith.mulf %387, %390 : vector<8x128xf32>
    %399 = arith.addf %397, %398 : vector<8x128xf32>
    %400 = math.tanh %399 : vector<8x128xf32>
    %401 = arith.mulf %396, %400 : vector<8x128xf32>
    %402 = tpu.concatenate %401, %375 in 1 : vector<8x128xf32>, vector<8x128xf32> -> vector<8x256xf32>
    %c0_112 = arith.constant 0 : index
    %c0_113 = arith.constant 0 : index
    %403 = vector.load %arg5[%c0_112, %c0_113] : memref<256x512xf32, #tpu.memory_space<vmem>>, vector<256x512xf32>
    %cst_114 = arith.constant dense<0.000000e+00> : vector<8x512xf32>
    %404 = tpu.matmul %402, %403, %cst_114 {dimension_numbers = #tpu.dot_dimension_numbers<[1], [0], [0], [1], [0, 0, 1, 1], [], []>} : vector<8x256xf32>, vector<256x512xf32>, vector<8x512xf32> -> vector<8x512xf32>
    %405 = vector.broadcast %8 : vector<1x512xf32> to vector<8x512xf32>
    %406 = arith.addf %404, %405 : vector<8x512xf32>
    %407 = vector.extract_strided_slice %406 {offsets = [0, 0], sizes = [8, 256], strides = [1, 1]} : vector<8x512xf32> to vector<8x256xf32>
    %408 = arith.negf %407 : vector<8x256xf32>
    %409 = math.exp %408 : vector<8x256xf32>
    %cst_115 = arith.constant 1.000000e+00 : f32
    %410 = vector.broadcast %cst_115 : f32 to vector<8x256xf32>
    %411 = arith.addf %410, %409 : vector<8x256xf32>
    %412 = arith.divf %410, %411 : vector<8x256xf32>
    %413 = vector.extract_strided_slice %412 {offsets = [0, 0], sizes = [8, 128], strides = [1, 1]} : vector<8x256xf32> to vector<8x128xf32>
    %414 = vector.extract_strided_slice %412 {offsets = [0, 128], sizes = [8, 128], strides = [1, 1]} : vector<8x256xf32> to vector<8x128xf32>
    %415 = vector.extract_strided_slice %406 {offsets = [0, 256], sizes = [8, 128], strides = [1, 1]} : vector<8x512xf32> to vector<8x128xf32>
    %416 = math.tanh %415 : vector<8x128xf32>
    %417 = vector.extract_strided_slice %406 {offsets = [0, 384], sizes = [8, 128], strides = [1, 1]} : vector<8x512xf32> to vector<8x128xf32>
    %418 = arith.negf %417 : vector<8x128xf32>
    %419 = math.exp %418 : vector<8x128xf32>
    %cst_116 = arith.constant 1.000000e+00 : f32
    %420 = vector.broadcast %cst_116 : f32 to vector<8x128xf32>
    %421 = arith.addf %420, %419 : vector<8x128xf32>
    %422 = arith.divf %420, %421 : vector<8x128xf32>
    %423 = arith.mulf %414, %373 : vector<8x128xf32>
    %424 = arith.mulf %413, %416 : vector<8x128xf32>
    %425 = arith.addf %423, %424 : vector<8x128xf32>
    %426 = math.tanh %425 : vector<8x128xf32>
    %427 = arith.mulf %422, %426 : vector<8x128xf32>
    %c56_117 = arith.constant 56 : index
    %c0_118 = arith.constant 0 : index
    %428 = vector.load %arg13[%c56_117, %c0_118] : memref<96x128xf32, #tpu.memory_space<vmem>>, vector<8x128xf32>
    tpu.vector_store %arg13[%c56_117, %c0_118], %427 {strides = array<i32>} : memref<96x128xf32, #tpu.memory_space<vmem>>, vector<8x128xf32>,
    %c64 = arith.constant 64 : index
    %c0_119 = arith.constant 0 : index
    %429 = vector.load %arg12[%c64, %c0_119] : memref<96x512xf32, #tpu.memory_space<vmem>>, vector<8x512xf32>
    %c0_120 = arith.constant 0 : index
    %c0_121 = arith.constant 0 : index
    %430 = vector.load %arg3[%c0_120, %c0_121] : memref<128x512xf32, #tpu.memory_space<vmem>>, vector<128x512xf32>
    %cst_122 = arith.constant dense<0.000000e+00> : vector<8x512xf32>
    %431 = tpu.matmul %401, %430, %cst_122 {dimension_numbers = #tpu.dot_dimension_numbers<[1], [0], [0], [1], [0, 0, 1, 1], [], []>} : vector<8x128xf32>, vector<128x512xf32>, vector<8x512xf32> -> vector<8x512xf32>
    %432 = arith.addf %429, %431 : vector<8x512xf32>
    %433 = vector.extract_strided_slice %432 {offsets = [0, 0], sizes = [8, 256], strides = [1, 1]} : vector<8x512xf32> to vector<8x256xf32>
    %434 = arith.negf %433 : vector<8x256xf32>
    %435 = math.exp %434 : vector<8x256xf32>
    %cst_123 = arith.constant 1.000000e+00 : f32
    %436 = vector.broadcast %cst_123 : f32 to vector<8x256xf32>
    %437 = arith.addf %436, %435 : vector<8x256xf32>
    %438 = arith.divf %436, %437 : vector<8x256xf32>
    %439 = vector.extract_strided_slice %438 {offsets = [0, 0], sizes = [8, 128], strides = [1, 1]} : vector<8x256xf32> to vector<8x128xf32>
    %440 = vector.extract_strided_slice %438 {offsets = [0, 128], sizes = [8, 128], strides = [1, 1]} : vector<8x256xf32> to vector<8x128xf32>
    %441 = vector.extract_strided_slice %432 {offsets = [0, 256], sizes = [8, 128], strides = [1, 1]} : vector<8x512xf32> to vector<8x128xf32>
    %442 = math.tanh %441 : vector<8x128xf32>
    %443 = vector.extract_strided_slice %432 {offsets = [0, 384], sizes = [8, 128], strides = [1, 1]} : vector<8x512xf32> to vector<8x128xf32>
    %444 = arith.negf %443 : vector<8x128xf32>
    %445 = math.exp %444 : vector<8x128xf32>
    %cst_124 = arith.constant 1.000000e+00 : f32
    %446 = vector.broadcast %cst_124 : f32 to vector<8x128xf32>
    %447 = arith.addf %446, %445 : vector<8x128xf32>
    %448 = arith.divf %446, %447 : vector<8x128xf32>
    %449 = arith.mulf %440, %399 : vector<8x128xf32>
    %450 = arith.mulf %439, %442 : vector<8x128xf32>
    %451 = arith.addf %449, %450 : vector<8x128xf32>
    %452 = math.tanh %451 : vector<8x128xf32>
    %453 = arith.mulf %448, %452 : vector<8x128xf32>
    %454 = tpu.concatenate %453, %427 in 1 : vector<8x128xf32>, vector<8x128xf32> -> vector<8x256xf32>
    %c0_125 = arith.constant 0 : index
    %c0_126 = arith.constant 0 : index
    %455 = vector.load %arg5[%c0_125, %c0_126] : memref<256x512xf32, #tpu.memory_space<vmem>>, vector<256x512xf32>
    %cst_127 = arith.constant dense<0.000000e+00> : vector<8x512xf32>
    %456 = tpu.matmul %454, %455, %cst_127 {dimension_numbers = #tpu.dot_dimension_numbers<[1], [0], [0], [1], [0, 0, 1, 1], [], []>} : vector<8x256xf32>, vector<256x512xf32>, vector<8x512xf32> -> vector<8x512xf32>
    %457 = vector.broadcast %8 : vector<1x512xf32> to vector<8x512xf32>
    %458 = arith.addf %456, %457 : vector<8x512xf32>
    %459 = vector.extract_strided_slice %458 {offsets = [0, 0], sizes = [8, 256], strides = [1, 1]} : vector<8x512xf32> to vector<8x256xf32>
    %460 = arith.negf %459 : vector<8x256xf32>
    %461 = math.exp %460 : vector<8x256xf32>
    %cst_128 = arith.constant 1.000000e+00 : f32
    %462 = vector.broadcast %cst_128 : f32 to vector<8x256xf32>
    %463 = arith.addf %462, %461 : vector<8x256xf32>
    %464 = arith.divf %462, %463 : vector<8x256xf32>
    %465 = vector.extract_strided_slice %464 {offsets = [0, 0], sizes = [8, 128], strides = [1, 1]} : vector<8x256xf32> to vector<8x128xf32>
    %466 = vector.extract_strided_slice %464 {offsets = [0, 128], sizes = [8, 128], strides = [1, 1]} : vector<8x256xf32> to vector<8x128xf32>
    %467 = vector.extract_strided_slice %458 {offsets = [0, 256], sizes = [8, 128], strides = [1, 1]} : vector<8x512xf32> to vector<8x128xf32>
    %468 = math.tanh %467 : vector<8x128xf32>
    %469 = vector.extract_strided_slice %458 {offsets = [0, 384], sizes = [8, 128], strides = [1, 1]} : vector<8x512xf32> to vector<8x128xf32>
    %470 = arith.negf %469 : vector<8x128xf32>
    %471 = math.exp %470 : vector<8x128xf32>
    %cst_129 = arith.constant 1.000000e+00 : f32
    %472 = vector.broadcast %cst_129 : f32 to vector<8x128xf32>
    %473 = arith.addf %472, %471 : vector<8x128xf32>
    %474 = arith.divf %472, %473 : vector<8x128xf32>
    %475 = arith.mulf %466, %425 : vector<8x128xf32>
    %476 = arith.mulf %465, %468 : vector<8x128xf32>
    %477 = arith.addf %475, %476 : vector<8x128xf32>
    %478 = math.tanh %477 : vector<8x128xf32>
    %479 = arith.mulf %474, %478 : vector<8x128xf32>
    %c64_130 = arith.constant 64 : index
    %c0_131 = arith.constant 0 : index
    %480 = vector.load %arg13[%c64_130, %c0_131] : memref<96x128xf32, #tpu.memory_space<vmem>>, vector<8x128xf32>
    tpu.vector_store %arg13[%c64_130, %c0_131], %479 {strides = array<i32>} : memref<96x128xf32, #tpu.memory_space<vmem>>, vector<8x128xf32>,
    %c72 = arith.constant 72 : index
    %c0_132 = arith.constant 0 : index
    %481 = vector.load %arg12[%c72, %c0_132] : memref<96x512xf32, #tpu.memory_space<vmem>>, vector<8x512xf32>
    %c0_133 = arith.constant 0 : index
    %c0_134 = arith.constant 0 : index
    %482 = vector.load %arg3[%c0_133, %c0_134] : memref<128x512xf32, #tpu.memory_space<vmem>>, vector<128x512xf32>
    %cst_135 = arith.constant dense<0.000000e+00> : vector<8x512xf32>
    %483 = tpu.matmul %453, %482, %cst_135 {dimension_numbers = #tpu.dot_dimension_numbers<[1], [0], [0], [1], [0, 0, 1, 1], [], []>} : vector<8x128xf32>, vector<128x512xf32>, vector<8x512xf32> -> vector<8x512xf32>
    %484 = arith.addf %481, %483 : vector<8x512xf32>
    %485 = vector.extract_strided_slice %484 {offsets = [0, 0], sizes = [8, 256], strides = [1, 1]} : vector<8x512xf32> to vector<8x256xf32>
    %486 = arith.negf %485 : vector<8x256xf32>
    %487 = math.exp %486 : vector<8x256xf32>
    %cst_136 = arith.constant 1.000000e+00 : f32
    %488 = vector.broadcast %cst_136 : f32 to vector<8x256xf32>
    %489 = arith.addf %488, %487 : vector<8x256xf32>
    %490 = arith.divf %488, %489 : vector<8x256xf32>
    %491 = vector.extract_strided_slice %490 {offsets = [0, 0], sizes = [8, 128], strides = [1, 1]} : vector<8x256xf32> to vector<8x128xf32>
    %492 = vector.extract_strided_slice %490 {offsets = [0, 128], sizes = [8, 128], strides = [1, 1]} : vector<8x256xf32> to vector<8x128xf32>
    %493 = vector.extract_strided_slice %484 {offsets = [0, 256], sizes = [8, 128], strides = [1, 1]} : vector<8x512xf32> to vector<8x128xf32>
    %494 = math.tanh %493 : vector<8x128xf32>
    %495 = vector.extract_strided_slice %484 {offsets = [0, 384], sizes = [8, 128], strides = [1, 1]} : vector<8x512xf32> to vector<8x128xf32>
    %496 = arith.negf %495 : vector<8x128xf32>
    %497 = math.exp %496 : vector<8x128xf32>
    %cst_137 = arith.constant 1.000000e+00 : f32
    %498 = vector.broadcast %cst_137 : f32 to vector<8x128xf32>
    %499 = arith.addf %498, %497 : vector<8x128xf32>
    %500 = arith.divf %498, %499 : vector<8x128xf32>
    %501 = arith.mulf %492, %451 : vector<8x128xf32>
    %502 = arith.mulf %491, %494 : vector<8x128xf32>
    %503 = arith.addf %501, %502 : vector<8x128xf32>
    %504 = math.tanh %503 : vector<8x128xf32>
    %505 = arith.mulf %500, %504 : vector<8x128xf32>
    %506 = tpu.concatenate %505, %479 in 1 : vector<8x128xf32>, vector<8x128xf32> -> vector<8x256xf32>
    %c0_138 = arith.constant 0 : index
    %c0_139 = arith.constant 0 : index
    %507 = vector.load %arg5[%c0_138, %c0_139] : memref<256x512xf32, #tpu.memory_space<vmem>>, vector<256x512xf32>
    %cst_140 = arith.constant dense<0.000000e+00> : vector<8x512xf32>
    %508 = tpu.matmul %506, %507, %cst_140 {dimension_numbers = #tpu.dot_dimension_numbers<[1], [0], [0], [1], [0, 0, 1, 1], [], []>} : vector<8x256xf32>, vector<256x512xf32>, vector<8x512xf32> -> vector<8x512xf32>
    %509 = vector.broadcast %8 : vector<1x512xf32> to vector<8x512xf32>
    %510 = arith.addf %508, %509 : vector<8x512xf32>
    %511 = vector.extract_strided_slice %510 {offsets = [0, 0], sizes = [8, 256], strides = [1, 1]} : vector<8x512xf32> to vector<8x256xf32>
    %512 = arith.negf %511 : vector<8x256xf32>
    %513 = math.exp %512 : vector<8x256xf32>
    %cst_141 = arith.constant 1.000000e+00 : f32
    %514 = vector.broadcast %cst_141 : f32 to vector<8x256xf32>
    %515 = arith.addf %514, %513 : vector<8x256xf32>
    %516 = arith.divf %514, %515 : vector<8x256xf32>
    %517 = vector.extract_strided_slice %516 {offsets = [0, 0], sizes = [8, 128], strides = [1, 1]} : vector<8x256xf32> to vector<8x128xf32>
    %518 = vector.extract_strided_slice %516 {offsets = [0, 128], sizes = [8, 128], strides = [1, 1]} : vector<8x256xf32> to vector<8x128xf32>
    %519 = vector.extract_strided_slice %510 {offsets = [0, 256], sizes = [8, 128], strides = [1, 1]} : vector<8x512xf32> to vector<8x128xf32>
    %520 = math.tanh %519 : vector<8x128xf32>
    %521 = vector.extract_strided_slice %510 {offsets = [0, 384], sizes = [8, 128], strides = [1, 1]} : vector<8x512xf32> to vector<8x128xf32>
    %522 = arith.negf %521 : vector<8x128xf32>
    %523 = math.exp %522 : vector<8x128xf32>
    %cst_142 = arith.constant 1.000000e+00 : f32
    %524 = vector.broadcast %cst_142 : f32 to vector<8x128xf32>
    %525 = arith.addf %524, %523 : vector<8x128xf32>
    %526 = arith.divf %524, %525 : vector<8x128xf32>
    %527 = arith.mulf %518, %477 : vector<8x128xf32>
    %528 = arith.mulf %517, %520 : vector<8x128xf32>
    %529 = arith.addf %527, %528 : vector<8x128xf32>
    %530 = math.tanh %529 : vector<8x128xf32>
    %531 = arith.mulf %526, %530 : vector<8x128xf32>
    %c72_143 = arith.constant 72 : index
    %c0_144 = arith.constant 0 : index
    %532 = vector.load %arg13[%c72_143, %c0_144] : memref<96x128xf32, #tpu.memory_space<vmem>>, vector<8x128xf32>
    tpu.vector_store %arg13[%c72_143, %c0_144], %531 {strides = array<i32>} : memref<96x128xf32, #tpu.memory_space<vmem>>, vector<8x128xf32>,
    %c80 = arith.constant 80 : index
    %c0_145 = arith.constant 0 : index
    %533 = vector.load %arg12[%c80, %c0_145] : memref<96x512xf32, #tpu.memory_space<vmem>>, vector<8x512xf32>
    %c0_146 = arith.constant 0 : index
    %c0_147 = arith.constant 0 : index
    %534 = vector.load %arg3[%c0_146, %c0_147] : memref<128x512xf32, #tpu.memory_space<vmem>>, vector<128x512xf32>
    %cst_148 = arith.constant dense<0.000000e+00> : vector<8x512xf32>
    %535 = tpu.matmul %505, %534, %cst_148 {dimension_numbers = #tpu.dot_dimension_numbers<[1], [0], [0], [1], [0, 0, 1, 1], [], []>} : vector<8x128xf32>, vector<128x512xf32>, vector<8x512xf32> -> vector<8x512xf32>
    %536 = arith.addf %533, %535 : vector<8x512xf32>
    %537 = vector.extract_strided_slice %536 {offsets = [0, 0], sizes = [8, 256], strides = [1, 1]} : vector<8x512xf32> to vector<8x256xf32>
    %538 = arith.negf %537 : vector<8x256xf32>
    %539 = math.exp %538 : vector<8x256xf32>
    %cst_149 = arith.constant 1.000000e+00 : f32
    %540 = vector.broadcast %cst_149 : f32 to vector<8x256xf32>
    %541 = arith.addf %540, %539 : vector<8x256xf32>
    %542 = arith.divf %540, %541 : vector<8x256xf32>
    %543 = vector.extract_strided_slice %542 {offsets = [0, 0], sizes = [8, 128], strides = [1, 1]} : vector<8x256xf32> to vector<8x128xf32>
    %544 = vector.extract_strided_slice %542 {offsets = [0, 128], sizes = [8, 128], strides = [1, 1]} : vector<8x256xf32> to vector<8x128xf32>
    %545 = vector.extract_strided_slice %536 {offsets = [0, 256], sizes = [8, 128], strides = [1, 1]} : vector<8x512xf32> to vector<8x128xf32>
    %546 = math.tanh %545 : vector<8x128xf32>
    %547 = vector.extract_strided_slice %536 {offsets = [0, 384], sizes = [8, 128], strides = [1, 1]} : vector<8x512xf32> to vector<8x128xf32>
    %548 = arith.negf %547 : vector<8x128xf32>
    %549 = math.exp %548 : vector<8x128xf32>
    %cst_150 = arith.constant 1.000000e+00 : f32
    %550 = vector.broadcast %cst_150 : f32 to vector<8x128xf32>
    %551 = arith.addf %550, %549 : vector<8x128xf32>
    %552 = arith.divf %550, %551 : vector<8x128xf32>
    %553 = arith.mulf %544, %503 : vector<8x128xf32>
    %554 = arith.mulf %543, %546 : vector<8x128xf32>
    %555 = arith.addf %553, %554 : vector<8x128xf32>
    %556 = math.tanh %555 : vector<8x128xf32>
    %557 = arith.mulf %552, %556 : vector<8x128xf32>
    %558 = tpu.concatenate %557, %531 in 1 : vector<8x128xf32>, vector<8x128xf32> -> vector<8x256xf32>
    %c0_151 = arith.constant 0 : index
    %c0_152 = arith.constant 0 : index
    %559 = vector.load %arg5[%c0_151, %c0_152] : memref<256x512xf32, #tpu.memory_space<vmem>>, vector<256x512xf32>
    %cst_153 = arith.constant dense<0.000000e+00> : vector<8x512xf32>
    %560 = tpu.matmul %558, %559, %cst_153 {dimension_numbers = #tpu.dot_dimension_numbers<[1], [0], [0], [1], [0, 0, 1, 1], [], []>} : vector<8x256xf32>, vector<256x512xf32>, vector<8x512xf32> -> vector<8x512xf32>
    %561 = vector.broadcast %8 : vector<1x512xf32> to vector<8x512xf32>
    %562 = arith.addf %560, %561 : vector<8x512xf32>
    %563 = vector.extract_strided_slice %562 {offsets = [0, 0], sizes = [8, 256], strides = [1, 1]} : vector<8x512xf32> to vector<8x256xf32>
    %564 = arith.negf %563 : vector<8x256xf32>
    %565 = math.exp %564 : vector<8x256xf32>
    %cst_154 = arith.constant 1.000000e+00 : f32
    %566 = vector.broadcast %cst_154 : f32 to vector<8x256xf32>
    %567 = arith.addf %566, %565 : vector<8x256xf32>
    %568 = arith.divf %566, %567 : vector<8x256xf32>
    %569 = vector.extract_strided_slice %568 {offsets = [0, 0], sizes = [8, 128], strides = [1, 1]} : vector<8x256xf32> to vector<8x128xf32>
    %570 = vector.extract_strided_slice %568 {offsets = [0, 128], sizes = [8, 128], strides = [1, 1]} : vector<8x256xf32> to vector<8x128xf32>
    %571 = vector.extract_strided_slice %562 {offsets = [0, 256], sizes = [8, 128], strides = [1, 1]} : vector<8x512xf32> to vector<8x128xf32>
    %572 = math.tanh %571 : vector<8x128xf32>
    %573 = vector.extract_strided_slice %562 {offsets = [0, 384], sizes = [8, 128], strides = [1, 1]} : vector<8x512xf32> to vector<8x128xf32>
    %574 = arith.negf %573 : vector<8x128xf32>
    %575 = math.exp %574 : vector<8x128xf32>
    %cst_155 = arith.constant 1.000000e+00 : f32
    %576 = vector.broadcast %cst_155 : f32 to vector<8x128xf32>
    %577 = arith.addf %576, %575 : vector<8x128xf32>
    %578 = arith.divf %576, %577 : vector<8x128xf32>
    %579 = arith.mulf %570, %529 : vector<8x128xf32>
    %580 = arith.mulf %569, %572 : vector<8x128xf32>
    %581 = arith.addf %579, %580 : vector<8x128xf32>
    %582 = math.tanh %581 : vector<8x128xf32>
    %583 = arith.mulf %578, %582 : vector<8x128xf32>
    %c80_156 = arith.constant 80 : index
    %c0_157 = arith.constant 0 : index
    %584 = vector.load %arg13[%c80_156, %c0_157] : memref<96x128xf32, #tpu.memory_space<vmem>>, vector<8x128xf32>
    tpu.vector_store %arg13[%c80_156, %c0_157], %583 {strides = array<i32>} : memref<96x128xf32, #tpu.memory_space<vmem>>, vector<8x128xf32>,
    %c88 = arith.constant 88 : index
    %c0_158 = arith.constant 0 : index
    %585 = vector.load %arg12[%c88, %c0_158] : memref<96x512xf32, #tpu.memory_space<vmem>>, vector<8x512xf32>
    %c0_159 = arith.constant 0 : index
    %c0_160 = arith.constant 0 : index
    %586 = vector.load %arg3[%c0_159, %c0_160] : memref<128x512xf32, #tpu.memory_space<vmem>>, vector<128x512xf32>
    %cst_161 = arith.constant dense<0.000000e+00> : vector<8x512xf32>
    %587 = tpu.matmul %557, %586, %cst_161 {dimension_numbers = #tpu.dot_dimension_numbers<[1], [0], [0], [1], [0, 0, 1, 1], [], []>} : vector<8x128xf32>, vector<128x512xf32>, vector<8x512xf32> -> vector<8x512xf32>
    %588 = arith.addf %585, %587 : vector<8x512xf32>
    %589 = vector.extract_strided_slice %588 {offsets = [0, 0], sizes = [8, 256], strides = [1, 1]} : vector<8x512xf32> to vector<8x256xf32>
    %590 = arith.negf %589 : vector<8x256xf32>
    %591 = math.exp %590 : vector<8x256xf32>
    %cst_162 = arith.constant 1.000000e+00 : f32
    %592 = vector.broadcast %cst_162 : f32 to vector<8x256xf32>
    %593 = arith.addf %592, %591 : vector<8x256xf32>
    %594 = arith.divf %592, %593 : vector<8x256xf32>
    %595 = vector.extract_strided_slice %594 {offsets = [0, 0], sizes = [8, 128], strides = [1, 1]} : vector<8x256xf32> to vector<8x128xf32>
    %596 = vector.extract_strided_slice %594 {offsets = [0, 128], sizes = [8, 128], strides = [1, 1]} : vector<8x256xf32> to vector<8x128xf32>
    %597 = vector.extract_strided_slice %588 {offsets = [0, 256], sizes = [8, 128], strides = [1, 1]} : vector<8x512xf32> to vector<8x128xf32>
    %598 = math.tanh %597 : vector<8x128xf32>
    %599 = vector.extract_strided_slice %588 {offsets = [0, 384], sizes = [8, 128], strides = [1, 1]} : vector<8x512xf32> to vector<8x128xf32>
    %600 = arith.negf %599 : vector<8x128xf32>
    %601 = math.exp %600 : vector<8x128xf32>
    %cst_163 = arith.constant 1.000000e+00 : f32
    %602 = vector.broadcast %cst_163 : f32 to vector<8x128xf32>
    %603 = arith.addf %602, %601 : vector<8x128xf32>
    %604 = arith.divf %602, %603 : vector<8x128xf32>
    %605 = arith.mulf %596, %555 : vector<8x128xf32>
    %606 = arith.mulf %595, %598 : vector<8x128xf32>
    %607 = arith.addf %605, %606 : vector<8x128xf32>
    %608 = math.tanh %607 : vector<8x128xf32>
    %609 = arith.mulf %604, %608 : vector<8x128xf32>
    %610 = tpu.concatenate %609, %583 in 1 : vector<8x128xf32>, vector<8x128xf32> -> vector<8x256xf32>
    %c0_164 = arith.constant 0 : index
    %c0_165 = arith.constant 0 : index
    %611 = vector.load %arg5[%c0_164, %c0_165] : memref<256x512xf32, #tpu.memory_space<vmem>>, vector<256x512xf32>
    %cst_166 = arith.constant dense<0.000000e+00> : vector<8x512xf32>
    %612 = tpu.matmul %610, %611, %cst_166 {dimension_numbers = #tpu.dot_dimension_numbers<[1], [0], [0], [1], [0, 0, 1, 1], [], []>} : vector<8x256xf32>, vector<256x512xf32>, vector<8x512xf32> -> vector<8x512xf32>
    %613 = vector.broadcast %8 : vector<1x512xf32> to vector<8x512xf32>
    %614 = arith.addf %612, %613 : vector<8x512xf32>
    %615 = vector.extract_strided_slice %614 {offsets = [0, 0], sizes = [8, 256], strides = [1, 1]} : vector<8x512xf32> to vector<8x256xf32>
    %616 = arith.negf %615 : vector<8x256xf32>
    %617 = math.exp %616 : vector<8x256xf32>
    %cst_167 = arith.constant 1.000000e+00 : f32
    %618 = vector.broadcast %cst_167 : f32 to vector<8x256xf32>
    %619 = arith.addf %618, %617 : vector<8x256xf32>
    %620 = arith.divf %618, %619 : vector<8x256xf32>
    %621 = vector.extract_strided_slice %620 {offsets = [0, 0], sizes = [8, 128], strides = [1, 1]} : vector<8x256xf32> to vector<8x128xf32>
    %622 = vector.extract_strided_slice %620 {offsets = [0, 128], sizes = [8, 128], strides = [1, 1]} : vector<8x256xf32> to vector<8x128xf32>
    %623 = vector.extract_strided_slice %614 {offsets = [0, 256], sizes = [8, 128], strides = [1, 1]} : vector<8x512xf32> to vector<8x128xf32>
    %624 = math.tanh %623 : vector<8x128xf32>
    %625 = vector.extract_strided_slice %614 {offsets = [0, 384], sizes = [8, 128], strides = [1, 1]} : vector<8x512xf32> to vector<8x128xf32>
    %626 = arith.negf %625 : vector<8x128xf32>
    %627 = math.exp %626 : vector<8x128xf32>
    %cst_168 = arith.constant 1.000000e+00 : f32
    %628 = vector.broadcast %cst_168 : f32 to vector<8x128xf32>
    %629 = arith.addf %628, %627 : vector<8x128xf32>
    %630 = arith.divf %628, %629 : vector<8x128xf32>
    %631 = arith.mulf %622, %581 : vector<8x128xf32>
    %632 = arith.mulf %621, %624 : vector<8x128xf32>
    %633 = arith.addf %631, %632 : vector<8x128xf32>
    %634 = math.tanh %633 : vector<8x128xf32>
    %635 = arith.mulf %630, %634 : vector<8x128xf32>
    %c88_169 = arith.constant 88 : index
    %c0_170 = arith.constant 0 : index
    %636 = vector.load %arg13[%c88_169, %c0_170] : memref<96x128xf32, #tpu.memory_space<vmem>>, vector<8x128xf32>
    tpu.vector_store %arg13[%c88_169, %c0_170], %635 {strides = array<i32>} : memref<96x128xf32, #tpu.memory_space<vmem>>, vector<8x128xf32>,
    %c0_171 = arith.constant 0 : index
    %c0_172 = arith.constant 0 : index
    %637 = vector.load %arg13[%c0_171, %c0_172] : memref<96x128xf32, #tpu.memory_space<vmem>>, vector<96x128xf32>
    %c0_173 = arith.constant 0 : index
    %c0_174 = arith.constant 0 : index
    %638 = vector.load %arg7[%c0_173, %c0_174] : memref<128x1xf32, #tpu.memory_space<vmem>>, vector<128x1xf32>
    %cst_175 = arith.constant dense<0.000000e+00> : vector<96x1xf32>
    %639 = tpu.matmul %637, %638, %cst_175 {dimension_numbers = #tpu.dot_dimension_numbers<[1], [0], [0], [1], [0, 0, 1, 1], [], []>} : vector<96x128xf32>, vector<128x1xf32>, vector<96x1xf32> -> vector<96x1xf32>
    %c0_176 = arith.constant 0 : index
    %c0_177 = arith.constant 0 : index
    %640 = vector.load %arg8[%c0_176, %c0_177] : memref<1x1xf32, #tpu.memory_space<vmem>>, vector<1x1xf32>
    %641 = vector.broadcast %640 : vector<1x1xf32> to vector<96x1xf32>
    %642 = arith.addf %639, %641 : vector<96x1xf32>
    %cst_178 = arith.constant 0.000000e+00 : f32
    %643 = vector.broadcast %cst_178 : f32 to vector<96x1xf32>
    %644 = arith.maximumf %642, %643 : vector<96x1xf32>
    %645 = vector.shape_cast %644 : vector<96x1xf32> to vector<12x8x1xf32>
    %646 = tpu.transpose %645, [1, 2, 0] : vector<12x8x1xf32> -> vector<8x1x12xf32>
    %647 = vector.shape_cast %646 : vector<8x1x12xf32> to vector<8x12xf32>
    %648 = tpu.transpose %647, [1, 0] : vector<8x12xf32> -> vector<12x8xf32>
    %c0_179 = arith.constant 0 : index
    %c0_180 = arith.constant 0 : index
    %649 = vector.load %arg9[%c0_179, %c0_180] : memref<3x12xf32, #tpu.memory_space<vmem>>, vector<3x12xf32>
    %cst_181 = arith.constant dense<0.000000e+00> : vector<3x8xf32>
    %650 = tpu.matmul %649, %648, %cst_181 {dimension_numbers = #tpu.dot_dimension_numbers<[1], [0], [0], [1], [0, 0, 1, 1], [], []>} : vector<3x12xf32>, vector<12x8xf32>, vector<3x8xf32> -> vector<3x8xf32>
    %c0_182 = arith.constant 0 : index
    %c0_183 = arith.constant 0 : index
    %651 = vector.load %arg10[%c0_182, %c0_183] : memref<3x1xf32, #tpu.memory_space<vmem>>, vector<3x1xf32>
    %652 = vector.broadcast %651 : vector<3x1xf32> to vector<3x8xf32>
    %653 = arith.addf %650, %652 : vector<3x8xf32>
    %c0_184 = arith.constant 0 : index
    %c0_185 = arith.constant 0 : index
    %654 = vector.load %arg11[%c0_184, %c0_185] : memref<3x8xf32, #tpu.memory_space<vmem>>, vector<3x8xf32>
    tpu.vector_store %arg11[%c0_184, %c0_185], %653 {strides = array<i32>} : memref<3x8xf32, #tpu.memory_space<vmem>>, vector<3x8xf32>,
    return
  }
  func.func @transform_0(%arg0: i32) -> (i32, i32, i32) {
    %c0_i32 = arith.constant 0 : i32
    %c0_i32_0 = arith.constant 0 : i32
    %c0_i32_1 = arith.constant 0 : i32
    return %c0_i32, %arg0, %c0_i32_0 : i32, i32, i32
  }
  func.func @transform_1(%arg0: i32) -> (i32, i32) {
    %c0_i32 = arith.constant 0 : i32
    %c0_i32_0 = arith.constant 0 : i32
    %c0_i32_1 = arith.constant 0 : i32
    return %c0_i32, %c0_i32_0 : i32, i32
  }
  func.func @transform_2(%arg0: i32) -> (i32, i32) {
    %c0_i32 = arith.constant 0 : i32
    %c0_i32_0 = arith.constant 0 : i32
    %c0_i32_1 = arith.constant 0 : i32
    return %c0_i32, %c0_i32_0 : i32, i32
  }
  func.func @transform_3(%arg0: i32) -> (i32, i32) {
    %c0_i32 = arith.constant 0 : i32
    %c0_i32_0 = arith.constant 0 : i32
    %c0_i32_1 = arith.constant 0 : i32
    return %c0_i32, %c0_i32_0 : i32, i32
  }
  func.func @transform_4(%arg0: i32) -> (i32, i32) {
    %c0_i32 = arith.constant 0 : i32
    %c0_i32_0 = arith.constant 0 : i32
    %c0_i32_1 = arith.constant 0 : i32
    return %c0_i32, %c0_i32_0 : i32, i32
  }
  func.func @transform_5(%arg0: i32) -> (i32, i32) {
    %c0_i32 = arith.constant 0 : i32
    %c0_i32_0 = arith.constant 0 : i32
    %c0_i32_1 = arith.constant 0 : i32
    return %c0_i32, %c0_i32_0 : i32, i32
  }
  func.func @transform_6(%arg0: i32) -> (i32, i32) {
    %c0_i32 = arith.constant 0 : i32
    %c0_i32_0 = arith.constant 0 : i32
    %c0_i32_1 = arith.constant 0 : i32
    return %c0_i32, %c0_i32_0 : i32, i32
  }
  func.func @transform_7(%arg0: i32) -> (i32, i32) {
    %c0_i32 = arith.constant 0 : i32
    %c0_i32_0 = arith.constant 0 : i32
    %c0_i32_1 = arith.constant 0 : i32
    return %c0_i32, %c0_i32_0 : i32, i32
  }
  func.func @transform_8(%arg0: i32) -> (i32, i32) {
    %c0_i32 = arith.constant 0 : i32
    %c0_i32_0 = arith.constant 0 : i32
    %c0_i32_1 = arith.constant 0 : i32
    return %c0_i32, %c0_i32_0 : i32, i32
  }
  func.func @transform_9(%arg0: i32) -> (i32, i32) {
    %c0_i32 = arith.constant 0 : i32
    %c0_i32_0 = arith.constant 0 : i32
    %c0_i32_1 = arith.constant 0 : i32
    return %c0_i32, %c0_i32_0 : i32, i32
  }
  func.func @transform_10(%arg0: i32) -> (i32, i32) {
    %c0_i32 = arith.constant 0 : i32
    %c0_i32_0 = arith.constant 0 : i32
    return %c0_i32, %arg0 : i32, i32
  }
}

</mosaic_0001>

<llo_original>
// kernel: lstm_forward.1
$region0: #{lstm_forward.1}
  #allocation0 [shape = 'u32[]', space=smem, size = 0x4, offset = 0x4, fixed_abs, tag = 'smem constant byte address 0x4 - core index']
  #allocation1 [shape = 'u32[144,128]{1,0:T(1,128)}', space=vmem, size = 0x12000, scoped, tag = 'internal scratch']
  #allocation2 [shape = 'f32[96,512]{1,0:T(8,128)}', space=vmem, size = 0x30000, scoped, tag = 'scratch operand']
  #allocation3 [shape = 'f32[96,128]{1,0:T(8,128)}', space=vmem, size = 0xc000, scoped, tag = 'scratch operand']
  #allocation4 [shape = 'f32[1,1]{1,0:T(1,128)S(1)}', space=vmem, size = 0x200, scoped, tag = 'scoped memory for lstm_forward.1']
  %s0 = inlined_call_operand.vmem [shape: f32[12,8,3], index: 0, kind: input, shape index: {}]
  %s1 = inlined_call_operand.vmem [shape: f32[3,512], index: 1, kind: input, shape index: {}]
  %s2 = inlined_call_operand.vmem [shape: f32[128,512], index: 2, kind: input, shape index: {}]
  %s3 = inlined_call_operand.vmem [shape: f32[1,512], index: 3, kind: input, shape index: {}]
  %s4 = inlined_call_operand.vmem [shape: f32[256,512], index: 4, kind: input, shape index: {}]
  %s5 = inlined_call_operand.vmem [shape: f32[1,512], index: 5, kind: input, shape index: {}]
  %s6 = inlined_call_operand.vmem [shape: f32[128,1], index: 6, kind: input, shape index: {}]
  %s7 = inlined_call_operand.<no memory space> [shape: f32[1,1], index: 7, kind: input, shape index: {}]
  %s8 = inlined_call_operand.vmem [shape: f32[3,12], index: 8, kind: input, shape index: {}]
  %s9 = inlined_call_operand.vmem [shape: f32[3,1], index: 9, kind: input, shape index: {}]
  %s10 = inlined_call_operand.vmem [shape: f32[3,8], index: 10, kind: output, shape index: {}]
  %s11 = sld [smem:[#allocation0]]
  $region50: #{lstm_forward.1} parent=0
    _
  %s13 = ssub.s32 1, %s11
  %s14 = scalar_select 0, %s13, %s11
  %v15 = vstv %s7
  %16 = vst [vmem:[#allocation4] sm:$0x1] %v15
  // Predicated region
  $region2: #{lstm_forward.1} parent=0 // pred_check
    _
  $region3: #{lstm_forward.1} parent=0 // pred_check_branch
    %18 = sbr.rel (0) target = $region5
  $region4: #{lstm_forward.1} parent=0 // pred_region
    _
  $region5: #{lstm_forward.1} parent=0 // pred_fallthru
    _
  // Predicated region
  $region6: #{lstm_forward.1} parent=0 // pred_check
    _
  $region7: #{lstm_forward.1} parent=0 // pred_check_branch
    %20 = sbr.rel (0) target = $region9
  $region8: #{lstm_forward.1} parent=0 // pred_region
    _
  $region9: #{lstm_forward.1} parent=0 // pred_fallthru
    _
  // Predicated region
  $region10: #{lstm_forward.1} parent=0 // pred_check
    _
  $region11: #{lstm_forward.1} parent=0 // pred_check_branch
    %22 = sbr.rel (0) target = $region13
  $region12: #{lstm_forward.1} parent=0 // pred_region
    _
  $region13: #{lstm_forward.1} parent=0 // pred_fallthru
    _
  // Predicated region
  $region14: #{lstm_forward.1} parent=0 // pred_check
    _
  $region15: #{lstm_forward.1} parent=0 // pred_check_branch
    %24 = sbr.rel (0) target = $region17
  $region16: #{lstm_forward.1} parent=0 // pred_region
    _
  $region17: #{lstm_forward.1} parent=0 // pred_fallthru
    _
  // Predicated region
  $region18: #{lstm_forward.1} parent=0 // pred_check
    _
  $region19: #{lstm_forward.1} parent=0 // pred_check_branch
    %26 = sbr.rel (0) target = $region21
  $region20: #{lstm_forward.1} parent=0 // pred_region
    _
  $region21: #{lstm_forward.1} parent=0 // pred_fallthru
    _
  // Predicated region
  $region22: #{lstm_forward.1} parent=0 // pred_check
    _
  $region23: #{lstm_forward.1} parent=0 // pred_check_branch
    %28 = sbr.rel (0) target = $region25
  $region24: #{lstm_forward.1} parent=0 // pred_region
    _
  $region25: #{lstm_forward.1} parent=0 // pred_fallthru
    _
  // Predicated region
  $region26: #{lstm_forward.1} parent=0 // pred_check
    _
  $region27: #{lstm_forward.1} parent=0 // pred_check_branch
    %30 = sbr.rel (0) target = $region29
  $region28: #{lstm_forward.1} parent=0 // pred_region
    _
  $region29: #{lstm_forward.1} parent=0 // pred_fallthru
    _
  // Predicated region
  $region30: #{lstm_forward.1} parent=0 // pred_check
    _
  $region31: #{lstm_forward.1} parent=0 // pred_check_branch
    %32 = sbr.rel (0) target = $region33
  $region32: #{lstm_forward.1} parent=0 // pred_region
    _
  $region33: #{lstm_forward.1} parent=0 // pred_fallthru
    _
  // Predicated region
  $region34: #{lstm_forward.1} parent=0 // pred_check
    _
  $region35: #{lstm_forward.1} parent=0 // pred_check_branch
    %34 = sbr.rel (0) target = $region37
  $region36: #{lstm_forward.1} parent=0 // pred_region
    _
  $region37: #{lstm_forward.1} parent=0 // pred_fallthru
    _
  // Predicated region
  $region38: #{lstm_forward.1} parent=0 // pred_check
    _
  $region39: #{lstm_forward.1} parent=0 // pred_check_branch
    %36 = sbr.rel (0) target = $region41
  $region40: #{lstm_forward.1} parent=0 // pred_region
    _
  $region41: #{lstm_forward.1} parent=0 // pred_fallthru
    _
  %v37 = vld [vmem:[%s0] sm:$0xff]
  %v38 = vld [vmem:[%s0 + $0x8] sm:$0xff]
  %v39 = vld [vmem:[%s0 + $0x10] sm:$0xff]
  %v40 = vld [vmem:[%s0 + $0x18] sm:$0xff]
  %v41 = vld [vmem:[%s0 + $0x20] sm:$0xff]
  %v42 = vld [vmem:[%s0 + $0x28] sm:$0xff]
  %v43 = vld [vmem:[%s0 + $0x30] sm:$0xff]
  %v44 = vld [vmem:[%s0 + $0x38] sm:$0xff]
  %v45 = vld [vmem:[%s0 + $0x40] sm:$0xff]
  %v46 = vld [vmem:[%s0 + $0x48] sm:$0xff]
  %v47 = vld [vmem:[%s0 + $0x50] sm:$0xff]
  %v48 = vld [vmem:[%s0 + $0x58] sm:$0xff]
  %v49 = vld [vmem:[%s1] sm:$0x77]
  %v50 = vld [vmem:[%s1 + $0x8] sm:$0x77]
  %v51 = vld [vmem:[%s3] sm:$0xf]
  %v53 = vlaneseq
  %v54 = vshrl.u32 %v53, 7
  %v55 = vsub.s32 0, %v54
  %v56 = vrot.slane %v51, %v55
  %v57 = vlaneseq
  %v58 = vshrl.u32 %v57, 7
  %v59 = vsub.s32 1, %v58
  %v60 = vrot.slane %v51, %v59
  %v61 = vlaneseq
  %v62 = vshrl.u32 %v61, 7
  %v63 = vsub.s32 2, %v62
  %v64 = vrot.slane %v51, %v63
  %v65 = vlaneseq
  %v66 = vshrl.u32 %v65, 7
  %v67 = vsub.s32 3, %v66
  %v68 = vrot.slane %v51, %v67
  %v75 = vcombine.high %v49, %v49
  %v76 = vcombine.high %v50, %v50
  %vm77 = vcmask 23552
  %v79 = vsel %vm77, %v37, 0
  %v82 = vsel %vm77, %v38, 0
  %v85 = vsel %vm77, %v39, 0
  %v88 = vsel %vm77, %v40, 0
  %v91 = vsel %vm77, %v41, 0
  %v94 = vsel %vm77, %v42, 0
  %v97 = vsel %vm77, %v43, 0
  %v100 = vsel %vm77, %v44, 0
  %v103 = vsel %vm77, %v45, 0
  %v106 = vsel %vm77, %v46, 0
  %v109 = vsel %vm77, %v47, 0
  %v112 = vsel %vm77, %v48, 0
  %vm114 = vcmask 1042432
  %v115 = vsel %vm114, %v49, 0
  %v117 = vsel %vm114, %v75, 0
  %v119 = vsel %vm114, %v50, 0
  %v121 = vsel %vm114, %v76, 0
  %123 = vmatprep.subr.mxu0 %v117
  %124 = vmatpush1.msra.mxu0 %v115
  %125 = vmatprep.subr.mxu0 0.0
  %126 = vmatpush1.msra.mxu0 0.0
  %127 = vmatprep.subr.mxu0 0.0
  %128 = vmatpush1.msra.mxu0 0.0
  %129 = vmatprep.subr.mxu0 0.0
  %130 = vmatpush1.msra.mxu0 0.0
  %131 = vmatprep.subr.mxu0 0.0
  %132 = vmatpush1.msra.mxu0 0.0
  %133 = vmatprep.subr.mxu0 0.0
  %134 = vmatpush1.msra.mxu0 0.0
  %135 = vmatprep.subr.mxu0 0.0
  %136 = vmatpush1.msra.mxu0 0.0
  %137 = vmatprep.subr.mxu0 0.0
  %138 = vmatpush1.msra.mxu0 0.0
  %139 = vmatprep.subr.mxu0 0.0
  %140 = vmatpush1.msra.mxu0 0.0
  %141 = vmatprep.subr.mxu0 0.0
  %142 = vmatpush1.msra.mxu0 0.0
  %143 = vmatprep.subr.mxu0 0.0
  %144 = vmatpush1.msra.mxu0 0.0
  %145 = vmatprep.subr.mxu0 0.0
  %146 = vmatpush1.msra.mxu0 0.0
  %147 = vmatprep.subr.mxu0 0.0
  %148 = vmatpush1.msra.mxu0 0.0
  %149 = vmatprep.subr.mxu0 0.0
  %150 = vmatpush1.msra.mxu0 0.0
  %151 = vmatprep.subr.mxu0 0.0
  %152 = vmatpush1.msra.mxu0 0.0
  %153 = vmatprep.subr.mxu0 0.0
  %154 = vmatpush1.msra.mxu0 0.0
  %155 = vmatprep.subr.mxu0 0.0
  %156 = vmatpush1.msra.mxu0 0.0
  %157 = vmatprep.subr.mxu0 0.0
  %158 = vmatpush1.msra.mxu0 0.0
  %159 = vmatprep.subr.mxu0 0.0
  %160 = vmatpush1.msra.mxu0 0.0
  %161 = vmatprep.subr.mxu0 0.0
  %162 = vmatpush1.msra.mxu0 0.0
  %163 = vmatprep.subr.mxu0 0.0
  %164 = vmatpush1.msra.mxu0 0.0
  %165 = vmatprep.subr.mxu0 0.0
  %166 = vmatpush1.msra.mxu0 0.0
  %167 = vmatprep.subr.mxu0 0.0
  %168 = vmatpush1.msra.mxu0 0.0
  %169 = vmatprep.subr.mxu0 0.0
  %170 = vmatpush1.msra.mxu0 0.0
  %171 = vmatprep.subr.mxu0 0.0
  %172 = vmatpush1.msra.mxu0 0.0
  %173 = vmatprep.subr.mxu0 0.0
  %174 = vmatpush1.msra.mxu0 0.0
  %175 = vmatprep.subr.mxu0 0.0
  %176 = vmatpush1.msra.mxu0 0.0
  %177 = vmatprep.subr.mxu0 0.0
  %178 = vmatpush1.msra.mxu0 0.0
  %179 = vmatprep.subr.mxu0 0.0
  %180 = vmatpush1.msra.mxu0 0.0
  %181 = vmatprep.subr.mxu0 0.0
  %182 = vmatpush1.msra.mxu0 0.0
  %183 = vmatprep.subr.mxu0 0.0
  %184 = vmatpush1.msra.mxu0 0.0
  %185 = vmatprep.subr.mxu0 0.0
  %186 = vmatpush1.msra.mxu0 0.0
  %187 = vmatprep.mubr.f32.mxu0 0.0
  %188 = vmatmul.mubr.f32.gmra.mrb[0].mxu0 %v79
  %v189 = vpop.f32.mrb[0].mxu0
  %v190 = vadd.f32 %v56, %v189
  %v191 = vpop.f32.mrb[0].mxu0
  %v192 = vadd.f32 %v60, %v191
  %193 = vmatprep.mubr.f32.mxu0 0.0
  %194 = vmatmul.mubr.f32.gmra.mrb[0].mxu0 %v82
  %v195 = vpop.f32.mrb[0].mxu0
  %v196 = vadd.f32 %v56, %v195
  %v197 = vpop.f32.mrb[0].mxu0
  %v198 = vadd.f32 %v60, %v197
  %199 = vmatprep.mubr.f32.mxu0 0.0
  %200 = vmatmul.mubr.f32.gmra.mrb[0].mxu0 %v85
  %v201 = vpop.f32.mrb[0].mxu0
  %v202 = vadd.f32 %v56, %v201
  %v203 = vpop.f32.mrb[0].mxu0
  %v204 = vadd.f32 %v60, %v203
  %205 = vmatprep.mubr.f32.mxu0 0.0
  %206 = vmatmul.mubr.f32.gmra.mrb[0].mxu0 %v88
  %v207 = vpop.f32.mrb[0].mxu0
  %v208 = vadd.f32 %v56, %v207
  %v209 = vpop.f32.mrb[0].mxu0
  %v210 = vadd.f32 %v60, %v209
  %211 = vmatprep.mubr.f32.mxu0 0.0
  %212 = vmatmul.mubr.f32.gmra.mrb[0].mxu0 %v91
  %v213 = vpop.f32.mrb[0].mxu0
  %v214 = vadd.f32 %v56, %v213
  %v215 = vpop.f32.mrb[0].mxu0
  %v216 = vadd.f32 %v60, %v215
  %217 = vmatprep.mubr.f32.mxu0 0.0
  %218 = vmatmul.mubr.f32.gmra.mrb[0].mxu0 %v94
  %v219 = vpop.f32.mrb[0].mxu0
  %v220 = vadd.f32 %v56, %v219
  %v221 = vpop.f32.mrb[0].mxu0
  %v222 = vadd.f32 %v60, %v221
  %223 = vmatprep.mubr.f32.mxu0 0.0
  %224 = vmatmul.mubr.f32.gmra.mrb[0].mxu0 %v97
  %v225 = vpop.f32.mrb[0].mxu0
  %v226 = vadd.f32 %v56, %v225
  %v227 = vpop.f32.mrb[0].mxu0
  %v228 = vadd.f32 %v60, %v227
  %229 = vmatprep.mubr.f32.mxu0 0.0
  %230 = vmatmul.mubr.f32.gmra.mrb[0].mxu0 %v100
  %v231 = vpop.f32.mrb[0].mxu0
  %v232 = vadd.f32 %v56, %v231
  %v233 = vpop.f32.mrb[0].mxu0
  %v234 = vadd.f32 %v60, %v233
  %235 = vmatprep.mubr.f32.mxu0 0.0
  %236 = vmatmul.mubr.f32.gmra.mrb[0].mxu0 %v103
  %v237 = vpop.f32.mrb[0].mxu0
  %v238 = vadd.f32 %v56, %v237
  %v239 = vpop.f32.mrb[0].mxu0
  %v240 = vadd.f32 %v60, %v239
  %241 = vmatprep.mubr.f32.mxu0 0.0
  %242 = vmatmul.mubr.f32.gmra.mrb[0].mxu0 %v106
  %v243 = vpop.f32.mrb[0].mxu0
  %v244 = vadd.f32 %v56, %v243
  %v245 = vpop.f32.mrb[0].mxu0
  %v246 = vadd.f32 %v60, %v245
  %247 = vmatprep.mubr.f32.mxu0 0.0
  %248 = vmatmul.mubr.f32.gmra.mrb[0].mxu0 %v109
  %v249 = vpop.f32.mrb[0].mxu0
  %v250 = vadd.f32 %v56, %v249
  %v251 = vpop.f32.mrb[0].mxu0
  %v252 = vadd.f32 %v60, %v251
  %253 = vmatprep.mubr.f32.mxu0 0.0
  %254 = vmatmul.mubr.f32.gmra.mrb[0].mxu0 %v112
  %v255 = vpop.f32.mrb[0].mxu0
  %v256 = vadd.f32 %v56, %v255
  %v257 = vpop.f32.mrb[0].mxu0
  %v258 = vadd.f32 %v60, %v257
  %259 = vdwg.mxu0
  %260 = vmatprep.subr.mxu0 %v121
  %261 = vmatpush1.msra.mxu0 %v119
  %262 = vmatprep.subr.mxu0 0.0
  %263 = vmatpush1.msra.mxu0 0.0
  %264 = vmatprep.subr.mxu0 0.0
  %265 = vmatpush1.msra.mxu0 0.0
  %266 = vmatprep.subr.mxu0 0.0
  %267 = vmatpush1.msra.mxu0 0.0
  %268 = vmatprep.subr.mxu0 0.0
  %269 = vmatpush1.msra.mxu0 0.0
  %270 = vmatprep.subr.mxu0 0.0
  %271 = vmatpush1.msra.mxu0 0.0
  %272 = vmatprep.subr.mxu0 0.0
  %273 = vmatpush1.msra.mxu0 0.0
  %274 = vmatprep.subr.mxu0 0.0
  %275 = vmatpush1.msra.mxu0 0.0
  %276 = vmatprep.subr.mxu0 0.0
  %277 = vmatpush1.msra.mxu0 0.0
  %278 = vmatprep.subr.mxu0 0.0
  %279 = vmatpush1.msra.mxu0 0.0
  %280 = vmatprep.subr.mxu0 0.0
  %281 = vmatpush1.msra.mxu0 0.0
  %282 = vmatprep.subr.mxu0 0.0
  %283 = vmatpush1.msra.mxu0 0.0
  %284 = vmatprep.subr.mxu0 0.0
  %285 = vmatpush1.msra.mxu0 0.0
  %286 = vmatprep.subr.mxu0 0.0
  %287 = vmatpush1.msra.mxu0 0.0
  %288 = vmatprep.subr.mxu0 0.0
  %289 = vmatpush1.msra.mxu0 0.0
  %290 = vmatprep.subr.mxu0 0.0
  %291 = vmatpush1.msra.mxu0 0.0
  %292 = vmatprep.subr.mxu0 0.0
  %293 = vmatpush1.msra.mxu0 0.0
  %294 = vmatprep.subr.mxu0 0.0
  %295 = vmatpush1.msra.mxu0 0.0
  %296 = vmatprep.subr.mxu0 0.0
  %297 = vmatpush1.msra.mxu0 0.0
  %298 = vmatprep.subr.mxu0 0.0
  %299 = vmatpush1.msra.mxu0 0.0
  %300 = vmatprep.subr.mxu0 0.0
  %301 = vmatpush1.msra.mxu0 0.0
  %302 = vmatprep.subr.mxu0 0.0
  %303 = vmatpush1.msra.mxu0 0.0
  %304 = vmatprep.subr.mxu0 0.0
  %305 = vmatpush1.msra.mxu0 0.0
  %306 = vmatprep.subr.mxu0 0.0
  %307 = vmatpush1.msra.mxu0 0.0
  %308 = vmatprep.subr.mxu0 0.0
  %309 = vmatpush1.msra.mxu0 0.0
  %310 = vmatprep.subr.mxu0 0.0
  %311 = vmatpush1.msra.mxu0 0.0
  %312 = vmatprep.subr.mxu0 0.0
  %313 = vmatpush1.msra.mxu0 0.0
  %314 = vmatprep.subr.mxu0 0.0
  %315 = vmatpush1.msra.mxu0 0.0
  %316 = vmatprep.subr.mxu0 0.0
  %317 = vmatpush1.msra.mxu0 0.0
  %318 = vmatprep.subr.mxu0 0.0
  %319 = vmatpush1.msra.mxu0 0.0
  %320 = vmatprep.subr.mxu0 0.0
  %321 = vmatpush1.msra.mxu0 0.0
  %322 = vmatprep.subr.mxu0 0.0
  %323 = vmatpush1.msra.mxu0 0.0
  %324 = vmatprep.mubr.f32.mxu0 0.0
  %325 = vmatmul.mubr.f32.gmra.mrb[0].mxu0 %v79
  %v326 = vpop.f32.mrb[0].mxu0
  %v327 = vadd.f32 %v64, %v326
  %v328 = vpop.f32.mrb[0].mxu0
  %v329 = vadd.f32 %v68, %v328
  %330 = vmatprep.mubr.f32.mxu0 0.0
  %331 = vmatmul.mubr.f32.gmra.mrb[0].mxu0 %v82
  %v332 = vpop.f32.mrb[0].mxu0
  %v333 = vadd.f32 %v64, %v332
  %v334 = vpop.f32.mrb[0].mxu0
  %v335 = vadd.f32 %v68, %v334
  %336 = vmatprep.mubr.f32.mxu0 0.0
  %337 = vmatmul.mubr.f32.gmra.mrb[0].mxu0 %v85
  %v338 = vpop.f32.mrb[0].mxu0
  %v339 = vadd.f32 %v64, %v338
  %v340 = vpop.f32.mrb[0].mxu0
  %v341 = vadd.f32 %v68, %v340
  %342 = vmatprep.mubr.f32.mxu0 0.0
  %343 = vmatmul.mubr.f32.gmra.mrb[0].mxu0 %v88
  %v344 = vpop.f32.mrb[0].mxu0
  %v345 = vadd.f32 %v64, %v344
  %v346 = vpop.f32.mrb[0].mxu0
  %v347 = vadd.f32 %v68, %v346
  %348 = vmatprep.mubr.f32.mxu0 0.0
  %349 = vmatmul.mubr.f32.gmra.mrb[0].mxu0 %v91
  %v350 = vpop.f32.mrb[0].mxu0
  %v351 = vadd.f32 %v64, %v350
  %v352 = vpop.f32.mrb[0].mxu0
  %v353 = vadd.f32 %v68, %v352
  %354 = vmatprep.mubr.f32.mxu0 0.0
  %355 = vmatmul.mubr.f32.gmra.mrb[0].mxu0 %v94
  %v356 = vpop.f32.mrb[0].mxu0
  %v357 = vadd.f32 %v64, %v356
  %v358 = vpop.f32.mrb[0].mxu0
  %v359 = vadd.f32 %v68, %v358
  %360 = vmatprep.mubr.f32.mxu0 0.0
  %361 = vmatmul.mubr.f32.gmra.mrb[0].mxu0 %v97
  %v362 = vpop.f32.mrb[0].mxu0
  %v363 = vadd.f32 %v64, %v362
  %v364 = vpop.f32.mrb[0].mxu0
  %v365 = vadd.f32 %v68, %v364
  %366 = vmatprep.mubr.f32.mxu0 0.0
  %367 = vmatmul.mubr.f32.gmra.mrb[0].mxu0 %v100
  %v368 = vpop.f32.mrb[0].mxu0
  %v369 = vadd.f32 %v64, %v368
  %v370 = vpop.f32.mrb[0].mxu0
  %v371 = vadd.f32 %v68, %v370
  %372 = vmatprep.mubr.f32.mxu0 0.0
  %373 = vmatmul.mubr.f32.gmra.mrb[0].mxu0 %v103
  %v374 = vpop.f32.mrb[0].mxu0
  %v375 = vadd.f32 %v64, %v374
  %v376 = vpop.f32.mrb[0].mxu0
  %v377 = vadd.f32 %v68, %v376
  %378 = vmatprep.mubr.f32.mxu0 0.0
  %379 = vmatmul.mubr.f32.gmra.mrb[0].mxu0 %v106
  %v380 = vpop.f32.mrb[0].mxu0
  %v381 = vadd.f32 %v64, %v380
  %v382 = vpop.f32.mrb[0].mxu0
  %v383 = vadd.f32 %v68, %v382
  %384 = vmatprep.mubr.f32.mxu0 0.0
  %385 = vmatmul.mubr.f32.gmra.mrb[0].mxu0 %v109
  %v386 = vpop.f32.mrb[0].mxu0
  %v387 = vadd.f32 %v64, %v386
  %v388 = vpop.f32.mrb[0].mxu0
  %v389 = vadd.f32 %v68, %v388
  %390 = vmatprep.mubr.f32.mxu0 0.0
  %391 = vmatmul.mubr.f32.gmra.mrb[0].mxu0 %v112
  %v392 = vpop.f32.mrb[0].mxu0
  %v393 = vadd.f32 %v64, %v392
  %v394 = vpop.f32.mrb[0].mxu0
  %v395 = vadd.f32 %v68, %v394
  %396 = vdwg.mxu0
  %397 = vst [vmem:[#allocation2] sm:$0xff] %v190
  %398 = vst [vmem:[#allocation2 + $0x8] sm:$0xff] %v192
  %399 = vst [vmem:[#allocation2 + $0x10] sm:$0xff] %v327
  %400 = vst [vmem:[#allocation2 + $0x18] sm:$0xff] %v329
  %401 = vst [vmem:[#allocation2 + $0x20] sm:$0xff] %v196
  %402 = vst [vmem:[#allocation2 + $0x28] sm:$0xff] %v198
  %403 = vst [vmem:[#allocation2 + $0x30] sm:$0xff] %v333
  %404 = vst [vmem:[#allocation2 + $0x38] sm:$0xff] %v335
  %405 = vst [vmem:[#allocation2 + $0x40] sm:$0xff] %v202
  %406 = vst [vmem:[#allocation2 + $0x48] sm:$0xff] %v204
  %407 = vst [vmem:[#allocation2 + $0x50] sm:$0xff] %v339
  %408 = vst [vmem:[#allocation2 + $0x58] sm:$0xff] %v341
  %409 = vst [vmem:[#allocation2 + $0x60] sm:$0xff] %v208
  %410 = vst [vmem:[#allocation2 + $0x68] sm:$0xff] %v210
  %411 = vst [vmem:[#allocation2 + $0x70] sm:$0xff] %v345
  %412 = vst [vmem:[#allocation2 + $0x78] sm:$0xff] %v347
  %413 = vst [vmem:[#allocation2 + $0x80] sm:$0xff] %v214
  %414 = vst [vmem:[#allocation2 + $0x88] sm:$0xff] %v216
  %415 = vst [vmem:[#allocation2 + $0x90] sm:$0xff] %v351
  %416 = vst [vmem:[#allocation2 + $0x98] sm:$0xff] %v353
  %417 = vst [vmem:[#allocation2 + $0xa0] sm:$0xff] %v220
  %418 = vst [vmem:[#allocation2 + $0xa8] sm:$0xff] %v222
  %419 = vst [vmem:[#allocation2 + $0xb0] sm:$0xff] %v357
  %420 = vst [vmem:[#allocation2 + $0xb8] sm:$0xff] %v359
  %421 = vst [vmem:[#allocation2 + $0xc0] sm:$0xff] %v226
  %422 = vst [vmem:[#allocation2 + $0xc8] sm:$0xff] %v228
  %423 = vst [vmem:[#allocation2 + $0xd0] sm:$0xff] %v363
  %424 = vst [vmem:[#allocation2 + $0xd8] sm:$0xff] %v365
  %425 = vst [vmem:[#allocation2 + $0xe0] sm:$0xff] %v232
  %426 = vst [vmem:[#allocation2 + $0xe8] sm:$0xff] %v234
  %427 = vst [vmem:[#allocation2 + $0xf0] sm:$0xff] %v369
  %428 = vst [vmem:[#allocation2 + $0xf8] sm:$0xff] %v371
  %429 = vst [vmem:[#allocation2 + $0x100] sm:$0xff] %v238
  %430 = vst [vmem:[#allocation2 + $0x108] sm:$0xff] %v240
  %431 = vst [vmem:[#allocation2 + $0x110] sm:$0xff] %v375
  %432 = vst [vmem:[#allocation2 + $0x118] sm:$0xff] %v377
  %433 = vst [vmem:[#allocation2 + $0x120] sm:$0xff] %v244
  %434 = vst [vmem:[#allocation2 + $0x128] sm:$0xff] %v246
  %435 = vst [vmem:[#allocation2 + $0x130] sm:$0xff] %v381
  %436 = vst [vmem:[#allocation2 + $0x138] sm:$0xff] %v383
  %437 = vst [vmem:[#allocation2 + $0x140] sm:$0xff] %v250
  %438 = vst [vmem:[#allocation2 + $0x148] sm:$0xff] %v252
  %439 = vst [vmem:[#allocation2 + $0x150] sm:$0xff] %v387
  %440 = vst [vmem:[#allocation2 + $0x158] sm:$0xff] %v389
  %441 = vst [vmem:[#allocation2 + $0x160] sm:$0xff] %v256
  %442 = vst [vmem:[#allocation2 + $0x168] sm:$0xff] %v258
  %443 = vst [vmem:[#allocation2 + $0x170] sm:$0xff] %v393
  %444 = vst [vmem:[#allocation2 + $0x178] sm:$0xff] %v395
  %v445 = vld [vmem:[%s5] sm:$0xf]
  %v446 = vld [vmem:[#allocation2] sm:$0xff]
  %v447 = vld [vmem:[#allocation2 + $0x8] sm:$0xff]
  %v448 = vld [vmem:[#allocation2 + $0x10] sm:$0xff]
  %v449 = vld [vmem:[#allocation2 + $0x18] sm:$0xff]
  %v450 = vld [vmem:[%s2] sm:$0xff]
  %v451 = vld [vmem:[%s2 + $0x8] sm:$0xff]
  %v452 = vld [vmem:[%s2 + $0x10] sm:$0xff]
  %v453 = vld [vmem:[%s2 + $0x18] sm:$0xff]
  %v454 = vld [vmem:[%s2 + $0x20] sm:$0xff]
  %v455 = vld [vmem:[%s2 + $0x28] sm:$0xff]
  %v456 = vld [vmem:[%s2 + $0x30] sm:$0xff]
  %v457 = vld [vmem:[%s2 + $0x38] sm:$0xff]
  %v458 = vld [vmem:[%s2 + $0x40] sm:$0xff]
  %v459 = vld [vmem:[%s2 + $0x48] sm:$0xff]
  %v460 = vld [vmem:[%s2 + $0x50] sm:$0xff]
  %v461 = vld [vmem:[%s2 + $0x58] sm:$0xff]
  %v462 = vld [vmem:[%s2 + $0x60] sm:$0xff]
  %v463 = vld [vmem:[%s2 + $0x68] sm:$0xff]
  %v464 = vld [vmem:[%s2 + $0x70] sm:$0xff]
  %v465 = vld [vmem:[%s2 + $0x78] sm:$0xff]
  %v466 = vld [vmem:[%s2 + $0x80] sm:$0xff]
  %v467 = vld [vmem:[%s2 + $0x88] sm:$0xff]
  %v468 = vld [vmem:[%s2 + $0x90] sm:$0xff]
  %v469 = vld [vmem:[%s2 + $0x98] sm:$0xff]
  %v470 = vld [vmem:[%s2 + $0xa0] sm:$0xff]
  %v471 = vld [vmem:[%s2 + $0xa8] sm:$0xff]
  %v472 = vld [vmem:[%s2 + $0xb0] sm:$0xff]
  %v473 = vld [vmem:[%s2 + $0xb8] sm:$0xff]
  %v474 = vld [vmem:[%s2 + $0xc0] sm:$0xff]
  %v475 = vld [vmem:[%s2 + $0xc8] sm:$0xff]
  %v476 = vld [vmem:[%s2 + $0xd0] sm:$0xff]
  %v477 = vld [vmem:[%s2 + $0xd8] sm:$0xff]
  %v478 = vld [vmem:[%s2 + $0xe0] sm:$0xff]
  %v479 = vld [vmem:[%s2 + $0xe8] sm:$0xff]
  %v480 = vld [vmem:[%s2 + $0xf0] sm:$0xff]
  %v481 = vld [vmem:[%s2 + $0xf8] sm:$0xff]
  %v482 = vld [vmem:[%s2 + $0x100] sm:$0xff]
  %v483 = vld [vmem:[%s2 + $0x108] sm:$0xff]
  %v484 = vld [vmem:[%s2 + $0x110] sm:$0xff]
  %v485 = vld [vmem:[%s2 + $0x118] sm:$0xff]
  %v486 = vld [vmem:[%s2 + $0x120] sm:$0xff]
  %v487 = vld [vmem:[%s2 + $0x128] sm:$0xff]
  %v488 = vld [vmem:[%s2 + $0x130] sm:$0xff]
  %v489 = vld [vmem:[%s2 + $0x138] sm:$0xff]
  %v490 = vld [vmem:[%s2 + $0x140] sm:$0xff]
  %v491 = vld [vmem:[%s2 + $0x148] sm:$0xff]
  %v492 = vld [vmem:[%s2 + $0x150] sm:$0xff]
  %v493 = vld [vmem:[%s2 + $0x158] sm:$0xff]
  %v494 = vld [vmem:[%s2 + $0x160] sm:$0xff]
  %v495 = vld [vmem:[%s2 + $0x168] sm:$0xff]
  %v496 = vld [vmem:[%s2 + $0x170] sm:$0xff]
  %v497 = vld [vmem:[%s2 + $0x178] sm:$0xff]
  %v498 = vld [vmem:[%s2 + $0x180] sm:$0xff]
  %v499 = vld [vmem:[%s2 + $0x188] sm:$0xff]
  %v500 = vld [vmem:[%s2 + $0x190] sm:$0xff]
  %v501 = vld [vmem:[%s2 + $0x198] sm:$0xff]
  %v502 = vld [vmem:[%s2 + $0x1a0] sm:$0xff]
  %v503 = vld [vmem:[%s2 + $0x1a8] sm:$0xff]
  %v504 = vld [vmem:[%s2 + $0x1b0] sm:$0xff]
  %v505 = vld [vmem:[%s2 + $0x1b8] sm:$0xff]
  %v506 = vld [vmem:[%s2 + $0x1c0] sm:$0xff]
  %v507 = vld [vmem:[%s2 + $0x1c8] sm:$0xff]
  %v508 = vld [vmem:[%s2 + $0x1d0] sm:$0xff]
  %v509 = vld [vmem:[%s2 + $0x1d8] sm:$0xff]
  %v510 = vld [vmem:[%s2 + $0x1e0] sm:$0xff]
  %v511 = vld [vmem:[%s2 + $0x1e8] sm:$0xff]
  %v512 = vld [vmem:[%s2 + $0x1f0] sm:$0xff]
  %v513 = vld [vmem:[%s2 + $0x1f8] sm:$0xff]
  %514 = vmatprep.subr.mxu0 %v451
  %515 = vmatpush1.msra.mxu0 %v450
  %516 = vmatprep.subr.mxu0 %v455
  %517 = vmatpush1.msra.mxu0 %v454
  %518 = vmatprep.subr.mxu0 %v459
  %519 = vmatpush1.msra.mxu0 %v458
  %520 = vmatprep.subr.mxu0 %v463
  %521 = vmatpush1.msra.mxu0 %v462
  %522 = vmatprep.subr.mxu0 %v467
  %523 = vmatpush1.msra.mxu0 %v466
  %524 = vmatprep.subr.mxu0 %v471
  %525 = vmatpush1.msra.mxu0 %v470
  %526 = vmatprep.subr.mxu0 %v475
  %527 = vmatpush1.msra.mxu0 %v474
  %528 = vmatprep.subr.mxu0 %v479
  %529 = vmatpush1.msra.mxu0 %v478
  %530 = vmatprep.subr.mxu0 %v483
  %531 = vmatpush1.msra.mxu0 %v482
  %532 = vmatprep.subr.mxu0 %v487
  %533 = vmatpush1.msra.mxu0 %v486
  %534 = vmatprep.subr.mxu0 %v491
  %535 = vmatpush1.msra.mxu0 %v490
  %536 = vmatprep.subr.mxu0 %v495
  %537 = vmatpush1.msra.mxu0 %v494
  %538 = vmatprep.subr.mxu0 %v499
  %539 = vmatpush1.msra.mxu0 %v498
  %540 = vmatprep.subr.mxu0 %v503
  %541 = vmatpush1.msra.mxu0 %v502
  %542 = vmatprep.subr.mxu0 %v507
  %543 = vmatpush1.msra.mxu0 %v506
  %544 = vmatprep.subr.mxu0 %v511
  %545 = vmatpush1.msra.mxu0 %v510
  %546 = vmatprep.subr.mxu0 0.0
  %547 = vmatpush1.msra.mxu0 0.0
  %548 = vmatprep.subr.mxu0 0.0
  %549 = vmatpush1.msra.mxu0 0.0
  %550 = vmatprep.subr.mxu0 0.0
  %551 = vmatpush1.msra.mxu0 0.0
  %552 = vmatprep.subr.mxu0 0.0
  %553 = vmatpush1.msra.mxu0 0.0
  %554 = vmatprep.subr.mxu0 0.0
  %555 = vmatpush1.msra.mxu0 0.0
  %556 = vmatprep.subr.mxu0 0.0
  %557 = vmatpush1.msra.mxu0 0.0
  %558 = vmatprep.subr.mxu0 0.0
  %559 = vmatpush1.msra.mxu0 0.0
  %560 = vmatprep.subr.mxu0 0.0
  %561 = vmatpush1.msra.mxu0 0.0
  %562 = vmatprep.subr.mxu0 0.0
  %563 = vmatpush1.msra.mxu0 0.0
  %564 = vmatprep.subr.mxu0 0.0
  %565 = vmatpush1.msra.mxu0 0.0
  %566 = vmatprep.subr.mxu0 0.0
  %567 = vmatpush1.msra.mxu0 0.0
  %568 = vmatprep.subr.mxu0 0.0
  %569 = vmatpush1.msra.mxu0 0.0
  %570 = vmatprep.subr.mxu0 0.0
  %571 = vmatpush1.msra.mxu0 0.0
  %572 = vmatprep.subr.mxu0 0.0
  %573 = vmatpush1.msra.mxu0 0.0
  %574 = vmatprep.subr.mxu0 0.0
  %575 = vmatpush1.msra.mxu0 0.0
  %576 = vmatprep.subr.mxu0 0.0
  %577 = vmatpush1.msra.mxu0 0.0
  %578 = vmatprep.mubr.f32.mxu0 0.0
  %579 = vmatmul.mubr.f32.gmra.mrb[0].mxu0 0.0
  %v580 = vpop.f32.mrb[0].mxu0
  %v581 = vadd.f32 0.0, %v580
  %v582 = vpop.f32.mrb[0].mxu0
  %v583 = vadd.f32 0.0, %v582
  %584 = vdwg.mxu0
  %585 = vmatprep.subr.mxu0 %v453
  %586 = vmatpush1.msra.mxu0 %v452
  %587 = vmatprep.subr.mxu0 %v457
  %588 = vmatpush1.msra.mxu0 %v456
  %589 = vmatprep.subr.mxu0 %v461
  %590 = vmatpush1.msra.mxu0 %v460
  %591 = vmatprep.subr.mxu0 %v465
  %592 = vmatpush1.msra.mxu0 %v464
  %593 = vmatprep.subr.mxu0 %v469
  %594 = vmatpush1.msra.mxu0 %v468
  %595 = vmatprep.subr.mxu0 %v473
  %596 = vmatpush1.msra.mxu0 %v472
  %597 = vmatprep.subr.mxu0 %v477
  %598 = vmatpush1.msra.mxu0 %v476
  %599 = vmatprep.subr.mxu0 %v481
  %600 = vmatpush1.msra.mxu0 %v480
  %601 = vmatprep.subr.mxu0 %v485
  %602 = vmatpush1.msra.mxu0 %v484
  %603 = vmatprep.subr.mxu0 %v489
  %604 = vmatpush1.msra.mxu0 %v488
  %605 = vmatprep.subr.mxu0 %v493
  %606 = vmatpush1.msra.mxu0 %v492
  %607 = vmatprep.subr.mxu0 %v497
  %608 = vmatpush1.msra.mxu0 %v496
  %609 = vmatprep.subr.mxu0 %v501
  %610 = vmatpush1.msra.mxu0 %v500
  %611 = vmatprep.subr.mxu0 %v505
  %612 = vmatpush1.msra.mxu0 %v504
  %613 = vmatprep.subr.mxu0 %v509
  %614 = vmatpush1.msra.mxu0 %v508
  %615 = vmatprep.subr.mxu0 %v513
  %616 = vmatpush1.msra.mxu0 %v512
  %617 = vmatprep.subr.mxu0 0.0
  %618 = vmatpush1.msra.mxu0 0.0
  %619 = vmatprep.subr.mxu0 0.0
  %620 = vmatpush1.msra.mxu0 0.0
  %621 = vmatprep.subr.mxu0 0.0
  %622 = vmatpush1.msra.mxu0 0.0
  %623 = vmatprep.subr.mxu0 0.0
  %624 = vmatpush1.msra.mxu0 0.0
  %625 = vmatprep.subr.mxu0 0.0
  %626 = vmatpush1.msra.mxu0 0.0
  %627 = vmatprep.subr.mxu0 0.0
  %628 = vmatpush1.msra.mxu0 0.0
  %629 = vmatprep.subr.mxu0 0.0
  %630 = vmatpush1.msra.mxu0 0.0
  %631 = vmatprep.subr.mxu0 0.0
  %632 = vmatpush1.msra.mxu0 0.0
  %633 = vmatprep.subr.mxu0 0.0
  %634 = vmatpush1.msra.mxu0 0.0
  %635 = vmatprep.subr.mxu0 0.0
  %636 = vmatpush1.msra.mxu0 0.0
  %637 = vmatprep.subr.mxu0 0.0
  %638 = vmatpush1.msra.mxu0 0.0
  %639 = vmatprep.subr.mxu0 0.0
  %640 = vmatpush1.msra.mxu0 0.0
  %641 = vmatprep.subr.mxu0 0.0
  %642 = vmatpush1.msra.mxu0 0.0
  %643 = vmatprep.subr.mxu0 0.0
  %644 = vmatpush1.msra.mxu0 0.0
  %645 = vmatprep.subr.mxu0 0.0
  %646 = vmatpush1.msra.mxu0 0.0
  %647 = vmatprep.subr.mxu0 0.0
  %648 = vmatpush1.msra.mxu0 0.0
  %649 = vmatprep.mubr.f32.mxu0 0.0
  %650 = vmatmul.mubr.f32.gmra.mrb[0].mxu0 0.0
  %v651 = vpop.f32.mrb[0].mxu0
  %v652 = vadd.f32 0.0, %v651
  %v653 = vpop.f32.mrb[0].mxu0
  %v654 = vadd.f32 0.0, %v653
  %655 = vdwg.mxu0
  %v656 = vadd.f32 %v446, %v581
  %v657 = vadd.f32 %v447, %v583
  %v658 = vadd.f32 %v448, %v652
  %v659 = vadd.f32 %v449, %v654
  %v660 = vxor.u32 %v656, 2147483648
  %v661 = vxor.u32 %v657, 2147483648
  %v662 = vmul.f32 %v660, 1.442695
  %v663 = vpow.pop %v662
  %v664 = vmul.f32 %v661, 1.442695
  %v665 = vpow.pop %v664
  %v666 = vadd.f32 %v663, 1.0
  %v667 = vadd.f32 %v665, 1.0
  %v668 = vrcp.pop %v666
  %v669 = vmul.f32 1.0, %v668
  %v670 = vrcp.pop %v667
  %v671 = vmul.f32 1.0, %v670
  %v672 = vtanh.pop %v658
  %v673 = vxor.u32 %v659, 2147483648
  %v674 = vmul.f32 %v673, 1.442695
  %v675 = vpow.pop %v674
  %v676 = vadd.f32 %v675, 1.0
  %v677 = vrcp.pop %v676
  %v678 = vmul.f32 1.0, %v677
  %v679 = vmul.f32 %v671, 0.0
  %v680 = vmul.f32 %v669, %v672
  %v681 = vadd.f32 %v679, %v680
  %v682 = vtanh.pop %v681
  %v683 = vmul.f32 %v678, %v682
  %v684 = vld [vmem:[%s4] sm:$0xff]
  %v685 = vld [vmem:[%s4 + $0x8] sm:$0xff]
  %v686 = vld [vmem:[%s4 + $0x10] sm:$0xff]
  %v687 = vld [vmem:[%s4 + $0x18] sm:$0xff]
  %v688 = vld [vmem:[%s4 + $0x20] sm:$0xff]
  %v689 = vld [vmem:[%s4 + $0x28] sm:$0xff]
  %v690 = vld [vmem:[%s4 + $0x30] sm:$0xff]
  %v691 = vld [vmem:[%s4 + $0x38] sm:$0xff]
  %v692 = vld [vmem:[%s4 + $0x40] sm:$0xff]
  %v693 = vld [vmem:[%s4 + $0x48] sm:$0xff]
  %v694 = vld [vmem:[%s4 + $0x50] sm:$0xff]
  %v695 = vld [vmem:[%s4 + $0x58] sm:$0xff]
  %v696 = vld [vmem:[%s4 + $0x60] sm:$0xff]
  %v697 = vld [vmem:[%s4 + $0x68] sm:$0xff]
  %v698 = vld [vmem:[%s4 + $0x70] sm:$0xff]
  %v699 = vld [vmem:[%s4 + $0x78] sm:$0xff]
  %v700 = vld [vmem:[%s4 + $0x80] sm:$0xff]
  %v701 = vld [vmem:[%s4 + $0x88] sm:$0xff]
  %v702 = vld [vmem:[%s4 + $0x90] sm:$0xff]
  %v703 = vld [vmem:[%s4 + $0x98] sm:$0xff]
  %v704 = vld [vmem:[%s4 + $0xa0] sm:$0xff]
  %v705 = vld [vmem:[%s4 + $0xa8] sm:$0xff]
  %v706 = vld [vmem:[%s4 + $0xb0] sm:$0xff]
  %v707 = vld [vmem:[%s4 + $0xb8] sm:$0xff]
  %v708 = vld [vmem:[%s4 + $0xc0] sm:$0xff]
  %v709 = vld [vmem:[%s4 + $0xc8] sm:$0xff]
  %v710 = vld [vmem:[%s4 + $0xd0] sm:$0xff]
  %v711 = vld [vmem:[%s4 + $0xd8] sm:$0xff]
  %v712 = vld [vmem:[%s4 + $0xe0] sm:$0xff]
  %v713 = vld [vmem:[%s4 + $0xe8] sm:$0xff]
  %v714 = vld [vmem:[%s4 + $0xf0] sm:$0xff]
  %v715 = vld [vmem:[%s4 + $0xf8] sm:$0xff]
  %v716 = vld [vmem:[%s4 + $0x100] sm:$0xff]
  %v717 = vld [vmem:[%s4 + $0x108] sm:$0xff]
  %v718 = vld [vmem:[%s4 + $0x110] sm:$0xff]
  %v719 = vld [vmem:[%s4 + $0x118] sm:$0xff]
  %v720 = vld [vmem:[%s4 + $0x120] sm:$0xff]
  %v721 = vld [vmem:[%s4 + $0x128] sm:$0xff]
  %v722 = vld [vmem:[%s4 + $0x130] sm:$0xff]
  %v723 = vld [vmem:[%s4 + $0x138] sm:$0xff]
  %v724 = vld [vmem:[%s4 + $0x140] sm:$0xff]
  %v725 = vld [vmem:[%s4 + $0x148] sm:$0xff]
  %v726 = vld [vmem:[%s4 + $0x150] sm:$0xff]
  %v727 = vld [vmem:[%s4 + $0x158] sm:$0xff]
  %v728 = vld [vmem:[%s4 + $0x160] sm:$0xff]
  %v729 = vld [vmem:[%s4 + $0x168] sm:$0xff]
  %v730 = vld [vmem:[%s4 + $0x170] sm:$0xff]
  %v731 = vld [vmem:[%s4 + $0x178] sm:$0xff]
  %v732 = vld [vmem:[%s4 + $0x180] sm:$0xff]
  %v733 = vld [vmem:[%s4 + $0x188] sm:$0xff]
  %v734 = vld [vmem:[%s4 + $0x190] sm:$0xff]
  %v735 = vld [vmem:[%s4 + $0x198] sm:$0xff]
  %v736 = vld [vmem:[%s4 + $0x1a0] sm:$0xff]
  %v737 = vld [vmem:[%s4 + $0x1a8] sm:$0xff]
  %v738 = vld [vmem:[%s4 + $0x1b0] sm:$0xff]
  %v739 = vld [vmem:[%s4 + $0x1b8] sm:$0xff]
  %v740 = vld [vmem:[%s4 + $0x1c0] sm:$0xff]
  %v741 = vld [vmem:[%s4 + $0x1c8] sm:$0xff]
  %v742 = vld [vmem:[%s4 + $0x1d0] sm:$0xff]
  %v743 = vld [vmem:[%s4 + $0x1d8] sm:$0xff]
  %v744 = vld [vmem:[%s4 + $0x1e0] sm:$0xff]
  %v745 = vld [vmem:[%s4 + $0x1e8] sm:$0xff]
  %v746 = vld [vmem:[%s4 + $0x1f0] sm:$0xff]
  %v747 = vld [vmem:[%s4 + $0x1f8] sm:$0xff]
  %v748 = vld [vmem:[%s4 + $0x200] sm:$0xff]
  %v749 = vld [vmem:[%s4 + $0x208] sm:$0xff]
  %v750 = vld [vmem:[%s4 + $0x210] sm:$0xff]
  %v751 = vld [vmem:[%s4 + $0x218] sm:$0xff]
  %v752 = vld [vmem:[%s4 + $0x220] sm:$0xff]
  %v753 = vld [vmem:[%s4 + $0x228] sm:$0xff]
  %v754 = vld [vmem:[%s4 + $0x230] sm:$0xff]
  %v755 = vld [vmem:[%s4 + $0x238] sm:$0xff]
  %v756 = vld [vmem:[%s4 + $0x240] sm:$0xff]
  %v757 = vld [vmem:[%s4 + $0x248] sm:$0xff]
  %v758 = vld [vmem:[%s4 + $0x250] sm:$0xff]
  %v759 = vld [vmem:[%s4 + $0x258] sm:$0xff]
  %v760 = vld [vmem:[%s4 + $0x260] sm:$0xff]
  %v761 = vld [vmem:[%s4 + $0x268] sm:$0xff]
  %v762 = vld [vmem:[%s4 + $0x270] sm:$0xff]
  %v763 = vld [vmem:[%s4 + $0x278] sm:$0xff]
  %v764 = vld [vmem:[%s4 + $0x280] sm:$0xff]
  %v765 = vld [vmem:[%s4 + $0x288] sm:$0xff]
  %v766 = vld [vmem:[%s4 + $0x290] sm:$0xff]
  %v767 = vld [vmem:[%s4 + $0x298] sm:$0xff]
  %v768 = vld [vmem:[%s4 + $0x2a0] sm:$0xff]
  %v769 = vld [vmem:[%s4 + $0x2a8] sm:$0xff]
  %v770 = vld [vmem:[%s4 + $0x2b0] sm:$0xff]
  %v771 = vld [vmem:[%s4 + $0x2b8] sm:$0xff]
  %v772 = vld [vmem:[%s4 + $0x2c0] sm:$0xff]
  %v773 = vld [vmem:[%s4 + $0x2c8] sm:$0xff]
  %v774 = vld [vmem:[%s4 + $0x2d0] sm:$0xff]
  %v775 = vld [vmem:[%s4 + $0x2d8] sm:$0xff]
  %v776 = vld [vmem:[%s4 + $0x2e0] sm:$0xff]
  %v777 = vld [vmem:[%s4 + $0x2e8] sm:$0xff]
  %v778 = vld [vmem:[%s4 + $0x2f0] sm:$0xff]
  %v779 = vld [vmem:[%s4 + $0x2f8] sm:$0xff]
  %v780 = vld [vmem:[%s4 + $0x300] sm:$0xff]
  %v781 = vld [vmem:[%s4 + $0x308] sm:$0xff]
  %v782 = vld [vmem:[%s4 + $0x310] sm:$0xff]
  %v783 = vld [vmem:[%s4 + $0x318] sm:$0xff]
  %v784 = vld [vmem:[%s4 + $0x320] sm:$0xff]
  %v785 = vld [vmem:[%s4 + $0x328] sm:$0xff]
  %v786 = vld [vmem:[%s4 + $0x330] sm:$0xff]
  %v787 = vld [vmem:[%s4 + $0x338] sm:$0xff]
  %v788 = vld [vmem:[%s4 + $0x340] sm:$0xff]
  %v789 = vld [vmem:[%s4 + $0x348] sm:$0xff]
  %v790 = vld [vmem:[%s4 + $0x350] sm:$0xff]
  %v791 = vld [vmem:[%s4 + $0x358] sm:$0xff]
  %v792 = vld [vmem:[%s4 + $0x360] sm:$0xff]
  %v793 = vld [vmem:[%s4 + $0x368] sm:$0xff]
  %v794 = vld [vmem:[%s4 + $0x370] sm:$0xff]
  %v795 = vld [vmem:[%s4 + $0x378] sm:$0xff]
  %v796 = vld [vmem:[%s4 + $0x380] sm:$0xff]
  %v797 = vld [vmem:[%s4 + $0x388] sm:$0xff]
  %v798 = vld [vmem:[%s4 + $0x390] sm:$0xff]
  %v799 = vld [vmem:[%s4 + $0x398] sm:$0xff]
  %v800 = vld [vmem:[%s4 + $0x3a0] sm:$0xff]
  %v801 = vld [vmem:[%s4 + $0x3a8] sm:$0xff]
  %v802 = vld [vmem:[%s4 + $0x3b0] sm:$0xff]
  %v803 = vld [vmem:[%s4 + $0x3b8] sm:$0xff]
  %v804 = vld [vmem:[%s4 + $0x3c0] sm:$0xff]
  %v805 = vld [vmem:[%s4 + $0x3c8] sm:$0xff]
  %v806 = vld [vmem:[%s4 + $0x3d0] sm:$0xff]
  %v807 = vld [vmem:[%s4 + $0x3d8] sm:$0xff]
  %v808 = vld [vmem:[%s4 + $0x3e0] sm:$0xff]
  %v809 = vld [vmem:[%s4 + $0x3e8] sm:$0xff]
  %v810 = vld [vmem:[%s4 + $0x3f0] sm:$0xff]
  %v811 = vld [vmem:[%s4 + $0x3f8] sm:$0xff]
  %v813 = vlaneseq
  %v814 = vshrl.u32 %v813, 7
  %v815 = vsub.s32 0, %v814
  %v816 = vrot.slane %v445, %v815
  %v817 = vlaneseq
  %v818 = vshrl.u32 %v817, 7
  %v819 = vsub.s32 1, %v818
  %v820 = vrot.slane %v445, %v819
  %v821 = vlaneseq
  %v822 = vshrl.u32 %v821, 7
  %v823 = vsub.s32 2, %v822
  %v824 = vrot.slane %v445, %v823
  %v825 = vlaneseq
  %v826 = vshrl.u32 %v825, 7
  %v827 = vsub.s32 3, %v826
  %v828 = vrot.slane %v445, %v827
  %833 = vmatprep.subr.mxu0 %v685
  %834 = vmatpush1.msra.mxu0 %v684
  %835 = vmatprep.subr.mxu0 %v689
  %836 = vmatpush1.msra.mxu0 %v688
  %837 = vmatprep.subr.mxu0 %v693
  %838 = vmatpush1.msra.mxu0 %v692
  %839 = vmatprep.subr.mxu0 %v697
  %840 = vmatpush1.msra.mxu0 %v696
  %841 = vmatprep.subr.mxu0 %v701
  %842 = vmatpush1.msra.mxu0 %v700
  %843 = vmatprep.subr.mxu0 %v705
  %844 = vmatpush1.msra.mxu0 %v704
  %845 = vmatprep.subr.mxu0 %v709
  %846 = vmatpush1.msra.mxu0 %v708
  %847 = vmatprep.subr.mxu0 %v713
  %848 = vmatpush1.msra.mxu0 %v712
  %849 = vmatprep.subr.mxu0 %v717
  %850 = vmatpush1.msra.mxu0 %v716
  %851 = vmatprep.subr.mxu0 %v721
  %852 = vmatpush1.msra.mxu0 %v720
  %853 = vmatprep.subr.mxu0 %v725
  %854 = vmatpush1.msra.mxu0 %v724
  %855 = vmatprep.subr.mxu0 %v729
  %856 = vmatpush1.msra.mxu0 %v728
  %857 = vmatprep.subr.mxu0 %v733
  %858 = vmatpush1.msra.mxu0 %v732
  %859 = vmatprep.subr.mxu0 %v737
  %860 = vmatpush1.msra.mxu0 %v736
  %861 = vmatprep.subr.mxu0 %v741
  %862 = vmatpush1.msra.mxu0 %v740
  %863 = vmatprep.subr.mxu0 %v745
  %864 = vmatpush1.msra.mxu0 %v744
  %865 = vmatprep.subr.mxu0 %v749
  %866 = vmatpush1.msra.mxu0 %v748
  %867 = vmatprep.subr.mxu0 %v753
  %868 = vmatpush1.msra.mxu0 %v752
  %869 = vmatprep.subr.mxu0 %v757
  %870 = vmatpush1.msra.mxu0 %v756
  %871 = vmatprep.subr.mxu0 %v761
  %872 = vmatpush1.msra.mxu0 %v760
  %873 = vmatprep.subr.mxu0 %v765
  %874 = vmatpush1.msra.mxu0 %v764
  %875 = vmatprep.subr.mxu0 %v769
  %876 = vmatpush1.msra.mxu0 %v768
  %877 = vmatprep.subr.mxu0 %v773
  %878 = vmatpush1.msra.mxu0 %v772
  %879 = vmatprep.subr.mxu0 %v777
  %880 = vmatpush1.msra.mxu0 %v776
  %881 = vmatprep.subr.mxu0 %v781
  %882 = vmatpush1.msra.mxu0 %v780
  %883 = vmatprep.subr.mxu0 %v785
  %884 = vmatpush1.msra.mxu0 %v784
  %885 = vmatprep.subr.mxu0 %v789
  %886 = vmatpush1.msra.mxu0 %v788
  %887 = vmatprep.subr.mxu0 %v793
  %888 = vmatpush1.msra.mxu0 %v792
  %889 = vmatprep.subr.mxu0 %v797
  %890 = vmatpush1.msra.mxu0 %v796
  %891 = vmatprep.subr.mxu0 %v801
  %892 = vmatpush1.msra.mxu0 %v800
  %893 = vmatprep.subr.mxu0 %v805
  %894 = vmatpush1.msra.mxu0 %v804
  %895 = vmatprep.subr.mxu0 %v809
  %896 = vmatpush1.msra.mxu0 %v808
  %897 = vmatprep.mubr.f32.mxu0 0.0
  %898 = vmatmul.mubr.f32.gmra.mrb[0].mxu0 %v683
  %v899 = vpop.f32.mrb[0].mxu0
  %v900 = vadd.f32 %v816, %v899
  %v901 = vpop.f32.mrb[0].mxu0
  %v902 = vadd.f32 %v820, %v901
  %903 = vdwg.mxu0
  %904 = vmatprep.subr.mxu0 %v687
  %905 = vmatpush1.msra.mxu0 %v686
  %906 = vmatprep.subr.mxu0 %v691
  %907 = vmatpush1.msra.mxu0 %v690
  %908 = vmatprep.subr.mxu0 %v695
  %909 = vmatpush1.msra.mxu0 %v694
  %910 = vmatprep.subr.mxu0 %v699
  %911 = vmatpush1.msra.mxu0 %v698
  %912 = vmatprep.subr.mxu0 %v703
  %913 = vmatpush1.msra.mxu0 %v702
  %914 = vmatprep.subr.mxu0 %v707
  %915 = vmatpush1.msra.mxu0 %v706
  %916 = vmatprep.subr.mxu0 %v711
  %917 = vmatpush1.msra.mxu0 %v710
  %918 = vmatprep.subr.mxu0 %v715
  %919 = vmatpush1.msra.mxu0 %v714
  %920 = vmatprep.subr.mxu0 %v719
  %921 = vmatpush1.msra.mxu0 %v718
  %922 = vmatprep.subr.mxu0 %v723
  %923 = vmatpush1.msra.mxu0 %v722
  %924 = vmatprep.subr.mxu0 %v727
  %925 = vmatpush1.msra.mxu0 %v726
  %926 = vmatprep.subr.mxu0 %v731
  %927 = vmatpush1.msra.mxu0 %v730
  %928 = vmatprep.subr.mxu0 %v735
  %929 = vmatpush1.msra.mxu0 %v734
  %930 = vmatprep.subr.mxu0 %v739
  %931 = vmatpush1.msra.mxu0 %v738
  %932 = vmatprep.subr.mxu0 %v743
  %933 = vmatpush1.msra.mxu0 %v742
  %934 = vmatprep.subr.mxu0 %v747
  %935 = vmatpush1.msra.mxu0 %v746
  %936 = vmatprep.subr.mxu0 %v751
  %937 = vmatpush1.msra.mxu0 %v750
  %938 = vmatprep.subr.mxu0 %v755
  %939 = vmatpush1.msra.mxu0 %v754
  %940 = vmatprep.subr.mxu0 %v759
  %941 = vmatpush1.msra.mxu0 %v758
  %942 = vmatprep.subr.mxu0 %v763
  %943 = vmatpush1.msra.mxu0 %v762
  %944 = vmatprep.subr.mxu0 %v767
  %945 = vmatpush1.msra.mxu0 %v766
  %946 = vmatprep.subr.mxu0 %v771
  %947 = vmatpush1.msra.mxu0 %v770
  %948 = vmatprep.subr.mxu0 %v775
  %949 = vmatpush1.msra.mxu0 %v774
  %950 = vmatprep.subr.mxu0 %v779
  %951 = vmatpush1.msra.mxu0 %v778
  %952 = vmatprep.subr.mxu0 %v783
  %953 = vmatpush1.msra.mxu0 %v782
  %954 = vmatprep.subr.mxu0 %v787
  %955 = vmatpush1.msra.mxu0 %v786
  %956 = vmatprep.subr.mxu0 %v791
  %957 = vmatpush1.msra.mxu0 %v790
  %958 = vmatprep.subr.mxu0 %v795
  %959 = vmatpush1.msra.mxu0 %v794
  %960 = vmatprep.subr.mxu0 %v799
  %961 = vmatpush1.msra.mxu0 %v798
  %962 = vmatprep.subr.mxu0 %v803
  %963 = vmatpush1.msra.mxu0 %v802
  %964 = vmatprep.subr.mxu0 %v807
  %965 = vmatpush1.msra.mxu0 %v806
  %966 = vmatprep.subr.mxu0 %v811
  %967 = vmatpush1.msra.mxu0 %v810
  %968 = vmatprep.mubr.f32.mxu0 0.0
  %969 = vmatmul.mubr.f32.gmra.mrb[0].mxu0 %v683
  %v970 = vpop.f32.mrb[0].mxu0
  %v971 = vadd.f32 %v824, %v970
  %v972 = vpop.f32.mrb[0].mxu0
  %v973 = vadd.f32 %v828, %v972
  %974 = vdwg.mxu0
  %v975 = vxor.u32 %v900, 2147483648
  %v976 = vxor.u32 %v902, 2147483648
  %v977 = vmul.f32 %v975, 1.442695
  %v978 = vpow.pop %v977
  %v979 = vmul.f32 %v976, 1.442695
  %v980 = vpow.pop %v979
  %v981 = vadd.f32 %v978, 1.0
  %v982 = vadd.f32 %v980, 1.0
  %v983 = vrcp.pop %v981
  %v984 = vmul.f32 1.0, %v983
  %v985 = vrcp.pop %v982
  %v986 = vmul.f32 1.0, %v985
  %v987 = vtanh.pop %v971
  %v988 = vxor.u32 %v973, 2147483648
  %v989 = vmul.f32 %v988, 1.442695
  %v990 = vpow.pop %v989
  %v991 = vadd.f32 %v990, 1.0
  %v992 = vrcp.pop %v991
  %v993 = vmul.f32 1.0, %v992
  %v994 = vmul.f32 %v986, 0.0
  %v995 = vmul.f32 %v984, %v987
  %v996 = vadd.f32 %v994, %v995
  %v997 = vtanh.pop %v996
  %v998 = vmul.f32 %v993, %v997
  %999 = vst [vmem:[#allocation3] sm:$0xff] %v998
  %v1000 = vld [vmem:[#allocation2 + $0x20] sm:$0xff]
  %v1001 = vld [vmem:[#allocation2 + $0x28] sm:$0xff]
  %v1002 = vld [vmem:[#allocation2 + $0x30] sm:$0xff]
  %v1003 = vld [vmem:[#allocation2 + $0x38] sm:$0xff]
  %v1004 = vld [vmem:[%s2] sm:$0xff]
  %v1005 = vld [vmem:[%s2 + $0x8] sm:$0xff]
  %v1006 = vld [vmem:[%s2 + $0x10] sm:$0xff]
  %v1007 = vld [vmem:[%s2 + $0x18] sm:$0xff]
  %v1008 = vld [vmem:[%s2 + $0x20] sm:$0xff]
  %v1009 = vld [vmem:[%s2 + $0x28] sm:$0xff]
  %v1010 = vld [vmem:[%s2 + $0x30] sm:$0xff]
  %v1011 = vld [vmem:[%s2 + $0x38] sm:$0xff]
  %v1012 = vld [vmem:[%s2 + $0x40] sm:$0xff]
  %v1013 = vld [vmem:[%s2 + $0x48] sm:$0xff]
  %v1014 = vld [vmem:[%s2 + $0x50] sm:$0xff]
  %v1015 = vld [vmem:[%s2 + $0x58] sm:$0xff]
  %v1016 = vld [vmem:[%s2 + $0x60] sm:$0xff]
  %v1017 = vld [vmem:[%s2 + $0x68] sm:$0xff]
  %v1018 = vld [vmem:[%s2 + $0x70] sm:$0xff]
  %v1019 = vld [vmem:[%s2 + $0x78] sm:$0xff]
  %v1020 = vld [vmem:[%s2 + $0x80] sm:$0xff]
  %v1021 = vld [vmem:[%s2 + $0x88] sm:$0xff]
  %v1022 = vld [vmem:[%s2 + $0x90] sm:$0xff]
  %v1023 = vld [vmem:[%s2 + $0x98] sm:$0xff]
  %v1024 = vld [vmem:[%s2 + $0xa0] sm:$0xff]
  %v1025 = vld [vmem:[%s2 + $0xa8] sm:$0xff]
  %v1026 = vld [vmem:[%s2 + $0xb0] sm:$0xff]
  %v1027 = vld [vmem:[%s2 + $0xb8] sm:$0xff]
  %v1028 = vld [vmem:[%s2 + $0xc0] sm:$0xff]
  %v1029 = vld [vmem:[%s2 + $0xc8] sm:$0xff]
  %v1030 = vld [vmem:[%s2 + $0xd0] sm:$0xff]
  %v1031 = vld [vmem:[%s2 + $0xd8] sm:$0xff]
  %v1032 = vld [vmem:[%s2 + $0xe0] sm:$0xff]
  %v1033 = vld [vmem:[%s2 + $0xe8] sm:$0xff]
  %v1034 = vld [vmem:[%s2 + $0xf0] sm:$0xff]
  %v1035 = vld [vmem:[%s2 + $0xf8] sm:$0xff]
  %v1036 = vld [vmem:[%s2 + $0x100] sm:$0xff]
  %v1037 = vld [vmem:[%s2 + $0x108] sm:$0xff]
  %v1038 = vld [vmem:[%s2 + $0x110] sm:$0xff]
  %v1039 = vld [vmem:[%s2 + $0x118] sm:$0xff]
  %v1040 = vld [vmem:[%s2 + $0x120] sm:$0xff]
  %v1041 = vld [vmem:[%s2 + $0x128] sm:$0xff]
  %v1042 = vld [vmem:[%s2 + $0x130] sm:$0xff]
  %v1043 = vld [vmem:[%s2 + $0x138] sm:$0xff]
  %v1044 = vld [vmem:[%s2 + $0x140] sm:$0xff]
  %v1045 = vld [vmem:[%s2 + $0x148] sm:$0xff]
  %v1046 = vld [vmem:[%s2 + $0x150] sm:$0xff]
  %v1047 = vld [vmem:[%s2 + $0x158] sm:$0xff]
  %v1048 = vld [vmem:[%s2 + $0x160] sm:$0xff]
  %v1049 = vld [vmem:[%s2 + $0x168] sm:$0xff]
  %v1050 = vld [vmem:[%s2 + $0x170] sm:$0xff]
  %v1051 = vld [vmem:[%s2 + $0x178] sm:$0xff]
  %v1052 = vld [vmem:[%s2 + $0x180] sm:$0xff]
  %v1053 = vld [vmem:[%s2 + $0x188] sm:$0xff]
  %v1054 = vld [vmem:[%s2 + $0x190] sm:$0xff]
  %v1055 = vld [vmem:[%s2 + $0x198] sm:$0xff]
  %v1056 = vld [vmem:[%s2 + $0x1a0] sm:$0xff]
  %v1057 = vld [vmem:[%s2 + $0x1a8] sm:$0xff]
  %v1058 = vld [vmem:[%s2 + $0x1b0] sm:$0xff]
  %v1059 = vld [vmem:[%s2 + $0x1b8] sm:$0xff]
  %v1060 = vld [vmem:[%s2 + $0x1c0] sm:$0xff]
  %v1061 = vld [vmem:[%s2 + $0x1c8] sm:$0xff]
  %v1062 = vld [vmem:[%s2 + $0x1d0] sm:$0xff]
  %v1063 = vld [vmem:[%s2 + $0x1d8] sm:$0xff]
  %v1064 = vld [vmem:[%s2 + $0x1e0] sm:$0xff]
  %v1065 = vld [vmem:[%s2 + $0x1e8] sm:$0xff]
  %v1066 = vld [vmem:[%s2 + $0x1f0] sm:$0xff]
  %v1067 = vld [vmem:[%s2 + $0x1f8] sm:$0xff]
  %1068 = vmatprep.subr.mxu0 %v1005
  %1069 = vmatpush1.msra.mxu0 %v1004
  %1070 = vmatprep.subr.mxu0 %v1009
  %1071 = vmatpush1.msra.mxu0 %v1008
  %1072 = vmatprep.subr.mxu0 %v1013
  %1073 = vmatpush1.msra.mxu0 %v1012
  %1074 = vmatprep.subr.mxu0 %v1017
  %1075 = vmatpush1.msra.mxu0 %v1016
  %1076 = vmatprep.subr.mxu0 %v1021
  %1077 = vmatpush1.msra.mxu0 %v1020
  %1078 = vmatprep.subr.mxu0 %v1025
  %1079 = vmatpush1.msra.mxu0 %v1024
  %1080 = vmatprep.subr.mxu0 %v1029
  %1081 = vmatpush1.msra.mxu0 %v1028
  %1082 = vmatprep.subr.mxu0 %v1033
  %1083 = vmatpush1.msra.mxu0 %v1032
  %1084 = vmatprep.subr.mxu0 %v1037
  %1085 = vmatpush1.msra.mxu0 %v1036
  %1086 = vmatprep.subr.mxu0 %v1041
  %1087 = vmatpush1.msra.mxu0 %v1040
  %1088 = vmatprep.subr.mxu0 %v1045
  %1089 = vmatpush1.msra.mxu0 %v1044
  %1090 = vmatprep.subr.mxu0 %v1049
  %1091 = vmatpush1.msra.mxu0 %v1048
  %1092 = vmatprep.subr.mxu0 %v1053
  %1093 = vmatpush1.msra.mxu0 %v1052
  %1094 = vmatprep.subr.mxu0 %v1057
  %1095 = vmatpush1.msra.mxu0 %v1056
  %1096 = vmatprep.subr.mxu0 %v1061
  %1097 = vmatpush1.msra.mxu0 %v1060
  %1098 = vmatprep.subr.mxu0 %v1065
  %1099 = vmatpush1.msra.mxu0 %v1064
  %1100 = vmatprep.subr.mxu0 0.0
  %1101 = vmatpush1.msra.mxu0 0.0
  %1102 = vmatprep.subr.mxu0 0.0
  %1103 = vmatpush1.msra.mxu0 0.0
  %1104 = vmatprep.subr.mxu0 0.0
  %1105 = vmatpush1.msra.mxu0 0.0
  %1106 = vmatprep.subr.mxu0 0.0
  %1107 = vmatpush1.msra.mxu0 0.0
  %1108 = vmatprep.subr.mxu0 0.0
  %1109 = vmatpush1.msra.mxu0 0.0
  %1110 = vmatprep.subr.mxu0 0.0
  %1111 = vmatpush1.msra.mxu0 0.0
  %1112 = vmatprep.subr.mxu0 0.0
  %1113 = vmatpush1.msra.mxu0 0.0
  %1114 = vmatprep.subr.mxu0 0.0
  %1115 = vmatpush1.msra.mxu0 0.0
  %1116 = vmatprep.subr.mxu0 0.0
  %1117 = vmatpush1.msra.mxu0 0.0
  %1118 = vmatprep.subr.mxu0 0.0
  %1119 = vmatpush1.msra.mxu0 0.0
  %1120 = vmatprep.subr.mxu0 0.0
  %1121 = vmatpush1.msra.mxu0 0.0
  %1122 = vmatprep.subr.mxu0 0.0
  %1123 = vmatpush1.msra.mxu0 0.0
  %1124 = vmatprep.subr.mxu0 0.0
  %1125 = vmatpush1.msra.mxu0 0.0
  %1126 = vmatprep.subr.mxu0 0.0
  %1127 = vmatpush1.msra.mxu0 0.0
  %1128 = vmatprep.subr.mxu0 0.0
  %1129 = vmatpush1.msra.mxu0 0.0
  %1130 = vmatprep.subr.mxu0 0.0
  %1131 = vmatpush1.msra.mxu0 0.0
  %1132 = vmatprep.mubr.f32.mxu0 0.0
  %1133 = vmatmul.mubr.f32.gmra.mrb[0].mxu0 %v683
  %v1134 = vpop.f32.mrb[0].mxu0
  %v1135 = vadd.f32 0.0, %v1134
  %v1136 = vpop.f32.mrb[0].mxu0
  %v1137 = vadd.f32 0.0, %v1136
  %1138 = vdwg.mxu0
  %1139 = vmatprep.subr.mxu0 %v1007
  %1140 = vmatpush1.msra.mxu0 %v1006
  %1141 = vmatprep.subr.mxu0 %v1011
  %1142 = vmatpush1.msra.mxu0 %v1010
  %1143 = vmatprep.subr.mxu0 %v1015
  %1144 = vmatpush1.msra.mxu0 %v1014
  %1145 = vmatprep.subr.mxu0 %v1019
  %1146 = vmatpush1.msra.mxu0 %v1018
  %1147 = vmatprep.subr.mxu0 %v1023
  %1148 = vmatpush1.msra.mxu0 %v1022
  %1149 = vmatprep.subr.mxu0 %v1027
  %1150 = vmatpush1.msra.mxu0 %v1026
  %1151 = vmatprep.subr.mxu0 %v1031
  %1152 = vmatpush1.msra.mxu0 %v1030
  %1153 = vmatprep.subr.mxu0 %v1035
  %1154 = vmatpush1.msra.mxu0 %v1034
  %1155 = vmatprep.subr.mxu0 %v1039
  %1156 = vmatpush1.msra.mxu0 %v1038
  %1157 = vmatprep.subr.mxu0 %v1043
  %1158 = vmatpush1.msra.mxu0 %v1042
  %1159 = vmatprep.subr.mxu0 %v1047
  %1160 = vmatpush1.msra.mxu0 %v1046
  %1161 = vmatprep.subr.mxu0 %v1051
  %1162 = vmatpush1.msra.mxu0 %v1050
  %1163 = vmatprep.subr.mxu0 %v1055
  %1164 = vmatpush1.msra.mxu0 %v1054
  %1165 = vmatprep.subr.mxu0 %v1059
  %1166 = vmatpush1.msra.mxu0 %v1058
  %1167 = vmatprep.subr.mxu0 %v1063
  %1168 = vmatpush1.msra.mxu0 %v1062
  %1169 = vmatprep.subr.mxu0 %v1067
  %1170 = vmatpush1.msra.mxu0 %v1066
  %1171 = vmatprep.subr.mxu0 0.0
  %1172 = vmatpush1.msra.mxu0 0.0
  %1173 = vmatprep.subr.mxu0 0.0
  %1174 = vmatpush1.msra.mxu0 0.0
  %1175 = vmatprep.subr.mxu0 0.0
  %1176 = vmatpush1.msra.mxu0 0.0
  %1177 = vmatprep.subr.mxu0 0.0
  %1178 = vmatpush1.msra.mxu0 0.0
  %1179 = vmatprep.subr.mxu0 0.0
  %1180 = vmatpush1.msra.mxu0 0.0
  %1181 = vmatprep.subr.mxu0 0.0
  %1182 = vmatpush1.msra.mxu0 0.0
  %1183 = vmatprep.subr.mxu0 0.0
  %1184 = vmatpush1.msra.mxu0 0.0
  %1185 = vmatprep.subr.mxu0 0.0
  %1186 = vmatpush1.msra.mxu0 0.0
  %1187 = vmatprep.subr.mxu0 0.0
  %1188 = vmatpush1.msra.mxu0 0.0
  %1189 = vmatprep.subr.mxu0 0.0
  %1190 = vmatpush1.msra.mxu0 0.0
  %1191 = vmatprep.subr.mxu0 0.0
  %1192 = vmatpush1.msra.mxu0 0.0
  %1193 = vmatprep.subr.mxu0 0.0
  %1194 = vmatpush1.msra.mxu0 0.0
  %1195 = vmatprep.subr.mxu0 0.0
  %1196 = vmatpush1.msra.mxu0 0.0
  %1197 = vmatprep.subr.mxu0 0.0
  %1198 = vmatpush1.msra.mxu0 0.0
  %1199 = vmatprep.subr.mxu0 0.0
  %1200 = vmatpush1.msra.mxu0 0.0
  %1201 = vmatprep.subr.mxu0 0.0
  %1202 = vmatpush1.msra.mxu0 0.0
  %1203 = vmatprep.mubr.f32.mxu0 0.0
  %1204 = vmatmul.mubr.f32.gmra.mrb[0].mxu0 %v683
  %v1205 = vpop.f32.mrb[0].mxu0
  %v1206 = vadd.f32 0.0, %v1205
  %v1207 = vpop.f32.mrb[0].mxu0
  %v1208 = vadd.f32 0.0, %v1207
  %1209 = vdwg.mxu0
  %v1210 = vadd.f32 %v1000, %v1135
  %v1211 = vadd.f32 %v1001, %v1137
  %v1212 = vadd.f32 %v1002, %v1206
  %v1213 = vadd.f32 %v1003, %v1208
  %v1214 = vxor.u32 %v1210, 2147483648
  %v1215 = vxor.u32 %v1211, 2147483648
  %v1216 = vmul.f32 %v1214, 1.442695
  %v1217 = vpow.pop %v1216
  %v1218 = vmul.f32 %v1215, 1.442695
  %v1219 = vpow.pop %v1218
  %v1220 = vadd.f32 %v1217, 1.0
  %v1221 = vadd.f32 %v1219, 1.0
  %v1222 = vrcp.pop %v1220
  %v1223 = vmul.f32 1.0, %v1222
  %v1224 = vrcp.pop %v1221
  %v1225 = vmul.f32 1.0, %v1224
  %v1226 = vtanh.pop %v1212
  %v1227 = vxor.u32 %v1213, 2147483648
  %v1228 = vmul.f32 %v1227, 1.442695
  %v1229 = vpow.pop %v1228
  %v1230 = vadd.f32 %v1229, 1.0
  %v1231 = vrcp.pop %v1230
  %v1232 = vmul.f32 1.0, %v1231
  %v1233 = vmul.f32 %v1225, %v681
  %v1234 = vmul.f32 %v1223, %v1226
  %v1235 = vadd.f32 %v1233, %v1234
  %v1236 = vtanh.pop %v1235
  %v1237 = vmul.f32 %v1232, %v1236
  %v1238 = vld [vmem:[%s4] sm:$0xff]
  %v1239 = vld [vmem:[%s4 + $0x8] sm:$0xff]
  %v1240 = vld [vmem:[%s4 + $0x10] sm:$0xff]
  %v1241 = vld [vmem:[%s4 + $0x18] sm:$0xff]
  %v1242 = vld [vmem:[%s4 + $0x20] sm:$0xff]
  %v1243 = vld [vmem:[%s4 + $0x28] sm:$0xff]
  %v1244 = vld [vmem:[%s4 + $0x30] sm:$0xff]
  %v1245 = vld [vmem:[%s4 + $0x38] sm:$0xff]
  %v1246 = vld [vmem:[%s4 + $0x40] sm:$0xff]
  %v1247 = vld [vmem:[%s4 + $0x48] sm:$0xff]
  %v1248 = vld [vmem:[%s4 + $0x50] sm:$0xff]
  %v1249 = vld [vmem:[%s4 + $0x58] sm:$0xff]
  %v1250 = vld [vmem:[%s4 + $0x60] sm:$0xff]
  %v1251 = vld [vmem:[%s4 + $0x68] sm:$0xff]
  %v1252 = vld [vmem:[%s4 + $0x70] sm:$0xff]
  %v1253 = vld [vmem:[%s4 + $0x78] sm:$0xff]
  %v1254 = vld [vmem:[%s4 + $0x80] sm:$0xff]
  %v1255 = vld [vmem:[%s4 + $0x88] sm:$0xff]
  %v1256 = vld [vmem:[%s4 + $0x90] sm:$0xff]
  %v1257 = vld [vmem:[%s4 + $0x98] sm:$0xff]
  %v1258 = vld [vmem:[%s4 + $0xa0] sm:$0xff]
  %v1259 = vld [vmem:[%s4 + $0xa8] sm:$0xff]
  %v1260 = vld [vmem:[%s4 + $0xb0] sm:$0xff]
  %v1261 = vld [vmem:[%s4 + $0xb8] sm:$0xff]
  %v1262 = vld [vmem:[%s4 + $0xc0] sm:$0xff]
  %v1263 = vld [vmem:[%s4 + $0xc8] sm:$0xff]
  %v1264 = vld [vmem:[%s4 + $0xd0] sm:$0xff]
  %v1265 = vld [vmem:[%s4 + $0xd8] sm:$0xff]
  %v1266 = vld [vmem:[%s4 + $0xe0] sm:$0xff]
  %v1267 = vld [vmem:[%s4 + $0xe8] sm:$0xff]
  %v1268 = vld [vmem:[%s4 + $0xf0] sm:$0xff]
  %v1269 = vld [vmem:[%s4 + $0xf8] sm:$0xff]
  %v1270 = vld [vmem:[%s4 + $0x100] sm:$0xff]
  %v1271 = vld [vmem:[%s4 + $0x108] sm:$0xff]
  %v1272 = vld [vmem:[%s4 + $0x110] sm:$0xff]
  %v1273 = vld [vmem:[%s4 + $0x118] sm:$0xff]
  %v1274 = vld [vmem:[%s4 + $0x120] sm:$0xff]
  %v1275 = vld [vmem:[%s4 + $0x128] sm:$0xff]
  %v1276 = vld [vmem:[%s4 + $0x130] sm:$0xff]
  %v1277 = vld [vmem:[%s4 + $0x138] sm:$0xff]
  %v1278 = vld [vmem:[%s4 + $0x140] sm:$0xff]
  %v1279 = vld [vmem:[%s4 + $0x148] sm:$0xff]
  %v1280 = vld [vmem:[%s4 + $0x150] sm:$0xff]
  %v1281 = vld [vmem:[%s4 + $0x158] sm:$0xff]
  %v1282 = vld [vmem:[%s4 + $0x160] sm:$0xff]
  %v1283 = vld [vmem:[%s4 + $0x168] sm:$0xff]
  %v1284 = vld [vmem:[%s4 + $0x170] sm:$0xff]
  %v1285 = vld [vmem:[%s4 + $0x178] sm:$0xff]
  %v1286 = vld [vmem:[%s4 + $0x180] sm:$0xff]
  %v1287 = vld [vmem:[%s4 + $0x188] sm:$0xff]
  %v1288 = vld [vmem:[%s4 + $0x190] sm:$0xff]
  %v1289 = vld [vmem:[%s4 + $0x198] sm:$0xff]
  %v1290 = vld [vmem:[%s4 + $0x1a0] sm:$0xff]
  %v1291 = vld [vmem:[%s4 + $0x1a8] sm:$0xff]
  %v1292 = vld [vmem:[%s4 + $0x1b0] sm:$0xff]
  %v1293 = vld [vmem:[%s4 + $0x1b8] sm:$0xff]
  %v1294 = vld [vmem:[%s4 + $0x1c0] sm:$0xff]
  %v1295 = vld [vmem:[%s4 + $0x1c8] sm:$0xff]
  %v1296 = vld [vmem:[%s4 + $0x1d0] sm:$0xff]
  %v1297 = vld [vmem:[%s4 + $0x1d8] sm:$0xff]
  %v1298 = vld [vmem:[%s4 + $0x1e0] sm:$0xff]
  %v1299 = vld [vmem:[%s4 + $0x1e8] sm:$0xff]
  %v1300 = vld [vmem:[%s4 + $0x1f0] sm:$0xff]
  %v1301 = vld [vmem:[%s4 + $0x1f8] sm:$0xff]
  %v1302 = vld [vmem:[%s4 + $0x200] sm:$0xff]
  %v1303 = vld [vmem:[%s4 + $0x208] sm:$0xff]
  %v1304 = vld [vmem:[%s4 + $0x210] sm:$0xff]
  %v1305 = vld [vmem:[%s4 + $0x218] sm:$0xff]
  %v1306 = vld [vmem:[%s4 + $0x220] sm:$0xff]
  %v1307 = vld [vmem:[%s4 + $0x228] sm:$0xff]
  %v1308 = vld [vmem:[%s4 + $0x230] sm:$0xff]
  %v1309 = vld [vmem:[%s4 + $0x238] sm:$0xff]
  %v1310 = vld [vmem:[%s4 + $0x240] sm:$0xff]
  %v1311 = vld [vmem:[%s4 + $0x248] sm:$0xff]
  %v1312 = vld [vmem:[%s4 + $0x250] sm:$0xff]
  %v1313 = vld [vmem:[%s4 + $0x258] sm:$0xff]
  %v1314 = vld [vmem:[%s4 + $0x260] sm:$0xff]
  %v1315 = vld [vmem:[%s4 + $0x268] sm:$0xff]
  %v1316 = vld [vmem:[%s4 + $0x270] sm:$0xff]
  %v1317 = vld [vmem:[%s4 + $0x278] sm:$0xff]
  %v1318 = vld [vmem:[%s4 + $0x280] sm:$0xff]
  %v1319 = vld [vmem:[%s4 + $0x288] sm:$0xff]
  %v1320 = vld [vmem:[%s4 + $0x290] sm:$0xff]
  %v1321 = vld [vmem:[%s4 + $0x298] sm:$0xff]
  %v1322 = vld [vmem:[%s4 + $0x2a0] sm:$0xff]
  %v1323 = vld [vmem:[%s4 + $0x2a8] sm:$0xff]
  %v1324 = vld [vmem:[%s4 + $0x2b0] sm:$0xff]
  %v1325 = vld [vmem:[%s4 + $0x2b8] sm:$0xff]
  %v1326 = vld [vmem:[%s4 + $0x2c0] sm:$0xff]
  %v1327 = vld [vmem:[%s4 + $0x2c8] sm:$0xff]
  %v1328 = vld [vmem:[%s4 + $0x2d0] sm:$0xff]
  %v1329 = vld [vmem:[%s4 + $0x2d8] sm:$0xff]
  %v1330 = vld [vmem:[%s4 + $0x2e0] sm:$0xff]
  %v1331 = vld [vmem:[%s4 + $0x2e8] sm:$0xff]
  %v1332 = vld [vmem:[%s4 + $0x2f0] sm:$0xff]
  %v1333 = vld [vmem:[%s4 + $0x2f8] sm:$0xff]
  %v1334 = vld [vmem:[%s4 + $0x300] sm:$0xff]
  %v1335 = vld [vmem:[%s4 + $0x308] sm:$0xff]
  %v1336 = vld [vmem:[%s4 + $0x310] sm:$0xff]
  %v1337 = vld [vmem:[%s4 + $0x318] sm:$0xff]
  %v1338 = vld [vmem:[%s4 + $0x320] sm:$0xff]
  %v1339 = vld [vmem:[%s4 + $0x328] sm:$0xff]
  %v1340 = vld [vmem:[%s4 + $0x330] sm:$0xff]
  %v1341 = vld [vmem:[%s4 + $0x338] sm:$0xff]
  %v1342 = vld [vmem:[%s4 + $0x340] sm:$0xff]
  %v1343 = vld [vmem:[%s4 + $0x348] sm:$0xff]
  %v1344 = vld [vmem:[%s4 + $0x350] sm:$0xff]
  %v1345 = vld [vmem:[%s4 + $0x358] sm:$0xff]
  %v1346 = vld [vmem:[%s4 + $0x360] sm:$0xff]
  %v1347 = vld [vmem:[%s4 + $0x368] sm:$0xff]
  %v1348 = vld [vmem:[%s4 + $0x370] sm:$0xff]
  %v1349 = vld [vmem:[%s4 + $0x378] sm:$0xff]
  %v1350 = vld [vmem:[%s4 + $0x380] sm:$0xff]
  %v1351 = vld [vmem:[%s4 + $0x388] sm:$0xff]
  %v1352 = vld [vmem:[%s4 + $0x390] sm:$0xff]
  %v1353 = vld [vmem:[%s4 + $0x398] sm:$0xff]
  %v1354 = vld [vmem:[%s4 + $0x3a0] sm:$0xff]
  %v1355 = vld [vmem:[%s4 + $0x3a8] sm:$0xff]
  %v1356 = vld [vmem:[%s4 + $0x3b0] sm:$0xff]
  %v1357 = vld [vmem:[%s4 + $0x3b8] sm:$0xff]
  %v1358 = vld [vmem:[%s4 + $0x3c0] sm:$0xff]
  %v1359 = vld [vmem:[%s4 + $0x3c8] sm:$0xff]
  %v1360 = vld [vmem:[%s4 + $0x3d0] sm:$0xff]
  %v1361 = vld [vmem:[%s4 + $0x3d8] sm:$0xff]
  %v1362 = vld [vmem:[%s4 + $0x3e0] sm:$0xff]
  %v1363 = vld [vmem:[%s4 + $0x3e8] sm:$0xff]
  %v1364 = vld [vmem:[%s4 + $0x3f0] sm:$0xff]
  %v1365 = vld [vmem:[%s4 + $0x3f8] sm:$0xff]
  %1366 = vmatprep.subr.mxu0 %v1239
  %1367 = vmatpush1.msra.mxu0 %v1238
  %1368 = vmatprep.subr.mxu0 %v1243
  %1369 = vmatpush1.msra.mxu0 %v1242
  %1370 = vmatprep.subr.mxu0 %v1247
  %1371 = vmatpush1.msra.mxu0 %v1246
  %1372 = vmatprep.subr.mxu0 %v1251
  %1373 = vmatpush1.msra.mxu0 %v1250
  %1374 = vmatprep.subr.mxu0 %v1255
  %1375 = vmatpush1.msra.mxu0 %v1254
  %1376 = vmatprep.subr.mxu0 %v1259
  %1377 = vmatpush1.msra.mxu0 %v1258
  %1378 = vmatprep.subr.mxu0 %v1263
  %1379 = vmatpush1.msra.mxu0 %v1262
  %1380 = vmatprep.subr.mxu0 %v1267
  %1381 = vmatpush1.msra.mxu0 %v1266
  %1382 = vmatprep.subr.mxu0 %v1271
  %1383 = vmatpush1.msra.mxu0 %v1270
  %1384 = vmatprep.subr.mxu0 %v1275
  %1385 = vmatpush1.msra.mxu0 %v1274
  %1386 = vmatprep.subr.mxu0 %v1279
  %1387 = vmatpush1.msra.mxu0 %v1278
  %1388 = vmatprep.subr.mxu0 %v1283
  %1389 = vmatpush1.msra.mxu0 %v1282
  %1390 = vmatprep.subr.mxu0 %v1287
  %1391 = vmatpush1.msra.mxu0 %v1286
  %1392 = vmatprep.subr.mxu0 %v1291
  %1393 = vmatpush1.msra.mxu0 %v1290
  %1394 = vmatprep.subr.mxu0 %v1295
  %1395 = vmatpush1.msra.mxu0 %v1294
  %1396 = vmatprep.subr.mxu0 %v1299
  %1397 = vmatpush1.msra.mxu0 %v1298
  %1398 = vmatprep.subr.mxu0 %v1303
  %1399 = vmatpush1.msra.mxu0 %v1302
  %1400 = vmatprep.subr.mxu0 %v1307
  %1401 = vmatpush1.msra.mxu0 %v1306
  %1402 = vmatprep.subr.mxu0 %v1311
  %1403 = vmatpush1.msra.mxu0 %v1310
  %1404 = vmatprep.subr.mxu0 %v1315
  %1405 = vmatpush1.msra.mxu0 %v1314
  %1406 = vmatprep.subr.mxu0 %v1319
  %1407 = vmatpush1.msra.mxu0 %v1318
  %1408 = vmatprep.subr.mxu0 %v1323
  %1409 = vmatpush1.msra.mxu0 %v1322
  %1410 = vmatprep.subr.mxu0 %v1327
  %1411 = vmatpush1.msra.mxu0 %v1326
  %1412 = vmatprep.subr.mxu0 %v1331
  %1413 = vmatpush1.msra.mxu0 %v1330
  %1414 = vmatprep.subr.mxu0 %v1335
  %1415 = vmatpush1.msra.mxu0 %v1334
  %1416 = vmatprep.subr.mxu0 %v1339
  %1417 = vmatpush1.msra.mxu0 %v1338
  %1418 = vmatprep.subr.mxu0 %v1343
  %1419 = vmatpush1.msra.mxu0 %v1342
  %1420 = vmatprep.subr.mxu0 %v1347
  %1421 = vmatpush1.msra.mxu0 %v1346
  %1422 = vmatprep.subr.mxu0 %v1351
  %1423 = vmatpush1.msra.mxu0 %v1350
  %1424 = vmatprep.subr.mxu0 %v1355
  %1425 = vmatpush1.msra.mxu0 %v1354
  %1426 = vmatprep.subr.mxu0 %v1359
  %1427 = vmatpush1.msra.mxu0 %v1358
  %1428 = vmatprep.subr.mxu0 %v1363
  %1429 = vmatpush1.msra.mxu0 %v1362
  %1430 = vmatprep.mubr.f32.mxu0 %v998
  %1431 = vmatmul.mubr.f32.gmra.mrb[0].mxu0 %v1237
  %v1432 = vpop.f32.mrb[0].mxu0
  %v1433 = vadd.f32 %v816, %v1432
  %v1434 = vpop.f32.mrb[0].mxu0
  %v1435 = vadd.f32 %v820, %v1434
  %1436 = vdwg.mxu0
  %1437 = vmatprep.subr.mxu0 %v1241
  %1438 = vmatpush1.msra.mxu0 %v1240
  %1439 = vmatprep.subr.mxu0 %v1245
  %1440 = vmatpush1.msra.mxu0 %v1244
  %1441 = vmatprep.subr.mxu0 %v1249
  %1442 = vmatpush1.msra.mxu0 %v1248
  %1443 = vmatprep.subr.mxu0 %v1253
  %1444 = vmatpush1.msra.mxu0 %v1252
  %1445 = vmatprep.subr.mxu0 %v1257
  %1446 = vmatpush1.msra.mxu0 %v1256
  %1447 = vmatprep.subr.mxu0 %v1261
  %1448 = vmatpush1.msra.mxu0 %v1260
  %1449 = vmatprep.subr.mxu0 %v1265
  %1450 = vmatpush1.msra.mxu0 %v1264
  %1451 = vmatprep.subr.mxu0 %v1269
  %1452 = vmatpush1.msra.mxu0 %v1268
  %1453 = vmatprep.subr.mxu0 %v1273
  %1454 = vmatpush1.msra.mxu0 %v1272
  %1455 = vmatprep.subr.mxu0 %v1277
  %1456 = vmatpush1.msra.mxu0 %v1276
  %1457 = vmatprep.subr.mxu0 %v1281
  %1458 = vmatpush1.msra.mxu0 %v1280
  %1459 = vmatprep.subr.mxu0 %v1285
  %1460 = vmatpush1.msra.mxu0 %v1284
  %1461 = vmatprep.subr.mxu0 %v1289
  %1462 = vmatpush1.msra.mxu0 %v1288
  %1463 = vmatprep.subr.mxu0 %v1293
  %1464 = vmatpush1.msra.mxu0 %v1292
  %1465 = vmatprep.subr.mxu0 %v1297
  %1466 = vmatpush1.msra.mxu0 %v1296
  %1467 = vmatprep.subr.mxu0 %v1301
  %1468 = vmatpush1.msra.mxu0 %v1300
  %1469 = vmatprep.subr.mxu0 %v1305
  %1470 = vmatpush1.msra.mxu0 %v1304
  %1471 = vmatprep.subr.mxu0 %v1309
  %1472 = vmatpush1.msra.mxu0 %v1308
  %1473 = vmatprep.subr.mxu0 %v1313
  %1474 = vmatpush1.msra.mxu0 %v1312
  %1475 = vmatprep.subr.mxu0 %v1317
  %1476 = vmatpush1.msra.mxu0 %v1316
  %1477 = vmatprep.subr.mxu0 %v1321
  %1478 = vmatpush1.msra.mxu0 %v1320
  %1479 = vmatprep.subr.mxu0 %v1325
  %1480 = vmatpush1.msra.mxu0 %v1324
  %1481 = vmatprep.subr.mxu0 %v1329
  %1482 = vmatpush1.msra.mxu0 %v1328
  %1483 = vmatprep.subr.mxu0 %v1333
  %1484 = vmatpush1.msra.mxu0 %v1332
  %1485 = vmatprep.subr.mxu0 %v1337
  %1486 = vmatpush1.msra.mxu0 %v1336
  %1487 = vmatprep.subr.mxu0 %v1341
  %1488 = vmatpush1.msra.mxu0 %v1340
  %1489 = vmatprep.subr.mxu0 %v1345
  %1490 = vmatpush1.msra.mxu0 %v1344
  %1491 = vmatprep.subr.mxu0 %v1349
  %1492 = vmatpush1.msra.mxu0 %v1348
  %1493 = vmatprep.subr.mxu0 %v1353
  %1494 = vmatpush1.msra.mxu0 %v1352
  %1495 = vmatprep.subr.mxu0 %v1357
  %1496 = vmatpush1.msra.mxu0 %v1356
  %1497 = vmatprep.subr.mxu0 %v1361
  %1498 = vmatpush1.msra.mxu0 %v1360
  %1499 = vmatprep.subr.mxu0 %v1365
  %1500 = vmatpush1.msra.mxu0 %v1364
  %1501 = vmatprep.mubr.f32.mxu0 %v998
  %1502 = vmatmul.mubr.f32.gmra.mrb[0].mxu0 %v1237
  %v1503 = vpop.f32.mrb[0].mxu0
  %v1504 = vadd.f32 %v824, %v1503
  %v1505 = vpop.f32.mrb[0].mxu0
  %v1506 = vadd.f32 %v828, %v1505
  %1507 = vdwg.mxu0
  %v1508 = vxor.u32 %v1433, 2147483648
  %v1509 = vxor.u32 %v1435, 2147483648
  %v1510 = vmul.f32 %v1508, 1.442695
  %v1511 = vpow.pop %v1510
  %v1512 = vmul.f32 %v1509, 1.442695
  %v1513 = vpow.pop %v1512
  %v1514 = vadd.f32 %v1511, 1.0
  %v1515 = vadd.f32 %v1513, 1.0
  %v1516 = vrcp.pop %v1514
  %v1517 = vmul.f32 1.0, %v1516
  %v1518 = vrcp.pop %v1515
  %v1519 = vmul.f32 1.0, %v1518
  %v1520 = vtanh.pop %v1504
  %v1521 = vxor.u32 %v1506, 2147483648
  %v1522 = vmul.f32 %v1521, 1.442695
  %v1523 = vpow.pop %v1522
  %v1524 = vadd.f32 %v1523, 1.0
  %v1525 = vrcp.pop %v1524
  %v1526 = vmul.f32 1.0, %v1525
  %v1527 = vmul.f32 %v1519, %v996
  %v1528 = vmul.f32 %v1517, %v1520
  %v1529 = vadd.f32 %v1527, %v1528
  %v1530 = vtanh.pop %v1529
  %v1531 = vmul.f32 %v1526, %v1530
  %1532 = vst [vmem:[#allocation3 + $0x8] sm:$0xff] %v1531
  %v1533 = vld [vmem:[#allocation2 + $0x40] sm:$0xff]
  %v1534 = vld [vmem:[#allocation2 + $0x48] sm:$0xff]
  %v1535 = vld [vmem:[#allocation2 + $0x50] sm:$0xff]
  %v1536 = vld [vmem:[#allocation2 + $0x58] sm:$0xff]
  %v1537 = vld [vmem:[%s2] sm:$0xff]
  %v1538 = vld [vmem:[%s2 + $0x8] sm:$0xff]
  %v1539 = vld [vmem:[%s2 + $0x10] sm:$0xff]
  %v1540 = vld [vmem:[%s2 + $0x18] sm:$0xff]
  %v1541 = vld [vmem:[%s2 + $0x20] sm:$0xff]
  %v1542 = vld [vmem:[%s2 + $0x28] sm:$0xff]
  %v1543 = vld [vmem:[%s2 + $0x30] sm:$0xff]
  %v1544 = vld [vmem:[%s2 + $0x38] sm:$0xff]
  %v1545 = vld [vmem:[%s2 + $0x40] sm:$0xff]
  %v1546 = vld [vmem:[%s2 + $0x48] sm:$0xff]
  %v1547 = vld [vmem:[%s2 + $0x50] sm:$0xff]
  %v1548 = vld [vmem:[%s2 + $0x58] sm:$0xff]
  %v1549 = vld [vmem:[%s2 + $0x60] sm:$0xff]
  %v1550 = vld [vmem:[%s2 + $0x68] sm:$0xff]
  %v1551 = vld [vmem:[%s2 + $0x70] sm:$0xff]
  %v1552 = vld [vmem:[%s2 + $0x78] sm:$0xff]
  %v1553 = vld [vmem:[%s2 + $0x80] sm:$0xff]
  %v1554 = vld [vmem:[%s2 + $0x88] sm:$0xff]
  %v1555 = vld [vmem:[%s2 + $0x90] sm:$0xff]
  %v1556 = vld [vmem:[%s2 + $0x98] sm:$0xff]
  %v1557 = vld [vmem:[%s2 + $0xa0] sm:$0xff]
  %v1558 = vld [vmem:[%s2 + $0xa8] sm:$0xff]
  %v1559 = vld [vmem:[%s2 + $0xb0] sm:$0xff]
  %v1560 = vld [vmem:[%s2 + $0xb8] sm:$0xff]
  %v1561 = vld [vmem:[%s2 + $0xc0] sm:$0xff]
  %v1562 = vld [vmem:[%s2 + $0xc8] sm:$0xff]
  %v1563 = vld [vmem:[%s2 + $0xd0] sm:$0xff]
  %v1564 = vld [vmem:[%s2 + $0xd8] sm:$0xff]
  %v1565 = vld [vmem:[%s2 + $0xe0] sm:$0xff]
  %v1566 = vld [vmem:[%s2 + $0xe8] sm:$0xff]
  %v1567 = vld [vmem:[%s2 + $0xf0] sm:$0xff]
  %v1568 = vld [vmem:[%s2 + $0xf8] sm:$0xff]
  %v1569 = vld [vmem:[%s2 + $0x100] sm:$0xff]
  %v1570 = vld [vmem:[%s2 + $0x108] sm:$0xff]
  %v1571 = vld [vmem:[%s2 + $0x110] sm:$0xff]
  %v1572 = vld [vmem:[%s2 + $0x118] sm:$0xff]
  %v1573 = vld [vmem:[%s2 + $0x120] sm:$0xff]
  %v1574 = vld [vmem:[%s2 + $0x128] sm:$0xff]
  %v1575 = vld [vmem:[%s2 + $0x130] sm:$0xff]
  %v1576 = vld [vmem:[%s2 + $0x138] sm:$0xff]
  %v1577 = vld [vmem:[%s2 + $0x140] sm:$0xff]
  %v1578 = vld [vmem:[%s2 + $0x148] sm:$0xff]
  %v1579 = vld [vmem:[%s2 + $0x150] sm:$0xff]
  %v1580 = vld [vmem:[%s2 + $0x158] sm:$0xff]
  %v1581 = vld [vmem:[%s2 + $0x160] sm:$0xff]
  %v1582 = vld [vmem:[%s2 + $0x168] sm:$0xff]
  %v1583 = vld [vmem:[%s2 + $0x170] sm:$0xff]
  %v1584 = vld [vmem:[%s2 + $0x178] sm:$0xff]
  %v1585 = vld [vmem:[%s2 + $0x180] sm:$0xff]
  %v1586 = vld [vmem:[%s2 + $0x188] sm:$0xff]
  %v1587 = vld [vmem:[%s2 + $0x190] sm:$0xff]
  %v1588 = vld [vmem:[%s2 + $0x198] sm:$0xff]
  %v1589 = vld [vmem:[%s2 + $0x1a0] sm:$0xff]
  %v1590 = vld [vmem:[%s2 + $0x1a8] sm:$0xff]
  %v1591 = vld [vmem:[%s2 + $0x1b0] sm:$0xff]
  %v1592 = vld [vmem:[%s2 + $0x1b8] sm:$0xff]
  %v1593 = vld [vmem:[%s2 + $0x1c0] sm:$0xff]
  %v1594 = vld [vmem:[%s2 + $0x1c8] sm:$0xff]
  %v1595 = vld [vmem:[%s2 + $0x1d0] sm:$0xff]
  %v1596 = vld [vmem:[%s2 + $0x1d8] sm:$0xff]
  %v1597 = vld [vmem:[%s2 + $0x1e0] sm:$0xff]
  %v1598 = vld [vmem:[%s2 + $0x1e8] sm:$0xff]
  %v1599 = vld [vmem:[%s2 + $0x1f0] sm:$0xff]
  %v1600 = vld [vmem:[%s2 + $0x1f8] sm:$0xff]
  %1601 = vmatprep.subr.mxu0 %v1538
  %1602 = vmatpush1.msra.mxu0 %v1537
  %1603 = vmatprep.subr.mxu0 %v1542
  %1604 = vmatpush1.msra.mxu0 %v1541
  %1605 = vmatprep.subr.mxu0 %v1546
  %1606 = vmatpush1.msra.mxu0 %v1545
  %1607 = vmatprep.subr.mxu0 %v1550
  %1608 = vmatpush1.msra.mxu0 %v1549
  %1609 = vmatprep.subr.mxu0 %v1554
  %1610 = vmatpush1.msra.mxu0 %v1553
  %1611 = vmatprep.subr.mxu0 %v1558
  %1612 = vmatpush1.msra.mxu0 %v1557
  %1613 = vmatprep.subr.mxu0 %v1562
  %1614 = vmatpush1.msra.mxu0 %v1561
  %1615 = vmatprep.subr.mxu0 %v1566
  %1616 = vmatpush1.msra.mxu0 %v1565
  %1617 = vmatprep.subr.mxu0 %v1570
  %1618 = vmatpush1.msra.mxu0 %v1569
  %1619 = vmatprep.subr.mxu0 %v1574
  %1620 = vmatpush1.msra.mxu0 %v1573
  %1621 = vmatprep.subr.mxu0 %v1578
  %1622 = vmatpush1.msra.mxu0 %v1577
  %1623 = vmatprep.subr.mxu0 %v1582
  %1624 = vmatpush1.msra.mxu0 %v1581
  %1625 = vmatprep.subr.mxu0 %v1586
  %1626 = vmatpush1.msra.mxu0 %v1585
  %1627 = vmatprep.subr.mxu0 %v1590
  %1628 = vmatpush1.msra.mxu0 %v1589
  %1629 = vmatprep.subr.mxu0 %v1594
  %1630 = vmatpush1.msra.mxu0 %v1593
  %1631 = vmatprep.subr.mxu0 %v1598
  %1632 = vmatpush1.msra.mxu0 %v1597
  %1633 = vmatprep.subr.mxu0 0.0
  %1634 = vmatpush1.msra.mxu0 0.0
  %1635 = vmatprep.subr.mxu0 0.0
  %1636 = vmatpush1.msra.mxu0 0.0
  %1637 = vmatprep.subr.mxu0 0.0
  %1638 = vmatpush1.msra.mxu0 0.0
  %1639 = vmatprep.subr.mxu0 0.0
  %1640 = vmatpush1.msra.mxu0 0.0
  %1641 = vmatprep.subr.mxu0 0.0
  %1642 = vmatpush1.msra.mxu0 0.0
  %1643 = vmatprep.subr.mxu0 0.0
  %1644 = vmatpush1.msra.mxu0 0.0
  %1645 = vmatprep.subr.mxu0 0.0
  %1646 = vmatpush1.msra.mxu0 0.0
  %1647 = vmatprep.subr.mxu0 0.0
  %1648 = vmatpush1.msra.mxu0 0.0
  %1649 = vmatprep.subr.mxu0 0.0
  %1650 = vmatpush1.msra.mxu0 0.0
  %1651 = vmatprep.subr.mxu0 0.0
  %1652 = vmatpush1.msra.mxu0 0.0
  %1653 = vmatprep.subr.mxu0 0.0
  %1654 = vmatpush1.msra.mxu0 0.0
  %1655 = vmatprep.subr.mxu0 0.0
  %1656 = vmatpush1.msra.mxu0 0.0
  %1657 = vmatprep.subr.mxu0 0.0
  %1658 = vmatpush1.msra.mxu0 0.0
  %1659 = vmatprep.subr.mxu0 0.0
  %1660 = vmatpush1.msra.mxu0 0.0
  %1661 = vmatprep.subr.mxu0 0.0
  %1662 = vmatpush1.msra.mxu0 0.0
  %1663 = vmatprep.subr.mxu0 0.0
  %1664 = vmatpush1.msra.mxu0 0.0
  %1665 = vmatprep.mubr.f32.mxu0 0.0
  %1666 = vmatmul.mubr.f32.gmra.mrb[0].mxu0 %v1237
  %v1667 = vpop.f32.mrb[0].mxu0
  %v1668 = vadd.f32 0.0, %v1667
  %v1669 = vpop.f32.mrb[0].mxu0
  %v1670 = vadd.f32 0.0, %v1669
  %1671 = vdwg.mxu0
  %1672 = vmatprep.subr.mxu0 %v1540
  %1673 = vmatpush1.msra.mxu0 %v1539
  %1674 = vmatprep.subr.mxu0 %v1544
  %1675 = vmatpush1.msra.mxu0 %v1543
  %1676 = vmatprep.subr.mxu0 %v1548
  %1677 = vmatpush1.msra.mxu0 %v1547
  %1678 = vmatprep.subr.mxu0 %v1552
  %1679 = vmatpush1.msra.mxu0 %v1551
  %1680 = vmatprep.subr.mxu0 %v1556
  %1681 = vmatpush1.msra.mxu0 %v1555
  %1682 = vmatprep.subr.mxu0 %v1560
  %1683 = vmatpush1.msra.mxu0 %v1559
  %1684 = vmatprep.subr.mxu0 %v1564
  %1685 = vmatpush1.msra.mxu0 %v1563
  %1686 = vmatprep.subr.mxu0 %v1568
  %1687 = vmatpush1.msra.mxu0 %v1567
  %1688 = vmatprep.subr.mxu0 %v1572
  %1689 = vmatpush1.msra.mxu0 %v1571
  %1690 = vmatprep.subr.mxu0 %v1576
  %1691 = vmatpush1.msra.mxu0 %v1575
  %1692 = vmatprep.subr.mxu0 %v1580
  %1693 = vmatpush1.msra.mxu0 %v1579
  %1694 = vmatprep.subr.mxu0 %v1584
  %1695 = vmatpush1.msra.mxu0 %v1583
  %1696 = vmatprep.subr.mxu0 %v1588
  %1697 = vmatpush1.msra.mxu0 %v1587
  %1698 = vmatprep.subr.mxu0 %v1592
  %1699 = vmatpush1.msra.mxu0 %v1591
  %1700 = vmatprep.subr.mxu0 %v1596
  %1701 = vmatpush1.msra.mxu0 %v1595
  %1702 = vmatprep.subr.mxu0 %v1600
  %1703 = vmatpush1.msra.mxu0 %v1599
  %1704 = vmatprep.subr.mxu0 0.0
  %1705 = vmatpush1.msra.mxu0 0.0
  %1706 = vmatprep.subr.mxu0 0.0
  %1707 = vmatpush1.msra.mxu0 0.0
  %1708 = vmatprep.subr.mxu0 0.0
  %1709 = vmatpush1.msra.mxu0 0.0
  %1710 = vmatprep.subr.mxu0 0.0
  %1711 = vmatpush1.msra.mxu0 0.0
  %1712 = vmatprep.subr.mxu0 0.0
  %1713 = vmatpush1.msra.mxu0 0.0
  %1714 = vmatprep.subr.mxu0 0.0
  %1715 = vmatpush1.msra.mxu0 0.0
  %1716 = vmatprep.subr.mxu0 0.0
  %1717 = vmatpush1.msra.mxu0 0.0
  %1718 = vmatprep.subr.mxu0 0.0
  %1719 = vmatpush1.msra.mxu0 0.0
  %1720 = vmatprep.subr.mxu0 0.0
  %1721 = vmatpush1.msra.mxu0 0.0
  %1722 = vmatprep.subr.mxu0 0.0
  %1723 = vmatpush1.msra.mxu0 0.0
  %1724 = vmatprep.subr.mxu0 0.0
  %1725 = vmatpush1.msra.mxu0 0.0
  %1726 = vmatprep.subr.mxu0 0.0
  %1727 = vmatpush1.msra.mxu0 0.0
  %1728 = vmatprep.subr.mxu0 0.0
  %1729 = vmatpush1.msra.mxu0 0.0
  %1730 = vmatprep.subr.mxu0 0.0
  %1731 = vmatpush1.msra.mxu0 0.0
  %1732 = vmatprep.subr.mxu0 0.0
  %1733 = vmatpush1.msra.mxu0 0.0
  %1734 = vmatprep.subr.mxu0 0.0
  %1735 = vmatpush1.msra.mxu0 0.0
  %1736 = vmatprep.mubr.f32.mxu0 0.0
  %1737 = vmatmul.mubr.f32.gmra.mrb[0].mxu0 %v1237
  %v1738 = vpop.f32.mrb[0].mxu0
  %v1739 = vadd.f32 0.0, %v1738
  %v1740 = vpop.f32.mrb[0].mxu0
  %v1741 = vadd.f32 0.0, %v1740
  %1742 = vdwg.mxu0
  %v1743 = vadd.f32 %v1533, %v1668
  %v1744 = vadd.f32 %v1534, %v1670
  %v1745 = vadd.f32 %v1535, %v1739
  %v1746 = vadd.f32 %v1536, %v1741
  %v1747 = vxor.u32 %v1743, 2147483648
  %v1748 = vxor.u32 %v1744, 2147483648
  %v1749 = vmul.f32 %v1747, 1.442695
  %v1750 = vpow.pop %v1749
  %v1751 = vmul.f32 %v1748, 1.442695
  %v1752 = vpow.pop %v1751
  %v1753 = vadd.f32 %v1750, 1.0
  %v1754 = vadd.f32 %v1752, 1.0
  %v1755 = vrcp.pop %v1753
  %v1756 = vmul.f32 1.0, %v1755
  %v1757 = vrcp.pop %v1754
  %v1758 = vmul.f32 1.0, %v1757
  %v1759 = vtanh.pop %v1745
  %v1760 = vxor.u32 %v1746, 2147483648
  %v1761 = vmul.f32 %v1760, 1.442695
  %v1762 = vpow.pop %v1761
  %v1763 = vadd.f32 %v1762, 1.0
  %v1764 = vrcp.pop %v1763
  %v1765 = vmul.f32 1.0, %v1764
  %v1766 = vmul.f32 %v1758, %v1235
  %v1767 = vmul.f32 %v1756, %v1759
  %v1768 = vadd.f32 %v1766, %v1767
  %v1769 = vtanh.pop %v1768
  %v1770 = vmul.f32 %v1765, %v1769
  %v1771 = vld [vmem:[%s4] sm:$0xff]
  %v1772 = vld [vmem:[%s4 + $0x8] sm:$0xff]
  %v1773 = vld [vmem:[%s4 + $0x10] sm:$0xff]
  %v1774 = vld [vmem:[%s4 + $0x18] sm:$0xff]
  %v1775 = vld [vmem:[%s4 + $0x20] sm:$0xff]
  %v1776 = vld [vmem:[%s4 + $0x28] sm:$0xff]
  %v1777 = vld [vmem:[%s4 + $0x30] sm:$0xff]
  %v1778 = vld [vmem:[%s4 + $0x38] sm:$0xff]
  %v1779 = vld [vmem:[%s4 + $0x40] sm:$0xff]
  %v1780 = vld [vmem:[%s4 + $0x48] sm:$0xff]
  %v1781 = vld [vmem:[%s4 + $0x50] sm:$0xff]
  %v1782 = vld [vmem:[%s4 + $0x58] sm:$0xff]
  %v1783 = vld [vmem:[%s4 + $0x60] sm:$0xff]
  %v1784 = vld [vmem:[%s4 + $0x68] sm:$0xff]
  %v1785 = vld [vmem:[%s4 + $0x70] sm:$0xff]
  %v1786 = vld [vmem:[%s4 + $0x78] sm:$0xff]
  %v1787 = vld [vmem:[%s4 + $0x80] sm:$0xff]
  %v1788 = vld [vmem:[%s4 + $0x88] sm:$0xff]
  %v1789 = vld [vmem:[%s4 + $0x90] sm:$0xff]
  %v1790 = vld [vmem:[%s4 + $0x98] sm:$0xff]
  %v1791 = vld [vmem:[%s4 + $0xa0] sm:$0xff]
  %v1792 = vld [vmem:[%s4 + $0xa8] sm:$0xff]
  %v1793 = vld [vmem:[%s4 + $0xb0] sm:$0xff]
  %v1794 = vld [vmem:[%s4 + $0xb8] sm:$0xff]
  %v1795 = vld [vmem:[%s4 + $0xc0] sm:$0xff]
  %v1796 = vld [vmem:[%s4 + $0xc8] sm:$0xff]
  %v1797 = vld [vmem:[%s4 + $0xd0] sm:$0xff]
  %v1798 = vld [vmem:[%s4 + $0xd8] sm:$0xff]
  %v1799 = vld [vmem:[%s4 + $0xe0] sm:$0xff]
  %v1800 = vld [vmem:[%s4 + $0xe8] sm:$0xff]
  %v1801 = vld [vmem:[%s4 + $0xf0] sm:$0xff]
  %v1802 = vld [vmem:[%s4 + $0xf8] sm:$0xff]
  %v1803 = vld [vmem:[%s4 + $0x100] sm:$0xff]
  %v1804 = vld [vmem:[%s4 + $0x108] sm:$0xff]
  %v1805 = vld [vmem:[%s4 + $0x110] sm:$0xff]
  %v1806 = vld [vmem:[%s4 + $0x118] sm:$0xff]
  %v1807 = vld [vmem:[%s4 + $0x120] sm:$0xff]
  %v1808 = vld [vmem:[%s4 + $0x128] sm:$0xff]
  %v1809 = vld [vmem:[%s4 + $0x130] sm:$0xff]
  %v1810 = vld [vmem:[%s4 + $0x138] sm:$0xff]
  %v1811 = vld [vmem:[%s4 + $0x140] sm:$0xff]
  %v1812 = vld [vmem:[%s4 + $0x148] sm:$0xff]
  %v1813 = vld [vmem:[%s4 + $0x150] sm:$0xff]
  %v1814 = vld [vmem:[%s4 + $0x158] sm:$0xff]
  %v1815 = vld [vmem:[%s4 + $0x160] sm:$0xff]
  %v1816 = vld [vmem:[%s4 + $0x168] sm:$0xff]
  %v1817 = vld [vmem:[%s4 + $0x170] sm:$0xff]
  %v1818 = vld [vmem:[%s4 + $0x178] sm:$0xff]
  %v1819 = vld [vmem:[%s4 + $0x180] sm:$0xff]
  %v1820 = vld [vmem:[%s4 + $0x188] sm:$0xff]
  %v1821 = vld [vmem:[%s4 + $0x190] sm:$0xff]
  %v1822 = vld [vmem:[%s4 + $0x198] sm:$0xff]
  %v1823 = vld [vmem:[%s4 + $0x1a0] sm:$0xff]
  %v1824 = vld [vmem:[%s4 + $0x1a8] sm:$0xff]
  %v1825 = vld [vmem:[%s4 + $0x1b0] sm:$0xff]
  %v1826 = vld [vmem:[%s4 + $0x1b8] sm:$0xff]
  %v1827 = vld [vmem:[%s4 + $0x1c0] sm:$0xff]
  %v1828 = vld [vmem:[%s4 + $0x1c8] sm:$0xff]
  %v1829 = vld [vmem:[%s4 + $0x1d0] sm:$0xff]
  %v1830 = vld [vmem:[%s4 + $0x1d8] sm:$0xff]
  %v1831 = vld [vmem:[%s4 + $0x1e0] sm:$0xff]
  %v1832 = vld [vmem:[%s4 + $0x1e8] sm:$0xff]
  %v1833 = vld [vmem:[%s4 + $0x1f0] sm:$0xff]
  %v1834 = vld [vmem:[%s4 + $0x1f8] sm:$0xff]
  %v1835 = vld [vmem:[%s4 + $0x200] sm:$0xff]
  %v1836 = vld [vmem:[%s4 + $0x208] sm:$0xff]
  %v1837 = vld [vmem:[%s4 + $0x210] sm:$0xff]
  %v1838 = vld [vmem:[%s4 + $0x218] sm:$0xff]
  %v1839 = vld [vmem:[%s4 + $0x220] sm:$0xff]
  %v1840 = vld [vmem:[%s4 + $0x228] sm:$0xff]
  %v1841 = vld [vmem:[%s4 + $0x230] sm:$0xff]
  %v1842 = vld [vmem:[%s4 + $0x238] sm:$0xff]
  %v1843 = vld [vmem:[%s4 + $0x240] sm:$0xff]
  %v1844 = vld [vmem:[%s4 + $0x248] sm:$0xff]
  %v1845 = vld [vmem:[%s4 + $0x250] sm:$0xff]
  %v1846 = vld [vmem:[%s4 + $0x258] sm:$0xff]
  %v1847 = vld [vmem:[%s4 + $0x260] sm:$0xff]
  %v1848 = vld [vmem:[%s4 + $0x268] sm:$0xff]
  %v1849 = vld [vmem:[%s4 + $0x270] sm:$0xff]
  %v1850 = vld [vmem:[%s4 + $0x278] sm:$0xff]
  %v1851 = vld [vmem:[%s4 + $0x280] sm:$0xff]
  %v1852 = vld [vmem:[%s4 + $0x288] sm:$0xff]
  %v1853 = vld [vmem:[%s4 + $0x290] sm:$0xff]
  %v1854 = vld [vmem:[%s4 + $0x298] sm:$0xff]
  %v1855 = vld [vmem:[%s4 + $0x2a0] sm:$0xff]
  %v1856 = vld [vmem:[%s4 + $0x2a8] sm:$0xff]
  %v1857 = vld [vmem:[%s4 + $0x2b0] sm:$0xff]
  %v1858 = vld [vmem:[%s4 + $0x2b8] sm:$0xff]
  %v1859 = vld [vmem:[%s4 + $0x2c0] sm:$0xff]
  %v1860 = vld [vmem:[%s4 + $0x2c8] sm:$0xff]
  %v1861 = vld [vmem:[%s4 + $0x2d0] sm:$0xff]
  %v1862 = vld [vmem:[%s4 + $0x2d8] sm:$0xff]
  %v1863 = vld [vmem:[%s4 + $0x2e0] sm:$0xff]
  %v1864 = vld [vmem:[%s4 + $0x2e8] sm:$0xff]
  %v1865 = vld [vmem:[%s4 + $0x2f0] sm:$0xff]
  %v1866 = vld [vmem:[%s4 + $0x2f8] sm:$0xff]
  %v1867 = vld [vmem:[%s4 + $0x300] sm:$0xff]
  %v1868 = vld [vmem:[%s4 + $0x308] sm:$0xff]
  %v1869 = vld [vmem:[%s4 + $0x310] sm:$0xff]
  %v1870 = vld [vmem:[%s4 + $0x318] sm:$0xff]
  %v1871 = vld [vmem:[%s4 + $0x320] sm:$0xff]
  %v1872 = vld [vmem:[%s4 + $0x328] sm:$0xff]
  %v1873 = vld [vmem:[%s4 + $0x330] sm:$0xff]
  %v1874 = vld [vmem:[%s4 + $0x338] sm:$0xff]
  %v1875 = vld [vmem:[%s4 + $0x340] sm:$0xff]
  %v1876 = vld [vmem:[%s4 + $0x348] sm:$0xff]
  %v1877 = vld [vmem:[%s4 + $0x350] sm:$0xff]
  %v1878 = vld [vmem:[%s4 + $0x358] sm:$0xff]
  %v1879 = vld [vmem:[%s4 + $0x360] sm:$0xff]
  %v1880 = vld [vmem:[%s4 + $0x368] sm:$0xff]
  %v1881 = vld [vmem:[%s4 + $0x370] sm:$0xff]
  %v1882 = vld [vmem:[%s4 + $0x378] sm:$0xff]
  %v1883 = vld [vmem:[%s4 + $0x380] sm:$0xff]
  %v1884 = vld [vmem:[%s4 + $0x388] sm:$0xff]
  %v1885 = vld [vmem:[%s4 + $0x390] sm:$0xff]
  %v1886 = vld [vmem:[%s4 + $0x398] sm:$0xff]
  %v1887 = vld [vmem:[%s4 + $0x3a0] sm:$0xff]
  %v1888 = vld [vmem:[%s4 + $0x3a8] sm:$0xff]
  %v1889 = vld [vmem:[%s4 + $0x3b0] sm:$0xff]
  %v1890 = vld [vmem:[%s4 + $0x3b8] sm:$0xff]
  %v1891 = vld [vmem:[%s4 + $0x3c0] sm:$0xff]
  %v1892 = vld [vmem:[%s4 + $0x3c8] sm:$0xff]
  %v1893 = vld [vmem:[%s4 + $0x3d0] sm:$0xff]
  %v1894 = vld [vmem:[%s4 + $0x3d8] sm:$0xff]
  %v1895 = vld [vmem:[%s4 + $0x3e0] sm:$0xff]
  %v1896 = vld [vmem:[%s4 + $0x3e8] sm:$0xff]
  %v1897 = vld [vmem:[%s4 + $0x3f0] sm:$0xff]
  %v1898 = vld [vmem:[%s4 + $0x3f8] sm:$0xff]
  %1899 = vmatprep.subr.mxu0 %v1772
  %1900 = vmatpush1.msra.mxu0 %v1771
  %1901 = vmatprep.subr.mxu0 %v1776
  %1902 = vmatpush1.msra.mxu0 %v1775
  %1903 = vmatprep.subr.mxu0 %v1780
  %1904 = vmatpush1.msra.mxu0 %v1779
  %1905 = vmatprep.subr.mxu0 %v1784
  %1906 = vmatpush1.msra.mxu0 %v1783
  %1907 = vmatprep.subr.mxu0 %v1788
  %1908 = vmatpush1.msra.mxu0 %v1787
  %1909 = vmatprep.subr.mxu0 %v1792
  %1910 = vmatpush1.msra.mxu0 %v1791
  %1911 = vmatprep.subr.mxu0 %v1796
  %1912 = vmatpush1.msra.mxu0 %v1795
  %1913 = vmatprep.subr.mxu0 %v1800
  %1914 = vmatpush1.msra.mxu0 %v1799
  %1915 = vmatprep.subr.mxu0 %v1804
  %1916 = vmatpush1.msra.mxu0 %v1803
  %1917 = vmatprep.subr.mxu0 %v1808
  %1918 = vmatpush1.msra.mxu0 %v1807
  %1919 = vmatprep.subr.mxu0 %v1812
  %1920 = vmatpush1.msra.mxu0 %v1811
  %1921 = vmatprep.subr.mxu0 %v1816
  %1922 = vmatpush1.msra.mxu0 %v1815
  %1923 = vmatprep.subr.mxu0 %v1820
  %1924 = vmatpush1.msra.mxu0 %v1819
  %1925 = vmatprep.subr.mxu0 %v1824
  %1926 = vmatpush1.msra.mxu0 %v1823
  %1927 = vmatprep.subr.mxu0 %v1828
  %1928 = vmatpush1.msra.mxu0 %v1827
  %1929 = vmatprep.subr.mxu0 %v1832
  %1930 = vmatpush1.msra.mxu0 %v1831
  %1931 = vmatprep.subr.mxu0 %v1836
  %1932 = vmatpush1.msra.mxu0 %v1835
  %1933 = vmatprep.subr.mxu0 %v1840
  %1934 = vmatpush1.msra.mxu0 %v1839
  %1935 = vmatprep.subr.mxu0 %v1844
  %1936 = vmatpush1.msra.mxu0 %v1843
  %1937 = vmatprep.subr.mxu0 %v1848
  %1938 = vmatpush1.msra.mxu0 %v1847
  %1939 = vmatprep.subr.mxu0 %v1852
  %1940 = vmatpush1.msra.mxu0 %v1851
  %1941 = vmatprep.subr.mxu0 %v1856
  %1942 = vmatpush1.msra.mxu0 %v1855
  %1943 = vmatprep.subr.mxu0 %v1860
  %1944 = vmatpush1.msra.mxu0 %v1859
  %1945 = vmatprep.subr.mxu0 %v1864
  %1946 = vmatpush1.msra.mxu0 %v1863
  %1947 = vmatprep.subr.mxu0 %v1868
  %1948 = vmatpush1.msra.mxu0 %v1867
  %1949 = vmatprep.subr.mxu0 %v1872
  %1950 = vmatpush1.msra.mxu0 %v1871
  %1951 = vmatprep.subr.mxu0 %v1876
  %1952 = vmatpush1.msra.mxu0 %v1875
  %1953 = vmatprep.subr.mxu0 %v1880
  %1954 = vmatpush1.msra.mxu0 %v1879
  %1955 = vmatprep.subr.mxu0 %v1884
  %1956 = vmatpush1.msra.mxu0 %v1883
  %1957 = vmatprep.subr.mxu0 %v1888
  %1958 = vmatpush1.msra.mxu0 %v1887
  %1959 = vmatprep.subr.mxu0 %v1892
  %1960 = vmatpush1.msra.mxu0 %v1891
  %1961 = vmatprep.subr.mxu0 %v1896
  %1962 = vmatpush1.msra.mxu0 %v1895
  %1963 = vmatprep.mubr.f32.mxu0 %v1531
  %1964 = vmatmul.mubr.f32.gmra.mrb[0].mxu0 %v1770
  %v1965 = vpop.f32.mrb[0].mxu0
  %v1966 = vadd.f32 %v816, %v1965
  %v1967 = vpop.f32.mrb[0].mxu0
  %v1968 = vadd.f32 %v820, %v1967
  %1969 = vdwg.mxu0
  %1970 = vmatprep.subr.mxu0 %v1774
  %1971 = vmatpush1.msra.mxu0 %v1773
  %1972 = vmatprep.subr.mxu0 %v1778
  %1973 = vmatpush1.msra.mxu0 %v1777
  %1974 = vmatprep.subr.mxu0 %v1782
  %1975 = vmatpush1.msra.mxu0 %v1781
  %1976 = vmatprep.subr.mxu0 %v1786
  %1977 = vmatpush1.msra.mxu0 %v1785
  %1978 = vmatprep.subr.mxu0 %v1790
  %1979 = vmatpush1.msra.mxu0 %v1789
  %1980 = vmatprep.subr.mxu0 %v1794
  %1981 = vmatpush1.msra.mxu0 %v1793
  %1982 = vmatprep.subr.mxu0 %v1798
  %1983 = vmatpush1.msra.mxu0 %v1797
  %1984 = vmatprep.subr.mxu0 %v1802
  %1985 = vmatpush1.msra.mxu0 %v1801
  %1986 = vmatprep.subr.mxu0 %v1806
  %1987 = vmatpush1.msra.mxu0 %v1805
  %1988 = vmatprep.subr.mxu0 %v1810
  %1989 = vmatpush1.msra.mxu0 %v1809
  %1990 = vmatprep.subr.mxu0 %v1814
  %1991 = vmatpush1.msra.mxu0 %v1813
  %1992 = vmatprep.subr.mxu0 %v1818
  %1993 = vmatpush1.msra.mxu0 %v1817
  %1994 = vmatprep.subr.mxu0 %v1822
  %1995 = vmatpush1.msra.mxu0 %v1821
  %1996 = vmatprep.subr.mxu0 %v1826
  %1997 = vmatpush1.msra.mxu0 %v1825
  %1998 = vmatprep.subr.mxu0 %v1830
  %1999 = vmatpush1.msra.mxu0 %v1829
  %2000 = vmatprep.subr.mxu0 %v1834
  %2001 = vmatpush1.msra.mxu0 %v1833
  %2002 = vmatprep.subr.mxu0 %v1838
  %2003 = vmatpush1.msra.mxu0 %v1837
  %2004 = vmatprep.subr.mxu0 %v1842
  %2005 = vmatpush1.msra.mxu0 %v1841
  %2006 = vmatprep.subr.mxu0 %v1846
  %2007 = vmatpush1.msra.mxu0 %v1845
  %2008 = vmatprep.subr.mxu0 %v1850
  %2009 = vmatpush1.msra.mxu0 %v1849
  %2010 = vmatprep.subr.mxu0 %v1854
  %2011 = vmatpush1.msra.mxu0 %v1853
  %2012 = vmatprep.subr.mxu0 %v1858
  %2013 = vmatpush1.msra.mxu0 %v1857
  %2014 = vmatprep.subr.mxu0 %v1862
  %2015 = vmatpush1.msra.mxu0 %v1861
  %2016 = vmatprep.subr.mxu0 %v1866
  %2017 = vmatpush1.msra.mxu0 %v1865
  %2018 = vmatprep.subr.mxu0 %v1870
  %2019 = vmatpush1.msra.mxu0 %v1869
  %2020 = vmatprep.subr.mxu0 %v1874
  %2021 = vmatpush1.msra.mxu0 %v1873
  %2022 = vmatprep.subr.mxu0 %v1878
  %2023 = vmatpush1.msra.mxu0 %v1877
  %2024 = vmatprep.subr.mxu0 %v1882
  %2025 = vmatpush1.msra.mxu0 %v1881
  %2026 = vmatprep.subr.mxu0 %v1886
  %2027 = vmatpush1.msra.mxu0 %v1885
  %2028 = vmatprep.subr.mxu0 %v1890
  %2029 = vmatpush1.msra.mxu0 %v1889
  %2030 = vmatprep.subr.mxu0 %v1894
  %2031 = vmatpush1.msra.mxu0 %v1893
  %2032 = vmatprep.subr.mxu0 %v1898
  %2033 = vmatpush1.msra.mxu0 %v1897
  %2034 = vmatprep.mubr.f32.mxu0 %v1531
  %2035 = vmatmul.mubr.f32.gmra.mrb[0].mxu0 %v1770
  %v2036 = vpop.f32.mrb[0].mxu0
  %v2037 = vadd.f32 %v824, %v2036
  %v2038 = vpop.f32.mrb[0].mxu0
  %v2039 = vadd.f32 %v828, %v2038
  %2040 = vdwg.mxu0
  %v2041 = vxor.u32 %v1966, 2147483648
  %v2042 = vxor.u32 %v1968, 2147483648
  %v2043 = vmul.f32 %v2041, 1.442695
  %v2044 = vpow.pop %v2043
  %v2045 = vmul.f32 %v2042, 1.442695
  %v2046 = vpow.pop %v2045
  %v2047 = vadd.f32 %v2044, 1.0
  %v2048 = vadd.f32 %v2046, 1.0
  %v2049 = vrcp.pop %v2047
  %v2050 = vmul.f32 1.0, %v2049
  %v2051 = vrcp.pop %v2048
  %v2052 = vmul.f32 1.0, %v2051
  %v2053 = vtanh.pop %v2037
  %v2054 = vxor.u32 %v2039, 2147483648
  %v2055 = vmul.f32 %v2054, 1.442695
  %v2056 = vpow.pop %v2055
  %v2057 = vadd.f32 %v2056, 1.0
  %v2058 = vrcp.pop %v2057
  %v2059 = vmul.f32 1.0, %v2058
  %v2060 = vmul.f32 %v2052, %v1529
  %v2061 = vmul.f32 %v2050, %v2053
  %v2062 = vadd.f32 %v2060, %v2061
  %v2063 = vtanh.pop %v2062
  %v2064 = vmul.f32 %v2059, %v2063
  %2065 = vst [vmem:[#allocation3 + $0x10] sm:$0xff] %v2064
  %v2066 = vld [vmem:[#allocation2 + $0x60] sm:$0xff]
  %v2067 = vld [vmem:[#allocation2 + $0x68] sm:$0xff]
  %v2068 = vld [vmem:[#allocation2 + $0x70] sm:$0xff]
  %v2069 = vld [vmem:[#allocation2 + $0x78] sm:$0xff]
  %v2070 = vld [vmem:[%s2] sm:$0xff]
  %v2071 = vld [vmem:[%s2 + $0x8] sm:$0xff]
  %v2072 = vld [vmem:[%s2 + $0x10] sm:$0xff]
  %v2073 = vld [vmem:[%s2 + $0x18] sm:$0xff]
  %v2074 = vld [vmem:[%s2 + $0x20] sm:$0xff]
  %v2075 = vld [vmem:[%s2 + $0x28] sm:$0xff]
  %v2076 = vld [vmem:[%s2 + $0x30] sm:$0xff]
  %v2077 = vld [vmem:[%s2 + $0x38] sm:$0xff]
  %v2078 = vld [vmem:[%s2 + $0x40] sm:$0xff]
  %v2079 = vld [vmem:[%s2 + $0x48] sm:$0xff]
  %v2080 = vld [vmem:[%s2 + $0x50] sm:$0xff]
  %v2081 = vld [vmem:[%s2 + $0x58] sm:$0xff]
  %v2082 = vld [vmem:[%s2 + $0x60] sm:$0xff]
  %v2083 = vld [vmem:[%s2 + $0x68] sm:$0xff]
  %v2084 = vld [vmem:[%s2 + $0x70] sm:$0xff]
  %v2085 = vld [vmem:[%s2 + $0x78] sm:$0xff]
  %v2086 = vld [vmem:[%s2 + $0x80] sm:$0xff]
  %v2087 = vld [vmem:[%s2 + $0x88] sm:$0xff]
  %v2088 = vld [vmem:[%s2 + $0x90] sm:$0xff]
  %v2089 = vld [vmem:[%s2 + $0x98] sm:$0xff]
  %v2090 = vld [vmem:[%s2 + $0xa0] sm:$0xff]
  %v2091 = vld [vmem:[%s2 + $0xa8] sm:$0xff]
  %v2092 = vld [vmem:[%s2 + $0xb0] sm:$0xff]
  %v2093 = vld [vmem:[%s2 + $0xb8] sm:$0xff]
  %v2094 = vld [vmem:[%s2 + $0xc0] sm:$0xff]
  %v2095 = vld [vmem:[%s2 + $0xc8] sm:$0xff]
  %v2096 = vld [vmem:[%s2 + $0xd0] sm:$0xff]
  %v2097 = vld [vmem:[%s2 + $0xd8] sm:$0xff]
  %v2098 = vld [vmem:[%s2 + $0xe0] sm:$0xff]
  %v2099 = vld [vmem:[%s2 + $0xe8] sm:$0xff]
  %v2100 = vld [vmem:[%s2 + $0xf0] sm:$0xff]
  %v2101 = vld [vmem:[%s2 + $0xf8] sm:$0xff]
  %v2102 = vld [vmem:[%s2 + $0x100] sm:$0xff]
  %v2103 = vld [vmem:[%s2 + $0x108] sm:$0xff]
  %v2104 = vld [vmem:[%s2 + $0x110] sm:$0xff]
  %v2105 = vld [vmem:[%s2 + $0x118] sm:$0xff]
  %v2106 = vld [vmem:[%s2 + $0x120] sm:$0xff]
  %v2107 = vld [vmem:[%s2 + $0x128] sm:$0xff]
  %v2108 = vld [vmem:[%s2 + $0x130] sm:$0xff]
  %v2109 = vld [vmem:[%s2 + $0x138] sm:$0xff]
  %v2110 = vld [vmem:[%s2 + $0x140] sm:$0xff]
  %v2111 = vld [vmem:[%s2 + $0x148] sm:$0xff]
  %v2112 = vld [vmem:[%s2 + $0x150] sm:$0xff]
  %v2113 = vld [vmem:[%s2 + $0x158] sm:$0xff]
  %v2114 = vld [vmem:[%s2 + $0x160] sm:$0xff]
  %v2115 = vld [vmem:[%s2 + $0x168] sm:$0xff]
  %v2116 = vld [vmem:[%s2 + $0x170] sm:$0xff]
  %v2117 = vld [vmem:[%s2 + $0x178] sm:$0xff]
  %v2118 = vld [vmem:[%s2 + $0x180] sm:$0xff]
  %v2119 = vld [vmem:[%s2 + $0x188] sm:$0xff]
  %v2120 = vld [vmem:[%s2 + $0x190] sm:$0xff]
  %v2121 = vld [vmem:[%s2 + $0x198] sm:$0xff]
  %v2122 = vld [vmem:[%s2 + $0x1a0] sm:$0xff]
  %v2123 = vld [vmem:[%s2 + $0x1a8] sm:$0xff]
  %v2124 = vld [vmem:[%s2 + $0x1b0] sm:$0xff]
  %v2125 = vld [vmem:[%s2 + $0x1b8] sm:$0xff]
  %v2126 = vld [vmem:[%s2 + $0x1c0] sm:$0xff]
  %v2127 = vld [vmem:[%s2 + $0x1c8] sm:$0xff]
  %v2128 = vld [vmem:[%s2 + $0x1d0] sm:$0xff]
  %v2129 = vld [vmem:[%s2 + $0x1d8] sm:$0xff]
  %v2130 = vld [vmem:[%s2 + $0x1e0] sm:$0xff]
  %v2131 = vld [vmem:[%s2 + $0x1e8] sm:$0xff]
  %v2132 = vld [vmem:[%s2 + $0x1f0] sm:$0xff]
  %v2133 = vld [vmem:[%s2 + $0x1f8] sm:$0xff]
  %2134 = vmatprep.subr.mxu0 %v2071
  %2135 = vmatpush1.msra.mxu0 %v2070
  %2136 = vmatprep.subr.mxu0 %v2075
  %2137 = vmatpush1.msra.mxu0 %v2074
  %2138 = vmatprep.subr.mxu0 %v2079
  %2139 = vmatpush1.msra.mxu0 %v2078
  %2140 = vmatprep.subr.mxu0 %v2083
  %2141 = vmatpush1.msra.mxu0 %v2082
  %2142 = vmatprep.subr.mxu0 %v2087
  %2143 = vmatpush1.msra.mxu0 %v2086
  %2144 = vmatprep.subr.mxu0 %v2091
  %2145 = vmatpush1.msra.mxu0 %v2090
  %2146 = vmatprep.subr.mxu0 %v2095
  %2147 = vmatpush1.msra.mxu0 %v2094
  %2148 = vmatprep.subr.mxu0 %v2099
  %2149 = vmatpush1.msra.mxu0 %v2098
  %2150 = vmatprep.subr.mxu0 %v2103
  %2151 = vmatpush1.msra.mxu0 %v2102
  %2152 = vmatprep.subr.mxu0 %v2107
  %2153 = vmatpush1.msra.mxu0 %v2106
  %2154 = vmatprep.subr.mxu0 %v2111
  %2155 = vmatpush1.msra.mxu0 %v2110
  %2156 = vmatprep.subr.mxu0 %v2115
  %2157 = vmatpush1.msra.mxu0 %v2114
  %2158 = vmatprep.subr.mxu0 %v2119
  %2159 = vmatpush1.msra.mxu0 %v2118
  %2160 = vmatprep.subr.mxu0 %v2123
  %2161 = vmatpush1.msra.mxu0 %v2122
  %2162 = vmatprep.subr.mxu0 %v2127
  %2163 = vmatpush1.msra.mxu0 %v2126
  %2164 = vmatprep.subr.mxu0 %v2131
  %2165 = vmatpush1.msra.mxu0 %v2130
  %2166 = vmatprep.subr.mxu0 0.0
  %2167 = vmatpush1.msra.mxu0 0.0
  %2168 = vmatprep.subr.mxu0 0.0
  %2169 = vmatpush1.msra.mxu0 0.0
  %2170 = vmatprep.subr.mxu0 0.0
  %2171 = vmatpush1.msra.mxu0 0.0
  %2172 = vmatprep.subr.mxu0 0.0
  %2173 = vmatpush1.msra.mxu0 0.0
  %2174 = vmatprep.subr.mxu0 0.0
  %2175 = vmatpush1.msra.mxu0 0.0
  %2176 = vmatprep.subr.mxu0 0.0
  %2177 = vmatpush1.msra.mxu0 0.0
  %2178 = vmatprep.subr.mxu0 0.0
  %2179 = vmatpush1.msra.mxu0 0.0
  %2180 = vmatprep.subr.mxu0 0.0
  %2181 = vmatpush1.msra.mxu0 0.0
  %2182 = vmatprep.subr.mxu0 0.0
  %2183 = vmatpush1.msra.mxu0 0.0
  %2184 = vmatprep.subr.mxu0 0.0
  %2185 = vmatpush1.msra.mxu0 0.0
  %2186 = vmatprep.subr.mxu0 0.0
  %2187 = vmatpush1.msra.mxu0 0.0
  %2188 = vmatprep.subr.mxu0 0.0
  %2189 = vmatpush1.msra.mxu0 0.0
  %2190 = vmatprep.subr.mxu0 0.0
  %2191 = vmatpush1.msra.mxu0 0.0
  %2192 = vmatprep.subr.mxu0 0.0
  %2193 = vmatpush1.msra.mxu0 0.0
  %2194 = vmatprep.subr.mxu0 0.0
  %2195 = vmatpush1.msra.mxu0 0.0
  %2196 = vmatprep.subr.mxu0 0.0
  %2197 = vmatpush1.msra.mxu0 0.0
  %2198 = vmatprep.mubr.f32.mxu0 0.0
  %2199 = vmatmul.mubr.f32.gmra.mrb[0].mxu0 %v1770
  %v2200 = vpop.f32.mrb[0].mxu0
  %v2201 = vadd.f32 0.0, %v2200
  %v2202 = vpop.f32.mrb[0].mxu0
  %v2203 = vadd.f32 0.0, %v2202
  %2204 = vdwg.mxu0
  %2205 = vmatprep.subr.mxu0 %v2073
  %2206 = vmatpush1.msra.mxu0 %v2072
  %2207 = vmatprep.subr.mxu0 %v2077
  %2208 = vmatpush1.msra.mxu0 %v2076
  %2209 = vmatprep.subr.mxu0 %v2081
  %2210 = vmatpush1.msra.mxu0 %v2080
  %2211 = vmatprep.subr.mxu0 %v2085
  %2212 = vmatpush1.msra.mxu0 %v2084
  %2213 = vmatprep.subr.mxu0 %v2089
  %2214 = vmatpush1.msra.mxu0 %v2088
  %2215 = vmatprep.subr.mxu0 %v2093
  %2216 = vmatpush1.msra.mxu0 %v2092
  %2217 = vmatprep.subr.mxu0 %v2097
  %2218 = vmatpush1.msra.mxu0 %v2096
  %2219 = vmatprep.subr.mxu0 %v2101
  %2220 = vmatpush1.msra.mxu0 %v2100
  %2221 = vmatprep.subr.mxu0 %v2105
  %2222 = vmatpush1.msra.mxu0 %v2104
  %2223 = vmatprep.subr.mxu0 %v2109
  %2224 = vmatpush1.msra.mxu0 %v2108
  %2225 = vmatprep.subr.mxu0 %v2113
  %2226 = vmatpush1.msra.mxu0 %v2112
  %2227 = vmatprep.subr.mxu0 %v2117
  %2228 = vmatpush1.msra.mxu0 %v2116
  %2229 = vmatprep.subr.mxu0 %v2121
  %2230 = vmatpush1.msra.mxu0 %v2120
  %2231 = vmatprep.subr.mxu0 %v2125
  %2232 = vmatpush1.msra.mxu0 %v2124
  %2233 = vmatprep.subr.mxu0 %v2129
  %2234 = vmatpush1.msra.mxu0 %v2128
  %2235 = vmatprep.subr.mxu0 %v2133
  %2236 = vmatpush1.msra.mxu0 %v2132
  %2237 = vmatprep.subr.mxu0 0.0
  %2238 = vmatpush1.msra.mxu0 0.0
  %2239 = vmatprep.subr.mxu0 0.0
  %2240 = vmatpush1.msra.mxu0 0.0
  %2241 = vmatprep.subr.mxu0 0.0
  %2242 = vmatpush1.msra.mxu0 0.0
  %2243 = vmatprep.subr.mxu0 0.0
  %2244 = vmatpush1.msra.mxu0 0.0
  %2245 = vmatprep.subr.mxu0 0.0
  %2246 = vmatpush1.msra.mxu0 0.0
  %2247 = vmatprep.subr.mxu0 0.0
  %2248 = vmatpush1.msra.mxu0 0.0
  %2249 = vmatprep.subr.mxu0 0.0
  %2250 = vmatpush1.msra.mxu0 0.0
  %2251 = vmatprep.subr.mxu0 0.0
  %2252 = vmatpush1.msra.mxu0 0.0
  %2253 = vmatprep.subr.mxu0 0.0
  %2254 = vmatpush1.msra.mxu0 0.0
  %2255 = vmatprep.subr.mxu0 0.0
  %2256 = vmatpush1.msra.mxu0 0.0
  %2257 = vmatprep.subr.mxu0 0.0
  %2258 = vmatpush1.msra.mxu0 0.0
  %2259 = vmatprep.subr.mxu0 0.0
  %2260 = vmatpush1.msra.mxu0 0.0
  %2261 = vmatprep.subr.mxu0 0.0
  %2262 = vmatpush1.msra.mxu0 0.0
  %2263 = vmatprep.subr.mxu0 0.0
  %2264 = vmatpush1.msra.mxu0 0.0
  %2265 = vmatprep.subr.mxu0 0.0
  %2266 = vmatpush1.msra.mxu0 0.0
  %2267 = vmatprep.subr.mxu0 0.0
  %2268 = vmatpush1.msra.mxu0 0.0
  %2269 = vmatprep.mubr.f32.mxu0 0.0
  %2270 = vmatmul.mubr.f32.gmra.mrb[0].mxu0 %v1770
  %v2271 = vpop.f32.mrb[0].mxu0
  %v2272 = vadd.f32 0.0, %v2271
  %v2273 = vpop.f32.mrb[0].mxu0
  %v2274 = vadd.f32 0.0, %v2273
  %2275 = vdwg.mxu0
  %v2276 = vadd.f32 %v2066, %v2201
  %v2277 = vadd.f32 %v2067, %v2203
  %v2278 = vadd.f32 %v2068, %v2272
  %v2279 = vadd.f32 %v2069, %v2274
  %v2280 = vxor.u32 %v2276, 2147483648
  %v2281 = vxor.u32 %v2277, 2147483648
  %v2282 = vmul.f32 %v2280, 1.442695
  %v2283 = vpow.pop %v2282
  %v2284 = vmul.f32 %v2281, 1.442695
  %v2285 = vpow.pop %v2284
  %v2286 = vadd.f32 %v2283, 1.0
  %v2287 = vadd.f32 %v2285, 1.0
  %v2288 = vrcp.pop %v2286
  %v2289 = vmul.f32 1.0, %v2288
  %v2290 = vrcp.pop %v2287
  %v2291 = vmul.f32 1.0, %v2290
  %v2292 = vtanh.pop %v2278
  %v2293 = vxor.u32 %v2279, 2147483648
  %v2294 = vmul.f32 %v2293, 1.442695
  %v2295 = vpow.pop %v2294
  %v2296 = vadd.f32 %v2295, 1.0
  %v2297 = vrcp.pop %v2296
  %v2298 = vmul.f32 1.0, %v2297
  %v2299 = vmul.f32 %v2291, %v1768
  %v2300 = vmul.f32 %v2289, %v2292
  %v2301 = vadd.f32 %v2299, %v2300
  %v2302 = vtanh.pop %v2301
  %v2303 = vmul.f32 %v2298, %v2302
  %v2304 = vld [vmem:[%s4] sm:$0xff]
  %v2305 = vld [vmem:[%s4 + $0x8] sm:$0xff]
  %v2306 = vld [vmem:[%s4 + $0x10] sm:$0xff]
  %v2307 = vld [vmem:[%s4 + $0x18] sm:$0xff]
  %v2308 = vld [vmem:[%s4 + $0x20] sm:$0xff]
  %v2309 = vld [vmem:[%s4 + $0x28] sm:$0xff]
  %v2310 = vld [vmem:[%s4 + $0x30] sm:$0xff]
  %v2311 = vld [vmem:[%s4 + $0x38] sm:$0xff]
  %v2312 = vld [vmem:[%s4 + $0x40] sm:$0xff]
  %v2313 = vld [vmem:[%s4 + $0x48] sm:$0xff]
  %v2314 = vld [vmem:[%s4 + $0x50] sm:$0xff]
  %v2315 = vld [vmem:[%s4 + $0x58] sm:$0xff]
  %v2316 = vld [vmem:[%s4 + $0x60] sm:$0xff]
  %v2317 = vld [vmem:[%s4 + $0x68] sm:$0xff]
  %v2318 = vld [vmem:[%s4 + $0x70] sm:$0xff]
  %v2319 = vld [vmem:[%s4 + $0x78] sm:$0xff]
  %v2320 = vld [vmem:[%s4 + $0x80] sm:$0xff]
  %v2321 = vld [vmem:[%s4 + $0x88] sm:$0xff]
  %v2322 = vld [vmem:[%s4 + $0x90] sm:$0xff]
  %v2323 = vld [vmem:[%s4 + $0x98] sm:$0xff]
  %v2324 = vld [vmem:[%s4 + $0xa0] sm:$0xff]
  %v2325 = vld [vmem:[%s4 + $0xa8] sm:$0xff]
  %v2326 = vld [vmem:[%s4 + $0xb0] sm:$0xff]
  %v2327 = vld [vmem:[%s4 + $0xb8] sm:$0xff]
  %v2328 = vld [vmem:[%s4 + $0xc0] sm:$0xff]
  %v2329 = vld [vmem:[%s4 + $0xc8] sm:$0xff]
  %v2330 = vld [vmem:[%s4 + $0xd0] sm:$0xff]
  %v2331 = vld [vmem:[%s4 + $0xd8] sm:$0xff]
  %v2332 = vld [vmem:[%s4 + $0xe0] sm:$0xff]
  %v2333 = vld [vmem:[%s4 + $0xe8] sm:$0xff]
  %v2334 = vld [vmem:[%s4 + $0xf0] sm:$0xff]
  %v2335 = vld [vmem:[%s4 + $0xf8] sm:$0xff]
  %v2336 = vld [vmem:[%s4 + $0x100] sm:$0xff]
  %v2337 = vld [vmem:[%s4 + $0x108] sm:$0xff]
  %v2338 = vld [vmem:[%s4 + $0x110] sm:$0xff]
  %v2339 = vld [vmem:[%s4 + $0x118] sm:$0xff]
  %v2340 = vld [vmem:[%s4 + $0x120] sm:$0xff]
  %v2341 = vld [vmem:[%s4 + $0x128] sm:$0xff]
  %v2342 = vld [vmem:[%s4 + $0x130] sm:$0xff]
  %v2343 = vld [vmem:[%s4 + $0x138] sm:$0xff]
  %v2344 = vld [vmem:[%s4 + $0x140] sm:$0xff]
  %v2345 = vld [vmem:[%s4 + $0x148] sm:$0xff]
  %v2346 = vld [vmem:[%s4 + $0x150] sm:$0xff]
  %v2347 = vld [vmem:[%s4 + $0x158] sm:$0xff]
  %v2348 = vld [vmem:[%s4 + $0x160] sm:$0xff]
  %v2349 = vld [vmem:[%s4 + $0x168] sm:$0xff]
  %v2350 = vld [vmem:[%s4 + $0x170] sm:$0xff]
  %v2351 = vld [vmem:[%s4 + $0x178] sm:$0xff]
  %v2352 = vld [vmem:[%s4 + $0x180] sm:$0xff]
  %v2353 = vld [vmem:[%s4 + $0x188] sm:$0xff]
  %v2354 = vld [vmem:[%s4 + $0x190] sm:$0xff]
  %v2355 = vld [vmem:[%s4 + $0x198] sm:$0xff]
  %v2356 = vld [vmem:[%s4 + $0x1a0] sm:$0xff]
  %v2357 = vld [vmem:[%s4 + $0x1a8] sm:$0xff]
  %v2358 = vld [vmem:[%s4 + $0x1b0] sm:$0xff]
  %v2359 = vld [vmem:[%s4 + $0x1b8] sm:$0xff]
  %v2360 = vld [vmem:[%s4 + $0x1c0] sm:$0xff]
  %v2361 = vld [vmem:[%s4 + $0x1c8] sm:$0xff]
  %v2362 = vld [vmem:[%s4 + $0x1d0] sm:$0xff]
  %v2363 = vld [vmem:[%s4 + $0x1d8] sm:$0xff]
  %v2364 = vld [vmem:[%s4 + $0x1e0] sm:$0xff]
  %v2365 = vld [vmem:[%s4 + $0x1e8] sm:$0xff]
  %v2366 = vld [vmem:[%s4 + $0x1f0] sm:$0xff]
  %v2367 = vld [vmem:[%s4 + $0x1f8] sm:$0xff]
  %v2368 = vld [vmem:[%s4 + $0x200] sm:$0xff]
  %v2369 = vld [vmem:[%s4 + $0x208] sm:$0xff]
  %v2370 = vld [vmem:[%s4 + $0x210] sm:$0xff]
  %v2371 = vld [vmem:[%s4 + $0x218] sm:$0xff]
  %v2372 = vld [vmem:[%s4 + $0x220] sm:$0xff]
  %v2373 = vld [vmem:[%s4 + $0x228] sm:$0xff]
  %v2374 = vld [vmem:[%s4 + $0x230] sm:$0xff]
  %v2375 = vld [vmem:[%s4 + $0x238] sm:$0xff]
  %v2376 = vld [vmem:[%s4 + $0x240] sm:$0xff]
  %v2377 = vld [vmem:[%s4 + $0x248] sm:$0xff]
  %v2378 = vld [vmem:[%s4 + $0x250] sm:$0xff]
  %v2379 = vld [vmem:[%s4 + $0x258] sm:$0xff]
  %v2380 = vld [vmem:[%s4 + $0x260] sm:$0xff]
  %v2381 = vld [vmem:[%s4 + $0x268] sm:$0xff]
  %v2382 = vld [vmem:[%s4 + $0x270] sm:$0xff]
  %v2383 = vld [vmem:[%s4 + $0x278] sm:$0xff]
  %v2384 = vld [vmem:[%s4 + $0x280] sm:$0xff]
  %v2385 = vld [vmem:[%s4 + $0x288] sm:$0xff]
  %v2386 = vld [vmem:[%s4 + $0x290] sm:$0xff]
  %v2387 = vld [vmem:[%s4 + $0x298] sm:$0xff]
  %v2388 = vld [vmem:[%s4 + $0x2a0] sm:$0xff]
  %v2389 = vld [vmem:[%s4 + $0x2a8] sm:$0xff]
  %v2390 = vld [vmem:[%s4 + $0x2b0] sm:$0xff]
  %v2391 = vld [vmem:[%s4 + $0x2b8] sm:$0xff]
  %v2392 = vld [vmem:[%s4 + $0x2c0] sm:$0xff]
  %v2393 = vld [vmem:[%s4 + $0x2c8] sm:$0xff]
  %v2394 = vld [vmem:[%s4 + $0x2d0] sm:$0xff]
  %v2395 = vld [vmem:[%s4 + $0x2d8] sm:$0xff]
  %v2396 = vld [vmem:[%s4 + $0x2e0] sm:$0xff]
  %v2397 = vld [vmem:[%s4 + $0x2e8] sm:$0xff]
  %v2398 = vld [vmem:[%s4 + $0x2f0] sm:$0xff]
  %v2399 = vld [vmem:[%s4 + $0x2f8] sm:$0xff]
  %v2400 = vld [vmem:[%s4 + $0x300] sm:$0xff]
  %v2401 = vld [vmem:[%s4 + $0x308] sm:$0xff]
  %v2402 = vld [vmem:[%s4 + $0x310] sm:$0xff]
  %v2403 = vld [vmem:[%s4 + $0x318] sm:$0xff]
  %v2404 = vld [vmem:[%s4 + $0x320] sm:$0xff]
  %v2405 = vld [vmem:[%s4 + $0x328] sm:$0xff]
  %v2406 = vld [vmem:[%s4 + $0x330] sm:$0xff]
  %v2407 = vld [vmem:[%s4 + $0x338] sm:$0xff]
  %v2408 = vld [vmem:[%s4 + $0x340] sm:$0xff]
  %v2409 = vld [vmem:[%s4 + $0x348] sm:$0xff]
  %v2410 = vld [vmem:[%s4 + $0x350] sm:$0xff]
  %v2411 = vld [vmem:[%s4 + $0x358] sm:$0xff]
  %v2412 = vld [vmem:[%s4 + $0x360] sm:$0xff]
  %v2413 = vld [vmem:[%s4 + $0x368] sm:$0xff]
  %v2414 = vld [vmem:[%s4 + $0x370] sm:$0xff]
  %v2415 = vld [vmem:[%s4 + $0x378] sm:$0xff]
  %v2416 = vld [vmem:[%s4 + $0x380] sm:$0xff]
  %v2417 = vld [vmem:[%s4 + $0x388] sm:$0xff]
  %v2418 = vld [vmem:[%s4 + $0x390] sm:$0xff]
  %v2419 = vld [vmem:[%s4 + $0x398] sm:$0xff]
  %v2420 = vld [vmem:[%s4 + $0x3a0] sm:$0xff]
  %v2421 = vld [vmem:[%s4 + $0x3a8] sm:$0xff]
  %v2422 = vld [vmem:[%s4 + $0x3b0] sm:$0xff]
  %v2423 = vld [vmem:[%s4 + $0x3b8] sm:$0xff]
  %v2424 = vld [vmem:[%s4 + $0x3c0] sm:$0xff]
  %v2425 = vld [vmem:[%s4 + $0x3c8] sm:$0xff]
  %v2426 = vld [vmem:[%s4 + $0x3d0] sm:$0xff]
  %v2427 = vld [vmem:[%s4 + $0x3d8] sm:$0xff]
  %v2428 = vld [vmem:[%s4 + $0x3e0] sm:$0xff]
  %v2429 = vld [vmem:[%s4 + $0x3e8] sm:$0xff]
  %v2430 = vld [vmem:[%s4 + $0x3f0] sm:$0xff]
  %v2431 = vld [vmem:[%s4 + $0x3f8] sm:$0xff]
  %2432 = vmatprep.subr.mxu0 %v2305
  %2433 = vmatpush1.msra.mxu0 %v2304
  %2434 = vmatprep.subr.mxu0 %v2309
  %2435 = vmatpush1.msra.mxu0 %v2308
  %2436 = vmatprep.subr.mxu0 %v2313
  %2437 = vmatpush1.msra.mxu0 %v2312
  %2438 = vmatprep.subr.mxu0 %v2317
  %2439 = vmatpush1.msra.mxu0 %v2316
  %2440 = vmatprep.subr.mxu0 %v2321
  %2441 = vmatpush1.msra.mxu0 %v2320
  %2442 = vmatprep.subr.mxu0 %v2325
  %2443 = vmatpush1.msra.mxu0 %v2324
  %2444 = vmatprep.subr.mxu0 %v2329
  %2445 = vmatpush1.msra.mxu0 %v2328
  %2446 = vmatprep.subr.mxu0 %v2333
  %2447 = vmatpush1.msra.mxu0 %v2332
  %2448 = vmatprep.subr.mxu0 %v2337
  %2449 = vmatpush1.msra.mxu0 %v2336
  %2450 = vmatprep.subr.mxu0 %v2341
  %2451 = vmatpush1.msra.mxu0 %v2340
  %2452 = vmatprep.subr.mxu0 %v2345
  %2453 = vmatpush1.msra.mxu0 %v2344
  %2454 = vmatprep.subr.mxu0 %v2349
  %2455 = vmatpush1.msra.mxu0 %v2348
  %2456 = vmatprep.subr.mxu0 %v2353
  %2457 = vmatpush1.msra.mxu0 %v2352
  %2458 = vmatprep.subr.mxu0 %v2357
  %2459 = vmatpush1.msra.mxu0 %v2356
  %2460 = vmatprep.subr.mxu0 %v2361
  %2461 = vmatpush1.msra.mxu0 %v2360
  %2462 = vmatprep.subr.mxu0 %v2365
  %2463 = vmatpush1.msra.mxu0 %v2364
  %2464 = vmatprep.subr.mxu0 %v2369
  %2465 = vmatpush1.msra.mxu0 %v2368
  %2466 = vmatprep.subr.mxu0 %v2373
  %2467 = vmatpush1.msra.mxu0 %v2372
  %2468 = vmatprep.subr.mxu0 %v2377
  %2469 = vmatpush1.msra.mxu0 %v2376
  %2470 = vmatprep.subr.mxu0 %v2381
  %2471 = vmatpush1.msra.mxu0 %v2380
  %2472 = vmatprep.subr.mxu0 %v2385
  %2473 = vmatpush1.msra.mxu0 %v2384
  %2474 = vmatprep.subr.mxu0 %v2389
  %2475 = vmatpush1.msra.mxu0 %v2388
  %2476 = vmatprep.subr.mxu0 %v2393
  %2477 = vmatpush1.msra.mxu0 %v2392
  %2478 = vmatprep.subr.mxu0 %v2397
  %2479 = vmatpush1.msra.mxu0 %v2396
  %2480 = vmatprep.subr.mxu0 %v2401
  %2481 = vmatpush1.msra.mxu0 %v2400
  %2482 = vmatprep.subr.mxu0 %v2405
  %2483 = vmatpush1.msra.mxu0 %v2404
  %2484 = vmatprep.subr.mxu0 %v2409
  %2485 = vmatpush1.msra.mxu0 %v2408
  %2486 = vmatprep.subr.mxu0 %v2413
  %2487 = vmatpush1.msra.mxu0 %v2412
  %2488 = vmatprep.subr.mxu0 %v2417
  %2489 = vmatpush1.msra.mxu0 %v2416
  %2490 = vmatprep.subr.mxu0 %v2421
  %2491 = vmatpush1.msra.mxu0 %v2420
  %2492 = vmatprep.subr.mxu0 %v2425
  %2493 = vmatpush1.msra.mxu0 %v2424
  %2494 = vmatprep.subr.mxu0 %v2429
  %2495 = vmatpush1.msra.mxu0 %v2428
  %2496 = vmatprep.mubr.f32.mxu0 %v2064
  %2497 = vmatmul.mubr.f32.gmra.mrb[0].mxu0 %v2303
  %v2498 = vpop.f32.mrb[0].mxu0
  %v2499 = vadd.f32 %v816, %v2498
  %v2500 = vpop.f32.mrb[0].mxu0
  %v2501 = vadd.f32 %v820, %v2500
  %2502 = vdwg.mxu0
  %2503 = vmatprep.subr.mxu0 %v2307
  %2504 = vmatpush1.msra.mxu0 %v2306
  %2505 = vmatprep.subr.mxu0 %v2311
  %2506 = vmatpush1.msra.mxu0 %v2310
  %2507 = vmatprep.subr.mxu0 %v2315
  %2508 = vmatpush1.msra.mxu0 %v2314
  %2509 = vmatprep.subr.mxu0 %v2319
  %2510 = vmatpush1.msra.mxu0 %v2318
  %2511 = vmatprep.subr.mxu0 %v2323
  %2512 = vmatpush1.msra.mxu0 %v2322
  %2513 = vmatprep.subr.mxu0 %v2327
  %2514 = vmatpush1.msra.mxu0 %v2326
  %2515 = vmatprep.subr.mxu0 %v2331
  %2516 = vmatpush1.msra.mxu0 %v2330
  %2517 = vmatprep.subr.mxu0 %v2335
  %2518 = vmatpush1.msra.mxu0 %v2334
  %2519 = vmatprep.subr.mxu0 %v2339
  %2520 = vmatpush1.msra.mxu0 %v2338
  %2521 = vmatprep.subr.mxu0 %v2343
  %2522 = vmatpush1.msra.mxu0 %v2342
  %2523 = vmatprep.subr.mxu0 %v2347
  %2524 = vmatpush1.msra.mxu0 %v2346
  %2525 = vmatprep.subr.mxu0 %v2351
  %2526 = vmatpush1.msra.mxu0 %v2350
  %2527 = vmatprep.subr.mxu0 %v2355
  %2528 = vmatpush1.msra.mxu0 %v2354
  %2529 = vmatprep.subr.mxu0 %v2359
  %2530 = vmatpush1.msra.mxu0 %v2358
  %2531 = vmatprep.subr.mxu0 %v2363
  %2532 = vmatpush1.msra.mxu0 %v2362
  %2533 = vmatprep.subr.mxu0 %v2367
  %2534 = vmatpush1.msra.mxu0 %v2366
  %2535 = vmatprep.subr.mxu0 %v2371
  %2536 = vmatpush1.msra.mxu0 %v2370
  %2537 = vmatprep.subr.mxu0 %v2375
  %2538 = vmatpush1.msra.mxu0 %v2374
  %2539 = vmatprep.subr.mxu0 %v2379
  %2540 = vmatpush1.msra.mxu0 %v2378
  %2541 = vmatprep.subr.mxu0 %v2383
  %2542 = vmatpush1.msra.mxu0 %v2382
  %2543 = vmatprep.subr.mxu0 %v2387
  %2544 = vmatpush1.msra.mxu0 %v2386
  %2545 = vmatprep.subr.mxu0 %v2391
  %2546 = vmatpush1.msra.mxu0 %v2390
  %2547 = vmatprep.subr.mxu0 %v2395
  %2548 = vmatpush1.msra.mxu0 %v2394
  %2549 = vmatprep.subr.mxu0 %v2399
  %2550 = vmatpush1.msra.mxu0 %v2398
  %2551 = vmatprep.subr.mxu0 %v2403
  %2552 = vmatpush1.msra.mxu0 %v2402
  %2553 = vmatprep.subr.mxu0 %v2407
  %2554 = vmatpush1.msra.mxu0 %v2406
  %2555 = vmatprep.subr.mxu0 %v2411
  %2556 = vmatpush1.msra.mxu0 %v2410
  %2557 = vmatprep.subr.mxu0 %v2415
  %2558 = vmatpush1.msra.mxu0 %v2414
  %2559 = vmatprep.subr.mxu0 %v2419
  %2560 = vmatpush1.msra.mxu0 %v2418
  %2561 = vmatprep.subr.mxu0 %v2423
  %2562 = vmatpush1.msra.mxu0 %v2422
  %2563 = vmatprep.subr.mxu0 %v2427
  %2564 = vmatpush1.msra.mxu0 %v2426
  %2565 = vmatprep.subr.mxu0 %v2431
  %2566 = vmatpush1.msra.mxu0 %v2430
  %2567 = vmatprep.mubr.f32.mxu0 %v2064
  %2568 = vmatmul.mubr.f32.gmra.mrb[0].mxu0 %v2303
  %v2569 = vpop.f32.mrb[0].mxu0
  %v2570 = vadd.f32 %v824, %v2569
  %v2571 = vpop.f32.mrb[0].mxu0
  %v2572 = vadd.f32 %v828, %v2571
  %2573 = vdwg.mxu0
  %v2574 = vxor.u32 %v2499, 2147483648
  %v2575 = vxor.u32 %v2501, 2147483648
  %v2576 = vmul.f32 %v2574, 1.442695
  %v2577 = vpow.pop %v2576
  %v2578 = vmul.f32 %v2575, 1.442695
  %v2579 = vpow.pop %v2578
  %v2580 = vadd.f32 %v2577, 1.0
  %v2581 = vadd.f32 %v2579, 1.0
  %v2582 = vrcp.pop %v2580
  %v2583 = vmul.f32 1.0, %v2582
  %v2584 = vrcp.pop %v2581
  %v2585 = vmul.f32 1.0, %v2584
  %v2586 = vtanh.pop %v2570
  %v2587 = vxor.u32 %v2572, 2147483648
  %v2588 = vmul.f32 %v2587, 1.442695
  %v2589 = vpow.pop %v2588
  %v2590 = vadd.f32 %v2589, 1.0
  %v2591 = vrcp.pop %v2590
  %v2592 = vmul.f32 1.0, %v2591
  %v2593 = vmul.f32 %v2585, %v2062
  %v2594 = vmul.f32 %v2583, %v2586
  %v2595 = vadd.f32 %v2593, %v2594
  %v2596 = vtanh.pop %v2595
  %v2597 = vmul.f32 %v2592, %v2596
  %2598 = vst [vmem:[#allocation3 + $0x18] sm:$0xff] %v2597
  %v2599 = vld [vmem:[#allocation2 + $0x80] sm:$0xff]
  %v2600 = vld [vmem:[#allocation2 + $0x88] sm:$0xff]
  %v2601 = vld [vmem:[#allocation2 + $0x90] sm:$0xff]
  %v2602 = vld [vmem:[#allocation2 + $0x98] sm:$0xff]
  %v2603 = vld [vmem:[%s2] sm:$0xff]
  %v2604 = vld [vmem:[%s2 + $0x8] sm:$0xff]
  %v2605 = vld [vmem:[%s2 + $0x10] sm:$0xff]
  %v2606 = vld [vmem:[%s2 + $0x18] sm:$0xff]
  %v2607 = vld [vmem:[%s2 + $0x20] sm:$0xff]
  %v2608 = vld [vmem:[%s2 + $0x28] sm:$0xff]
  %v2609 = vld [vmem:[%s2 + $0x30] sm:$0xff]
  %v2610 = vld [vmem:[%s2 + $0x38] sm:$0xff]
  %v2611 = vld [vmem:[%s2 + $0x40] sm:$0xff]
  %v2612 = vld [vmem:[%s2 + $0x48] sm:$0xff]
  %v2613 = vld [vmem:[%s2 + $0x50] sm:$0xff]
  %v2614 = vld [vmem:[%s2 + $0x58] sm:$0xff]
  %v2615 = vld [vmem:[%s2 + $0x60] sm:$0xff]
  %v2616 = vld [vmem:[%s2 + $0x68] sm:$0xff]
  %v2617 = vld [vmem:[%s2 + $0x70] sm:$0xff]
  %v2618 = vld [vmem:[%s2 + $0x78] sm:$0xff]
  %v2619 = vld [vmem:[%s2 + $0x80] sm:$0xff]
  %v2620 = vld [vmem:[%s2 + $0x88] sm:$0xff]
  %v2621 = vld [vmem:[%s2 + $0x90] sm:$0xff]
  %v2622 = vld [vmem:[%s2 + $0x98] sm:$0xff]
  %v2623 = vld [vmem:[%s2 + $0xa0] sm:$0xff]
  %v2624 = vld [vmem:[%s2 + $0xa8] sm:$0xff]
  %v2625 = vld [vmem:[%s2 + $0xb0] sm:$0xff]
  %v2626 = vld [vmem:[%s2 + $0xb8] sm:$0xff]
  %v2627 = vld [vmem:[%s2 + $0xc0] sm:$0xff]
  %v2628 = vld [vmem:[%s2 + $0xc8] sm:$0xff]
  %v2629 = vld [vmem:[%s2 + $0xd0] sm:$0xff]
  %v2630 = vld [vmem:[%s2 + $0xd8] sm:$0xff]
  %v2631 = vld [vmem:[%s2 + $0xe0] sm:$0xff]
  %v2632 = vld [vmem:[%s2 + $0xe8] sm:$0xff]
  %v2633 = vld [vmem:[%s2 + $0xf0] sm:$0xff]
  %v2634 = vld [vmem:[%s2 + $0xf8] sm:$0xff]
  %v2635 = vld [vmem:[%s2 + $0x100] sm:$0xff]
  %v2636 = vld [vmem:[%s2 + $0x108] sm:$0xff]
  %v2637 = vld [vmem:[%s2 + $0x110] sm:$0xff]
  %v2638 = vld [vmem:[%s2 + $0x118] sm:$0xff]
  %v2639 = vld [vmem:[%s2 + $0x120] sm:$0xff]
  %v2640 = vld [vmem:[%s2 + $0x128] sm:$0xff]
  %v2641 = vld [vmem:[%s2 + $0x130] sm:$0xff]
  %v2642 = vld [vmem:[%s2 + $0x138] sm:$0xff]
  %v2643 = vld [vmem:[%s2 + $0x140] sm:$0xff]
  %v2644 = vld [vmem:[%s2 + $0x148] sm:$0xff]
  %v2645 = vld [vmem:[%s2 + $0x150] sm:$0xff]
  %v2646 = vld [vmem:[%s2 + $0x158] sm:$0xff]
  %v2647 = vld [vmem:[%s2 + $0x160] sm:$0xff]
  %v2648 = vld [vmem:[%s2 + $0x168] sm:$0xff]
  %v2649 = vld [vmem:[%s2 + $0x170] sm:$0xff]
  %v2650 = vld [vmem:[%s2 + $0x178] sm:$0xff]
  %v2651 = vld [vmem:[%s2 + $0x180] sm:$0xff]
  %v2652 = vld [vmem:[%s2 + $0x188] sm:$0xff]
  %v2653 = vld [vmem:[%s2 + $0x190] sm:$0xff]
  %v2654 = vld [vmem:[%s2 + $0x198] sm:$0xff]
  %v2655 = vld [vmem:[%s2 + $0x1a0] sm:$0xff]
  %v2656 = vld [vmem:[%s2 + $0x1a8] sm:$0xff]
  %v2657 = vld [vmem:[%s2 + $0x1b0] sm:$0xff]
  %v2658 = vld [vmem:[%s2 + $0x1b8] sm:$0xff]
  %v2659 = vld [vmem:[%s2 + $0x1c0] sm:$0xff]
  %v2660 = vld [vmem:[%s2 + $0x1c8] sm:$0xff]
  %v2661 = vld [vmem:[%s2 + $0x1d0] sm:$0xff]
  %v2662 = vld [vmem:[%s2 + $0x1d8] sm:$0xff]
  %v2663 = vld [vmem:[%s2 + $0x1e0] sm:$0xff]
  %v2664 = vld [vmem:[%s2 + $0x1e8] sm:$0xff]
  %v2665 = vld [vmem:[%s2 + $0x1f0] sm:$0xff]
  %v2666 = vld [vmem:[%s2 + $0x1f8] sm:$0xff]
  %2667 = vmatprep.subr.mxu0 %v2604
  %2668 = vmatpush1.msra.mxu0 %v2603
  %2669 = vmatprep.subr.mxu0 %v2608
  %2670 = vmatpush1.msra.mxu0 %v2607
  %2671 = vmatprep.subr.mxu0 %v2612
  %2672 = vmatpush1.msra.mxu0 %v2611
  %2673 = vmatprep.subr.mxu0 %v2616
  %2674 = vmatpush1.msra.mxu0 %v2615
  %2675 = vmatprep.subr.mxu0 %v2620
  %2676 = vmatpush1.msra.mxu0 %v2619
  %2677 = vmatprep.subr.mxu0 %v2624
  %2678 = vmatpush1.msra.mxu0 %v2623
  %2679 = vmatprep.subr.mxu0 %v2628
  %2680 = vmatpush1.msra.mxu0 %v2627
  %2681 = vmatprep.subr.mxu0 %v2632
  %2682 = vmatpush1.msra.mxu0 %v2631
  %2683 = vmatprep.subr.mxu0 %v2636
  %2684 = vmatpush1.msra.mxu0 %v2635
  %2685 = vmatprep.subr.mxu0 %v2640
  %2686 = vmatpush1.msra.mxu0 %v2639
  %2687 = vmatprep.subr.mxu0 %v2644
  %2688 = vmatpush1.msra.mxu0 %v2643
  %2689 = vmatprep.subr.mxu0 %v2648
  %2690 = vmatpush1.msra.mxu0 %v2647
  %2691 = vmatprep.subr.mxu0 %v2652
  %2692 = vmatpush1.msra.mxu0 %v2651
  %2693 = vmatprep.subr.mxu0 %v2656
  %2694 = vmatpush1.msra.mxu0 %v2655
  %2695 = vmatprep.subr.mxu0 %v2660
  %2696 = vmatpush1.msra.mxu0 %v2659
  %2697 = vmatprep.subr.mxu0 %v2664
  %2698 = vmatpush1.msra.mxu0 %v2663
  %2699 = vmatprep.subr.mxu0 0.0
  %2700 = vmatpush1.msra.mxu0 0.0
  %2701 = vmatprep.subr.mxu0 0.0
  %2702 = vmatpush1.msra.mxu0 0.0
  %2703 = vmatprep.subr.mxu0 0.0
  %2704 = vmatpush1.msra.mxu0 0.0
  %2705 = vmatprep.subr.mxu0 0.0
  %2706 = vmatpush1.msra.mxu0 0.0
  %2707 = vmatprep.subr.mxu0 0.0
  %2708 = vmatpush1.msra.mxu0 0.0
  %2709 = vmatprep.subr.mxu0 0.0
  %2710 = vmatpush1.msra.mxu0 0.0
  %2711 = vmatprep.subr.mxu0 0.0
  %2712 = vmatpush1.msra.mxu0 0.0
  %2713 = vmatprep.subr.mxu0 0.0
  %2714 = vmatpush1.msra.mxu0 0.0
  %2715 = vmatprep.subr.mxu0 0.0
  %2716 = vmatpush1.msra.mxu0 0.0
  %2717 = vmatprep.subr.mxu0 0.0
  %2718 = vmatpush1.msra.mxu0 0.0
  %2719 = vmatprep.subr.mxu0 0.0
  %2720 = vmatpush1.msra.mxu0 0.0
  %2721 = vmatprep.subr.mxu0 0.0
  %2722 = vmatpush1.msra.mxu0 0.0
  %2723 = vmatprep.subr.mxu0 0.0
  %2724 = vmatpush1.msra.mxu0 0.0
  %2725 = vmatprep.subr.mxu0 0.0
  %2726 = vmatpush1.msra.mxu0 0.0
  %2727 = vmatprep.subr.mxu0 0.0
  %2728 = vmatpush1.msra.mxu0 0.0
  %2729 = vmatprep.subr.mxu0 0.0
  %2730 = vmatpush1.msra.mxu0 0.0
  %2731 = vmatprep.mubr.f32.mxu0 0.0
  %2732 = vmatmul.mubr.f32.gmra.mrb[0].mxu0 %v2303
  %v2733 = vpop.f32.mrb[0].mxu0
  %v2734 = vadd.f32 0.0, %v2733
  %v2735 = vpop.f32.mrb[0].mxu0
  %v2736 = vadd.f32 0.0, %v2735
  %2737 = vdwg.mxu0
  %2738 = vmatprep.subr.mxu0 %v2606
  %2739 = vmatpush1.msra.mxu0 %v2605
  %2740 = vmatprep.subr.mxu0 %v2610
  %2741 = vmatpush1.msra.mxu0 %v2609
  %2742 = vmatprep.subr.mxu0 %v2614
  %2743 = vmatpush1.msra.mxu0 %v2613
  %2744 = vmatprep.subr.mxu0 %v2618
  %2745 = vmatpush1.msra.mxu0 %v2617
  %2746 = vmatprep.subr.mxu0 %v2622
  %2747 = vmatpush1.msra.mxu0 %v2621
  %2748 = vmatprep.subr.mxu0 %v2626
  %2749 = vmatpush1.msra.mxu0 %v2625
  %2750 = vmatprep.subr.mxu0 %v2630
  %2751 = vmatpush1.msra.mxu0 %v2629
  %2752 = vmatprep.subr.mxu0 %v2634
  %2753 = vmatpush1.msra.mxu0 %v2633
  %2754 = vmatprep.subr.mxu0 %v2638
  %2755 = vmatpush1.msra.mxu0 %v2637
  %2756 = vmatprep.subr.mxu0 %v2642
  %2757 = vmatpush1.msra.mxu0 %v2641
  %2758 = vmatprep.subr.mxu0 %v2646
  %2759 = vmatpush1.msra.mxu0 %v2645
  %2760 = vmatprep.subr.mxu0 %v2650
  %2761 = vmatpush1.msra.mxu0 %v2649
  %2762 = vmatprep.subr.mxu0 %v2654
  %2763 = vmatpush1.msra.mxu0 %v2653
  %2764 = vmatprep.subr.mxu0 %v2658
  %2765 = vmatpush1.msra.mxu0 %v2657
  %2766 = vmatprep.subr.mxu0 %v2662
  %2767 = vmatpush1.msra.mxu0 %v2661
  %2768 = vmatprep.subr.mxu0 %v2666
  %2769 = vmatpush1.msra.mxu0 %v2665
  %2770 = vmatprep.subr.mxu0 0.0
  %2771 = vmatpush1.msra.mxu0 0.0
  %2772 = vmatprep.subr.mxu0 0.0
  %2773 = vmatpush1.msra.mxu0 0.0
  %2774 = vmatprep.subr.mxu0 0.0
  %2775 = vmatpush1.msra.mxu0 0.0
  %2776 = vmatprep.subr.mxu0 0.0
  %2777 = vmatpush1.msra.mxu0 0.0
  %2778 = vmatprep.subr.mxu0 0.0
  %2779 = vmatpush1.msra.mxu0 0.0
  %2780 = vmatprep.subr.mxu0 0.0
  %2781 = vmatpush1.msra.mxu0 0.0
  %2782 = vmatprep.subr.mxu0 0.0
  %2783 = vmatpush1.msra.mxu0 0.0
  %2784 = vmatprep.subr.mxu0 0.0
  %2785 = vmatpush1.msra.mxu0 0.0
  %2786 = vmatprep.subr.mxu0 0.0
  %2787 = vmatpush1.msra.mxu0 0.0
  %2788 = vmatprep.subr.mxu0 0.0
  %2789 = vmatpush1.msra.mxu0 0.0
  %2790 = vmatprep.subr.mxu0 0.0
  %2791 = vmatpush1.msra.mxu0 0.0
  %2792 = vmatprep.subr.mxu0 0.0
  %2793 = vmatpush1.msra.mxu0 0.0
  %2794 = vmatprep.subr.mxu0 0.0
  %2795 = vmatpush1.msra.mxu0 0.0
  %2796 = vmatprep.subr.mxu0 0.0
  %2797 = vmatpush1.msra.mxu0 0.0
  %2798 = vmatprep.subr.mxu0 0.0
  %2799 = vmatpush1.msra.mxu0 0.0
  %2800 = vmatprep.subr.mxu0 0.0
  %2801 = vmatpush1.msra.mxu0 0.0
  %2802 = vmatprep.mubr.f32.mxu0 0.0
  %2803 = vmatmul.mubr.f32.gmra.mrb[0].mxu0 %v2303
  %v2804 = vpop.f32.mrb[0].mxu0
  %v2805 = vadd.f32 0.0, %v2804
  %v2806 = vpop.f32.mrb[0].mxu0
  %v2807 = vadd.f32 0.0, %v2806
  %2808 = vdwg.mxu0
  %v2809 = vadd.f32 %v2599, %v2734
  %v2810 = vadd.f32 %v2600, %v2736
  %v2811 = vadd.f32 %v2601, %v2805
  %v2812 = vadd.f32 %v2602, %v2807
  %v2813 = vxor.u32 %v2809, 2147483648
  %v2814 = vxor.u32 %v2810, 2147483648
  %v2815 = vmul.f32 %v2813, 1.442695
  %v2816 = vpow.pop %v2815
  %v2817 = vmul.f32 %v2814, 1.442695
  %v2818 = vpow.pop %v2817
  %v2819 = vadd.f32 %v2816, 1.0
  %v2820 = vadd.f32 %v2818, 1.0
  %v2821 = vrcp.pop %v2819
  %v2822 = vmul.f32 1.0, %v2821
  %v2823 = vrcp.pop %v2820
  %v2824 = vmul.f32 1.0, %v2823
  %v2825 = vtanh.pop %v2811
  %v2826 = vxor.u32 %v2812, 2147483648
  %v2827 = vmul.f32 %v2826, 1.442695
  %v2828 = vpow.pop %v2827
  %v2829 = vadd.f32 %v2828, 1.0
  %v2830 = vrcp.pop %v2829
  %v2831 = vmul.f32 1.0, %v2830
  %v2832 = vmul.f32 %v2824, %v2301
  %v2833 = vmul.f32 %v2822, %v2825
  %v2834 = vadd.f32 %v2832, %v2833
  %v2835 = vtanh.pop %v2834
  %v2836 = vmul.f32 %v2831, %v2835
  %v2837 = vld [vmem:[%s4] sm:$0xff]
  %v2838 = vld [vmem:[%s4 + $0x8] sm:$0xff]
  %v2839 = vld [vmem:[%s4 + $0x10] sm:$0xff]
  %v2840 = vld [vmem:[%s4 + $0x18] sm:$0xff]
  %v2841 = vld [vmem:[%s4 + $0x20] sm:$0xff]
  %v2842 = vld [vmem:[%s4 + $0x28] sm:$0xff]
  %v2843 = vld [vmem:[%s4 + $0x30] sm:$0xff]
  %v2844 = vld [vmem:[%s4 + $0x38] sm:$0xff]
  %v2845 = vld [vmem:[%s4 + $0x40] sm:$0xff]
  %v2846 = vld [vmem:[%s4 + $0x48] sm:$0xff]
  %v2847 = vld [vmem:[%s4 + $0x50] sm:$0xff]
  %v2848 = vld [vmem:[%s4 + $0x58] sm:$0xff]
  %v2849 = vld [vmem:[%s4 + $0x60] sm:$0xff]
  %v2850 = vld [vmem:[%s4 + $0x68] sm:$0xff]
  %v2851 = vld [vmem:[%s4 + $0x70] sm:$0xff]
  %v2852 = vld [vmem:[%s4 + $0x78] sm:$0xff]
  %v2853 = vld [vmem:[%s4 + $0x80] sm:$0xff]
  %v2854 = vld [vmem:[%s4 + $0x88] sm:$0xff]
  %v2855 = vld [vmem:[%s4 + $0x90] sm:$0xff]
  %v2856 = vld [vmem:[%s4 + $0x98] sm:$0xff]
  %v2857 = vld [vmem:[%s4 + $0xa0] sm:$0xff]
  %v2858 = vld [vmem:[%s4 + $0xa8] sm:$0xff]
  %v2859 = vld [vmem:[%s4 + $0xb0] sm:$0xff]
  %v2860 = vld [vmem:[%s4 + $0xb8] sm:$0xff]
  %v2861 = vld [vmem:[%s4 + $0xc0] sm:$0xff]
  %v2862 = vld [vmem:[%s4 + $0xc8] sm:$0xff]
  %v2863 = vld [vmem:[%s4 + $0xd0] sm:$0xff]
  %v2864 = vld [vmem:[%s4 + $0xd8] sm:$0xff]
  %v2865 = vld [vmem:[%s4 + $0xe0] sm:$0xff]
  %v2866 = vld [vmem:[%s4 + $0xe8] sm:$0xff]
  %v2867 = vld [vmem:[%s4 + $0xf0] sm:$0xff]
  %v2868 = vld [vmem:[%s4 + $0xf8] sm:$0xff]
  %v2869 = vld [vmem:[%s4 + $0x100] sm:$0xff]
  %v2870 = vld [vmem:[%s4 + $0x108] sm:$0xff]
  %v2871 = vld [vmem:[%s4 + $0x110] sm:$0xff]
  %v2872 = vld [vmem:[%s4 + $0x118] sm:$0xff]
  %v2873 = vld [vmem:[%s4 + $0x120] sm:$0xff]
  %v2874 = vld [vmem:[%s4 + $0x128] sm:$0xff]
  %v2875 = vld [vmem:[%s4 + $0x130] sm:$0xff]
  %v2876 = vld [vmem:[%s4 + $0x138] sm:$0xff]
  %v2877 = vld [vmem:[%s4 + $0x140] sm:$0xff]
  %v2878 = vld [vmem:[%s4 + $0x148] sm:$0xff]
  %v2879 = vld [vmem:[%s4 + $0x150] sm:$0xff]
  %v2880 = vld [vmem:[%s4 + $0x158] sm:$0xff]
  %v2881 = vld [vmem:[%s4 + $0x160] sm:$0xff]
  %v2882 = vld [vmem:[%s4 + $0x168] sm:$0xff]
  %v2883 = vld [vmem:[%s4 + $0x170] sm:$0xff]
  %v2884 = vld [vmem:[%s4 + $0x178] sm:$0xff]
  %v2885 = vld [vmem:[%s4 + $0x180] sm:$0xff]
  %v2886 = vld [vmem:[%s4 + $0x188] sm:$0xff]
  %v2887 = vld [vmem:[%s4 + $0x190] sm:$0xff]
  %v2888 = vld [vmem:[%s4 + $0x198] sm:$0xff]
  %v2889 = vld [vmem:[%s4 + $0x1a0] sm:$0xff]
  %v2890 = vld [vmem:[%s4 + $0x1a8] sm:$0xff]
  %v2891 = vld [vmem:[%s4 + $0x1b0] sm:$0xff]
  %v2892 = vld [vmem:[%s4 + $0x1b8] sm:$0xff]
  %v2893 = vld [vmem:[%s4 + $0x1c0] sm:$0xff]
  %v2894 = vld [vmem:[%s4 + $0x1c8] sm:$0xff]
  %v2895 = vld [vmem:[%s4 + $0x1d0] sm:$0xff]
  %v2896 = vld [vmem:[%s4 + $0x1d8] sm:$0xff]
  %v2897 = vld [vmem:[%s4 + $0x1e0] sm:$0xff]
  %v2898 = vld [vmem:[%s4 + $0x1e8] sm:$0xff]
  %v2899 = vld [vmem:[%s4 + $0x1f0] sm:$0xff]
  %v2900 = vld [vmem:[%s4 + $0x1f8] sm:$0xff]
  %v2901 = vld [vmem:[%s4 + $0x200] sm:$0xff]
  %v2902 = vld [vmem:[%s4 + $0x208] sm:$0xff]
  %v2903 = vld [vmem:[%s4 + $0x210] sm:$0xff]
  %v2904 = vld [vmem:[%s4 + $0x218] sm:$0xff]
  %v2905 = vld [vmem:[%s4 + $0x220] sm:$0xff]
  %v2906 = vld [vmem:[%s4 + $0x228] sm:$0xff]
  %v2907 = vld [vmem:[%s4 + $0x230] sm:$0xff]
  %v2908 = vld [vmem:[%s4 + $0x238] sm:$0xff]
  %v2909 = vld [vmem:[%s4 + $0x240] sm:$0xff]
  %v2910 = vld [vmem:[%s4 + $0x248] sm:$0xff]
  %v2911 = vld [vmem:[%s4 + $0x250] sm:$0xff]
  %v2912 = vld [vmem:[%s4 + $0x258] sm:$0xff]
  %v2913 = vld [vmem:[%s4 + $0x260] sm:$0xff]
  %v2914 = vld [vmem:[%s4 + $0x268] sm:$0xff]
  %v2915 = vld [vmem:[%s4 + $0x270] sm:$0xff]
  %v2916 = vld [vmem:[%s4 + $0x278] sm:$0xff]
  %v2917 = vld [vmem:[%s4 + $0x280] sm:$0xff]
  %v2918 = vld [vmem:[%s4 + $0x288] sm:$0xff]
  %v2919 = vld [vmem:[%s4 + $0x290] sm:$0xff]
  %v2920 = vld [vmem:[%s4 + $0x298] sm:$0xff]
  %v2921 = vld [vmem:[%s4 + $0x2a0] sm:$0xff]
  %v2922 = vld [vmem:[%s4 + $0x2a8] sm:$0xff]
  %v2923 = vld [vmem:[%s4 + $0x2b0] sm:$0xff]
  %v2924 = vld [vmem:[%s4 + $0x2b8] sm:$0xff]
  %v2925 = vld [vmem:[%s4 + $0x2c0] sm:$0xff]
  %v2926 = vld [vmem:[%s4 + $0x2c8] sm:$0xff]
  %v2927 = vld [vmem:[%s4 + $0x2d0] sm:$0xff]
  %v2928 = vld [vmem:[%s4 + $0x2d8] sm:$0xff]
  %v2929 = vld [vmem:[%s4 + $0x2e0] sm:$0xff]
  %v2930 = vld [vmem:[%s4 + $0x2e8] sm:$0xff]
  %v2931 = vld [vmem:[%s4 + $0x2f0] sm:$0xff]
  %v2932 = vld [vmem:[%s4 + $0x2f8] sm:$0xff]
  %v2933 = vld [vmem:[%s4 + $0x300] sm:$0xff]
  %v2934 = vld [vmem:[%s4 + $0x308] sm:$0xff]
  %v2935 = vld [vmem:[%s4 + $0x310] sm:$0xff]
  %v2936 = vld [vmem:[%s4 + $0x318] sm:$0xff]
  %v2937 = vld [vmem:[%s4 + $0x320] sm:$0xff]
  %v2938 = vld [vmem:[%s4 + $0x328] sm:$0xff]
  %v2939 = vld [vmem:[%s4 + $0x330] sm:$0xff]
  %v2940 = vld [vmem:[%s4 + $0x338] sm:$0xff]
  %v2941 = vld [vmem:[%s4 + $0x340] sm:$0xff]
  %v2942 = vld [vmem:[%s4 + $0x348] sm:$0xff]
  %v2943 = vld [vmem:[%s4 + $0x350] sm:$0xff]
  %v2944 = vld [vmem:[%s4 + $0x358] sm:$0xff]
  %v2945 = vld [vmem:[%s4 + $0x360] sm:$0xff]
  %v2946 = vld [vmem:[%s4 + $0x368] sm:$0xff]
  %v2947 = vld [vmem:[%s4 + $0x370] sm:$0xff]
  %v2948 = vld [vmem:[%s4 + $0x378] sm:$0xff]
  %v2949 = vld [vmem:[%s4 + $0x380] sm:$0xff]
  %v2950 = vld [vmem:[%s4 + $0x388] sm:$0xff]
  %v2951 = vld [vmem:[%s4 + $0x390] sm:$0xff]
  %v2952 = vld [vmem:[%s4 + $0x398] sm:$0xff]
  %v2953 = vld [vmem:[%s4 + $0x3a0] sm:$0xff]
  %v2954 = vld [vmem:[%s4 + $0x3a8] sm:$0xff]
  %v2955 = vld [vmem:[%s4 + $0x3b0] sm:$0xff]
  %v2956 = vld [vmem:[%s4 + $0x3b8] sm:$0xff]
  %v2957 = vld [vmem:[%s4 + $0x3c0] sm:$0xff]
  %v2958 = vld [vmem:[%s4 + $0x3c8] sm:$0xff]
  %v2959 = vld [vmem:[%s4 + $0x3d0] sm:$0xff]
  %v2960 = vld [vmem:[%s4 + $0x3d8] sm:$0xff]
  %v2961 = vld [vmem:[%s4 + $0x3e0] sm:$0xff]
  %v2962 = vld [vmem:[%s4 + $0x3e8] sm:$0xff]
  %v2963 = vld [vmem:[%s4 + $0x3f0] sm:$0xff]
  %v2964 = vld [vmem:[%s4 + $0x3f8] sm:$0xff]
  %2965 = vmatprep.subr.mxu0 %v2838
  %2966 = vmatpush1.msra.mxu0 %v2837
  %2967 = vmatprep.subr.mxu0 %v2842
  %2968 = vmatpush1.msra.mxu0 %v2841
  %2969 = vmatprep.subr.mxu0 %v2846
  %2970 = vmatpush1.msra.mxu0 %v2845
  %2971 = vmatprep.subr.mxu0 %v2850
  %2972 = vmatpush1.msra.mxu0 %v2849
  %2973 = vmatprep.subr.mxu0 %v2854
  %2974 = vmatpush1.msra.mxu0 %v2853
  %2975 = vmatprep.subr.mxu0 %v2858
  %2976 = vmatpush1.msra.mxu0 %v2857
  %2977 = vmatprep.subr.mxu0 %v2862
  %2978 = vmatpush1.msra.mxu0 %v2861
  %2979 = vmatprep.subr.mxu0 %v2866
  %2980 = vmatpush1.msra.mxu0 %v2865
  %2981 = vmatprep.subr.mxu0 %v2870
  %2982 = vmatpush1.msra.mxu0 %v2869
  %2983 = vmatprep.subr.mxu0 %v2874
  %2984 = vmatpush1.msra.mxu0 %v2873
  %2985 = vmatprep.subr.mxu0 %v2878
  %2986 = vmatpush1.msra.mxu0 %v2877
  %2987 = vmatprep.subr.mxu0 %v2882
  %2988 = vmatpush1.msra.mxu0 %v2881
  %2989 = vmatprep.subr.mxu0 %v2886
  %2990 = vmatpush1.msra.mxu0 %v2885
  %2991 = vmatprep.subr.mxu0 %v2890
  %2992 = vmatpush1.msra.mxu0 %v2889
  %2993 = vmatprep.subr.mxu0 %v2894
  %2994 = vmatpush1.msra.mxu0 %v2893
  %2995 = vmatprep.subr.mxu0 %v2898
  %2996 = vmatpush1.msra.mxu0 %v2897
  %2997 = vmatprep.subr.mxu0 %v2902
  %2998 = vmatpush1.msra.mxu0 %v2901
  %2999 = vmatprep.subr.mxu0 %v2906
  %3000 = vmatpush1.msra.mxu0 %v2905
  %3001 = vmatprep.subr.mxu0 %v2910
  %3002 = vmatpush1.msra.mxu0 %v2909
  %3003 = vmatprep.subr.mxu0 %v2914
  %3004 = vmatpush1.msra.mxu0 %v2913
  %3005 = vmatprep.subr.mxu0 %v2918
  %3006 = vmatpush1.msra.mxu0 %v2917
  %3007 = vmatprep.subr.mxu0 %v2922
  %3008 = vmatpush1.msra.mxu0 %v2921
  %3009 = vmatprep.subr.mxu0 %v2926
  %3010 = vmatpush1.msra.mxu0 %v2925
  %3011 = vmatprep.subr.mxu0 %v2930
  %3012 = vmatpush1.msra.mxu0 %v2929
  %3013 = vmatprep.subr.mxu0 %v2934
  %3014 = vmatpush1.msra.mxu0 %v2933
  %3015 = vmatprep.subr.mxu0 %v2938
  %3016 = vmatpush1.msra.mxu0 %v2937
  %3017 = vmatprep.subr.mxu0 %v2942
  %3018 = vmatpush1.msra.mxu0 %v2941
  %3019 = vmatprep.subr.mxu0 %v2946
  %3020 = vmatpush1.msra.mxu0 %v2945
  %3021 = vmatprep.subr.mxu0 %v2950
  %3022 = vmatpush1.msra.mxu0 %v2949
  %3023 = vmatprep.subr.mxu0 %v2954
  %3024 = vmatpush1.msra.mxu0 %v2953
  %3025 = vmatprep.subr.mxu0 %v2958
  %3026 = vmatpush1.msra.mxu0 %v2957
  %3027 = vmatprep.subr.mxu0 %v2962
  %3028 = vmatpush1.msra.mxu0 %v2961
  %3029 = vmatprep.mubr.f32.mxu0 %v2597
  %3030 = vmatmul.mubr.f32.gmra.mrb[0].mxu0 %v2836
  %v3031 = vpop.f32.mrb[0].mxu0
  %v3032 = vadd.f32 %v816, %v3031
  %v3033 = vpop.f32.mrb[0].mxu0
  %v3034 = vadd.f32 %v820, %v3033
  %3035 = vdwg.mxu0
  %3036 = vmatprep.subr.mxu0 %v2840
  %3037 = vmatpush1.msra.mxu0 %v2839
  %3038 = vmatprep.subr.mxu0 %v2844
  %3039 = vmatpush1.msra.mxu0 %v2843
  %3040 = vmatprep.subr.mxu0 %v2848
  %3041 = vmatpush1.msra.mxu0 %v2847
  %3042 = vmatprep.subr.mxu0 %v2852
  %3043 = vmatpush1.msra.mxu0 %v2851
  %3044 = vmatprep.subr.mxu0 %v2856
  %3045 = vmatpush1.msra.mxu0 %v2855
  %3046 = vmatprep.subr.mxu0 %v2860
  %3047 = vmatpush1.msra.mxu0 %v2859
  %3048 = vmatprep.subr.mxu0 %v2864
  %3049 = vmatpush1.msra.mxu0 %v2863
  %3050 = vmatprep.subr.mxu0 %v2868
  %3051 = vmatpush1.msra.mxu0 %v2867
  %3052 = vmatprep.subr.mxu0 %v2872
  %3053 = vmatpush1.msra.mxu0 %v2871
  %3054 = vmatprep.subr.mxu0 %v2876
  %3055 = vmatpush1.msra.mxu0 %v2875
  %3056 = vmatprep.subr.mxu0 %v2880
  %3057 = vmatpush1.msra.mxu0 %v2879
  %3058 = vmatprep.subr.mxu0 %v2884
  %3059 = vmatpush1.msra.mxu0 %v2883
  %3060 = vmatprep.subr.mxu0 %v2888
  %3061 = vmatpush1.msra.mxu0 %v2887
  %3062 = vmatprep.subr.mxu0 %v2892
  %3063 = vmatpush1.msra.mxu0 %v2891
  %3064 = vmatprep.subr.mxu0 %v2896
  %3065 = vmatpush1.msra.mxu0 %v2895
  %3066 = vmatprep.subr.mxu0 %v2900
  %3067 = vmatpush1.msra.mxu0 %v2899
  %3068 = vmatprep.subr.mxu0 %v2904
  %3069 = vmatpush1.msra.mxu0 %v2903
  %3070 = vmatprep.subr.mxu0 %v2908
  %3071 = vmatpush1.msra.mxu0 %v2907
  %3072 = vmatprep.subr.mxu0 %v2912
  %3073 = vmatpush1.msra.mxu0 %v2911
  %3074 = vmatprep.subr.mxu0 %v2916
  %3075 = vmatpush1.msra.mxu0 %v2915
  %3076 = vmatprep.subr.mxu0 %v2920
  %3077 = vmatpush1.msra.mxu0 %v2919
  %3078 = vmatprep.subr.mxu0 %v2924
  %3079 = vmatpush1.msra.mxu0 %v2923
  %3080 = vmatprep.subr.mxu0 %v2928
  %3081 = vmatpush1.msra.mxu0 %v2927
  %3082 = vmatprep.subr.mxu0 %v2932
  %3083 = vmatpush1.msra.mxu0 %v2931
  %3084 = vmatprep.subr.mxu0 %v2936
  %3085 = vmatpush1.msra.mxu0 %v2935
  %3086 = vmatprep.subr.mxu0 %v2940
  %3087 = vmatpush1.msra.mxu0 %v2939
  %3088 = vmatprep.subr.mxu0 %v2944
  %3089 = vmatpush1.msra.mxu0 %v2943
  %3090 = vmatprep.subr.mxu0 %v2948
  %3091 = vmatpush1.msra.mxu0 %v2947
  %3092 = vmatprep.subr.mxu0 %v2952
  %3093 = vmatpush1.msra.mxu0 %v2951
  %3094 = vmatprep.subr.mxu0 %v2956
  %3095 = vmatpush1.msra.mxu0 %v2955
  %3096 = vmatprep.subr.mxu0 %v2960
  %3097 = vmatpush1.msra.mxu0 %v2959
  %3098 = vmatprep.subr.mxu0 %v2964
  %3099 = vmatpush1.msra.mxu0 %v2963
  %3100 = vmatprep.mubr.f32.mxu0 %v2597
  %3101 = vmatmul.mubr.f32.gmra.mrb[0].mxu0 %v2836
  %v3102 = vpop.f32.mrb[0].mxu0
  %v3103 = vadd.f32 %v824, %v3102
  %v3104 = vpop.f32.mrb[0].mxu0
  %v3105 = vadd.f32 %v828, %v3104
  %3106 = vdwg.mxu0
  %v3107 = vxor.u32 %v3032, 2147483648
  %v3108 = vxor.u32 %v3034, 2147483648
  %v3109 = vmul.f32 %v3107, 1.442695
  %v3110 = vpow.pop %v3109
  %v3111 = vmul.f32 %v3108, 1.442695
  %v3112 = vpow.pop %v3111
  %v3113 = vadd.f32 %v3110, 1.0
  %v3114 = vadd.f32 %v3112, 1.0
  %v3115 = vrcp.pop %v3113
  %v3116 = vmul.f32 1.0, %v3115
  %v3117 = vrcp.pop %v3114
  %v3118 = vmul.f32 1.0, %v3117
  %v3119 = vtanh.pop %v3103
  %v3120 = vxor.u32 %v3105, 2147483648
  %v3121 = vmul.f32 %v3120, 1.442695
  %v3122 = vpow.pop %v3121
  %v3123 = vadd.f32 %v3122, 1.0
  %v3124 = vrcp.pop %v3123
  %v3125 = vmul.f32 1.0, %v3124
  %v3126 = vmul.f32 %v3118, %v2595
  %v3127 = vmul.f32 %v3116, %v3119
  %v3128 = vadd.f32 %v3126, %v3127
  %v3129 = vtanh.pop %v3128
  %v3130 = vmul.f32 %v3125, %v3129
  %3131 = vst [vmem:[#allocation3 + $0x20] sm:$0xff] %v3130
  %v3132 = vld [vmem:[#allocation2 + $0xa0] sm:$0xff]
  %v3133 = vld [vmem:[#allocation2 + $0xa8] sm:$0xff]
  %v3134 = vld [vmem:[#allocation2 + $0xb0] sm:$0xff]
  %v3135 = vld [vmem:[#allocation2 + $0xb8] sm:$0xff]
  %v3136 = vld [vmem:[%s2] sm:$0xff]
  %v3137 = vld [vmem:[%s2 + $0x8] sm:$0xff]
  %v3138 = vld [vmem:[%s2 + $0x10] sm:$0xff]
  %v3139 = vld [vmem:[%s2 + $0x18] sm:$0xff]
  %v3140 = vld [vmem:[%s2 + $0x20] sm:$0xff]
  %v3141 = vld [vmem:[%s2 + $0x28] sm:$0xff]
  %v3142 = vld [vmem:[%s2 + $0x30] sm:$0xff]
  %v3143 = vld [vmem:[%s2 + $0x38] sm:$0xff]
  %v3144 = vld [vmem:[%s2 + $0x40] sm:$0xff]
  %v3145 = vld [vmem:[%s2 + $0x48] sm:$0xff]
  %v3146 = vld [vmem:[%s2 + $0x50] sm:$0xff]
  %v3147 = vld [vmem:[%s2 + $0x58] sm:$0xff]
  %v3148 = vld [vmem:[%s2 + $0x60] sm:$0xff]
  %v3149 = vld [vmem:[%s2 + $0x68] sm:$0xff]
  %v3150 = vld [vmem:[%s2 + $0x70] sm:$0xff]
  %v3151 = vld [vmem:[%s2 + $0x78] sm:$0xff]
  %v3152 = vld [vmem:[%s2 + $0x80] sm:$0xff]
  %v3153 = vld [vmem:[%s2 + $0x88] sm:$0xff]
  %v3154 = vld [vmem:[%s2 + $0x90] sm:$0xff]
  %v3155 = vld [vmem:[%s2 + $0x98] sm:$0xff]
  %v3156 = vld [vmem:[%s2 + $0xa0] sm:$0xff]
  %v3157 = vld [vmem:[%s2 + $0xa8] sm:$0xff]
  %v3158 = vld [vmem:[%s2 + $0xb0] sm:$0xff]
  %v3159 = vld [vmem:[%s2 + $0xb8] sm:$0xff]
  %v3160 = vld [vmem:[%s2 + $0xc0] sm:$0xff]
  %v3161 = vld [vmem:[%s2 + $0xc8] sm:$0xff]
  %v3162 = vld [vmem:[%s2 + $0xd0] sm:$0xff]
  %v3163 = vld [vmem:[%s2 + $0xd8] sm:$0xff]
  %v3164 = vld [vmem:[%s2 + $0xe0] sm:$0xff]
  %v3165 = vld [vmem:[%s2 + $0xe8] sm:$0xff]
  %v3166 = vld [vmem:[%s2 + $0xf0] sm:$0xff]
  %v3167 = vld [vmem:[%s2 + $0xf8] sm:$0xff]
  %v3168 = vld [vmem:[%s2 + $0x100] sm:$0xff]
  %v3169 = vld [vmem:[%s2 + $0x108] sm:$0xff]
  %v3170 = vld [vmem:[%s2 + $0x110] sm:$0xff]
  %v3171 = vld [vmem:[%s2 + $0x118] sm:$0xff]
  %v3172 = vld [vmem:[%s2 + $0x120] sm:$0xff]
  %v3173 = vld [vmem:[%s2 + $0x128] sm:$0xff]
  %v3174 = vld [vmem:[%s2 + $0x130] sm:$0xff]
  %v3175 = vld [vmem:[%s2 + $0x138] sm:$0xff]
  %v3176 = vld [vmem:[%s2 + $0x140] sm:$0xff]
  %v3177 = vld [vmem:[%s2 + $0x148] sm:$0xff]
  %v3178 = vld [vmem:[%s2 + $0x150] sm:$0xff]
  %v3179 = vld [vmem:[%s2 + $0x158] sm:$0xff]
  %v3180 = vld [vmem:[%s2 + $0x160] sm:$0xff]
  %v3181 = vld [vmem:[%s2 + $0x168] sm:$0xff]
  %v3182 = vld [vmem:[%s2 + $0x170] sm:$0xff]
  %v3183 = vld [vmem:[%s2 + $0x178] sm:$0xff]
  %v3184 = vld [vmem:[%s2 + $0x180] sm:$0xff]
  %v3185 = vld [vmem:[%s2 + $0x188] sm:$0xff]
  %v3186 = vld [vmem:[%s2 + $0x190] sm:$0xff]
  %v3187 = vld [vmem:[%s2 + $0x198] sm:$0xff]
  %v3188 = vld [vmem:[%s2 + $0x1a0] sm:$0xff]
  %v3189 = vld [vmem:[%s2 + $0x1a8] sm:$0xff]
  %v3190 = vld [vmem:[%s2 + $0x1b0] sm:$0xff]
  %v3191 = vld [vmem:[%s2 + $0x1b8] sm:$0xff]
  %v3192 = vld [vmem:[%s2 + $0x1c0] sm:$0xff]
  %v3193 = vld [vmem:[%s2 + $0x1c8] sm:$0xff]
  %v3194 = vld [vmem:[%s2 + $0x1d0] sm:$0xff]
  %v3195 = vld [vmem:[%s2 + $0x1d8] sm:$0xff]
  %v3196 = vld [vmem:[%s2 + $0x1e0] sm:$0xff]
  %v3197 = vld [vmem:[%s2 + $0x1e8] sm:$0xff]
  %v3198 = vld [vmem:[%s2 + $0x1f0] sm:$0xff]
  %v3199 = vld [vmem:[%s2 + $0x1f8] sm:$0xff]
  %3200 = vmatprep.subr.mxu0 %v3137
  %3201 = vmatpush1.msra.mxu0 %v3136
  %3202 = vmatprep.subr.mxu0 %v3141
  %3203 = vmatpush1.msra.mxu0 %v3140
  %3204 = vmatprep.subr.mxu0 %v3145
  %3205 = vmatpush1.msra.mxu0 %v3144
  %3206 = vmatprep.subr.mxu0 %v3149
  %3207 = vmatpush1.msra.mxu0 %v3148
  %3208 = vmatprep.subr.mxu0 %v3153
  %3209 = vmatpush1.msra.mxu0 %v3152
  %3210 = vmatprep.subr.mxu0 %v3157
  %3211 = vmatpush1.msra.mxu0 %v3156
  %3212 = vmatprep.subr.mxu0 %v3161
  %3213 = vmatpush1.msra.mxu0 %v3160
  %3214 = vmatprep.subr.mxu0 %v3165
  %3215 = vmatpush1.msra.mxu0 %v3164
  %3216 = vmatprep.subr.mxu0 %v3169
  %3217 = vmatpush1.msra.mxu0 %v3168
  %3218 = vmatprep.subr.mxu0 %v3173
  %3219 = vmatpush1.msra.mxu0 %v3172
  %3220 = vmatprep.subr.mxu0 %v3177
  %3221 = vmatpush1.msra.mxu0 %v3176
  %3222 = vmatprep.subr.mxu0 %v3181
  %3223 = vmatpush1.msra.mxu0 %v3180
  %3224 = vmatprep.subr.mxu0 %v3185
  %3225 = vmatpush1.msra.mxu0 %v3184
  %3226 = vmatprep.subr.mxu0 %v3189
  %3227 = vmatpush1.msra.mxu0 %v3188
  %3228 = vmatprep.subr.mxu0 %v3193
  %3229 = vmatpush1.msra.mxu0 %v3192
  %3230 = vmatprep.subr.mxu0 %v3197
  %3231 = vmatpush1.msra.mxu0 %v3196
  %3232 = vmatprep.subr.mxu0 0.0
  %3233 = vmatpush1.msra.mxu0 0.0
  %3234 = vmatprep.subr.mxu0 0.0
  %3235 = vmatpush1.msra.mxu0 0.0
  %3236 = vmatprep.subr.mxu0 0.0
  %3237 = vmatpush1.msra.mxu0 0.0
  %3238 = vmatprep.subr.mxu0 0.0
  %3239 = vmatpush1.msra.mxu0 0.0
  %3240 = vmatprep.subr.mxu0 0.0
  %3241 = vmatpush1.msra.mxu0 0.0
  %3242 = vmatprep.subr.mxu0 0.0
  %3243 = vmatpush1.msra.mxu0 0.0
  %3244 = vmatprep.subr.mxu0 0.0
  %3245 = vmatpush1.msra.mxu0 0.0
  %3246 = vmatprep.subr.mxu0 0.0
  %3247 = vmatpush1.msra.mxu0 0.0
  %3248 = vmatprep.subr.mxu0 0.0
  %3249 = vmatpush1.msra.mxu0 0.0
  %3250 = vmatprep.subr.mxu0 0.0
  %3251 = vmatpush1.msra.mxu0 0.0
  %3252 = vmatprep.subr.mxu0 0.0
  %3253 = vmatpush1.msra.mxu0 0.0
  %3254 = vmatprep.subr.mxu0 0.0
  %3255 = vmatpush1.msra.mxu0 0.0
  %3256 = vmatprep.subr.mxu0 0.0
  %3257 = vmatpush1.msra.mxu0 0.0
  %3258 = vmatprep.subr.mxu0 0.0
  %3259 = vmatpush1.msra.mxu0 0.0
  %3260 = vmatprep.subr.mxu0 0.0
  %3261 = vmatpush1.msra.mxu0 0.0
  %3262 = vmatprep.subr.mxu0 0.0
  %3263 = vmatpush1.msra.mxu0 0.0
  %3264 = vmatprep.mubr.f32.mxu0 0.0
  %3265 = vmatmul.mubr.f32.gmra.mrb[0].mxu0 %v2836
  %v3266 = vpop.f32.mrb[0].mxu0
  %v3267 = vadd.f32 0.0, %v3266
  %v3268 = vpop.f32.mrb[0].mxu0
  %v3269 = vadd.f32 0.0, %v3268
  %3270 = vdwg.mxu0
  %3271 = vmatprep.subr.mxu0 %v3139
  %3272 = vmatpush1.msra.mxu0 %v3138
  %3273 = vmatprep.subr.mxu0 %v3143
  %3274 = vmatpush1.msra.mxu0 %v3142
  %3275 = vmatprep.subr.mxu0 %v3147
  %3276 = vmatpush1.msra.mxu0 %v3146
  %3277 = vmatprep.subr.mxu0 %v3151
  %3278 = vmatpush1.msra.mxu0 %v3150
  %3279 = vmatprep.subr.mxu0 %v3155
  %3280 = vmatpush1.msra.mxu0 %v3154
  %3281 = vmatprep.subr.mxu0 %v3159
  %3282 = vmatpush1.msra.mxu0 %v3158
  %3283 = vmatprep.subr.mxu0 %v3163
  %3284 = vmatpush1.msra.mxu0 %v3162
  %3285 = vmatprep.subr.mxu0 %v3167
  %3286 = vmatpush1.msra.mxu0 %v3166
  %3287 = vmatprep.subr.mxu0 %v3171
  %3288 = vmatpush1.msra.mxu0 %v3170
  %3289 = vmatprep.subr.mxu0 %v3175
  %3290 = vmatpush1.msra.mxu0 %v3174
  %3291 = vmatprep.subr.mxu0 %v3179
  %3292 = vmatpush1.msra.mxu0 %v3178
  %3293 = vmatprep.subr.mxu0 %v3183
  %3294 = vmatpush1.msra.mxu0 %v3182
  %3295 = vmatprep.subr.mxu0 %v3187
  %3296 = vmatpush1.msra.mxu0 %v3186
  %3297 = vmatprep.subr.mxu0 %v3191
  %3298 = vmatpush1.msra.mxu0 %v3190
  %3299 = vmatprep.subr.mxu0 %v3195
  %3300 = vmatpush1.msra.mxu0 %v3194
  %3301 = vmatprep.subr.mxu0 %v3199
  %3302 = vmatpush1.msra.mxu0 %v3198
  %3303 = vmatprep.subr.mxu0 0.0
  %3304 = vmatpush1.msra.mxu0 0.0
  %3305 = vmatprep.subr.mxu0 0.0
  %3306 = vmatpush1.msra.mxu0 0.0
  %3307 = vmatprep.subr.mxu0 0.0
  %3308 = vmatpush1.msra.mxu0 0.0
  %3309 = vmatprep.subr.mxu0 0.0
  %3310 = vmatpush1.msra.mxu0 0.0
  %3311 = vmatprep.subr.mxu0 0.0
  %3312 = vmatpush1.msra.mxu0 0.0
  %3313 = vmatprep.subr.mxu0 0.0
  %3314 = vmatpush1.msra.mxu0 0.0
  %3315 = vmatprep.subr.mxu0 0.0
  %3316 = vmatpush1.msra.mxu0 0.0
  %3317 = vmatprep.subr.mxu0 0.0
  %3318 = vmatpush1.msra.mxu0 0.0
  %3319 = vmatprep.subr.mxu0 0.0
  %3320 = vmatpush1.msra.mxu0 0.0
  %3321 = vmatprep.subr.mxu0 0.0
  %3322 = vmatpush1.msra.mxu0 0.0
  %3323 = vmatprep.subr.mxu0 0.0
  %3324 = vmatpush1.msra.mxu0 0.0
  %3325 = vmatprep.subr.mxu0 0.0
  %3326 = vmatpush1.msra.mxu0 0.0
  %3327 = vmatprep.subr.mxu0 0.0
  %3328 = vmatpush1.msra.mxu0 0.0
  %3329 = vmatprep.subr.mxu0 0.0
  %3330 = vmatpush1.msra.mxu0 0.0
  %3331 = vmatprep.subr.mxu0 0.0
  %3332 = vmatpush1.msra.mxu0 0.0
  %3333 = vmatprep.subr.mxu0 0.0
  %3334 = vmatpush1.msra.mxu0 0.0
  %3335 = vmatprep.mubr.f32.mxu0 0.0
  %3336 = vmatmul.mubr.f32.gmra.mrb[0].mxu0 %v2836
  %v3337 = vpop.f32.mrb[0].mxu0
  %v3338 = vadd.f32 0.0, %v3337
  %v3339 = vpop.f32.mrb[0].mxu0
  %v3340 = vadd.f32 0.0, %v3339
  %3341 = vdwg.mxu0
  %v3342 = vadd.f32 %v3132, %v3267
  %v3343 = vadd.f32 %v3133, %v3269
  %v3344 = vadd.f32 %v3134, %v3338
  %v3345 = vadd.f32 %v3135, %v3340
  %v3346 = vxor.u32 %v3342, 2147483648
  %v3347 = vxor.u32 %v3343, 2147483648
  %v3348 = vmul.f32 %v3346, 1.442695
  %v3349 = vpow.pop %v3348
  %v3350 = vmul.f32 %v3347, 1.442695
  %v3351 = vpow.pop %v3350
  %v3352 = vadd.f32 %v3349, 1.0
  %v3353 = vadd.f32 %v3351, 1.0
  %v3354 = vrcp.pop %v3352
  %v3355 = vmul.f32 1.0, %v3354
  %v3356 = vrcp.pop %v3353
  %v3357 = vmul.f32 1.0, %v3356
  %v3358 = vtanh.pop %v3344
  %v3359 = vxor.u32 %v3345, 2147483648
  %v3360 = vmul.f32 %v3359, 1.442695
  %v3361 = vpow.pop %v3360
  %v3362 = vadd.f32 %v3361, 1.0
  %v3363 = vrcp.pop %v3362
  %v3364 = vmul.f32 1.0, %v3363
  %v3365 = vmul.f32 %v3357, %v2834
  %v3366 = vmul.f32 %v3355, %v3358
  %v3367 = vadd.f32 %v3365, %v3366
  %v3368 = vtanh.pop %v3367
  %v3369 = vmul.f32 %v3364, %v3368
  %v3370 = vld [vmem:[%s4] sm:$0xff]
  %v3371 = vld [vmem:[%s4 + $0x8] sm:$0xff]
  %v3372 = vld [vmem:[%s4 + $0x10] sm:$0xff]
  %v3373 = vld [vmem:[%s4 + $0x18] sm:$0xff]
  %v3374 = vld [vmem:[%s4 + $0x20] sm:$0xff]
  %v3375 = vld [vmem:[%s4 + $0x28] sm:$0xff]
  %v3376 = vld [vmem:[%s4 + $0x30] sm:$0xff]
  %v3377 = vld [vmem:[%s4 + $0x38] sm:$0xff]
  %v3378 = vld [vmem:[%s4 + $0x40] sm:$0xff]
  %v3379 = vld [vmem:[%s4 + $0x48] sm:$0xff]
  %v3380 = vld [vmem:[%s4 + $0x50] sm:$0xff]
  %v3381 = vld [vmem:[%s4 + $0x58] sm:$0xff]
  %v3382 = vld [vmem:[%s4 + $0x60] sm:$0xff]
  %v3383 = vld [vmem:[%s4 + $0x68] sm:$0xff]
  %v3384 = vld [vmem:[%s4 + $0x70] sm:$0xff]
  %v3385 = vld [vmem:[%s4 + $0x78] sm:$0xff]
  %v3386 = vld [vmem:[%s4 + $0x80] sm:$0xff]
  %v3387 = vld [vmem:[%s4 + $0x88] sm:$0xff]
  %v3388 = vld [vmem:[%s4 + $0x90] sm:$0xff]
  %v3389 = vld [vmem:[%s4 + $0x98] sm:$0xff]
  %v3390 = vld [vmem:[%s4 + $0xa0] sm:$0xff]
  %v3391 = vld [vmem:[%s4 + $0xa8] sm:$0xff]
  %v3392 = vld [vmem:[%s4 + $0xb0] sm:$0xff]
  %v3393 = vld [vmem:[%s4 + $0xb8] sm:$0xff]
  %v3394 = vld [vmem:[%s4 + $0xc0] sm:$0xff]
  %v3395 = vld [vmem:[%s4 + $0xc8] sm:$0xff]
  %v3396 = vld [vmem:[%s4 + $0xd0] sm:$0xff]
  %v3397 = vld [vmem:[%s4 + $0xd8] sm:$0xff]
  %v3398 = vld [vmem:[%s4 + $0xe0] sm:$0xff]
  %v3399 = vld [vmem:[%s4 + $0xe8] sm:$0xff]
  %v3400 = vld [vmem:[%s4 + $0xf0] sm:$0xff]
  %v3401 = vld [vmem:[%s4 + $0xf8] sm:$0xff]
  %v3402 = vld [vmem:[%s4 + $0x100] sm:$0xff]
  %v3403 = vld [vmem:[%s4 + $0x108] sm:$0xff]
  %v3404 = vld [vmem:[%s4 + $0x110] sm:$0xff]
  %v3405 = vld [vmem:[%s4 + $0x118] sm:$0xff]
  %v3406 = vld [vmem:[%s4 + $0x120] sm:$0xff]
  %v3407 = vld [vmem:[%s4 + $0x128] sm:$0xff]
  %v3408 = vld [vmem:[%s4 + $0x130] sm:$0xff]
  %v3409 = vld [vmem:[%s4 + $0x138] sm:$0xff]
  %v3410 = vld [vmem:[%s4 + $0x140] sm:$0xff]
  %v3411 = vld [vmem:[%s4 + $0x148] sm:$0xff]
  %v3412 = vld [vmem:[%s4 + $0x150] sm:$0xff]
  %v3413 = vld [vmem:[%s4 + $0x158] sm:$0xff]
  %v3414 = vld [vmem:[%s4 + $0x160] sm:$0xff]
  %v3415 = vld [vmem:[%s4 + $0x168] sm:$0xff]
  %v3416 = vld [vmem:[%s4 + $0x170] sm:$0xff]
  %v3417 = vld [vmem:[%s4 + $0x178] sm:$0xff]
  %v3418 = vld [vmem:[%s4 + $0x180] sm:$0xff]
  %v3419 = vld [vmem:[%s4 + $0x188] sm:$0xff]
  %v3420 = vld [vmem:[%s4 + $0x190] sm:$0xff]
  %v3421 = vld [vmem:[%s4 + $0x198] sm:$0xff]
  %v3422 = vld [vmem:[%s4 + $0x1a0] sm:$0xff]
  %v3423 = vld [vmem:[%s4 + $0x1a8] sm:$0xff]
  %v3424 = vld [vmem:[%s4 + $0x1b0] sm:$0xff]
  %v3425 = vld [vmem:[%s4 + $0x1b8] sm:$0xff]
  %v3426 = vld [vmem:[%s4 + $0x1c0] sm:$0xff]
  %v3427 = vld [vmem:[%s4 + $0x1c8] sm:$0xff]
  %v3428 = vld [vmem:[%s4 + $0x1d0] sm:$0xff]
  %v3429 = vld [vmem:[%s4 + $0x1d8] sm:$0xff]
  %v3430 = vld [vmem:[%s4 + $0x1e0] sm:$0xff]
  %v3431 = vld [vmem:[%s4 + $0x1e8] sm:$0xff]
  %v3432 = vld [vmem:[%s4 + $0x1f0] sm:$0xff]
  %v3433 = vld [vmem:[%s4 + $0x1f8] sm:$0xff]
  %v3434 = vld [vmem:[%s4 + $0x200] sm:$0xff]
  %v3435 = vld [vmem:[%s4 + $0x208] sm:$0xff]
  %v3436 = vld [vmem:[%s4 + $0x210] sm:$0xff]
  %v3437 = vld [vmem:[%s4 + $0x218] sm:$0xff]
  %v3438 = vld [vmem:[%s4 + $0x220] sm:$0xff]
  %v3439 = vld [vmem:[%s4 + $0x228] sm:$0xff]
  %v3440 = vld [vmem:[%s4 + $0x230] sm:$0xff]
  %v3441 = vld [vmem:[%s4 + $0x238] sm:$0xff]
  %v3442 = vld [vmem:[%s4 + $0x240] sm:$0xff]
  %v3443 = vld [vmem:[%s4 + $0x248] sm:$0xff]
  %v3444 = vld [vmem:[%s4 + $0x250] sm:$0xff]
  %v3445 = vld [vmem:[%s4 + $0x258] sm:$0xff]
  %v3446 = vld [vmem:[%s4 + $0x260] sm:$0xff]
  %v3447 = vld [vmem:[%s4 + $0x268] sm:$0xff]
  %v3448 = vld [vmem:[%s4 + $0x270] sm:$0xff]
  %v3449 = vld [vmem:[%s4 + $0x278] sm:$0xff]
  %v3450 = vld [vmem:[%s4 + $0x280] sm:$0xff]
  %v3451 = vld [vmem:[%s4 + $0x288] sm:$0xff]
  %v3452 = vld [vmem:[%s4 + $0x290] sm:$0xff]
  %v3453 = vld [vmem:[%s4 + $0x298] sm:$0xff]
  %v3454 = vld [vmem:[%s4 + $0x2a0] sm:$0xff]
  %v3455 = vld [vmem:[%s4 + $0x2a8] sm:$0xff]
  %v3456 = vld [vmem:[%s4 + $0x2b0] sm:$0xff]
  %v3457 = vld [vmem:[%s4 + $0x2b8] sm:$0xff]
  %v3458 = vld [vmem:[%s4 + $0x2c0] sm:$0xff]
  %v3459 = vld [vmem:[%s4 + $0x2c8] sm:$0xff]
  %v3460 = vld [vmem:[%s4 + $0x2d0] sm:$0xff]
  %v3461 = vld [vmem:[%s4 + $0x2d8] sm:$0xff]
  %v3462 = vld [vmem:[%s4 + $0x2e0] sm:$0xff]
  %v3463 = vld [vmem:[%s4 + $0x2e8] sm:$0xff]
  %v3464 = vld [vmem:[%s4 + $0x2f0] sm:$0xff]
  %v3465 = vld [vmem:[%s4 + $0x2f8] sm:$0xff]
  %v3466 = vld [vmem:[%s4 + $0x300] sm:$0xff]
  %v3467 = vld [vmem:[%s4 + $0x308] sm:$0xff]
  %v3468 = vld [vmem:[%s4 + $0x310] sm:$0xff]
  %v3469 = vld [vmem:[%s4 + $0x318] sm:$0xff]
  %v3470 = vld [vmem:[%s4 + $0x320] sm:$0xff]
  %v3471 = vld [vmem:[%s4 + $0x328] sm:$0xff]
  %v3472 = vld [vmem:[%s4 + $0x330] sm:$0xff]
  %v3473 = vld [vmem:[%s4 + $0x338] sm:$0xff]
  %v3474 = vld [vmem:[%s4 + $0x340] sm:$0xff]
  %v3475 = vld [vmem:[%s4 + $0x348] sm:$0xff]
  %v3476 = vld [vmem:[%s4 + $0x350] sm:$0xff]
  %v3477 = vld [vmem:[%s4 + $0x358] sm:$0xff]
  %v3478 = vld [vmem:[%s4 + $0x360] sm:$0xff]
  %v3479 = vld [vmem:[%s4 + $0x368] sm:$0xff]
  %v3480 = vld [vmem:[%s4 + $0x370] sm:$0xff]
  %v3481 = vld [vmem:[%s4 + $0x378] sm:$0xff]
  %v3482 = vld [vmem:[%s4 + $0x380] sm:$0xff]
  %v3483 = vld [vmem:[%s4 + $0x388] sm:$0xff]
  %v3484 = vld [vmem:[%s4 + $0x390] sm:$0xff]
  %v3485 = vld [vmem:[%s4 + $0x398] sm:$0xff]
  %v3486 = vld [vmem:[%s4 + $0x3a0] sm:$0xff]
  %v3487 = vld [vmem:[%s4 + $0x3a8] sm:$0xff]
  %v3488 = vld [vmem:[%s4 + $0x3b0] sm:$0xff]
  %v3489 = vld [vmem:[%s4 + $0x3b8] sm:$0xff]
  %v3490 = vld [vmem:[%s4 + $0x3c0] sm:$0xff]
  %v3491 = vld [vmem:[%s4 + $0x3c8] sm:$0xff]
  %v3492 = vld [vmem:[%s4 + $0x3d0] sm:$0xff]
  %v3493 = vld [vmem:[%s4 + $0x3d8] sm:$0xff]
  %v3494 = vld [vmem:[%s4 + $0x3e0] sm:$0xff]
  %v3495 = vld [vmem:[%s4 + $0x3e8] sm:$0xff]
  %v3496 = vld [vmem:[%s4 + $0x3f0] sm:$0xff]
  %v3497 = vld [vmem:[%s4 + $0x3f8] sm:$0xff]
  %3498 = vmatprep.subr.mxu0 %v3371
  %3499 = vmatpush1.msra.mxu0 %v3370
  %3500 = vmatprep.subr.mxu0 %v3375
  %3501 = vmatpush1.msra.mxu0 %v3374
  %3502 = vmatprep.subr.mxu0 %v3379
  %3503 = vmatpush1.msra.mxu0 %v3378
  %3504 = vmatprep.subr.mxu0 %v3383
  %3505 = vmatpush1.msra.mxu0 %v3382
  %3506 = vmatprep.subr.mxu0 %v3387
  %3507 = vmatpush1.msra.mxu0 %v3386
  %3508 = vmatprep.subr.mxu0 %v3391
  %3509 = vmatpush1.msra.mxu0 %v3390
  %3510 = vmatprep.subr.mxu0 %v3395
  %3511 = vmatpush1.msra.mxu0 %v3394
  %3512 = vmatprep.subr.mxu0 %v3399
  %3513 = vmatpush1.msra.mxu0 %v3398
  %3514 = vmatprep.subr.mxu0 %v3403
  %3515 = vmatpush1.msra.mxu0 %v3402
  %3516 = vmatprep.subr.mxu0 %v3407
  %3517 = vmatpush1.msra.mxu0 %v3406
  %3518 = vmatprep.subr.mxu0 %v3411
  %3519 = vmatpush1.msra.mxu0 %v3410
  %3520 = vmatprep.subr.mxu0 %v3415
  %3521 = vmatpush1.msra.mxu0 %v3414
  %3522 = vmatprep.subr.mxu0 %v3419
  %3523 = vmatpush1.msra.mxu0 %v3418
  %3524 = vmatprep.subr.mxu0 %v3423
  %3525 = vmatpush1.msra.mxu0 %v3422
  %3526 = vmatprep.subr.mxu0 %v3427
  %3527 = vmatpush1.msra.mxu0 %v3426
  %3528 = vmatprep.subr.mxu0 %v3431
  %3529 = vmatpush1.msra.mxu0 %v3430
  %3530 = vmatprep.subr.mxu0 %v3435
  %3531 = vmatpush1.msra.mxu0 %v3434
  %3532 = vmatprep.subr.mxu0 %v3439
  %3533 = vmatpush1.msra.mxu0 %v3438
  %3534 = vmatprep.subr.mxu0 %v3443
  %3535 = vmatpush1.msra.mxu0 %v3442
  %3536 = vmatprep.subr.mxu0 %v3447
  %3537 = vmatpush1.msra.mxu0 %v3446
  %3538 = vmatprep.subr.mxu0 %v3451
  %3539 = vmatpush1.msra.mxu0 %v3450
  %3540 = vmatprep.subr.mxu0 %v3455
  %3541 = vmatpush1.msra.mxu0 %v3454
  %3542 = vmatprep.subr.mxu0 %v3459
  %3543 = vmatpush1.msra.mxu0 %v3458
  %3544 = vmatprep.subr.mxu0 %v3463
  %3545 = vmatpush1.msra.mxu0 %v3462
  %3546 = vmatprep.subr.mxu0 %v3467
  %3547 = vmatpush1.msra.mxu0 %v3466
  %3548 = vmatprep.subr.mxu0 %v3471
  %3549 = vmatpush1.msra.mxu0 %v3470
  %3550 = vmatprep.subr.mxu0 %v3475
  %3551 = vmatpush1.msra.mxu0 %v3474
  %3552 = vmatprep.subr.mxu0 %v3479
  %3553 = vmatpush1.msra.mxu0 %v3478
  %3554 = vmatprep.subr.mxu0 %v3483
  %3555 = vmatpush1.msra.mxu0 %v3482
  %3556 = vmatprep.subr.mxu0 %v3487
  %3557 = vmatpush1.msra.mxu0 %v3486
  %3558 = vmatprep.subr.mxu0 %v3491
  %3559 = vmatpush1.msra.mxu0 %v3490
  %3560 = vmatprep.subr.mxu0 %v3495
  %3561 = vmatpush1.msra.mxu0 %v3494
  %3562 = vmatprep.mubr.f32.mxu0 %v3130
  %3563 = vmatmul.mubr.f32.gmra.mrb[0].mxu0 %v3369
  %v3564 = vpop.f32.mrb[0].mxu0
  %v3565 = vadd.f32 %v816, %v3564
  %v3566 = vpop.f32.mrb[0].mxu0
  %v3567 = vadd.f32 %v820, %v3566
  %3568 = vdwg.mxu0
  %3569 = vmatprep.subr.mxu0 %v3373
  %3570 = vmatpush1.msra.mxu0 %v3372
  %3571 = vmatprep.subr.mxu0 %v3377
  %3572 = vmatpush1.msra.mxu0 %v3376
  %3573 = vmatprep.subr.mxu0 %v3381
  %3574 = vmatpush1.msra.mxu0 %v3380
  %3575 = vmatprep.subr.mxu0 %v3385
  %3576 = vmatpush1.msra.mxu0 %v3384
  %3577 = vmatprep.subr.mxu0 %v3389
  %3578 = vmatpush1.msra.mxu0 %v3388
  %3579 = vmatprep.subr.mxu0 %v3393
  %3580 = vmatpush1.msra.mxu0 %v3392
  %3581 = vmatprep.subr.mxu0 %v3397
  %3582 = vmatpush1.msra.mxu0 %v3396
  %3583 = vmatprep.subr.mxu0 %v3401
  %3584 = vmatpush1.msra.mxu0 %v3400
  %3585 = vmatprep.subr.mxu0 %v3405
  %3586 = vmatpush1.msra.mxu0 %v3404
  %3587 = vmatprep.subr.mxu0 %v3409
  %3588 = vmatpush1.msra.mxu0 %v3408
  %3589 = vmatprep.subr.mxu0 %v3413
  %3590 = vmatpush1.msra.mxu0 %v3412
  %3591 = vmatprep.subr.mxu0 %v3417
  %3592 = vmatpush1.msra.mxu0 %v3416
  %3593 = vmatprep.subr.mxu0 %v3421
  %3594 = vmatpush1.msra.mxu0 %v3420
  %3595 = vmatprep.subr.mxu0 %v3425
  %3596 = vmatpush1.msra.mxu0 %v3424
  %3597 = vmatprep.subr.mxu0 %v3429
  %3598 = vmatpush1.msra.mxu0 %v3428
  %3599 = vmatprep.subr.mxu0 %v3433
  %3600 = vmatpush1.msra.mxu0 %v3432
  %3601 = vmatprep.subr.mxu0 %v3437
  %3602 = vmatpush1.msra.mxu0 %v3436
  %3603 = vmatprep.subr.mxu0 %v3441
  %3604 = vmatpush1.msra.mxu0 %v3440
  %3605 = vmatprep.subr.mxu0 %v3445
  %3606 = vmatpush1.msra.mxu0 %v3444
  %3607 = vmatprep.subr.mxu0 %v3449
  %3608 = vmatpush1.msra.mxu0 %v3448
  %3609 = vmatprep.subr.mxu0 %v3453
  %3610 = vmatpush1.msra.mxu0 %v3452
  %3611 = vmatprep.subr.mxu0 %v3457
  %3612 = vmatpush1.msra.mxu0 %v3456
  %3613 = vmatprep.subr.mxu0 %v3461
  %3614 = vmatpush1.msra.mxu0 %v3460
  %3615 = vmatprep.subr.mxu0 %v3465
  %3616 = vmatpush1.msra.mxu0 %v3464
  %3617 = vmatprep.subr.mxu0 %v3469
  %3618 = vmatpush1.msra.mxu0 %v3468
  %3619 = vmatprep.subr.mxu0 %v3473
  %3620 = vmatpush1.msra.mxu0 %v3472
  %3621 = vmatprep.subr.mxu0 %v3477
  %3622 = vmatpush1.msra.mxu0 %v3476
  %3623 = vmatprep.subr.mxu0 %v3481
  %3624 = vmatpush1.msra.mxu0 %v3480
  %3625 = vmatprep.subr.mxu0 %v3485
  %3626 = vmatpush1.msra.mxu0 %v3484
  %3627 = vmatprep.subr.mxu0 %v3489
  %3628 = vmatpush1.msra.mxu0 %v3488
  %3629 = vmatprep.subr.mxu0 %v3493
  %3630 = vmatpush1.msra.mxu0 %v3492
  %3631 = vmatprep.subr.mxu0 %v3497
  %3632 = vmatpush1.msra.mxu0 %v3496
  %3633 = vmatprep.mubr.f32.mxu0 %v3130
  %3634 = vmatmul.mubr.f32.gmra.mrb[0].mxu0 %v3369
  %v3635 = vpop.f32.mrb[0].mxu0
  %v3636 = vadd.f32 %v824, %v3635
  %v3637 = vpop.f32.mrb[0].mxu0
  %v3638 = vadd.f32 %v828, %v3637
  %3639 = vdwg.mxu0
  %v3640 = vxor.u32 %v3565, 2147483648
  %v3641 = vxor.u32 %v3567, 2147483648
  %v3642 = vmul.f32 %v3640, 1.442695
  %v3643 = vpow.pop %v3642
  %v3644 = vmul.f32 %v3641, 1.442695
  %v3645 = vpow.pop %v3644
  %v3646 = vadd.f32 %v3643, 1.0
  %v3647 = vadd.f32 %v3645, 1.0
  %v3648 = vrcp.pop %v3646
  %v3649 = vmul.f32 1.0, %v3648
  %v3650 = vrcp.pop %v3647
  %v3651 = vmul.f32 1.0, %v3650
  %v3652 = vtanh.pop %v3636
  %v3653 = vxor.u32 %v3638, 2147483648
  %v3654 = vmul.f32 %v3653, 1.442695
  %v3655 = vpow.pop %v3654
  %v3656 = vadd.f32 %v3655, 1.0
  %v3657 = vrcp.pop %v3656
  %v3658 = vmul.f32 1.0, %v3657
  %v3659 = vmul.f32 %v3651, %v3128
  %v3660 = vmul.f32 %v3649, %v3652
  %v3661 = vadd.f32 %v3659, %v3660
  %v3662 = vtanh.pop %v3661
  %v3663 = vmul.f32 %v3658, %v3662
  %3664 = vst [vmem:[#allocation3 + $0x28] sm:$0xff] %v3663
  %v3665 = vld [vmem:[#allocation2 + $0xc0] sm:$0xff]
  %v3666 = vld [vmem:[#allocation2 + $0xc8] sm:$0xff]
  %v3667 = vld [vmem:[#allocation2 + $0xd0] sm:$0xff]
  %v3668 = vld [vmem:[#allocation2 + $0xd8] sm:$0xff]
  %v3669 = vld [vmem:[%s2] sm:$0xff]
  %v3670 = vld [vmem:[%s2 + $0x8] sm:$0xff]
  %v3671 = vld [vmem:[%s2 + $0x10] sm:$0xff]
  %v3672 = vld [vmem:[%s2 + $0x18] sm:$0xff]
  %v3673 = vld [vmem:[%s2 + $0x20] sm:$0xff]
  %v3674 = vld [vmem:[%s2 + $0x28] sm:$0xff]
  %v3675 = vld [vmem:[%s2 + $0x30] sm:$0xff]
  %v3676 = vld [vmem:[%s2 + $0x38] sm:$0xff]
  %v3677 = vld [vmem:[%s2 + $0x40] sm:$0xff]
  %v3678 = vld [vmem:[%s2 + $0x48] sm:$0xff]
  %v3679 = vld [vmem:[%s2 + $0x50] sm:$0xff]
  %v3680 = vld [vmem:[%s2 + $0x58] sm:$0xff]
  %v3681 = vld [vmem:[%s2 + $0x60] sm:$0xff]
  %v3682 = vld [vmem:[%s2 + $0x68] sm:$0xff]
  %v3683 = vld [vmem:[%s2 + $0x70] sm:$0xff]
  %v3684 = vld [vmem:[%s2 + $0x78] sm:$0xff]
  %v3685 = vld [vmem:[%s2 + $0x80] sm:$0xff]
  %v3686 = vld [vmem:[%s2 + $0x88] sm:$0xff]
  %v3687 = vld [vmem:[%s2 + $0x90] sm:$0xff]
  %v3688 = vld [vmem:[%s2 + $0x98] sm:$0xff]
  %v3689 = vld [vmem:[%s2 + $0xa0] sm:$0xff]
  %v3690 = vld [vmem:[%s2 + $0xa8] sm:$0xff]
  %v3691 = vld [vmem:[%s2 + $0xb0] sm:$0xff]
  %v3692 = vld [vmem:[%s2 + $0xb8] sm:$0xff]
  %v3693 = vld [vmem:[%s2 + $0xc0] sm:$0xff]
  %v3694 = vld [vmem:[%s2 + $0xc8] sm:$0xff]
  %v3695 = vld [vmem:[%s2 + $0xd0] sm:$0xff]
  %v3696 = vld [vmem:[%s2 + $0xd8] sm:$0xff]
  %v3697 = vld [vmem:[%s2 + $0xe0] sm:$0xff]
  %v3698 = vld [vmem:[%s2 + $0xe8] sm:$0xff]
  %v3699 = vld [vmem:[%s2 + $0xf0] sm:$0xff]
  %v3700 = vld [vmem:[%s2 + $0xf8] sm:$0xff]
  %v3701 = vld [vmem:[%s2 + $0x100] sm:$0xff]
  %v3702 = vld [vmem:[%s2 + $0x108] sm:$0xff]
  %v3703 = vld [vmem:[%s2 + $0x110] sm:$0xff]
  %v3704 = vld [vmem:[%s2 + $0x118] sm:$0xff]
  %v3705 = vld [vmem:[%s2 + $0x120] sm:$0xff]
  %v3706 = vld [vmem:[%s2 + $0x128] sm:$0xff]
  %v3707 = vld [vmem:[%s2 + $0x130] sm:$0xff]
  %v3708 = vld [vmem:[%s2 + $0x138] sm:$0xff]
  %v3709 = vld [vmem:[%s2 + $0x140] sm:$0xff]
  %v3710 = vld [vmem:[%s2 + $0x148] sm:$0xff]
  %v3711 = vld [vmem:[%s2 + $0x150] sm:$0xff]
  %v3712 = vld [vmem:[%s2 + $0x158] sm:$0xff]
  %v3713 = vld [vmem:[%s2 + $0x160] sm:$0xff]
  %v3714 = vld [vmem:[%s2 + $0x168] sm:$0xff]
  %v3715 = vld [vmem:[%s2 + $0x170] sm:$0xff]
  %v3716 = vld [vmem:[%s2 + $0x178] sm:$0xff]
  %v3717 = vld [vmem:[%s2 + $0x180] sm:$0xff]
  %v3718 = vld [vmem:[%s2 + $0x188] sm:$0xff]
  %v3719 = vld [vmem:[%s2 + $0x190] sm:$0xff]
  %v3720 = vld [vmem:[%s2 + $0x198] sm:$0xff]
  %v3721 = vld [vmem:[%s2 + $0x1a0] sm:$0xff]
  %v3722 = vld [vmem:[%s2 + $0x1a8] sm:$0xff]
  %v3723 = vld [vmem:[%s2 + $0x1b0] sm:$0xff]
  %v3724 = vld [vmem:[%s2 + $0x1b8] sm:$0xff]
  %v3725 = vld [vmem:[%s2 + $0x1c0] sm:$0xff]
  %v3726 = vld [vmem:[%s2 + $0x1c8] sm:$0xff]
  %v3727 = vld [vmem:[%s2 + $0x1d0] sm:$0xff]
  %v3728 = vld [vmem:[%s2 + $0x1d8] sm:$0xff]
  %v3729 = vld [vmem:[%s2 + $0x1e0] sm:$0xff]
  %v3730 = vld [vmem:[%s2 + $0x1e8] sm:$0xff]
  %v3731 = vld [vmem:[%s2 + $0x1f0] sm:$0xff]
  %v3732 = vld [vmem:[%s2 + $0x1f8] sm:$0xff]
  %3733 = vmatprep.subr.mxu0 %v3670
  %3734 = vmatpush1.msra.mxu0 %v3669
  %3735 = vmatprep.subr.mxu0 %v3674
  %3736 = vmatpush1.msra.mxu0 %v3673
  %3737 = vmatprep.subr.mxu0 %v3678
  %3738 = vmatpush1.msra.mxu0 %v3677
  %3739 = vmatprep.subr.mxu0 %v3682
  %3740 = vmatpush1.msra.mxu0 %v3681
  %3741 = vmatprep.subr.mxu0 %v3686
  %3742 = vmatpush1.msra.mxu0 %v3685
  %3743 = vmatprep.subr.mxu0 %v3690
  %3744 = vmatpush1.msra.mxu0 %v3689
  %3745 = vmatprep.subr.mxu0 %v3694
  %3746 = vmatpush1.msra.mxu0 %v3693
  %3747 = vmatprep.subr.mxu0 %v3698
  %3748 = vmatpush1.msra.mxu0 %v3697
  %3749 = vmatprep.subr.mxu0 %v3702
  %3750 = vmatpush1.msra.mxu0 %v3701
  %3751 = vmatprep.subr.mxu0 %v3706
  %3752 = vmatpush1.msra.mxu0 %v3705
  %3753 = vmatprep.subr.mxu0 %v3710
  %3754 = vmatpush1.msra.mxu0 %v3709
  %3755 = vmatprep.subr.mxu0 %v3714
  %3756 = vmatpush1.msra.mxu0 %v3713
  %3757 = vmatprep.subr.mxu0 %v3718
  %3758 = vmatpush1.msra.mxu0 %v3717
  %3759 = vmatprep.subr.mxu0 %v3722
  %3760 = vmatpush1.msra.mxu0 %v3721
  %3761 = vmatprep.subr.mxu0 %v3726
  %3762 = vmatpush1.msra.mxu0 %v3725
  %3763 = vmatprep.subr.mxu0 %v3730
  %3764 = vmatpush1.msra.mxu0 %v3729
  %3765 = vmatprep.subr.mxu0 0.0
  %3766 = vmatpush1.msra.mxu0 0.0
  %3767 = vmatprep.subr.mxu0 0.0
  %3768 = vmatpush1.msra.mxu0 0.0
  %3769 = vmatprep.subr.mxu0 0.0
  %3770 = vmatpush1.msra.mxu0 0.0
  %3771 = vmatprep.subr.mxu0 0.0
  %3772 = vmatpush1.msra.mxu0 0.0
  %3773 = vmatprep.subr.mxu0 0.0
  %3774 = vmatpush1.msra.mxu0 0.0
  %3775 = vmatprep.subr.mxu0 0.0
  %3776 = vmatpush1.msra.mxu0 0.0
  %3777 = vmatprep.subr.mxu0 0.0
  %3778 = vmatpush1.msra.mxu0 0.0
  %3779 = vmatprep.subr.mxu0 0.0
  %3780 = vmatpush1.msra.mxu0 0.0
  %3781 = vmatprep.subr.mxu0 0.0
  %3782 = vmatpush1.msra.mxu0 0.0
  %3783 = vmatprep.subr.mxu0 0.0
  %3784 = vmatpush1.msra.mxu0 0.0
  %3785 = vmatprep.subr.mxu0 0.0
  %3786 = vmatpush1.msra.mxu0 0.0
  %3787 = vmatprep.subr.mxu0 0.0
  %3788 = vmatpush1.msra.mxu0 0.0
  %3789 = vmatprep.subr.mxu0 0.0
  %3790 = vmatpush1.msra.mxu0 0.0
  %3791 = vmatprep.subr.mxu0 0.0
  %3792 = vmatpush1.msra.mxu0 0.0
  %3793 = vmatprep.subr.mxu0 0.0
  %3794 = vmatpush1.msra.mxu0 0.0
  %3795 = vmatprep.subr.mxu0 0.0
  %3796 = vmatpush1.msra.mxu0 0.0
  %3797 = vmatprep.mubr.f32.mxu0 0.0
  %3798 = vmatmul.mubr.f32.gmra.mrb[0].mxu0 %v3369
  %v3799 = vpop.f32.mrb[0].mxu0
  %v3800 = vadd.f32 0.0, %v3799
  %v3801 = vpop.f32.mrb[0].mxu0
  %v3802 = vadd.f32 0.0, %v3801
  %3803 = vdwg.mxu0
  %3804 = vmatprep.subr.mxu0 %v3672
  %3805 = vmatpush1.msra.mxu0 %v3671
  %3806 = vmatprep.subr.mxu0 %v3676
  %3807 = vmatpush1.msra.mxu0 %v3675
  %3808 = vmatprep.subr.mxu0 %v3680
  %3809 = vmatpush1.msra.mxu0 %v3679
  %3810 = vmatprep.subr.mxu0 %v3684
  %3811 = vmatpush1.msra.mxu0 %v3683
  %3812 = vmatprep.subr.mxu0 %v3688
  %3813 = vmatpush1.msra.mxu0 %v3687
  %3814 = vmatprep.subr.mxu0 %v3692
  %3815 = vmatpush1.msra.mxu0 %v3691
  %3816 = vmatprep.subr.mxu0 %v3696
  %3817 = vmatpush1.msra.mxu0 %v3695
  %3818 = vmatprep.subr.mxu0 %v3700
  %3819 = vmatpush1.msra.mxu0 %v3699
  %3820 = vmatprep.subr.mxu0 %v3704
  %3821 = vmatpush1.msra.mxu0 %v3703
  %3822 = vmatprep.subr.mxu0 %v3708
  %3823 = vmatpush1.msra.mxu0 %v3707
  %3824 = vmatprep.subr.mxu0 %v3712
  %3825 = vmatpush1.msra.mxu0 %v3711
  %3826 = vmatprep.subr.mxu0 %v3716
  %3827 = vmatpush1.msra.mxu0 %v3715
  %3828 = vmatprep.subr.mxu0 %v3720
  %3829 = vmatpush1.msra.mxu0 %v3719
  %3830 = vmatprep.subr.mxu0 %v3724
  %3831 = vmatpush1.msra.mxu0 %v3723
  %3832 = vmatprep.subr.mxu0 %v3728
  %3833 = vmatpush1.msra.mxu0 %v3727
  %3834 = vmatprep.subr.mxu0 %v3732
  %3835 = vmatpush1.msra.mxu0 %v3731
  %3836 = vmatprep.subr.mxu0 0.0
  %3837 = vmatpush1.msra.mxu0 0.0
  %3838 = vmatprep.subr.mxu0 0.0
  %3839 = vmatpush1.msra.mxu0 0.0
  %3840 = vmatprep.subr.mxu0 0.0
  %3841 = vmatpush1.msra.mxu0 0.0
  %3842 = vmatprep.subr.mxu0 0.0
  %3843 = vmatpush1.msra.mxu0 0.0
  %3844 = vmatprep.subr.mxu0 0.0
  %3845 = vmatpush1.msra.mxu0 0.0
  %3846 = vmatprep.subr.mxu0 0.0
  %3847 = vmatpush1.msra.mxu0 0.0
  %3848 = vmatprep.subr.mxu0 0.0
  %3849 = vmatpush1.msra.mxu0 0.0
  %3850 = vmatprep.subr.mxu0 0.0
  %3851 = vmatpush1.msra.mxu0 0.0
  %3852 = vmatprep.subr.mxu0 0.0
  %3853 = vmatpush1.msra.mxu0 0.0
  %3854 = vmatprep.subr.mxu0 0.0
  %3855 = vmatpush1.msra.mxu0 0.0
  %3856 = vmatprep.subr.mxu0 0.0
  %3857 = vmatpush1.msra.mxu0 0.0
  %3858 = vmatprep.subr.mxu0 0.0
  %3859 = vmatpush1.msra.mxu0 0.0
  %3860 = vmatprep.subr.mxu0 0.0
  %3861 = vmatpush1.msra.mxu0 0.0
  %3862 = vmatprep.subr.mxu0 0.0
  %3863 = vmatpush1.msra.mxu0 0.0
  %3864 = vmatprep.subr.mxu0 0.0
  %3865 = vmatpush1.msra.mxu0 0.0
  %3866 = vmatprep.subr.mxu0 0.0
  %3867 = vmatpush1.msra.mxu0 0.0
  %3868 = vmatprep.mubr.f32.mxu0 0.0
  %3869 = vmatmul.mubr.f32.gmra.mrb[0].mxu0 %v3369
  %v3870 = vpop.f32.mrb[0].mxu0
  %v3871 = vadd.f32 0.0, %v3870
  %v3872 = vpop.f32.mrb[0].mxu0
  %v3873 = vadd.f32 0.0, %v3872
  %3874 = vdwg.mxu0
  %v3875 = vadd.f32 %v3665, %v3800
  %v3876 = vadd.f32 %v3666, %v3802
  %v3877 = vadd.f32 %v3667, %v3871
  %v3878 = vadd.f32 %v3668, %v3873
  %v3879 = vxor.u32 %v3875, 2147483648
  %v3880 = vxor.u32 %v3876, 2147483648
  %v3881 = vmul.f32 %v3879, 1.442695
  %v3882 = vpow.pop %v3881
  %v3883 = vmul.f32 %v3880, 1.442695
  %v3884 = vpow.pop %v3883
  %v3885 = vadd.f32 %v3882, 1.0
  %v3886 = vadd.f32 %v3884, 1.0
  %v3887 = vrcp.pop %v3885
  %v3888 = vmul.f32 1.0, %v3887
  %v3889 = vrcp.pop %v3886
  %v3890 = vmul.f32 1.0, %v3889
  %v3891 = vtanh.pop %v3877
  %v3892 = vxor.u32 %v3878, 2147483648
  %v3893 = vmul.f32 %v3892, 1.442695
  %v3894 = vpow.pop %v3893
  %v3895 = vadd.f32 %v3894, 1.0
  %v3896 = vrcp.pop %v3895
  %v3897 = vmul.f32 1.0, %v3896
  %v3898 = vmul.f32 %v3890, %v3367
  %v3899 = vmul.f32 %v3888, %v3891
  %v3900 = vadd.f32 %v3898, %v3899
  %v3901 = vtanh.pop %v3900
  %v3902 = vmul.f32 %v3897, %v3901
  %v3903 = vld [vmem:[%s4] sm:$0xff]
  %v3904 = vld [vmem:[%s4 + $0x8] sm:$0xff]
  %v3905 = vld [vmem:[%s4 + $0x10] sm:$0xff]
  %v3906 = vld [vmem:[%s4 + $0x18] sm:$0xff]
  %v3907 = vld [vmem:[%s4 + $0x20] sm:$0xff]
  %v3908 = vld [vmem:[%s4 + $0x28] sm:$0xff]
  %v3909 = vld [vmem:[%s4 + $0x30] sm:$0xff]
  %v3910 = vld [vmem:[%s4 + $0x38] sm:$0xff]
  %v3911 = vld [vmem:[%s4 + $0x40] sm:$0xff]
  %v3912 = vld [vmem:[%s4 + $0x48] sm:$0xff]
  %v3913 = vld [vmem:[%s4 + $0x50] sm:$0xff]
  %v3914 = vld [vmem:[%s4 + $0x58] sm:$0xff]
  %v3915 = vld [vmem:[%s4 + $0x60] sm:$0xff]
  %v3916 = vld [vmem:[%s4 + $0x68] sm:$0xff]
  %v3917 = vld [vmem:[%s4 + $0x70] sm:$0xff]
  %v3918 = vld [vmem:[%s4 + $0x78] sm:$0xff]
  %v3919 = vld [vmem:[%s4 + $0x80] sm:$0xff]
  %v3920 = vld [vmem:[%s4 + $0x88] sm:$0xff]
  %v3921 = vld [vmem:[%s4 + $0x90] sm:$0xff]
  %v3922 = vld [vmem:[%s4 + $0x98] sm:$0xff]
  %v3923 = vld [vmem:[%s4 + $0xa0] sm:$0xff]
  %v3924 = vld [vmem:[%s4 + $0xa8] sm:$0xff]
  %v3925 = vld [vmem:[%s4 + $0xb0] sm:$0xff]
  %v3926 = vld [vmem:[%s4 + $0xb8] sm:$0xff]
  %v3927 = vld [vmem:[%s4 + $0xc0] sm:$0xff]
  %v3928 = vld [vmem:[%s4 + $0xc8] sm:$0xff]
  %v3929 = vld [vmem:[%s4 + $0xd0] sm:$0xff]
  %v3930 = vld [vmem:[%s4 + $0xd8] sm:$0xff]
  %v3931 = vld [vmem:[%s4 + $0xe0] sm:$0xff]
  %v3932 = vld [vmem:[%s4 + $0xe8] sm:$0xff]
  %v3933 = vld [vmem:[%s4 + $0xf0] sm:$0xff]
  %v3934 = vld [vmem:[%s4 + $0xf8] sm:$0xff]
  %v3935 = vld [vmem:[%s4 + $0x100] sm:$0xff]
  %v3936 = vld [vmem:[%s4 + $0x108] sm:$0xff]
  %v3937 = vld [vmem:[%s4 + $0x110] sm:$0xff]
  %v3938 = vld [vmem:[%s4 + $0x118] sm:$0xff]
  %v3939 = vld [vmem:[%s4 + $0x120] sm:$0xff]
  %v3940 = vld [vmem:[%s4 + $0x128] sm:$0xff]
  %v3941 = vld [vmem:[%s4 + $0x130] sm:$0xff]
  %v3942 = vld [vmem:[%s4 + $0x138] sm:$0xff]
  %v3943 = vld [vmem:[%s4 + $0x140] sm:$0xff]
  %v3944 = vld [vmem:[%s4 + $0x148] sm:$0xff]
  %v3945 = vld [vmem:[%s4 + $0x150] sm:$0xff]
  %v3946 = vld [vmem:[%s4 + $0x158] sm:$0xff]
  %v3947 = vld [vmem:[%s4 + $0x160] sm:$0xff]
  %v3948 = vld [vmem:[%s4 + $0x168] sm:$0xff]
  %v3949 = vld [vmem:[%s4 + $0x170] sm:$0xff]
  %v3950 = vld [vmem:[%s4 + $0x178] sm:$0xff]
  %v3951 = vld [vmem:[%s4 + $0x180] sm:$0xff]
  %v3952 = vld [vmem:[%s4 + $0x188] sm:$0xff]
  %v3953 = vld [vmem:[%s4 + $0x190] sm:$0xff]
  %v3954 = vld [vmem:[%s4 + $0x198] sm:$0xff]
  %v3955 = vld [vmem:[%s4 + $0x1a0] sm:$0xff]
  %v3956 = vld [vmem:[%s4 + $0x1a8] sm:$0xff]
  %v3957 = vld [vmem:[%s4 + $0x1b0] sm:$0xff]
  %v3958 = vld [vmem:[%s4 + $0x1b8] sm:$0xff]
  %v3959 = vld [vmem:[%s4 + $0x1c0] sm:$0xff]
  %v3960 = vld [vmem:[%s4 + $0x1c8] sm:$0xff]
  %v3961 = vld [vmem:[%s4 + $0x1d0] sm:$0xff]
  %v3962 = vld [vmem:[%s4 + $0x1d8] sm:$0xff]
  %v3963 = vld [vmem:[%s4 + $0x1e0] sm:$0xff]
  %v3964 = vld [vmem:[%s4 + $0x1e8] sm:$0xff]
  %v3965 = vld [vmem:[%s4 + $0x1f0] sm:$0xff]
  %v3966 = vld [vmem:[%s4 + $0x1f8] sm:$0xff]
  %v3967 = vld [vmem:[%s4 + $0x200] sm:$0xff]
  %v3968 = vld [vmem:[%s4 + $0x208] sm:$0xff]
  %v3969 = vld [vmem:[%s4 + $0x210] sm:$0xff]
  %v3970 = vld [vmem:[%s4 + $0x218] sm:$0xff]
  %v3971 = vld [vmem:[%s4 + $0x220] sm:$0xff]
  %v3972 = vld [vmem:[%s4 + $0x228] sm:$0xff]
  %v3973 = vld [vmem:[%s4 + $0x230] sm:$0xff]
  %v3974 = vld [vmem:[%s4 + $0x238] sm:$0xff]
  %v3975 = vld [vmem:[%s4 + $0x240] sm:$0xff]
  %v3976 = vld [vmem:[%s4 + $0x248] sm:$0xff]
  %v3977 = vld [vmem:[%s4 + $0x250] sm:$0xff]
  %v3978 = vld [vmem:[%s4 + $0x258] sm:$0xff]
  %v3979 = vld [vmem:[%s4 + $0x260] sm:$0xff]
  %v3980 = vld [vmem:[%s4 + $0x268] sm:$0xff]
  %v3981 = vld [vmem:[%s4 + $0x270] sm:$0xff]
  %v3982 = vld [vmem:[%s4 + $0x278] sm:$0xff]
  %v3983 = vld [vmem:[%s4 + $0x280] sm:$0xff]
  %v3984 = vld [vmem:[%s4 + $0x288] sm:$0xff]
  %v3985 = vld [vmem:[%s4 + $0x290] sm:$0xff]
  %v3986 = vld [vmem:[%s4 + $0x298] sm:$0xff]
  %v3987 = vld [vmem:[%s4 + $0x2a0] sm:$0xff]
  %v3988 = vld [vmem:[%s4 + $0x2a8] sm:$0xff]
  %v3989 = vld [vmem:[%s4 + $0x2b0] sm:$0xff]
  %v3990 = vld [vmem:[%s4 + $0x2b8] sm:$0xff]
  %v3991 = vld [vmem:[%s4 + $0x2c0] sm:$0xff]
  %v3992 = vld [vmem:[%s4 + $0x2c8] sm:$0xff]
  %v3993 = vld [vmem:[%s4 + $0x2d0] sm:$0xff]
  %v3994 = vld [vmem:[%s4 + $0x2d8] sm:$0xff]
  %v3995 = vld [vmem:[%s4 + $0x2e0] sm:$0xff]
  %v3996 = vld [vmem:[%s4 + $0x2e8] sm:$0xff]
  %v3997 = vld [vmem:[%s4 + $0x2f0] sm:$0xff]
  %v3998 = vld [vmem:[%s4 + $0x2f8] sm:$0xff]
  %v3999 = vld [vmem:[%s4 + $0x300] sm:$0xff]
  %v4000 = vld [vmem:[%s4 + $0x308] sm:$0xff]
  %v4001 = vld [vmem:[%s4 + $0x310] sm:$0xff]
  %v4002 = vld [vmem:[%s4 + $0x318] sm:$0xff]
  %v4003 = vld [vmem:[%s4 + $0x320] sm:$0xff]
  %v4004 = vld [vmem:[%s4 + $0x328] sm:$0xff]
  %v4005 = vld [vmem:[%s4 + $0x330] sm:$0xff]
  %v4006 = vld [vmem:[%s4 + $0x338] sm:$0xff]
  %v4007 = vld [vmem:[%s4 + $0x340] sm:$0xff]
  %v4008 = vld [vmem:[%s4 + $0x348] sm:$0xff]
  %v4009 = vld [vmem:[%s4 + $0x350] sm:$0xff]
  %v4010 = vld [vmem:[%s4 + $0x358] sm:$0xff]
  %v4011 = vld [vmem:[%s4 + $0x360] sm:$0xff]
  %v4012 = vld [vmem:[%s4 + $0x368] sm:$0xff]
  %v4013 = vld [vmem:[%s4 + $0x370] sm:$0xff]
  %v4014 = vld [vmem:[%s4 + $0x378] sm:$0xff]
  %v4015 = vld [vmem:[%s4 + $0x380] sm:$0xff]
  %v4016 = vld [vmem:[%s4 + $0x388] sm:$0xff]
  %v4017 = vld [vmem:[%s4 + $0x390] sm:$0xff]
  %v4018 = vld [vmem:[%s4 + $0x398] sm:$0xff]
  %v4019 = vld [vmem:[%s4 + $0x3a0] sm:$0xff]
  %v4020 = vld [vmem:[%s4 + $0x3a8] sm:$0xff]
  %v4021 = vld [vmem:[%s4 + $0x3b0] sm:$0xff]
  %v4022 = vld [vmem:[%s4 + $0x3b8] sm:$0xff]
  %v4023 = vld [vmem:[%s4 + $0x3c0] sm:$0xff]
  %v4024 = vld [vmem:[%s4 + $0x3c8] sm:$0xff]
  %v4025 = vld [vmem:[%s4 + $0x3d0] sm:$0xff]
  %v4026 = vld [vmem:[%s4 + $0x3d8] sm:$0xff]
  %v4027 = vld [vmem:[%s4 + $0x3e0] sm:$0xff]
  %v4028 = vld [vmem:[%s4 + $0x3e8] sm:$0xff]
  %v4029 = vld [vmem:[%s4 + $0x3f0] sm:$0xff]
  %v4030 = vld [vmem:[%s4 + $0x3f8] sm:$0xff]
  %4031 = vmatprep.subr.mxu0 %v3904
  %4032 = vmatpush1.msra.mxu0 %v3903
  %4033 = vmatprep.subr.mxu0 %v3908
  %4034 = vmatpush1.msra.mxu0 %v3907
  %4035 = vmatprep.subr.mxu0 %v3912
  %4036 = vmatpush1.msra.mxu0 %v3911
  %4037 = vmatprep.subr.mxu0 %v3916
  %4038 = vmatpush1.msra.mxu0 %v3915
  %4039 = vmatprep.subr.mxu0 %v3920
  %4040 = vmatpush1.msra.mxu0 %v3919
  %4041 = vmatprep.subr.mxu0 %v3924
  %4042 = vmatpush1.msra.mxu0 %v3923
  %4043 = vmatprep.subr.mxu0 %v3928
  %4044 = vmatpush1.msra.mxu0 %v3927
  %4045 = vmatprep.subr.mxu0 %v3932
  %4046 = vmatpush1.msra.mxu0 %v3931
  %4047 = vmatprep.subr.mxu0 %v3936
  %4048 = vmatpush1.msra.mxu0 %v3935
  %4049 = vmatprep.subr.mxu0 %v3940
  %4050 = vmatpush1.msra.mxu0 %v3939
  %4051 = vmatprep.subr.mxu0 %v3944
  %4052 = vmatpush1.msra.mxu0 %v3943
  %4053 = vmatprep.subr.mxu0 %v3948
  %4054 = vmatpush1.msra.mxu0 %v3947
  %4055 = vmatprep.subr.mxu0 %v3952
  %4056 = vmatpush1.msra.mxu0 %v3951
  %4057 = vmatprep.subr.mxu0 %v3956
  %4058 = vmatpush1.msra.mxu0 %v3955
  %4059 = vmatprep.subr.mxu0 %v3960
  %4060 = vmatpush1.msra.mxu0 %v3959
  %4061 = vmatprep.subr.mxu0 %v3964
  %4062 = vmatpush1.msra.mxu0 %v3963
  %4063 = vmatprep.subr.mxu0 %v3968
  %4064 = vmatpush1.msra.mxu0 %v3967
  %4065 = vmatprep.subr.mxu0 %v3972
  %4066 = vmatpush1.msra.mxu0 %v3971
  %4067 = vmatprep.subr.mxu0 %v3976
  %4068 = vmatpush1.msra.mxu0 %v3975
  %4069 = vmatprep.subr.mxu0 %v3980
  %4070 = vmatpush1.msra.mxu0 %v3979
  %4071 = vmatprep.subr.mxu0 %v3984
  %4072 = vmatpush1.msra.mxu0 %v3983
  %4073 = vmatprep.subr.mxu0 %v3988
  %4074 = vmatpush1.msra.mxu0 %v3987
  %4075 = vmatprep.subr.mxu0 %v3992
  %4076 = vmatpush1.msra.mxu0 %v3991
  %4077 = vmatprep.subr.mxu0 %v3996
  %4078 = vmatpush1.msra.mxu0 %v3995
  %4079 = vmatprep.subr.mxu0 %v4000
  %4080 = vmatpush1.msra.mxu0 %v3999
  %4081 = vmatprep.subr.mxu0 %v4004
  %4082 = vmatpush1.msra.mxu0 %v4003
  %4083 = vmatprep.subr.mxu0 %v4008
  %4084 = vmatpush1.msra.mxu0 %v4007
  %4085 = vmatprep.subr.mxu0 %v4012
  %4086 = vmatpush1.msra.mxu0 %v4011
  %4087 = vmatprep.subr.mxu0 %v4016
  %4088 = vmatpush1.msra.mxu0 %v4015
  %4089 = vmatprep.subr.mxu0 %v4020
  %4090 = vmatpush1.msra.mxu0 %v4019
  %4091 = vmatprep.subr.mxu0 %v4024
  %4092 = vmatpush1.msra.mxu0 %v4023
  %4093 = vmatprep.subr.mxu0 %v4028
  %4094 = vmatpush1.msra.mxu0 %v4027
  %4095 = vmatprep.mubr.f32.mxu0 %v3663
  %4096 = vmatmul.mubr.f32.gmra.mrb[0].mxu0 %v3902
  %v4097 = vpop.f32.mrb[0].mxu0
  %v4098 = vadd.f32 %v816, %v4097
  %v4099 = vpop.f32.mrb[0].mxu0
  %v4100 = vadd.f32 %v820, %v4099
  %4101 = vdwg.mxu0
  %4102 = vmatprep.subr.mxu0 %v3906
  %4103 = vmatpush1.msra.mxu0 %v3905
  %4104 = vmatprep.subr.mxu0 %v3910
  %4105 = vmatpush1.msra.mxu0 %v3909
  %4106 = vmatprep.subr.mxu0 %v3914
  %4107 = vmatpush1.msra.mxu0 %v3913
  %4108 = vmatprep.subr.mxu0 %v3918
  %4109 = vmatpush1.msra.mxu0 %v3917
  %4110 = vmatprep.subr.mxu0 %v3922
  %4111 = vmatpush1.msra.mxu0 %v3921
  %4112 = vmatprep.subr.mxu0 %v3926
  %4113 = vmatpush1.msra.mxu0 %v3925
  %4114 = vmatprep.subr.mxu0 %v3930
  %4115 = vmatpush1.msra.mxu0 %v3929
  %4116 = vmatprep.subr.mxu0 %v3934
  %4117 = vmatpush1.msra.mxu0 %v3933
  %4118 = vmatprep.subr.mxu0 %v3938
  %4119 = vmatpush1.msra.mxu0 %v3937
  %4120 = vmatprep.subr.mxu0 %v3942
  %4121 = vmatpush1.msra.mxu0 %v3941
  %4122 = vmatprep.subr.mxu0 %v3946
  %4123 = vmatpush1.msra.mxu0 %v3945
  %4124 = vmatprep.subr.mxu0 %v3950
  %4125 = vmatpush1.msra.mxu0 %v3949
  %4126 = vmatprep.subr.mxu0 %v3954
  %4127 = vmatpush1.msra.mxu0 %v3953
  %4128 = vmatprep.subr.mxu0 %v3958
  %4129 = vmatpush1.msra.mxu0 %v3957
  %4130 = vmatprep.subr.mxu0 %v3962
  %4131 = vmatpush1.msra.mxu0 %v3961
  %4132 = vmatprep.subr.mxu0 %v3966
  %4133 = vmatpush1.msra.mxu0 %v3965
  %4134 = vmatprep.subr.mxu0 %v3970
  %4135 = vmatpush1.msra.mxu0 %v3969
  %4136 = vmatprep.subr.mxu0 %v3974
  %4137 = vmatpush1.msra.mxu0 %v3973
  %4138 = vmatprep.subr.mxu0 %v3978
  %4139 = vmatpush1.msra.mxu0 %v3977
  %4140 = vmatprep.subr.mxu0 %v3982
  %4141 = vmatpush1.msra.mxu0 %v3981
  %4142 = vmatprep.subr.mxu0 %v3986
  %4143 = vmatpush1.msra.mxu0 %v3985
  %4144 = vmatprep.subr.mxu0 %v3990
  %4145 = vmatpush1.msra.mxu0 %v3989
  %4146 = vmatprep.subr.mxu0 %v3994
  %4147 = vmatpush1.msra.mxu0 %v3993
  %4148 = vmatprep.subr.mxu0 %v3998
  %4149 = vmatpush1.msra.mxu0 %v3997
  %4150 = vmatprep.subr.mxu0 %v4002
  %4151 = vmatpush1.msra.mxu0 %v4001
  %4152 = vmatprep.subr.mxu0 %v4006
  %4153 = vmatpush1.msra.mxu0 %v4005
  %4154 = vmatprep.subr.mxu0 %v4010
  %4155 = vmatpush1.msra.mxu0 %v4009
  %4156 = vmatprep.subr.mxu0 %v4014
  %4157 = vmatpush1.msra.mxu0 %v4013
  %4158 = vmatprep.subr.mxu0 %v4018
  %4159 = vmatpush1.msra.mxu0 %v4017
  %4160 = vmatprep.subr.mxu0 %v4022
  %4161 = vmatpush1.msra.mxu0 %v4021
  %4162 = vmatprep.subr.mxu0 %v4026
  %4163 = vmatpush1.msra.mxu0 %v4025
  %4164 = vmatprep.subr.mxu0 %v4030
  %4165 = vmatpush1.msra.mxu0 %v4029
  %4166 = vmatprep.mubr.f32.mxu0 %v3663
  %4167 = vmatmul.mubr.f32.gmra.mrb[0].mxu0 %v3902
  %v4168 = vpop.f32.mrb[0].mxu0
  %v4169 = vadd.f32 %v824, %v4168
  %v4170 = vpop.f32.mrb[0].mxu0
  %v4171 = vadd.f32 %v828, %v4170
  %4172 = vdwg.mxu0
  %v4173 = vxor.u32 %v4098, 2147483648
  %v4174 = vxor.u32 %v4100, 2147483648
  %v4175 = vmul.f32 %v4173, 1.442695
  %v4176 = vpow.pop %v4175
  %v4177 = vmul.f32 %v4174, 1.442695
  %v4178 = vpow.pop %v4177
  %v4179 = vadd.f32 %v4176, 1.0
  %v4180 = vadd.f32 %v4178, 1.0
  %v4181 = vrcp.pop %v4179
  %v4182 = vmul.f32 1.0, %v4181
  %v4183 = vrcp.pop %v4180
  %v4184 = vmul.f32 1.0, %v4183
  %v4185 = vtanh.pop %v4169
  %v4186 = vxor.u32 %v4171, 2147483648
  %v4187 = vmul.f32 %v4186, 1.442695
  %v4188 = vpow.pop %v4187
  %v4189 = vadd.f32 %v4188, 1.0
  %v4190 = vrcp.pop %v4189
  %v4191 = vmul.f32 1.0, %v4190
  %v4192 = vmul.f32 %v4184, %v3661
  %v4193 = vmul.f32 %v4182, %v4185
  %v4194 = vadd.f32 %v4192, %v4193
  %v4195 = vtanh.pop %v4194
  %v4196 = vmul.f32 %v4191, %v4195
  %4197 = vst [vmem:[#allocation3 + $0x30] sm:$0xff] %v4196
  %v4198 = vld [vmem:[#allocation2 + $0xe0] sm:$0xff]
  %v4199 = vld [vmem:[#allocation2 + $0xe8] sm:$0xff]
  %v4200 = vld [vmem:[#allocation2 + $0xf0] sm:$0xff]
  %v4201 = vld [vmem:[#allocation2 + $0xf8] sm:$0xff]
  %v4202 = vld [vmem:[%s2] sm:$0xff]
  %v4203 = vld [vmem:[%s2 + $0x8] sm:$0xff]
  %v4204 = vld [vmem:[%s2 + $0x10] sm:$0xff]
  %v4205 = vld [vmem:[%s2 + $0x18] sm:$0xff]
  %v4206 = vld [vmem:[%s2 + $0x20] sm:$0xff]
  %v4207 = vld [vmem:[%s2 + $0x28] sm:$0xff]
  %v4208 = vld [vmem:[%s2 + $0x30] sm:$0xff]
  %v4209 = vld [vmem:[%s2 + $0x38] sm:$0xff]
  %v4210 = vld [vmem:[%s2 + $0x40] sm:$0xff]
  %v4211 = vld [vmem:[%s2 + $0x48] sm:$0xff]
  %v4212 = vld [vmem:[%s2 + $0x50] sm:$0xff]
  %v4213 = vld [vmem:[%s2 + $0x58] sm:$0xff]
  %v4214 = vld [vmem:[%s2 + $0x60] sm:$0xff]
  %v4215 = vld [vmem:[%s2 + $0x68] sm:$0xff]
  %v4216 = vld [vmem:[%s2 + $0x70] sm:$0xff]
  %v4217 = vld [vmem:[%s2 + $0x78] sm:$0xff]
  %v4218 = vld [vmem:[%s2 + $0x80] sm:$0xff]
  %v4219 = vld [vmem:[%s2 + $0x88] sm:$0xff]
  %v4220 = vld [vmem:[%s2 + $0x90] sm:$0xff]
  %v4221 = vld [vmem:[%s2 + $0x98] sm:$0xff]
  %v4222 = vld [vmem:[%s2 + $0xa0] sm:$0xff]
  %v4223 = vld [vmem:[%s2 + $0xa8] sm:$0xff]
  %v4224 = vld [vmem:[%s2 + $0xb0] sm:$0xff]
  %v4225 = vld [vmem:[%s2 + $0xb8] sm:$0xff]
  %v4226 = vld [vmem:[%s2 + $0xc0] sm:$0xff]
  %v4227 = vld [vmem:[%s2 + $0xc8] sm:$0xff]
  %v4228 = vld [vmem:[%s2 + $0xd0] sm:$0xff]
  %v4229 = vld [vmem:[%s2 + $0xd8] sm:$0xff]
  %v4230 = vld [vmem:[%s2 + $0xe0] sm:$0xff]
  %v4231 = vld [vmem:[%s2 + $0xe8] sm:$0xff]
  %v4232 = vld [vmem:[%s2 + $0xf0] sm:$0xff]
  %v4233 = vld [vmem:[%s2 + $0xf8] sm:$0xff]
  %v4234 = vld [vmem:[%s2 + $0x100] sm:$0xff]
  %v4235 = vld [vmem:[%s2 + $0x108] sm:$0xff]
  %v4236 = vld [vmem:[%s2 + $0x110] sm:$0xff]
  %v4237 = vld [vmem:[%s2 + $0x118] sm:$0xff]
  %v4238 = vld [vmem:[%s2 + $0x120] sm:$0xff]
  %v4239 = vld [vmem:[%s2 + $0x128] sm:$0xff]
  %v4240 = vld [vmem:[%s2 + $0x130] sm:$0xff]
  %v4241 = vld [vmem:[%s2 + $0x138] sm:$0xff]
  %v4242 = vld [vmem:[%s2 + $0x140] sm:$0xff]
  %v4243 = vld [vmem:[%s2 + $0x148] sm:$0xff]
  %v4244 = vld [vmem:[%s2 + $0x150] sm:$0xff]
  %v4245 = vld [vmem:[%s2 + $0x158] sm:$0xff]
  %v4246 = vld [vmem:[%s2 + $0x160] sm:$0xff]
  %v4247 = vld [vmem:[%s2 + $0x168] sm:$0xff]
  %v4248 = vld [vmem:[%s2 + $0x170] sm:$0xff]
  %v4249 = vld [vmem:[%s2 + $0x178] sm:$0xff]
  %v4250 = vld [vmem:[%s2 + $0x180] sm:$0xff]
  %v4251 = vld [vmem:[%s2 + $0x188] sm:$0xff]
  %v4252 = vld [vmem:[%s2 + $0x190] sm:$0xff]
  %v4253 = vld [vmem:[%s2 + $0x198] sm:$0xff]
  %v4254 = vld [vmem:[%s2 + $0x1a0] sm:$0xff]
  %v4255 = vld [vmem:[%s2 + $0x1a8] sm:$0xff]
  %v4256 = vld [vmem:[%s2 + $0x1b0] sm:$0xff]
  %v4257 = vld [vmem:[%s2 + $0x1b8] sm:$0xff]
  %v4258 = vld [vmem:[%s2 + $0x1c0] sm:$0xff]
  %v4259 = vld [vmem:[%s2 + $0x1c8] sm:$0xff]
  %v4260 = vld [vmem:[%s2 + $0x1d0] sm:$0xff]
  %v4261 = vld [vmem:[%s2 + $0x1d8] sm:$0xff]
  %v4262 = vld [vmem:[%s2 + $0x1e0] sm:$0xff]
  %v4263 = vld [vmem:[%s2 + $0x1e8] sm:$0xff]
  %v4264 = vld [vmem:[%s2 + $0x1f0] sm:$0xff]
  %v4265 = vld [vmem:[%s2 + $0x1f8] sm:$0xff]
  %4266 = vmatprep.subr.mxu0 %v4203
  %4267 = vmatpush1.msra.mxu0 %v4202
  %4268 = vmatprep.subr.mxu0 %v4207
  %4269 = vmatpush1.msra.mxu0 %v4206
  %4270 = vmatprep.subr.mxu0 %v4211
  %4271 = vmatpush1.msra.mxu0 %v4210
  %4272 = vmatprep.subr.mxu0 %v4215
  %4273 = vmatpush1.msra.mxu0 %v4214
  %4274 = vmatprep.subr.mxu0 %v4219
  %4275 = vmatpush1.msra.mxu0 %v4218
  %4276 = vmatprep.subr.mxu0 %v4223
  %4277 = vmatpush1.msra.mxu0 %v4222
  %4278 = vmatprep.subr.mxu0 %v4227
  %4279 = vmatpush1.msra.mxu0 %v4226
  %4280 = vmatprep.subr.mxu0 %v4231
  %4281 = vmatpush1.msra.mxu0 %v4230
  %4282 = vmatprep.subr.mxu0 %v4235
  %4283 = vmatpush1.msra.mxu0 %v4234
  %4284 = vmatprep.subr.mxu0 %v4239
  %4285 = vmatpush1.msra.mxu0 %v4238
  %4286 = vmatprep.subr.mxu0 %v4243
  %4287 = vmatpush1.msra.mxu0 %v4242
  %4288 = vmatprep.subr.mxu0 %v4247
  %4289 = vmatpush1.msra.mxu0 %v4246
  %4290 = vmatprep.subr.mxu0 %v4251
  %4291 = vmatpush1.msra.mxu0 %v4250
  %4292 = vmatprep.subr.mxu0 %v4255
  %4293 = vmatpush1.msra.mxu0 %v4254
  %4294 = vmatprep.subr.mxu0 %v4259
  %4295 = vmatpush1.msra.mxu0 %v4258
  %4296 = vmatprep.subr.mxu0 %v4263
  %4297 = vmatpush1.msra.mxu0 %v4262
  %4298 = vmatprep.subr.mxu0 0.0
  %4299 = vmatpush1.msra.mxu0 0.0
  %4300 = vmatprep.subr.mxu0 0.0
  %4301 = vmatpush1.msra.mxu0 0.0
  %4302 = vmatprep.subr.mxu0 0.0
  %4303 = vmatpush1.msra.mxu0 0.0
  %4304 = vmatprep.subr.mxu0 0.0
  %4305 = vmatpush1.msra.mxu0 0.0
  %4306 = vmatprep.subr.mxu0 0.0
  %4307 = vmatpush1.msra.mxu0 0.0
  %4308 = vmatprep.subr.mxu0 0.0
  %4309 = vmatpush1.msra.mxu0 0.0
  %4310 = vmatprep.subr.mxu0 0.0
  %4311 = vmatpush1.msra.mxu0 0.0
  %4312 = vmatprep.subr.mxu0 0.0
  %4313 = vmatpush1.msra.mxu0 0.0
  %4314 = vmatprep.subr.mxu0 0.0
  %4315 = vmatpush1.msra.mxu0 0.0
  %4316 = vmatprep.subr.mxu0 0.0
  %4317 = vmatpush1.msra.mxu0 0.0
  %4318 = vmatprep.subr.mxu0 0.0
  %4319 = vmatpush1.msra.mxu0 0.0
  %4320 = vmatprep.subr.mxu0 0.0
  %4321 = vmatpush1.msra.mxu0 0.0
  %4322 = vmatprep.subr.mxu0 0.0
  %4323 = vmatpush1.msra.mxu0 0.0
  %4324 = vmatprep.subr.mxu0 0.0
  %4325 = vmatpush1.msra.mxu0 0.0
  %4326 = vmatprep.subr.mxu0 0.0
  %4327 = vmatpush1.msra.mxu0 0.0
  %4328 = vmatprep.subr.mxu0 0.0
  %4329 = vmatpush1.msra.mxu0 0.0
  %4330 = vmatprep.mubr.f32.mxu0 0.0
  %4331 = vmatmul.mubr.f32.gmra.mrb[0].mxu0 %v3902
  %v4332 = vpop.f32.mrb[0].mxu0
  %v4333 = vadd.f32 0.0, %v4332
  %v4334 = vpop.f32.mrb[0].mxu0
  %v4335 = vadd.f32 0.0, %v4334
  %4336 = vdwg.mxu0
  %4337 = vmatprep.subr.mxu0 %v4205
  %4338 = vmatpush1.msra.mxu0 %v4204
  %4339 = vmatprep.subr.mxu0 %v4209
  %4340 = vmatpush1.msra.mxu0 %v4208
  %4341 = vmatprep.subr.mxu0 %v4213
  %4342 = vmatpush1.msra.mxu0 %v4212
  %4343 = vmatprep.subr.mxu0 %v4217
  %4344 = vmatpush1.msra.mxu0 %v4216
  %4345 = vmatprep.subr.mxu0 %v4221
  %4346 = vmatpush1.msra.mxu0 %v4220
  %4347 = vmatprep.subr.mxu0 %v4225
  %4348 = vmatpush1.msra.mxu0 %v4224
  %4349 = vmatprep.subr.mxu0 %v4229
  %4350 = vmatpush1.msra.mxu0 %v4228
  %4351 = vmatprep.subr.mxu0 %v4233
  %4352 = vmatpush1.msra.mxu0 %v4232
  %4353 = vmatprep.subr.mxu0 %v4237
  %4354 = vmatpush1.msra.mxu0 %v4236
  %4355 = vmatprep.subr.mxu0 %v4241
  %4356 = vmatpush1.msra.mxu0 %v4240
  %4357 = vmatprep.subr.mxu0 %v4245
  %4358 = vmatpush1.msra.mxu0 %v4244
  %4359 = vmatprep.subr.mxu0 %v4249
  %4360 = vmatpush1.msra.mxu0 %v4248
  %4361 = vmatprep.subr.mxu0 %v4253
  %4362 = vmatpush1.msra.mxu0 %v4252
  %4363 = vmatprep.subr.mxu0 %v4257
  %4364 = vmatpush1.msra.mxu0 %v4256
  %4365 = vmatprep.subr.mxu0 %v4261
  %4366 = vmatpush1.msra.mxu0 %v4260
  %4367 = vmatprep.subr.mxu0 %v4265
  %4368 = vmatpush1.msra.mxu0 %v4264
  %4369 = vmatprep.subr.mxu0 0.0
  %4370 = vmatpush1.msra.mxu0 0.0
  %4371 = vmatprep.subr.mxu0 0.0
  %4372 = vmatpush1.msra.mxu0 0.0
  %4373 = vmatprep.subr.mxu0 0.0
  %4374 = vmatpush1.msra.mxu0 0.0
  %4375 = vmatprep.subr.mxu0 0.0
  %4376 = vmatpush1.msra.mxu0 0.0
  %4377 = vmatprep.subr.mxu0 0.0
  %4378 = vmatpush1.msra.mxu0 0.0
  %4379 = vmatprep.subr.mxu0 0.0
  %4380 = vmatpush1.msra.mxu0 0.0
  %4381 = vmatprep.subr.mxu0 0.0
  %4382 = vmatpush1.msra.mxu0 0.0
  %4383 = vmatprep.subr.mxu0 0.0
  %4384 = vmatpush1.msra.mxu0 0.0
  %4385 = vmatprep.subr.mxu0 0.0
  %4386 = vmatpush1.msra.mxu0 0.0
  %4387 = vmatprep.subr.mxu0 0.0
  %4388 = vmatpush1.msra.mxu0 0.0
  %4389 = vmatprep.subr.mxu0 0.0
  %4390 = vmatpush1.msra.mxu0 0.0
  %4391 = vmatprep.subr.mxu0 0.0
  %4392 = vmatpush1.msra.mxu0 0.0
  %4393 = vmatprep.subr.mxu0 0.0
  %4394 = vmatpush1.msra.mxu0 0.0
  %4395 = vmatprep.subr.mxu0 0.0
  %4396 = vmatpush1.msra.mxu0 0.0
  %4397 = vmatprep.subr.mxu0 0.0
  %4398 = vmatpush1.msra.mxu0 0.0
  %4399 = vmatprep.subr.mxu0 0.0
  %4400 = vmatpush1.msra.mxu0 0.0
  %4401 = vmatprep.mubr.f32.mxu0 0.0
  %4402 = vmatmul.mubr.f32.gmra.mrb[0].mxu0 %v3902
  %v4403 = vpop.f32.mrb[0].mxu0
  %v4404 = vadd.f32 0.0, %v4403
  %v4405 = vpop.f32.mrb[0].mxu0
  %v4406 = vadd.f32 0.0, %v4405
  %4407 = vdwg.mxu0
  %v4408 = vadd.f32 %v4198, %v4333
  %v4409 = vadd.f32 %v4199, %v4335
  %v4410 = vadd.f32 %v4200, %v4404
  %v4411 = vadd.f32 %v4201, %v4406
  %v4412 = vxor.u32 %v4408, 2147483648
  %v4413 = vxor.u32 %v4409, 2147483648
  %v4414 = vmul.f32 %v4412, 1.442695
  %v4415 = vpow.pop %v4414
  %v4416 = vmul.f32 %v4413, 1.442695
  %v4417 = vpow.pop %v4416
  %v4418 = vadd.f32 %v4415, 1.0
  %v4419 = vadd.f32 %v4417, 1.0
  %v4420 = vrcp.pop %v4418
  %v4421 = vmul.f32 1.0, %v4420
  %v4422 = vrcp.pop %v4419
  %v4423 = vmul.f32 1.0, %v4422
  %v4424 = vtanh.pop %v4410
  %v4425 = vxor.u32 %v4411, 2147483648
  %v4426 = vmul.f32 %v4425, 1.442695
  %v4427 = vpow.pop %v4426
  %v4428 = vadd.f32 %v4427, 1.0
  %v4429 = vrcp.pop %v4428
  %v4430 = vmul.f32 1.0, %v4429
  %v4431 = vmul.f32 %v4423, %v3900
  %v4432 = vmul.f32 %v4421, %v4424
  %v4433 = vadd.f32 %v4431, %v4432
  %v4434 = vtanh.pop %v4433
  %v4435 = vmul.f32 %v4430, %v4434
  %v4436 = vld [vmem:[%s4] sm:$0xff]
  %v4437 = vld [vmem:[%s4 + $0x8] sm:$0xff]
  %v4438 = vld [vmem:[%s4 + $0x10] sm:$0xff]
  %v4439 = vld [vmem:[%s4 + $0x18] sm:$0xff]
  %v4440 = vld [vmem:[%s4 + $0x20] sm:$0xff]
  %v4441 = vld [vmem:[%s4 + $0x28] sm:$0xff]
  %v4442 = vld [vmem:[%s4 + $0x30] sm:$0xff]
  %v4443 = vld [vmem:[%s4 + $0x38] sm:$0xff]
  %v4444 = vld [vmem:[%s4 + $0x40] sm:$0xff]
  %v4445 = vld [vmem:[%s4 + $0x48] sm:$0xff]
  %v4446 = vld [vmem:[%s4 + $0x50] sm:$0xff]
  %v4447 = vld [vmem:[%s4 + $0x58] sm:$0xff]
  %v4448 = vld [vmem:[%s4 + $0x60] sm:$0xff]
  %v4449 = vld [vmem:[%s4 + $0x68] sm:$0xff]
  %v4450 = vld [vmem:[%s4 + $0x70] sm:$0xff]
  %v4451 = vld [vmem:[%s4 + $0x78] sm:$0xff]
  %v4452 = vld [vmem:[%s4 + $0x80] sm:$0xff]
  %v4453 = vld [vmem:[%s4 + $0x88] sm:$0xff]
  %v4454 = vld [vmem:[%s4 + $0x90] sm:$0xff]
  %v4455 = vld [vmem:[%s4 + $0x98] sm:$0xff]
  %v4456 = vld [vmem:[%s4 + $0xa0] sm:$0xff]
  %v4457 = vld [vmem:[%s4 + $0xa8] sm:$0xff]
  %v4458 = vld [vmem:[%s4 + $0xb0] sm:$0xff]
  %v4459 = vld [vmem:[%s4 + $0xb8] sm:$0xff]
  %v4460 = vld [vmem:[%s4 + $0xc0] sm:$0xff]
  %v4461 = vld [vmem:[%s4 + $0xc8] sm:$0xff]
  %v4462 = vld [vmem:[%s4 + $0xd0] sm:$0xff]
  %v4463 = vld [vmem:[%s4 + $0xd8] sm:$0xff]
  %v4464 = vld [vmem:[%s4 + $0xe0] sm:$0xff]
  %v4465 = vld [vmem:[%s4 + $0xe8] sm:$0xff]
  %v4466 = vld [vmem:[%s4 + $0xf0] sm:$0xff]
  %v4467 = vld [vmem:[%s4 + $0xf8] sm:$0xff]
  %v4468 = vld [vmem:[%s4 + $0x100] sm:$0xff]
  %v4469 = vld [vmem:[%s4 + $0x108] sm:$0xff]
  %v4470 = vld [vmem:[%s4 + $0x110] sm:$0xff]
  %v4471 = vld [vmem:[%s4 + $0x118] sm:$0xff]
  %v4472 = vld [vmem:[%s4 + $0x120] sm:$0xff]
  %v4473 = vld [vmem:[%s4 + $0x128] sm:$0xff]
  %v4474 = vld [vmem:[%s4 + $0x130] sm:$0xff]
  %v4475 = vld [vmem:[%s4 + $0x138] sm:$0xff]
  %v4476 = vld [vmem:[%s4 + $0x140] sm:$0xff]
  %v4477 = vld [vmem:[%s4 + $0x148] sm:$0xff]
  %v4478 = vld [vmem:[%s4 + $0x150] sm:$0xff]
  %v4479 = vld [vmem:[%s4 + $0x158] sm:$0xff]
  %v4480 = vld [vmem:[%s4 + $0x160] sm:$0xff]
  %v4481 = vld [vmem:[%s4 + $0x168] sm:$0xff]
  %v4482 = vld [vmem:[%s4 + $0x170] sm:$0xff]
  %v4483 = vld [vmem:[%s4 + $0x178] sm:$0xff]
  %v4484 = vld [vmem:[%s4 + $0x180] sm:$0xff]
  %v4485 = vld [vmem:[%s4 + $0x188] sm:$0xff]
  %v4486 = vld [vmem:[%s4 + $0x190] sm:$0xff]
  %v4487 = vld [vmem:[%s4 + $0x198] sm:$0xff]
  %v4488 = vld [vmem:[%s4 + $0x1a0] sm:$0xff]
  %v4489 = vld [vmem:[%s4 + $0x1a8] sm:$0xff]
  %v4490 = vld [vmem:[%s4 + $0x1b0] sm:$0xff]
  %v4491 = vld [vmem:[%s4 + $0x1b8] sm:$0xff]
  %v4492 = vld [vmem:[%s4 + $0x1c0] sm:$0xff]
  %v4493 = vld [vmem:[%s4 + $0x1c8] sm:$0xff]
  %v4494 = vld [vmem:[%s4 + $0x1d0] sm:$0xff]
  %v4495 = vld [vmem:[%s4 + $0x1d8] sm:$0xff]
  %v4496 = vld [vmem:[%s4 + $0x1e0] sm:$0xff]
  %v4497 = vld [vmem:[%s4 + $0x1e8] sm:$0xff]
  %v4498 = vld [vmem:[%s4 + $0x1f0] sm:$0xff]
  %v4499 = vld [vmem:[%s4 + $0x1f8] sm:$0xff]
  %v4500 = vld [vmem:[%s4 + $0x200] sm:$0xff]
  %v4501 = vld [vmem:[%s4 + $0x208] sm:$0xff]
  %v4502 = vld [vmem:[%s4 + $0x210] sm:$0xff]
  %v4503 = vld [vmem:[%s4 + $0x218] sm:$0xff]
  %v4504 = vld [vmem:[%s4 + $0x220] sm:$0xff]
  %v4505 = vld [vmem:[%s4 + $0x228] sm:$0xff]
  %v4506 = vld [vmem:[%s4 + $0x230] sm:$0xff]
  %v4507 = vld [vmem:[%s4 + $0x238] sm:$0xff]
  %v4508 = vld [vmem:[%s4 + $0x240] sm:$0xff]
  %v4509 = vld [vmem:[%s4 + $0x248] sm:$0xff]
  %v4510 = vld [vmem:[%s4 + $0x250] sm:$0xff]
  %v4511 = vld [vmem:[%s4 + $0x258] sm:$0xff]
  %v4512 = vld [vmem:[%s4 + $0x260] sm:$0xff]
  %v4513 = vld [vmem:[%s4 + $0x268] sm:$0xff]
  %v4514 = vld [vmem:[%s4 + $0x270] sm:$0xff]
  %v4515 = vld [vmem:[%s4 + $0x278] sm:$0xff]
  %v4516 = vld [vmem:[%s4 + $0x280] sm:$0xff]
  %v4517 = vld [vmem:[%s4 + $0x288] sm:$0xff]
  %v4518 = vld [vmem:[%s4 + $0x290] sm:$0xff]
  %v4519 = vld [vmem:[%s4 + $0x298] sm:$0xff]
  %v4520 = vld [vmem:[%s4 + $0x2a0] sm:$0xff]
  %v4521 = vld [vmem:[%s4 + $0x2a8] sm:$0xff]
  %v4522 = vld [vmem:[%s4 + $0x2b0] sm:$0xff]
  %v4523 = vld [vmem:[%s4 + $0x2b8] sm:$0xff]
  %v4524 = vld [vmem:[%s4 + $0x2c0] sm:$0xff]
  %v4525 = vld [vmem:[%s4 + $0x2c8] sm:$0xff]
  %v4526 = vld [vmem:[%s4 + $0x2d0] sm:$0xff]
  %v4527 = vld [vmem:[%s4 + $0x2d8] sm:$0xff]
  %v4528 = vld [vmem:[%s4 + $0x2e0] sm:$0xff]
  %v4529 = vld [vmem:[%s4 + $0x2e8] sm:$0xff]
  %v4530 = vld [vmem:[%s4 + $0x2f0] sm:$0xff]
  %v4531 = vld [vmem:[%s4 + $0x2f8] sm:$0xff]
  %v4532 = vld [vmem:[%s4 + $0x300] sm:$0xff]
  %v4533 = vld [vmem:[%s4 + $0x308] sm:$0xff]
  %v4534 = vld [vmem:[%s4 + $0x310] sm:$0xff]
  %v4535 = vld [vmem:[%s4 + $0x318] sm:$0xff]
  %v4536 = vld [vmem:[%s4 + $0x320] sm:$0xff]
  %v4537 = vld [vmem:[%s4 + $0x328] sm:$0xff]
  %v4538 = vld [vmem:[%s4 + $0x330] sm:$0xff]
  %v4539 = vld [vmem:[%s4 + $0x338] sm:$0xff]
  %v4540 = vld [vmem:[%s4 + $0x340] sm:$0xff]
  %v4541 = vld [vmem:[%s4 + $0x348] sm:$0xff]
  %v4542 = vld [vmem:[%s4 + $0x350] sm:$0xff]
  %v4543 = vld [vmem:[%s4 + $0x358] sm:$0xff]
  %v4544 = vld [vmem:[%s4 + $0x360] sm:$0xff]
  %v4545 = vld [vmem:[%s4 + $0x368] sm:$0xff]
  %v4546 = vld [vmem:[%s4 + $0x370] sm:$0xff]
  %v4547 = vld [vmem:[%s4 + $0x378] sm:$0xff]
  %v4548 = vld [vmem:[%s4 + $0x380] sm:$0xff]
  %v4549 = vld [vmem:[%s4 + $0x388] sm:$0xff]
  %v4550 = vld [vmem:[%s4 + $0x390] sm:$0xff]
  %v4551 = vld [vmem:[%s4 + $0x398] sm:$0xff]
  %v4552 = vld [vmem:[%s4 + $0x3a0] sm:$0xff]
  %v4553 = vld [vmem:[%s4 + $0x3a8] sm:$0xff]
  %v4554 = vld [vmem:[%s4 + $0x3b0] sm:$0xff]
  %v4555 = vld [vmem:[%s4 + $0x3b8] sm:$0xff]
  %v4556 = vld [vmem:[%s4 + $0x3c0] sm:$0xff]
  %v4557 = vld [vmem:[%s4 + $0x3c8] sm:$0xff]
  %v4558 = vld [vmem:[%s4 + $0x3d0] sm:$0xff]
  %v4559 = vld [vmem:[%s4 + $0x3d8] sm:$0xff]
  %v4560 = vld [vmem:[%s4 + $0x3e0] sm:$0xff]
  %v4561 = vld [vmem:[%s4 + $0x3e8] sm:$0xff]
  %v4562 = vld [vmem:[%s4 + $0x3f0] sm:$0xff]
  %v4563 = vld [vmem:[%s4 + $0x3f8] sm:$0xff]
  %4564 = vmatprep.subr.mxu0 %v4437
  %4565 = vmatpush1.msra.mxu0 %v4436
  %4566 = vmatprep.subr.mxu0 %v4441
  %4567 = vmatpush1.msra.mxu0 %v4440
  %4568 = vmatprep.subr.mxu0 %v4445
  %4569 = vmatpush1.msra.mxu0 %v4444
  %4570 = vmatprep.subr.mxu0 %v4449
  %4571 = vmatpush1.msra.mxu0 %v4448
  %4572 = vmatprep.subr.mxu0 %v4453
  %4573 = vmatpush1.msra.mxu0 %v4452
  %4574 = vmatprep.subr.mxu0 %v4457
  %4575 = vmatpush1.msra.mxu0 %v4456
  %4576 = vmatprep.subr.mxu0 %v4461
  %4577 = vmatpush1.msra.mxu0 %v4460
  %4578 = vmatprep.subr.mxu0 %v4465
  %4579 = vmatpush1.msra.mxu0 %v4464
  %4580 = vmatprep.subr.mxu0 %v4469
  %4581 = vmatpush1.msra.mxu0 %v4468
  %4582 = vmatprep.subr.mxu0 %v4473
  %4583 = vmatpush1.msra.mxu0 %v4472
  %4584 = vmatprep.subr.mxu0 %v4477
  %4585 = vmatpush1.msra.mxu0 %v4476
  %4586 = vmatprep.subr.mxu0 %v4481
  %4587 = vmatpush1.msra.mxu0 %v4480
  %4588 = vmatprep.subr.mxu0 %v4485
  %4589 = vmatpush1.msra.mxu0 %v4484
  %4590 = vmatprep.subr.mxu0 %v4489
  %4591 = vmatpush1.msra.mxu0 %v4488
  %4592 = vmatprep.subr.mxu0 %v4493
  %4593 = vmatpush1.msra.mxu0 %v4492
  %4594 = vmatprep.subr.mxu0 %v4497
  %4595 = vmatpush1.msra.mxu0 %v4496
  %4596 = vmatprep.subr.mxu0 %v4501
  %4597 = vmatpush1.msra.mxu0 %v4500
  %4598 = vmatprep.subr.mxu0 %v4505
  %4599 = vmatpush1.msra.mxu0 %v4504
  %4600 = vmatprep.subr.mxu0 %v4509
  %4601 = vmatpush1.msra.mxu0 %v4508
  %4602 = vmatprep.subr.mxu0 %v4513
  %4603 = vmatpush1.msra.mxu0 %v4512
  %4604 = vmatprep.subr.mxu0 %v4517
  %4605 = vmatpush1.msra.mxu0 %v4516
  %4606 = vmatprep.subr.mxu0 %v4521
  %4607 = vmatpush1.msra.mxu0 %v4520
  %4608 = vmatprep.subr.mxu0 %v4525
  %4609 = vmatpush1.msra.mxu0 %v4524
  %4610 = vmatprep.subr.mxu0 %v4529
  %4611 = vmatpush1.msra.mxu0 %v4528
  %4612 = vmatprep.subr.mxu0 %v4533
  %4613 = vmatpush1.msra.mxu0 %v4532
  %4614 = vmatprep.subr.mxu0 %v4537
  %4615 = vmatpush1.msra.mxu0 %v4536
  %4616 = vmatprep.subr.mxu0 %v4541
  %4617 = vmatpush1.msra.mxu0 %v4540
  %4618 = vmatprep.subr.mxu0 %v4545
  %4619 = vmatpush1.msra.mxu0 %v4544
  %4620 = vmatprep.subr.mxu0 %v4549
  %4621 = vmatpush1.msra.mxu0 %v4548
  %4622 = vmatprep.subr.mxu0 %v4553
  %4623 = vmatpush1.msra.mxu0 %v4552
  %4624 = vmatprep.subr.mxu0 %v4557
  %4625 = vmatpush1.msra.mxu0 %v4556
  %4626 = vmatprep.subr.mxu0 %v4561
  %4627 = vmatpush1.msra.mxu0 %v4560
  %4628 = vmatprep.mubr.f32.mxu0 %v4196
  %4629 = vmatmul.mubr.f32.gmra.mrb[0].mxu0 %v4435
  %v4630 = vpop.f32.mrb[0].mxu0
  %v4631 = vadd.f32 %v816, %v4630
  %v4632 = vpop.f32.mrb[0].mxu0
  %v4633 = vadd.f32 %v820, %v4632
  %4634 = vdwg.mxu0
  %4635 = vmatprep.subr.mxu0 %v4439
  %4636 = vmatpush1.msra.mxu0 %v4438
  %4637 = vmatprep.subr.mxu0 %v4443
  %4638 = vmatpush1.msra.mxu0 %v4442
  %4639 = vmatprep.subr.mxu0 %v4447
  %4640 = vmatpush1.msra.mxu0 %v4446
  %4641 = vmatprep.subr.mxu0 %v4451
  %4642 = vmatpush1.msra.mxu0 %v4450
  %4643 = vmatprep.subr.mxu0 %v4455
  %4644 = vmatpush1.msra.mxu0 %v4454
  %4645 = vmatprep.subr.mxu0 %v4459
  %4646 = vmatpush1.msra.mxu0 %v4458
  %4647 = vmatprep.subr.mxu0 %v4463
  %4648 = vmatpush1.msra.mxu0 %v4462
  %4649 = vmatprep.subr.mxu0 %v4467
  %4650 = vmatpush1.msra.mxu0 %v4466
  %4651 = vmatprep.subr.mxu0 %v4471
  %4652 = vmatpush1.msra.mxu0 %v4470
  %4653 = vmatprep.subr.mxu0 %v4475
  %4654 = vmatpush1.msra.mxu0 %v4474
  %4655 = vmatprep.subr.mxu0 %v4479
  %4656 = vmatpush1.msra.mxu0 %v4478
  %4657 = vmatprep.subr.mxu0 %v4483
  %4658 = vmatpush1.msra.mxu0 %v4482
  %4659 = vmatprep.subr.mxu0 %v4487
  %4660 = vmatpush1.msra.mxu0 %v4486
  %4661 = vmatprep.subr.mxu0 %v4491
  %4662 = vmatpush1.msra.mxu0 %v4490
  %4663 = vmatprep.subr.mxu0 %v4495
  %4664 = vmatpush1.msra.mxu0 %v4494
  %4665 = vmatprep.subr.mxu0 %v4499
  %4666 = vmatpush1.msra.mxu0 %v4498
  %4667 = vmatprep.subr.mxu0 %v4503
  %4668 = vmatpush1.msra.mxu0 %v4502
  %4669 = vmatprep.subr.mxu0 %v4507
  %4670 = vmatpush1.msra.mxu0 %v4506
  %4671 = vmatprep.subr.mxu0 %v4511
  %4672 = vmatpush1.msra.mxu0 %v4510
  %4673 = vmatprep.subr.mxu0 %v4515
  %4674 = vmatpush1.msra.mxu0 %v4514
  %4675 = vmatprep.subr.mxu0 %v4519
  %4676 = vmatpush1.msra.mxu0 %v4518
  %4677 = vmatprep.subr.mxu0 %v4523
  %4678 = vmatpush1.msra.mxu0 %v4522
  %4679 = vmatprep.subr.mxu0 %v4527
  %4680 = vmatpush1.msra.mxu0 %v4526
  %4681 = vmatprep.subr.mxu0 %v4531
  %4682 = vmatpush1.msra.mxu0 %v4530
  %4683 = vmatprep.subr.mxu0 %v4535
  %4684 = vmatpush1.msra.mxu0 %v4534
  %4685 = vmatprep.subr.mxu0 %v4539
  %4686 = vmatpush1.msra.mxu0 %v4538
  %4687 = vmatprep.subr.mxu0 %v4543
  %4688 = vmatpush1.msra.mxu0 %v4542
  %4689 = vmatprep.subr.mxu0 %v4547
  %4690 = vmatpush1.msra.mxu0 %v4546
  %4691 = vmatprep.subr.mxu0 %v4551
  %4692 = vmatpush1.msra.mxu0 %v4550
  %4693 = vmatprep.subr.mxu0 %v4555
  %4694 = vmatpush1.msra.mxu0 %v4554
  %4695 = vmatprep.subr.mxu0 %v4559
  %4696 = vmatpush1.msra.mxu0 %v4558
  %4697 = vmatprep.subr.mxu0 %v4563
  %4698 = vmatpush1.msra.mxu0 %v4562
  %4699 = vmatprep.mubr.f32.mxu0 %v4196
  %4700 = vmatmul.mubr.f32.gmra.mrb[0].mxu0 %v4435
  %v4701 = vpop.f32.mrb[0].mxu0
  %v4702 = vadd.f32 %v824, %v4701
  %v4703 = vpop.f32.mrb[0].mxu0
  %v4704 = vadd.f32 %v828, %v4703
  %4705 = vdwg.mxu0
  %v4706 = vxor.u32 %v4631, 2147483648
  %v4707 = vxor.u32 %v4633, 2147483648
  %v4708 = vmul.f32 %v4706, 1.442695
  %v4709 = vpow.pop %v4708
  %v4710 = vmul.f32 %v4707, 1.442695
  %v4711 = vpow.pop %v4710
  %v4712 = vadd.f32 %v4709, 1.0
  %v4713 = vadd.f32 %v4711, 1.0
  %v4714 = vrcp.pop %v4712
  %v4715 = vmul.f32 1.0, %v4714
  %v4716 = vrcp.pop %v4713
  %v4717 = vmul.f32 1.0, %v4716
  %v4718 = vtanh.pop %v4702
  %v4719 = vxor.u32 %v4704, 2147483648
  %v4720 = vmul.f32 %v4719, 1.442695
  %v4721 = vpow.pop %v4720
  %v4722 = vadd.f32 %v4721, 1.0
  %v4723 = vrcp.pop %v4722
  %v4724 = vmul.f32 1.0, %v4723
  %v4725 = vmul.f32 %v4717, %v4194
  %v4726 = vmul.f32 %v4715, %v4718
  %v4727 = vadd.f32 %v4725, %v4726
  %v4728 = vtanh.pop %v4727
  %v4729 = vmul.f32 %v4724, %v4728
  %4730 = vst [vmem:[#allocation3 + $0x38] sm:$0xff] %v4729
  %v4731 = vld [vmem:[#allocation2 + $0x100] sm:$0xff]
  %v4732 = vld [vmem:[#allocation2 + $0x108] sm:$0xff]
  %v4733 = vld [vmem:[#allocation2 + $0x110] sm:$0xff]
  %v4734 = vld [vmem:[#allocation2 + $0x118] sm:$0xff]
  %v4735 = vld [vmem:[%s2] sm:$0xff]
  %v4736 = vld [vmem:[%s2 + $0x8] sm:$0xff]
  %v4737 = vld [vmem:[%s2 + $0x10] sm:$0xff]
  %v4738 = vld [vmem:[%s2 + $0x18] sm:$0xff]
  %v4739 = vld [vmem:[%s2 + $0x20] sm:$0xff]
  %v4740 = vld [vmem:[%s2 + $0x28] sm:$0xff]
  %v4741 = vld [vmem:[%s2 + $0x30] sm:$0xff]
  %v4742 = vld [vmem:[%s2 + $0x38] sm:$0xff]
  %v4743 = vld [vmem:[%s2 + $0x40] sm:$0xff]
  %v4744 = vld [vmem:[%s2 + $0x48] sm:$0xff]
  %v4745 = vld [vmem:[%s2 + $0x50] sm:$0xff]
  %v4746 = vld [vmem:[%s2 + $0x58] sm:$0xff]
  %v4747 = vld [vmem:[%s2 + $0x60] sm:$0xff]
  %v4748 = vld [vmem:[%s2 + $0x68] sm:$0xff]
  %v4749 = vld [vmem:[%s2 + $0x70] sm:$0xff]
  %v4750 = vld [vmem:[%s2 + $0x78] sm:$0xff]
  %v4751 = vld [vmem:[%s2 + $0x80] sm:$0xff]
  %v4752 = vld [vmem:[%s2 + $0x88] sm:$0xff]
  %v4753 = vld [vmem:[%s2 + $0x90] sm:$0xff]
  %v4754 = vld [vmem:[%s2 + $0x98] sm:$0xff]
  %v4755 = vld [vmem:[%s2 + $0xa0] sm:$0xff]
  %v4756 = vld [vmem:[%s2 + $0xa8] sm:$0xff]
  %v4757 = vld [vmem:[%s2 + $0xb0] sm:$0xff]
  %v4758 = vld [vmem:[%s2 + $0xb8] sm:$0xff]
  %v4759 = vld [vmem:[%s2 + $0xc0] sm:$0xff]
  %v4760 = vld [vmem:[%s2 + $0xc8] sm:$0xff]
  %v4761 = vld [vmem:[%s2 + $0xd0] sm:$0xff]
  %v4762 = vld [vmem:[%s2 + $0xd8] sm:$0xff]
  %v4763 = vld [vmem:[%s2 + $0xe0] sm:$0xff]
  %v4764 = vld [vmem:[%s2 + $0xe8] sm:$0xff]
  %v4765 = vld [vmem:[%s2 + $0xf0] sm:$0xff]
  %v4766 = vld [vmem:[%s2 + $0xf8] sm:$0xff]
  %v4767 = vld [vmem:[%s2 + $0x100] sm:$0xff]
  %v4768 = vld [vmem:[%s2 + $0x108] sm:$0xff]
  %v4769 = vld [vmem:[%s2 + $0x110] sm:$0xff]
  %v4770 = vld [vmem:[%s2 + $0x118] sm:$0xff]
  %v4771 = vld [vmem:[%s2 + $0x120] sm:$0xff]
  %v4772 = vld [vmem:[%s2 + $0x128] sm:$0xff]
  %v4773 = vld [vmem:[%s2 + $0x130] sm:$0xff]
  %v4774 = vld [vmem:[%s2 + $0x138] sm:$0xff]
  %v4775 = vld [vmem:[%s2 + $0x140] sm:$0xff]
  %v4776 = vld [vmem:[%s2 + $0x148] sm:$0xff]
  %v4777 = vld [vmem:[%s2 + $0x150] sm:$0xff]
  %v4778 = vld [vmem:[%s2 + $0x158] sm:$0xff]
  %v4779 = vld [vmem:[%s2 + $0x160] sm:$0xff]
  %v4780 = vld [vmem:[%s2 + $0x168] sm:$0xff]
  %v4781 = vld [vmem:[%s2 + $0x170] sm:$0xff]
  %v4782 = vld [vmem:[%s2 + $0x178] sm:$0xff]
  %v4783 = vld [vmem:[%s2 + $0x180] sm:$0xff]
  %v4784 = vld [vmem:[%s2 + $0x188] sm:$0xff]
  %v4785 = vld [vmem:[%s2 + $0x190] sm:$0xff]
  %v4786 = vld [vmem:[%s2 + $0x198] sm:$0xff]
  %v4787 = vld [vmem:[%s2 + $0x1a0] sm:$0xff]
  %v4788 = vld [vmem:[%s2 + $0x1a8] sm:$0xff]
  %v4789 = vld [vmem:[%s2 + $0x1b0] sm:$0xff]
  %v4790 = vld [vmem:[%s2 + $0x1b8] sm:$0xff]
  %v4791 = vld [vmem:[%s2 + $0x1c0] sm:$0xff]
  %v4792 = vld [vmem:[%s2 + $0x1c8] sm:$0xff]
  %v4793 = vld [vmem:[%s2 + $0x1d0] sm:$0xff]
  %v4794 = vld [vmem:[%s2 + $0x1d8] sm:$0xff]
  %v4795 = vld [vmem:[%s2 + $0x1e0] sm:$0xff]
  %v4796 = vld [vmem:[%s2 + $0x1e8] sm:$0xff]
  %v4797 = vld [vmem:[%s2 + $0x1f0] sm:$0xff]
  %v4798 = vld [vmem:[%s2 + $0x1f8] sm:$0xff]
  %4799 = vmatprep.subr.mxu0 %v4736
  %4800 = vmatpush1.msra.mxu0 %v4735
  %4801 = vmatprep.subr.mxu0 %v4740
  %4802 = vmatpush1.msra.mxu0 %v4739
  %4803 = vmatprep.subr.mxu0 %v4744
  %4804 = vmatpush1.msra.mxu0 %v4743
  %4805 = vmatprep.subr.mxu0 %v4748
  %4806 = vmatpush1.msra.mxu0 %v4747
  %4807 = vmatprep.subr.mxu0 %v4752
  %4808 = vmatpush1.msra.mxu0 %v4751
  %4809 = vmatprep.subr.mxu0 %v4756
  %4810 = vmatpush1.msra.mxu0 %v4755
  %4811 = vmatprep.subr.mxu0 %v4760
  %4812 = vmatpush1.msra.mxu0 %v4759
  %4813 = vmatprep.subr.mxu0 %v4764
  %4814 = vmatpush1.msra.mxu0 %v4763
  %4815 = vmatprep.subr.mxu0 %v4768
  %4816 = vmatpush1.msra.mxu0 %v4767
  %4817 = vmatprep.subr.mxu0 %v4772
  %4818 = vmatpush1.msra.mxu0 %v4771
  %4819 = vmatprep.subr.mxu0 %v4776
  %4820 = vmatpush1.msra.mxu0 %v4775
  %4821 = vmatprep.subr.mxu0 %v4780
  %4822 = vmatpush1.msra.mxu0 %v4779
  %4823 = vmatprep.subr.mxu0 %v4784
  %4824 = vmatpush1.msra.mxu0 %v4783
  %4825 = vmatprep.subr.mxu0 %v4788
  %4826 = vmatpush1.msra.mxu0 %v4787
  %4827 = vmatprep.subr.mxu0 %v4792
  %4828 = vmatpush1.msra.mxu0 %v4791
  %4829 = vmatprep.subr.mxu0 %v4796
  %4830 = vmatpush1.msra.mxu0 %v4795
  %4831 = vmatprep.subr.mxu0 0.0
  %4832 = vmatpush1.msra.mxu0 0.0
  %4833 = vmatprep.subr.mxu0 0.0
  %4834 = vmatpush1.msra.mxu0 0.0
  %4835 = vmatprep.subr.mxu0 0.0
  %4836 = vmatpush1.msra.mxu0 0.0
  %4837 = vmatprep.subr.mxu0 0.0
  %4838 = vmatpush1.msra.mxu0 0.0
  %4839 = vmatprep.subr.mxu0 0.0
  %4840 = vmatpush1.msra.mxu0 0.0
  %4841 = vmatprep.subr.mxu0 0.0
  %4842 = vmatpush1.msra.mxu0 0.0
  %4843 = vmatprep.subr.mxu0 0.0
  %4844 = vmatpush1.msra.mxu0 0.0
  %4845 = vmatprep.subr.mxu0 0.0
  %4846 = vmatpush1.msra.mxu0 0.0
  %4847 = vmatprep.subr.mxu0 0.0
  %4848 = vmatpush1.msra.mxu0 0.0
  %4849 = vmatprep.subr.mxu0 0.0
  %4850 = vmatpush1.msra.mxu0 0.0
  %4851 = vmatprep.subr.mxu0 0.0
  %4852 = vmatpush1.msra.mxu0 0.0
  %4853 = vmatprep.subr.mxu0 0.0
  %4854 = vmatpush1.msra.mxu0 0.0
  %4855 = vmatprep.subr.mxu0 0.0
  %4856 = vmatpush1.msra.mxu0 0.0
  %4857 = vmatprep.subr.mxu0 0.0
  %4858 = vmatpush1.msra.mxu0 0.0
  %4859 = vmatprep.subr.mxu0 0.0
  %4860 = vmatpush1.msra.mxu0 0.0
  %4861 = vmatprep.subr.mxu0 0.0
  %4862 = vmatpush1.msra.mxu0 0.0
  %4863 = vmatprep.mubr.f32.mxu0 0.0
  %4864 = vmatmul.mubr.f32.gmra.mrb[0].mxu0 %v4435
  %v4865 = vpop.f32.mrb[0].mxu0
  %v4866 = vadd.f32 0.0, %v4865
  %v4867 = vpop.f32.mrb[0].mxu0
  %v4868 = vadd.f32 0.0, %v4867
  %4869 = vdwg.mxu0
  %4870 = vmatprep.subr.mxu0 %v4738
  %4871 = vmatpush1.msra.mxu0 %v4737
  %4872 = vmatprep.subr.mxu0 %v4742
  %4873 = vmatpush1.msra.mxu0 %v4741
  %4874 = vmatprep.subr.mxu0 %v4746
  %4875 = vmatpush1.msra.mxu0 %v4745
  %4876 = vmatprep.subr.mxu0 %v4750
  %4877 = vmatpush1.msra.mxu0 %v4749
  %4878 = vmatprep.subr.mxu0 %v4754
  %4879 = vmatpush1.msra.mxu0 %v4753
  %4880 = vmatprep.subr.mxu0 %v4758
  %4881 = vmatpush1.msra.mxu0 %v4757
  %4882 = vmatprep.subr.mxu0 %v4762
  %4883 = vmatpush1.msra.mxu0 %v4761
  %4884 = vmatprep.subr.mxu0 %v4766
  %4885 = vmatpush1.msra.mxu0 %v4765
  %4886 = vmatprep.subr.mxu0 %v4770
  %4887 = vmatpush1.msra.mxu0 %v4769
  %4888 = vmatprep.subr.mxu0 %v4774
  %4889 = vmatpush1.msra.mxu0 %v4773
  %4890 = vmatprep.subr.mxu0 %v4778
  %4891 = vmatpush1.msra.mxu0 %v4777
  %4892 = vmatprep.subr.mxu0 %v4782
  %4893 = vmatpush1.msra.mxu0 %v4781
  %4894 = vmatprep.subr.mxu0 %v4786
  %4895 = vmatpush1.msra.mxu0 %v4785
  %4896 = vmatprep.subr.mxu0 %v4790
  %4897 = vmatpush1.msra.mxu0 %v4789
  %4898 = vmatprep.subr.mxu0 %v4794
  %4899 = vmatpush1.msra.mxu0 %v4793
  %4900 = vmatprep.subr.mxu0 %v4798
  %4901 = vmatpush1.msra.mxu0 %v4797
  %4902 = vmatprep.subr.mxu0 0.0
  %4903 = vmatpush1.msra.mxu0 0.0
  %4904 = vmatprep.subr.mxu0 0.0
  %4905 = vmatpush1.msra.mxu0 0.0
  %4906 = vmatprep.subr.mxu0 0.0
  %4907 = vmatpush1.msra.mxu0 0.0
  %4908 = vmatprep.subr.mxu0 0.0
  %4909 = vmatpush1.msra.mxu0 0.0
  %4910 = vmatprep.subr.mxu0 0.0
  %4911 = vmatpush1.msra.mxu0 0.0
  %4912 = vmatprep.subr.mxu0 0.0
  %4913 = vmatpush1.msra.mxu0 0.0
  %4914 = vmatprep.subr.mxu0 0.0
  %4915 = vmatpush1.msra.mxu0 0.0
  %4916 = vmatprep.subr.mxu0 0.0
  %4917 = vmatpush1.msra.mxu0 0.0
  %4918 = vmatprep.subr.mxu0 0.0
  %4919 = vmatpush1.msra.mxu0 0.0
  %4920 = vmatprep.subr.mxu0 0.0
  %4921 = vmatpush1.msra.mxu0 0.0
  %4922 = vmatprep.subr.mxu0 0.0
  %4923 = vmatpush1.msra.mxu0 0.0
  %4924 = vmatprep.subr.mxu0 0.0
  %4925 = vmatpush1.msra.mxu0 0.0
  %4926 = vmatprep.subr.mxu0 0.0
  %4927 = vmatpush1.msra.mxu0 0.0
  %4928 = vmatprep.subr.mxu0 0.0
  %4929 = vmatpush1.msra.mxu0 0.0
  %4930 = vmatprep.subr.mxu0 0.0
  %4931 = vmatpush1.msra.mxu0 0.0
  %4932 = vmatprep.subr.mxu0 0.0
  %4933 = vmatpush1.msra.mxu0 0.0
  %4934 = vmatprep.mubr.f32.mxu0 0.0
  %4935 = vmatmul.mubr.f32.gmra.mrb[0].mxu0 %v4435
  %v4936 = vpop.f32.mrb[0].mxu0
  %v4937 = vadd.f32 0.0, %v4936
  %v4938 = vpop.f32.mrb[0].mxu0
  %v4939 = vadd.f32 0.0, %v4938
  %4940 = vdwg.mxu0
  %v4941 = vadd.f32 %v4731, %v4866
  %v4942 = vadd.f32 %v4732, %v4868
  %v4943 = vadd.f32 %v4733, %v4937
  %v4944 = vadd.f32 %v4734, %v4939
  %v4945 = vxor.u32 %v4941, 2147483648
  %v4946 = vxor.u32 %v4942, 2147483648
  %v4947 = vmul.f32 %v4945, 1.442695
  %v4948 = vpow.pop %v4947
  %v4949 = vmul.f32 %v4946, 1.442695
  %v4950 = vpow.pop %v4949
  %v4951 = vadd.f32 %v4948, 1.0
  %v4952 = vadd.f32 %v4950, 1.0
  %v4953 = vrcp.pop %v4951
  %v4954 = vmul.f32 1.0, %v4953
  %v4955 = vrcp.pop %v4952
  %v4956 = vmul.f32 1.0, %v4955
  %v4957 = vtanh.pop %v4943
  %v4958 = vxor.u32 %v4944, 2147483648
  %v4959 = vmul.f32 %v4958, 1.442695
  %v4960 = vpow.pop %v4959
  %v4961 = vadd.f32 %v4960, 1.0
  %v4962 = vrcp.pop %v4961
  %v4963 = vmul.f32 1.0, %v4962
  %v4964 = vmul.f32 %v4956, %v4433
  %v4965 = vmul.f32 %v4954, %v4957
  %v4966 = vadd.f32 %v4964, %v4965
  %v4967 = vtanh.pop %v4966
  %v4968 = vmul.f32 %v4963, %v4967
  %v4969 = vld [vmem:[%s4] sm:$0xff]
  %v4970 = vld [vmem:[%s4 + $0x8] sm:$0xff]
  %v4971 = vld [vmem:[%s4 + $0x10] sm:$0xff]
  %v4972 = vld [vmem:[%s4 + $0x18] sm:$0xff]
  %v4973 = vld [vmem:[%s4 + $0x20] sm:$0xff]
  %v4974 = vld [vmem:[%s4 + $0x28] sm:$0xff]
  %v4975 = vld [vmem:[%s4 + $0x30] sm:$0xff]
  %v4976 = vld [vmem:[%s4 + $0x38] sm:$0xff]
  %v4977 = vld [vmem:[%s4 + $0x40] sm:$0xff]
  %v4978 = vld [vmem:[%s4 + $0x48] sm:$0xff]
  %v4979 = vld [vmem:[%s4 + $0x50] sm:$0xff]
  %v4980 = vld [vmem:[%s4 + $0x58] sm:$0xff]
  %v4981 = vld [vmem:[%s4 + $0x60] sm:$0xff]
  %v4982 = vld [vmem:[%s4 + $0x68] sm:$0xff]
  %v4983 = vld [vmem:[%s4 + $0x70] sm:$0xff]
  %v4984 = vld [vmem:[%s4 + $0x78] sm:$0xff]
  %v4985 = vld [vmem:[%s4 + $0x80] sm:$0xff]
  %v4986 = vld [vmem:[%s4 + $0x88] sm:$0xff]
  %v4987 = vld [vmem:[%s4 + $0x90] sm:$0xff]
  %v4988 = vld [vmem:[%s4 + $0x98] sm:$0xff]
  %v4989 = vld [vmem:[%s4 + $0xa0] sm:$0xff]
  %v4990 = vld [vmem:[%s4 + $0xa8] sm:$0xff]
  %v4991 = vld [vmem:[%s4 + $0xb0] sm:$0xff]
  %v4992 = vld [vmem:[%s4 + $0xb8] sm:$0xff]
  %v4993 = vld [vmem:[%s4 + $0xc0] sm:$0xff]
  %v4994 = vld [vmem:[%s4 + $0xc8] sm:$0xff]
  %v4995 = vld [vmem:[%s4 + $0xd0] sm:$0xff]
  %v4996 = vld [vmem:[%s4 + $0xd8] sm:$0xff]
  %v4997 = vld [vmem:[%s4 + $0xe0] sm:$0xff]
  %v4998 = vld [vmem:[%s4 + $0xe8] sm:$0xff]
  %v4999 = vld [vmem:[%s4 + $0xf0] sm:$0xff]
  %v5000 = vld [vmem:[%s4 + $0xf8] sm:$0xff]
  %v5001 = vld [vmem:[%s4 + $0x100] sm:$0xff]
  %v5002 = vld [vmem:[%s4 + $0x108] sm:$0xff]
  %v5003 = vld [vmem:[%s4 + $0x110] sm:$0xff]
  %v5004 = vld [vmem:[%s4 + $0x118] sm:$0xff]
  %v5005 = vld [vmem:[%s4 + $0x120] sm:$0xff]
  %v5006 = vld [vmem:[%s4 + $0x128] sm:$0xff]
  %v5007 = vld [vmem:[%s4 + $0x130] sm:$0xff]
  %v5008 = vld [vmem:[%s4 + $0x138] sm:$0xff]
  %v5009 = vld [vmem:[%s4 + $0x140] sm:$0xff]
  %v5010 = vld [vmem:[%s4 + $0x148] sm:$0xff]
  %v5011 = vld [vmem:[%s4 + $0x150] sm:$0xff]
  %v5012 = vld [vmem:[%s4 + $0x158] sm:$0xff]
  %v5013 = vld [vmem:[%s4 + $0x160] sm:$0xff]
  %v5014 = vld [vmem:[%s4 + $0x168] sm:$0xff]
  %v5015 = vld [vmem:[%s4 + $0x170] sm:$0xff]
  %v5016 = vld [vmem:[%s4 + $0x178] sm:$0xff]
  %v5017 = vld [vmem:[%s4 + $0x180] sm:$0xff]
  %v5018 = vld [vmem:[%s4 + $0x188] sm:$0xff]
  %v5019 = vld [vmem:[%s4 + $0x190] sm:$0xff]
  %v5020 = vld [vmem:[%s4 + $0x198] sm:$0xff]
  %v5021 = vld [vmem:[%s4 + $0x1a0] sm:$0xff]
  %v5022 = vld [vmem:[%s4 + $0x1a8] sm:$0xff]
  %v5023 = vld [vmem:[%s4 + $0x1b0] sm:$0xff]
  %v5024 = vld [vmem:[%s4 + $0x1b8] sm:$0xff]
  %v5025 = vld [vmem:[%s4 + $0x1c0] sm:$0xff]
  %v5026 = vld [vmem:[%s4 + $0x1c8] sm:$0xff]
  %v5027 = vld [vmem:[%s4 + $0x1d0] sm:$0xff]
  %v5028 = vld [vmem:[%s4 + $0x1d8] sm:$0xff]
  %v5029 = vld [vmem:[%s4 + $0x1e0] sm:$0xff]
  %v5030 = vld [vmem:[%s4 + $0x1e8] sm:$0xff]
  %v5031 = vld [vmem:[%s4 + $0x1f0] sm:$0xff]
  %v5032 = vld [vmem:[%s4 + $0x1f8] sm:$0xff]
  %v5033 = vld [vmem:[%s4 + $0x200] sm:$0xff]
  %v5034 = vld [vmem:[%s4 + $0x208] sm:$0xff]
  %v5035 = vld [vmem:[%s4 + $0x210] sm:$0xff]
  %v5036 = vld [vmem:[%s4 + $0x218] sm:$0xff]
  %v5037 = vld [vmem:[%s4 + $0x220] sm:$0xff]
  %v5038 = vld [vmem:[%s4 + $0x228] sm:$0xff]
  %v5039 = vld [vmem:[%s4 + $0x230] sm:$0xff]
  %v5040 = vld [vmem:[%s4 + $0x238] sm:$0xff]
  %v5041 = vld [vmem:[%s4 + $0x240] sm:$0xff]
  %v5042 = vld [vmem:[%s4 + $0x248] sm:$0xff]
  %v5043 = vld [vmem:[%s4 + $0x250] sm:$0xff]
  %v5044 = vld [vmem:[%s4 + $0x258] sm:$0xff]
  %v5045 = vld [vmem:[%s4 + $0x260] sm:$0xff]
  %v5046 = vld [vmem:[%s4 + $0x268] sm:$0xff]
  %v5047 = vld [vmem:[%s4 + $0x270] sm:$0xff]
  %v5048 = vld [vmem:[%s4 + $0x278] sm:$0xff]
  %v5049 = vld [vmem:[%s4 + $0x280] sm:$0xff]
  %v5050 = vld [vmem:[%s4 + $0x288] sm:$0xff]
  %v5051 = vld [vmem:[%s4 + $0x290] sm:$0xff]
  %v5052 = vld [vmem:[%s4 + $0x298] sm:$0xff]
  %v5053 = vld [vmem:[%s4 + $0x2a0] sm:$0xff]
  %v5054 = vld [vmem:[%s4 + $0x2a8] sm:$0xff]
  %v5055 = vld [vmem:[%s4 + $0x2b0] sm:$0xff]
  %v5056 = vld [vmem:[%s4 + $0x2b8] sm:$0xff]
  %v5057 = vld [vmem:[%s4 + $0x2c0] sm:$0xff]
  %v5058 = vld [vmem:[%s4 + $0x2c8] sm:$0xff]
  %v5059 = vld [vmem:[%s4 + $0x2d0] sm:$0xff]
  %v5060 = vld [vmem:[%s4 + $0x2d8] sm:$0xff]
  %v5061 = vld [vmem:[%s4 + $0x2e0] sm:$0xff]
  %v5062 = vld [vmem:[%s4 + $0x2e8] sm:$0xff]
  %v5063 = vld [vmem:[%s4 + $0x2f0] sm:$0xff]
  %v5064 = vld [vmem:[%s4 + $0x2f8] sm:$0xff]
  %v5065 = vld [vmem:[%s4 + $0x300] sm:$0xff]
  %v5066 = vld [vmem:[%s4 + $0x308] sm:$0xff]
  %v5067 = vld [vmem:[%s4 + $0x310] sm:$0xff]
  %v5068 = vld [vmem:[%s4 + $0x318] sm:$0xff]
  %v5069 = vld [vmem:[%s4 + $0x320] sm:$0xff]
  %v5070 = vld [vmem:[%s4 + $0x328] sm:$0xff]
  %v5071 = vld [vmem:[%s4 + $0x330] sm:$0xff]
  %v5072 = vld [vmem:[%s4 + $0x338] sm:$0xff]
  %v5073 = vld [vmem:[%s4 + $0x340] sm:$0xff]
  %v5074 = vld [vmem:[%s4 + $0x348] sm:$0xff]
  %v5075 = vld [vmem:[%s4 + $0x350] sm:$0xff]
  %v5076 = vld [vmem:[%s4 + $0x358] sm:$0xff]
  %v5077 = vld [vmem:[%s4 + $0x360] sm:$0xff]
  %v5078 = vld [vmem:[%s4 + $0x368] sm:$0xff]
  %v5079 = vld [vmem:[%s4 + $0x370] sm:$0xff]
  %v5080 = vld [vmem:[%s4 + $0x378] sm:$0xff]
  %v5081 = vld [vmem:[%s4 + $0x380] sm:$0xff]
  %v5082 = vld [vmem:[%s4 + $0x388] sm:$0xff]
  %v5083 = vld [vmem:[%s4 + $0x390] sm:$0xff]
  %v5084 = vld [vmem:[%s4 + $0x398] sm:$0xff]
  %v5085 = vld [vmem:[%s4 + $0x3a0] sm:$0xff]
  %v5086 = vld [vmem:[%s4 + $0x3a8] sm:$0xff]
  %v5087 = vld [vmem:[%s4 + $0x3b0] sm:$0xff]
  %v5088 = vld [vmem:[%s4 + $0x3b8] sm:$0xff]
  %v5089 = vld [vmem:[%s4 + $0x3c0] sm:$0xff]
  %v5090 = vld [vmem:[%s4 + $0x3c8] sm:$0xff]
  %v5091 = vld [vmem:[%s4 + $0x3d0] sm:$0xff]
  %v5092 = vld [vmem:[%s4 + $0x3d8] sm:$0xff]
  %v5093 = vld [vmem:[%s4 + $0x3e0] sm:$0xff]
  %v5094 = vld [vmem:[%s4 + $0x3e8] sm:$0xff]
  %v5095 = vld [vmem:[%s4 + $0x3f0] sm:$0xff]
  %v5096 = vld [vmem:[%s4 + $0x3f8] sm:$0xff]
  %5097 = vmatprep.subr.mxu0 %v4970
  %5098 = vmatpush1.msra.mxu0 %v4969
  %5099 = vmatprep.subr.mxu0 %v4974
  %5100 = vmatpush1.msra.mxu0 %v4973
  %5101 = vmatprep.subr.mxu0 %v4978
  %5102 = vmatpush1.msra.mxu0 %v4977
  %5103 = vmatprep.subr.mxu0 %v4982
  %5104 = vmatpush1.msra.mxu0 %v4981
  %5105 = vmatprep.subr.mxu0 %v4986
  %5106 = vmatpush1.msra.mxu0 %v4985
  %5107 = vmatprep.subr.mxu0 %v4990
  %5108 = vmatpush1.msra.mxu0 %v4989
  %5109 = vmatprep.subr.mxu0 %v4994
  %5110 = vmatpush1.msra.mxu0 %v4993
  %5111 = vmatprep.subr.mxu0 %v4998
  %5112 = vmatpush1.msra.mxu0 %v4997
  %5113 = vmatprep.subr.mxu0 %v5002
  %5114 = vmatpush1.msra.mxu0 %v5001
  %5115 = vmatprep.subr.mxu0 %v5006
  %5116 = vmatpush1.msra.mxu0 %v5005
  %5117 = vmatprep.subr.mxu0 %v5010
  %5118 = vmatpush1.msra.mxu0 %v5009
  %5119 = vmatprep.subr.mxu0 %v5014
  %5120 = vmatpush1.msra.mxu0 %v5013
  %5121 = vmatprep.subr.mxu0 %v5018
  %5122 = vmatpush1.msra.mxu0 %v5017
  %5123 = vmatprep.subr.mxu0 %v5022
  %5124 = vmatpush1.msra.mxu0 %v5021
  %5125 = vmatprep.subr.mxu0 %v5026
  %5126 = vmatpush1.msra.mxu0 %v5025
  %5127 = vmatprep.subr.mxu0 %v5030
  %5128 = vmatpush1.msra.mxu0 %v5029
  %5129 = vmatprep.subr.mxu0 %v5034
  %5130 = vmatpush1.msra.mxu0 %v5033
  %5131 = vmatprep.subr.mxu0 %v5038
  %5132 = vmatpush1.msra.mxu0 %v5037
  %5133 = vmatprep.subr.mxu0 %v5042
  %5134 = vmatpush1.msra.mxu0 %v5041
  %5135 = vmatprep.subr.mxu0 %v5046
  %5136 = vmatpush1.msra.mxu0 %v5045
  %5137 = vmatprep.subr.mxu0 %v5050
  %5138 = vmatpush1.msra.mxu0 %v5049
  %5139 = vmatprep.subr.mxu0 %v5054
  %5140 = vmatpush1.msra.mxu0 %v5053
  %5141 = vmatprep.subr.mxu0 %v5058
  %5142 = vmatpush1.msra.mxu0 %v5057
  %5143 = vmatprep.subr.mxu0 %v5062
  %5144 = vmatpush1.msra.mxu0 %v5061
  %5145 = vmatprep.subr.mxu0 %v5066
  %5146 = vmatpush1.msra.mxu0 %v5065
  %5147 = vmatprep.subr.mxu0 %v5070
  %5148 = vmatpush1.msra.mxu0 %v5069
  %5149 = vmatprep.subr.mxu0 %v5074
  %5150 = vmatpush1.msra.mxu0 %v5073
  %5151 = vmatprep.subr.mxu0 %v5078
  %5152 = vmatpush1.msra.mxu0 %v5077
  %5153 = vmatprep.subr.mxu0 %v5082
  %5154 = vmatpush1.msra.mxu0 %v5081
  %5155 = vmatprep.subr.mxu0 %v5086
  %5156 = vmatpush1.msra.mxu0 %v5085
  %5157 = vmatprep.subr.mxu0 %v5090
  %5158 = vmatpush1.msra.mxu0 %v5089
  %5159 = vmatprep.subr.mxu0 %v5094
  %5160 = vmatpush1.msra.mxu0 %v5093
  %5161 = vmatprep.mubr.f32.mxu0 %v4729
  %5162 = vmatmul.mubr.f32.gmra.mrb[0].mxu0 %v4968
  %v5163 = vpop.f32.mrb[0].mxu0
  %v5164 = vadd.f32 %v816, %v5163
  %v5165 = vpop.f32.mrb[0].mxu0
  %v5166 = vadd.f32 %v820, %v5165
  %5167 = vdwg.mxu0
  %5168 = vmatprep.subr.mxu0 %v4972
  %5169 = vmatpush1.msra.mxu0 %v4971
  %5170 = vmatprep.subr.mxu0 %v4976
  %5171 = vmatpush1.msra.mxu0 %v4975
  %5172 = vmatprep.subr.mxu0 %v4980
  %5173 = vmatpush1.msra.mxu0 %v4979
  %5174 = vmatprep.subr.mxu0 %v4984
  %5175 = vmatpush1.msra.mxu0 %v4983
  %5176 = vmatprep.subr.mxu0 %v4988
  %5177 = vmatpush1.msra.mxu0 %v4987
  %5178 = vmatprep.subr.mxu0 %v4992
  %5179 = vmatpush1.msra.mxu0 %v4991
  %5180 = vmatprep.subr.mxu0 %v4996
  %5181 = vmatpush1.msra.mxu0 %v4995
  %5182 = vmatprep.subr.mxu0 %v5000
  %5183 = vmatpush1.msra.mxu0 %v4999
  %5184 = vmatprep.subr.mxu0 %v5004
  %5185 = vmatpush1.msra.mxu0 %v5003
  %5186 = vmatprep.subr.mxu0 %v5008
  %5187 = vmatpush1.msra.mxu0 %v5007
  %5188 = vmatprep.subr.mxu0 %v5012
  %5189 = vmatpush1.msra.mxu0 %v5011
  %5190 = vmatprep.subr.mxu0 %v5016
  %5191 = vmatpush1.msra.mxu0 %v5015
  %5192 = vmatprep.subr.mxu0 %v5020
  %5193 = vmatpush1.msra.mxu0 %v5019
  %5194 = vmatprep.subr.mxu0 %v5024
  %5195 = vmatpush1.msra.mxu0 %v5023
  %5196 = vmatprep.subr.mxu0 %v5028
  %5197 = vmatpush1.msra.mxu0 %v5027
  %5198 = vmatprep.subr.mxu0 %v5032
  %5199 = vmatpush1.msra.mxu0 %v5031
  %5200 = vmatprep.subr.mxu0 %v5036
  %5201 = vmatpush1.msra.mxu0 %v5035
  %5202 = vmatprep.subr.mxu0 %v5040
  %5203 = vmatpush1.msra.mxu0 %v5039
  %5204 = vmatprep.subr.mxu0 %v5044
  %5205 = vmatpush1.msra.mxu0 %v5043
  %5206 = vmatprep.subr.mxu0 %v5048
  %5207 = vmatpush1.msra.mxu0 %v5047
  %5208 = vmatprep.subr.mxu0 %v5052
  %5209 = vmatpush1.msra.mxu0 %v5051
  %5210 = vmatprep.subr.mxu0 %v5056
  %5211 = vmatpush1.msra.mxu0 %v5055
  %5212 = vmatprep.subr.mxu0 %v5060
  %5213 = vmatpush1.msra.mxu0 %v5059
  %5214 = vmatprep.subr.mxu0 %v5064
  %5215 = vmatpush1.msra.mxu0 %v5063
  %5216 = vmatprep.subr.mxu0 %v5068
  %5217 = vmatpush1.msra.mxu0 %v5067
  %5218 = vmatprep.subr.mxu0 %v5072
  %5219 = vmatpush1.msra.mxu0 %v5071
  %5220 = vmatprep.subr.mxu0 %v5076
  %5221 = vmatpush1.msra.mxu0 %v5075
  %5222 = vmatprep.subr.mxu0 %v5080
  %5223 = vmatpush1.msra.mxu0 %v5079
  %5224 = vmatprep.subr.mxu0 %v5084
  %5225 = vmatpush1.msra.mxu0 %v5083
  %5226 = vmatprep.subr.mxu0 %v5088
  %5227 = vmatpush1.msra.mxu0 %v5087
  %5228 = vmatprep.subr.mxu0 %v5092
  %5229 = vmatpush1.msra.mxu0 %v5091
  %5230 = vmatprep.subr.mxu0 %v5096
  %5231 = vmatpush1.msra.mxu0 %v5095
  %5232 = vmatprep.mubr.f32.mxu0 %v4729
  %5233 = vmatmul.mubr.f32.gmra.mrb[0].mxu0 %v4968
  %v5234 = vpop.f32.mrb[0].mxu0
  %v5235 = vadd.f32 %v824, %v5234
  %v5236 = vpop.f32.mrb[0].mxu0
  %v5237 = vadd.f32 %v828, %v5236
  %5238 = vdwg.mxu0
  %v5239 = vxor.u32 %v5164, 2147483648
  %v5240 = vxor.u32 %v5166, 2147483648
  %v5241 = vmul.f32 %v5239, 1.442695
  %v5242 = vpow.pop %v5241
  %v5243 = vmul.f32 %v5240, 1.442695
  %v5244 = vpow.pop %v5243
  %v5245 = vadd.f32 %v5242, 1.0
  %v5246 = vadd.f32 %v5244, 1.0
  %v5247 = vrcp.pop %v5245
  %v5248 = vmul.f32 1.0, %v5247
  %v5249 = vrcp.pop %v5246
  %v5250 = vmul.f32 1.0, %v5249
  %v5251 = vtanh.pop %v5235
  %v5252 = vxor.u32 %v5237, 2147483648
  %v5253 = vmul.f32 %v5252, 1.442695
  %v5254 = vpow.pop %v5253
  %v5255 = vadd.f32 %v5254, 1.0
  %v5256 = vrcp.pop %v5255
  %v5257 = vmul.f32 1.0, %v5256
  %v5258 = vmul.f32 %v5250, %v4727
  %v5259 = vmul.f32 %v5248, %v5251
  %v5260 = vadd.f32 %v5258, %v5259
  %v5261 = vtanh.pop %v5260
  %v5262 = vmul.f32 %v5257, %v5261
  %5263 = vst [vmem:[#allocation3 + $0x40] sm:$0xff] %v5262
  %v5264 = vld [vmem:[#allocation2 + $0x120] sm:$0xff]
  %v5265 = vld [vmem:[#allocation2 + $0x128] sm:$0xff]
  %v5266 = vld [vmem:[#allocation2 + $0x130] sm:$0xff]
  %v5267 = vld [vmem:[#allocation2 + $0x138] sm:$0xff]
  %v5268 = vld [vmem:[%s2] sm:$0xff]
  %v5269 = vld [vmem:[%s2 + $0x8] sm:$0xff]
  %v5270 = vld [vmem:[%s2 + $0x10] sm:$0xff]
  %v5271 = vld [vmem:[%s2 + $0x18] sm:$0xff]
  %v5272 = vld [vmem:[%s2 + $0x20] sm:$0xff]
  %v5273 = vld [vmem:[%s2 + $0x28] sm:$0xff]
  %v5274 = vld [vmem:[%s2 + $0x30] sm:$0xff]
  %v5275 = vld [vmem:[%s2 + $0x38] sm:$0xff]
  %v5276 = vld [vmem:[%s2 + $0x40] sm:$0xff]
  %v5277 = vld [vmem:[%s2 + $0x48] sm:$0xff]
  %v5278 = vld [vmem:[%s2 + $0x50] sm:$0xff]
  %v5279 = vld [vmem:[%s2 + $0x58] sm:$0xff]
  %v5280 = vld [vmem:[%s2 + $0x60] sm:$0xff]
  %v5281 = vld [vmem:[%s2 + $0x68] sm:$0xff]
  %v5282 = vld [vmem:[%s2 + $0x70] sm:$0xff]
  %v5283 = vld [vmem:[%s2 + $0x78] sm:$0xff]
  %v5284 = vld [vmem:[%s2 + $0x80] sm:$0xff]
  %v5285 = vld [vmem:[%s2 + $0x88] sm:$0xff]
  %v5286 = vld [vmem:[%s2 + $0x90] sm:$0xff]
  %v5287 = vld [vmem:[%s2 + $0x98] sm:$0xff]
  %v5288 = vld [vmem:[%s2 + $0xa0] sm:$0xff]
  %v5289 = vld [vmem:[%s2 + $0xa8] sm:$0xff]
  %v5290 = vld [vmem:[%s2 + $0xb0] sm:$0xff]
  %v5291 = vld [vmem:[%s2 + $0xb8] sm:$0xff]
  %v5292 = vld [vmem:[%s2 + $0xc0] sm:$0xff]
  %v5293 = vld [vmem:[%s2 + $0xc8] sm:$0xff]
  %v5294 = vld [vmem:[%s2 + $0xd0] sm:$0xff]
  %v5295 = vld [vmem:[%s2 + $0xd8] sm:$0xff]
  %v5296 = vld [vmem:[%s2 + $0xe0] sm:$0xff]
  %v5297 = vld [vmem:[%s2 + $0xe8] sm:$0xff]
  %v5298 = vld [vmem:[%s2 + $0xf0] sm:$0xff]
  %v5299 = vld [vmem:[%s2 + $0xf8] sm:$0xff]
  %v5300 = vld [vmem:[%s2 + $0x100] sm:$0xff]
  %v5301 = vld [vmem:[%s2 + $0x108] sm:$0xff]
  %v5302 = vld [vmem:[%s2 + $0x110] sm:$0xff]
  %v5303 = vld [vmem:[%s2 + $0x118] sm:$0xff]
  %v5304 = vld [vmem:[%s2 + $0x120] sm:$0xff]
  %v5305 = vld [vmem:[%s2 + $0x128] sm:$0xff]
  %v5306 = vld [vmem:[%s2 + $0x130] sm:$0xff]
  %v5307 = vld [vmem:[%s2 + $0x138] sm:$0xff]
  %v5308 = vld [vmem:[%s2 + $0x140] sm:$0xff]
  %v5309 = vld [vmem:[%s2 + $0x148] sm:$0xff]
  %v5310 = vld [vmem:[%s2 + $0x150] sm:$0xff]
  %v5311 = vld [vmem:[%s2 + $0x158] sm:$0xff]
  %v5312 = vld [vmem:[%s2 + $0x160] sm:$0xff]
  %v5313 = vld [vmem:[%s2 + $0x168] sm:$0xff]
  %v5314 = vld [vmem:[%s2 + $0x170] sm:$0xff]
  %v5315 = vld [vmem:[%s2 + $0x178] sm:$0xff]
  %v5316 = vld [vmem:[%s2 + $0x180] sm:$0xff]
  %v5317 = vld [vmem:[%s2 + $0x188] sm:$0xff]
  %v5318 = vld [vmem:[%s2 + $0x190] sm:$0xff]
  %v5319 = vld [vmem:[%s2 + $0x198] sm:$0xff]
  %v5320 = vld [vmem:[%s2 + $0x1a0] sm:$0xff]
  %v5321 = vld [vmem:[%s2 + $0x1a8] sm:$0xff]
  %v5322 = vld [vmem:[%s2 + $0x1b0] sm:$0xff]
  %v5323 = vld [vmem:[%s2 + $0x1b8] sm:$0xff]
  %v5324 = vld [vmem:[%s2 + $0x1c0] sm:$0xff]
  %v5325 = vld [vmem:[%s2 + $0x1c8] sm:$0xff]
  %v5326 = vld [vmem:[%s2 + $0x1d0] sm:$0xff]
  %v5327 = vld [vmem:[%s2 + $0x1d8] sm:$0xff]
  %v5328 = vld [vmem:[%s2 + $0x1e0] sm:$0xff]
  %v5329 = vld [vmem:[%s2 + $0x1e8] sm:$0xff]
  %v5330 = vld [vmem:[%s2 + $0x1f0] sm:$0xff]
  %v5331 = vld [vmem:[%s2 + $0x1f8] sm:$0xff]
  %5332 = vmatprep.subr.mxu0 %v5269
  %5333 = vmatpush1.msra.mxu0 %v5268
  %5334 = vmatprep.subr.mxu0 %v5273
  %5335 = vmatpush1.msra.mxu0 %v5272
  %5336 = vmatprep.subr.mxu0 %v5277
  %5337 = vmatpush1.msra.mxu0 %v5276
  %5338 = vmatprep.subr.mxu0 %v5281
  %5339 = vmatpush1.msra.mxu0 %v5280
  %5340 = vmatprep.subr.mxu0 %v5285
  %5341 = vmatpush1.msra.mxu0 %v5284
  %5342 = vmatprep.subr.mxu0 %v5289
  %5343 = vmatpush1.msra.mxu0 %v5288
  %5344 = vmatprep.subr.mxu0 %v5293
  %5345 = vmatpush1.msra.mxu0 %v5292
  %5346 = vmatprep.subr.mxu0 %v5297
  %5347 = vmatpush1.msra.mxu0 %v5296
  %5348 = vmatprep.subr.mxu0 %v5301
  %5349 = vmatpush1.msra.mxu0 %v5300
  %5350 = vmatprep.subr.mxu0 %v5305
  %5351 = vmatpush1.msra.mxu0 %v5304
  %5352 = vmatprep.subr.mxu0 %v5309
  %5353 = vmatpush1.msra.mxu0 %v5308
  %5354 = vmatprep.subr.mxu0 %v5313
  %5355 = vmatpush1.msra.mxu0 %v5312
  %5356 = vmatprep.subr.mxu0 %v5317
  %5357 = vmatpush1.msra.mxu0 %v5316
  %5358 = vmatprep.subr.mxu0 %v5321
  %5359 = vmatpush1.msra.mxu0 %v5320
  %5360 = vmatprep.subr.mxu0 %v5325
  %5361 = vmatpush1.msra.mxu0 %v5324
  %5362 = vmatprep.subr.mxu0 %v5329
  %5363 = vmatpush1.msra.mxu0 %v5328
  %5364 = vmatprep.subr.mxu0 0.0
  %5365 = vmatpush1.msra.mxu0 0.0
  %5366 = vmatprep.subr.mxu0 0.0
  %5367 = vmatpush1.msra.mxu0 0.0
  %5368 = vmatprep.subr.mxu0 0.0
  %5369 = vmatpush1.msra.mxu0 0.0
  %5370 = vmatprep.subr.mxu0 0.0
  %5371 = vmatpush1.msra.mxu0 0.0
  %5372 = vmatprep.subr.mxu0 0.0
  %5373 = vmatpush1.msra.mxu0 0.0
  %5374 = vmatprep.subr.mxu0 0.0
  %5375 = vmatpush1.msra.mxu0 0.0
  %5376 = vmatprep.subr.mxu0 0.0
  %5377 = vmatpush1.msra.mxu0 0.0
  %5378 = vmatprep.subr.mxu0 0.0
  %5379 = vmatpush1.msra.mxu0 0.0
  %5380 = vmatprep.subr.mxu0 0.0
  %5381 = vmatpush1.msra.mxu0 0.0
  %5382 = vmatprep.subr.mxu0 0.0
  %5383 = vmatpush1.msra.mxu0 0.0
  %5384 = vmatprep.subr.mxu0 0.0
  %5385 = vmatpush1.msra.mxu0 0.0
  %5386 = vmatprep.subr.mxu0 0.0
  %5387 = vmatpush1.msra.mxu0 0.0
  %5388 = vmatprep.subr.mxu0 0.0
  %5389 = vmatpush1.msra.mxu0 0.0
  %5390 = vmatprep.subr.mxu0 0.0
  %5391 = vmatpush1.msra.mxu0 0.0
  %5392 = vmatprep.subr.mxu0 0.0
  %5393 = vmatpush1.msra.mxu0 0.0
  %5394 = vmatprep.subr.mxu0 0.0
  %5395 = vmatpush1.msra.mxu0 0.0
  %5396 = vmatprep.mubr.f32.mxu0 0.0
  %5397 = vmatmul.mubr.f32.gmra.mrb[0].mxu0 %v4968
  %v5398 = vpop.f32.mrb[0].mxu0
  %v5399 = vadd.f32 0.0, %v5398
  %v5400 = vpop.f32.mrb[0].mxu0
  %v5401 = vadd.f32 0.0, %v5400
  %5402 = vdwg.mxu0
  %5403 = vmatprep.subr.mxu0 %v5271
  %5404 = vmatpush1.msra.mxu0 %v5270
  %5405 = vmatprep.subr.mxu0 %v5275
  %5406 = vmatpush1.msra.mxu0 %v5274
  %5407 = vmatprep.subr.mxu0 %v5279
  %5408 = vmatpush1.msra.mxu0 %v5278
  %5409 = vmatprep.subr.mxu0 %v5283
  %5410 = vmatpush1.msra.mxu0 %v5282
  %5411 = vmatprep.subr.mxu0 %v5287
  %5412 = vmatpush1.msra.mxu0 %v5286
  %5413 = vmatprep.subr.mxu0 %v5291
  %5414 = vmatpush1.msra.mxu0 %v5290
  %5415 = vmatprep.subr.mxu0 %v5295
  %5416 = vmatpush1.msra.mxu0 %v5294
  %5417 = vmatprep.subr.mxu0 %v5299
  %5418 = vmatpush1.msra.mxu0 %v5298
  %5419 = vmatprep.subr.mxu0 %v5303
  %5420 = vmatpush1.msra.mxu0 %v5302
  %5421 = vmatprep.subr.mxu0 %v5307
  %5422 = vmatpush1.msra.mxu0 %v5306
  %5423 = vmatprep.subr.mxu0 %v5311
  %5424 = vmatpush1.msra.mxu0 %v5310
  %5425 = vmatprep.subr.mxu0 %v5315
  %5426 = vmatpush1.msra.mxu0 %v5314
  %5427 = vmatprep.subr.mxu0 %v5319
  %5428 = vmatpush1.msra.mxu0 %v5318
  %5429 = vmatprep.subr.mxu0 %v5323
  %5430 = vmatpush1.msra.mxu0 %v5322
  %5431 = vmatprep.subr.mxu0 %v5327
  %5432 = vmatpush1.msra.mxu0 %v5326
  %5433 = vmatprep.subr.mxu0 %v5331
  %5434 = vmatpush1.msra.mxu0 %v5330
  %5435 = vmatprep.subr.mxu0 0.0
  %5436 = vmatpush1.msra.mxu0 0.0
  %5437 = vmatprep.subr.mxu0 0.0
  %5438 = vmatpush1.msra.mxu0 0.0
  %5439 = vmatprep.subr.mxu0 0.0
  %5440 = vmatpush1.msra.mxu0 0.0
  %5441 = vmatprep.subr.mxu0 0.0
  %5442 = vmatpush1.msra.mxu0 0.0
  %5443 = vmatprep.subr.mxu0 0.0
  %5444 = vmatpush1.msra.mxu0 0.0
  %5445 = vmatprep.subr.mxu0 0.0
  %5446 = vmatpush1.msra.mxu0 0.0
  %5447 = vmatprep.subr.mxu0 0.0
  %5448 = vmatpush1.msra.mxu0 0.0
  %5449 = vmatprep.subr.mxu0 0.0
  %5450 = vmatpush1.msra.mxu0 0.0
  %5451 = vmatprep.subr.mxu0 0.0
  %5452 = vmatpush1.msra.mxu0 0.0
  %5453 = vmatprep.subr.mxu0 0.0
  %5454 = vmatpush1.msra.mxu0 0.0
  %5455 = vmatprep.subr.mxu0 0.0
  %5456 = vmatpush1.msra.mxu0 0.0
  %5457 = vmatprep.subr.mxu0 0.0
  %5458 = vmatpush1.msra.mxu0 0.0
  %5459 = vmatprep.subr.mxu0 0.0
  %5460 = vmatpush1.msra.mxu0 0.0
  %5461 = vmatprep.subr.mxu0 0.0
  %5462 = vmatpush1.msra.mxu0 0.0
  %5463 = vmatprep.subr.mxu0 0.0
  %5464 = vmatpush1.msra.mxu0 0.0
  %5465 = vmatprep.subr.mxu0 0.0
  %5466 = vmatpush1.msra.mxu0 0.0
  %5467 = vmatprep.mubr.f32.mxu0 0.0
  %5468 = vmatmul.mubr.f32.gmra.mrb[0].mxu0 %v4968
  %v5469 = vpop.f32.mrb[0].mxu0
  %v5470 = vadd.f32 0.0, %v5469
  %v5471 = vpop.f32.mrb[0].mxu0
  %v5472 = vadd.f32 0.0, %v5471
  %5473 = vdwg.mxu0
  %v5474 = vadd.f32 %v5264, %v5399
  %v5475 = vadd.f32 %v5265, %v5401
  %v5476 = vadd.f32 %v5266, %v5470
  %v5477 = vadd.f32 %v5267, %v5472
  %v5478 = vxor.u32 %v5474, 2147483648
  %v5479 = vxor.u32 %v5475, 2147483648
  %v5480 = vmul.f32 %v5478, 1.442695
  %v5481 = vpow.pop %v5480
  %v5482 = vmul.f32 %v5479, 1.442695
  %v5483 = vpow.pop %v5482
  %v5484 = vadd.f32 %v5481, 1.0
  %v5485 = vadd.f32 %v5483, 1.0
  %v5486 = vrcp.pop %v5484
  %v5487 = vmul.f32 1.0, %v5486
  %v5488 = vrcp.pop %v5485
  %v5489 = vmul.f32 1.0, %v5488
  %v5490 = vtanh.pop %v5476
  %v5491 = vxor.u32 %v5477, 2147483648
  %v5492 = vmul.f32 %v5491, 1.442695
  %v5493 = vpow.pop %v5492
  %v5494 = vadd.f32 %v5493, 1.0
  %v5495 = vrcp.pop %v5494
  %v5496 = vmul.f32 1.0, %v5495
  %v5497 = vmul.f32 %v5489, %v4966
  %v5498 = vmul.f32 %v5487, %v5490
  %v5499 = vadd.f32 %v5497, %v5498
  %v5500 = vtanh.pop %v5499
  %v5501 = vmul.f32 %v5496, %v5500
  %v5502 = vld [vmem:[%s4] sm:$0xff]
  %v5503 = vld [vmem:[%s4 + $0x8] sm:$0xff]
  %v5504 = vld [vmem:[%s4 + $0x10] sm:$0xff]
  %v5505 = vld [vmem:[%s4 + $0x18] sm:$0xff]
  %v5506 = vld [vmem:[%s4 + $0x20] sm:$0xff]
  %v5507 = vld [vmem:[%s4 + $0x28] sm:$0xff]
  %v5508 = vld [vmem:[%s4 + $0x30] sm:$0xff]
  %v5509 = vld [vmem:[%s4 + $0x38] sm:$0xff]
  %v5510 = vld [vmem:[%s4 + $0x40] sm:$0xff]
  %v5511 = vld [vmem:[%s4 + $0x48] sm:$0xff]
  %v5512 = vld [vmem:[%s4 + $0x50] sm:$0xff]
  %v5513 = vld [vmem:[%s4 + $0x58] sm:$0xff]
  %v5514 = vld [vmem:[%s4 + $0x60] sm:$0xff]
  %v5515 = vld [vmem:[%s4 + $0x68] sm:$0xff]
  %v5516 = vld [vmem:[%s4 + $0x70] sm:$0xff]
  %v5517 = vld [vmem:[%s4 + $0x78] sm:$0xff]
  %v5518 = vld [vmem:[%s4 + $0x80] sm:$0xff]
  %v5519 = vld [vmem:[%s4 + $0x88] sm:$0xff]
  %v5520 = vld [vmem:[%s4 + $0x90] sm:$0xff]
  %v5521 = vld [vmem:[%s4 + $0x98] sm:$0xff]
  %v5522 = vld [vmem:[%s4 + $0xa0] sm:$0xff]
  %v5523 = vld [vmem:[%s4 + $0xa8] sm:$0xff]
  %v5524 = vld [vmem:[%s4 + $0xb0] sm:$0xff]
  %v5525 = vld [vmem:[%s4 + $0xb8] sm:$0xff]
  %v5526 = vld [vmem:[%s4 + $0xc0] sm:$0xff]
  %v5527 = vld [vmem:[%s4 + $0xc8] sm:$0xff]
  %v5528 = vld [vmem:[%s4 + $0xd0] sm:$0xff]
  %v5529 = vld [vmem:[%s4 + $0xd8] sm:$0xff]
  %v5530 = vld [vmem:[%s4 + $0xe0] sm:$0xff]
  %v5531 = vld [vmem:[%s4 + $0xe8] sm:$0xff]
  %v5532 = vld [vmem:[%s4 + $0xf0] sm:$0xff]
  %v5533 = vld [vmem:[%s4 + $0xf8] sm:$0xff]
  %v5534 = vld [vmem:[%s4 + $0x100] sm:$0xff]
  %v5535 = vld [vmem:[%s4 + $0x108] sm:$0xff]
  %v5536 = vld [vmem:[%s4 + $0x110] sm:$0xff]
  %v5537 = vld [vmem:[%s4 + $0x118] sm:$0xff]
  %v5538 = vld [vmem:[%s4 + $0x120] sm:$0xff]
  %v5539 = vld [vmem:[%s4 + $0x128] sm:$0xff]
  %v5540 = vld [vmem:[%s4 + $0x130] sm:$0xff]
  %v5541 = vld [vmem:[%s4 + $0x138] sm:$0xff]
  %v5542 = vld [vmem:[%s4 + $0x140] sm:$0xff]
  %v5543 = vld [vmem:[%s4 + $0x148] sm:$0xff]
  %v5544 = vld [vmem:[%s4 + $0x150] sm:$0xff]
  %v5545 = vld [vmem:[%s4 + $0x158] sm:$0xff]
  %v5546 = vld [vmem:[%s4 + $0x160] sm:$0xff]
  %v5547 = vld [vmem:[%s4 + $0x168] sm:$0xff]
  %v5548 = vld [vmem:[%s4 + $0x170] sm:$0xff]
  %v5549 = vld [vmem:[%s4 + $0x178] sm:$0xff]
  %v5550 = vld [vmem:[%s4 + $0x180] sm:$0xff]
  %v5551 = vld [vmem:[%s4 + $0x188] sm:$0xff]
  %v5552 = vld [vmem:[%s4 + $0x190] sm:$0xff]
  %v5553 = vld [vmem:[%s4 + $0x198] sm:$0xff]
  %v5554 = vld [vmem:[%s4 + $0x1a0] sm:$0xff]
  %v5555 = vld [vmem:[%s4 + $0x1a8] sm:$0xff]
  %v5556 = vld [vmem:[%s4 + $0x1b0] sm:$0xff]
  %v5557 = vld [vmem:[%s4 + $0x1b8] sm:$0xff]
  %v5558 = vld [vmem:[%s4 + $0x1c0] sm:$0xff]
  %v5559 = vld [vmem:[%s4 + $0x1c8] sm:$0xff]
  %v5560 = vld [vmem:[%s4 + $0x1d0] sm:$0xff]
  %v5561 = vld [vmem:[%s4 + $0x1d8] sm:$0xff]
  %v5562 = vld [vmem:[%s4 + $0x1e0] sm:$0xff]
  %v5563 = vld [vmem:[%s4 + $0x1e8] sm:$0xff]
  %v5564 = vld [vmem:[%s4 + $0x1f0] sm:$0xff]
  %v5565 = vld [vmem:[%s4 + $0x1f8] sm:$0xff]
  %v5566 = vld [vmem:[%s4 + $0x200] sm:$0xff]
  %v5567 = vld [vmem:[%s4 + $0x208] sm:$0xff]
  %v5568 = vld [vmem:[%s4 + $0x210] sm:$0xff]
  %v5569 = vld [vmem:[%s4 + $0x218] sm:$0xff]
  %v5570 = vld [vmem:[%s4 + $0x220] sm:$0xff]
  %v5571 = vld [vmem:[%s4 + $0x228] sm:$0xff]
  %v5572 = vld [vmem:[%s4 + $0x230] sm:$0xff]
  %v5573 = vld [vmem:[%s4 + $0x238] sm:$0xff]
  %v5574 = vld [vmem:[%s4 + $0x240] sm:$0xff]
  %v5575 = vld [vmem:[%s4 + $0x248] sm:$0xff]
  %v5576 = vld [vmem:[%s4 + $0x250] sm:$0xff]
  %v5577 = vld [vmem:[%s4 + $0x258] sm:$0xff]
  %v5578 = vld [vmem:[%s4 + $0x260] sm:$0xff]
  %v5579 = vld [vmem:[%s4 + $0x268] sm:$0xff]
  %v5580 = vld [vmem:[%s4 + $0x270] sm:$0xff]
  %v5581 = vld [vmem:[%s4 + $0x278] sm:$0xff]
  %v5582 = vld [vmem:[%s4 + $0x280] sm:$0xff]
  %v5583 = vld [vmem:[%s4 + $0x288] sm:$0xff]
  %v5584 = vld [vmem:[%s4 + $0x290] sm:$0xff]
  %v5585 = vld [vmem:[%s4 + $0x298] sm:$0xff]
  %v5586 = vld [vmem:[%s4 + $0x2a0] sm:$0xff]
  %v5587 = vld [vmem:[%s4 + $0x2a8] sm:$0xff]
  %v5588 = vld [vmem:[%s4 + $0x2b0] sm:$0xff]
  %v5589 = vld [vmem:[%s4 + $0x2b8] sm:$0xff]
  %v5590 = vld [vmem:[%s4 + $0x2c0] sm:$0xff]
  %v5591 = vld [vmem:[%s4 + $0x2c8] sm:$0xff]
  %v5592 = vld [vmem:[%s4 + $0x2d0] sm:$0xff]
  %v5593 = vld [vmem:[%s4 + $0x2d8] sm:$0xff]
  %v5594 = vld [vmem:[%s4 + $0x2e0] sm:$0xff]
  %v5595 = vld [vmem:[%s4 + $0x2e8] sm:$0xff]
  %v5596 = vld [vmem:[%s4 + $0x2f0] sm:$0xff]
  %v5597 = vld [vmem:[%s4 + $0x2f8] sm:$0xff]
  %v5598 = vld [vmem:[%s4 + $0x300] sm:$0xff]
  %v5599 = vld [vmem:[%s4 + $0x308] sm:$0xff]
  %v5600 = vld [vmem:[%s4 + $0x310] sm:$0xff]
  %v5601 = vld [vmem:[%s4 + $0x318] sm:$0xff]
  %v5602 = vld [vmem:[%s4 + $0x320] sm:$0xff]
  %v5603 = vld [vmem:[%s4 + $0x328] sm:$0xff]
  %v5604 = vld [vmem:[%s4 + $0x330] sm:$0xff]
  %v5605 = vld [vmem:[%s4 + $0x338] sm:$0xff]
  %v5606 = vld [vmem:[%s4 + $0x340] sm:$0xff]
  %v5607 = vld [vmem:[%s4 + $0x348] sm:$0xff]
  %v5608 = vld [vmem:[%s4 + $0x350] sm:$0xff]
  %v5609 = vld [vmem:[%s4 + $0x358] sm:$0xff]
  %v5610 = vld [vmem:[%s4 + $0x360] sm:$0xff]
  %v5611 = vld [vmem:[%s4 + $0x368] sm:$0xff]
  %v5612 = vld [vmem:[%s4 + $0x370] sm:$0xff]
  %v5613 = vld [vmem:[%s4 + $0x378] sm:$0xff]
  %v5614 = vld [vmem:[%s4 + $0x380] sm:$0xff]
  %v5615 = vld [vmem:[%s4 + $0x388] sm:$0xff]
  %v5616 = vld [vmem:[%s4 + $0x390] sm:$0xff]
  %v5617 = vld [vmem:[%s4 + $0x398] sm:$0xff]
  %v5618 = vld [vmem:[%s4 + $0x3a0] sm:$0xff]
  %v5619 = vld [vmem:[%s4 + $0x3a8] sm:$0xff]
  %v5620 = vld [vmem:[%s4 + $0x3b0] sm:$0xff]
  %v5621 = vld [vmem:[%s4 + $0x3b8] sm:$0xff]
  %v5622 = vld [vmem:[%s4 + $0x3c0] sm:$0xff]
  %v5623 = vld [vmem:[%s4 + $0x3c8] sm:$0xff]
  %v5624 = vld [vmem:[%s4 + $0x3d0] sm:$0xff]
  %v5625 = vld [vmem:[%s4 + $0x3d8] sm:$0xff]
  %v5626 = vld [vmem:[%s4 + $0x3e0] sm:$0xff]
  %v5627 = vld [vmem:[%s4 + $0x3e8] sm:$0xff]
  %v5628 = vld [vmem:[%s4 + $0x3f0] sm:$0xff]
  %v5629 = vld [vmem:[%s4 + $0x3f8] sm:$0xff]
  %5630 = vmatprep.subr.mxu0 %v5503
  %5631 = vmatpush1.msra.mxu0 %v5502
  %5632 = vmatprep.subr.mxu0 %v5507
  %5633 = vmatpush1.msra.mxu0 %v5506
  %5634 = vmatprep.subr.mxu0 %v5511
  %5635 = vmatpush1.msra.mxu0 %v5510
  %5636 = vmatprep.subr.mxu0 %v5515
  %5637 = vmatpush1.msra.mxu0 %v5514
  %5638 = vmatprep.subr.mxu0 %v5519
  %5639 = vmatpush1.msra.mxu0 %v5518
  %5640 = vmatprep.subr.mxu0 %v5523
  %5641 = vmatpush1.msra.mxu0 %v5522
  %5642 = vmatprep.subr.mxu0 %v5527
  %5643 = vmatpush1.msra.mxu0 %v5526
  %5644 = vmatprep.subr.mxu0 %v5531
  %5645 = vmatpush1.msra.mxu0 %v5530
  %5646 = vmatprep.subr.mxu0 %v5535
  %5647 = vmatpush1.msra.mxu0 %v5534
  %5648 = vmatprep.subr.mxu0 %v5539
  %5649 = vmatpush1.msra.mxu0 %v5538
  %5650 = vmatprep.subr.mxu0 %v5543
  %5651 = vmatpush1.msra.mxu0 %v5542
  %5652 = vmatprep.subr.mxu0 %v5547
  %5653 = vmatpush1.msra.mxu0 %v5546
  %5654 = vmatprep.subr.mxu0 %v5551
  %5655 = vmatpush1.msra.mxu0 %v5550
  %5656 = vmatprep.subr.mxu0 %v5555
  %5657 = vmatpush1.msra.mxu0 %v5554
  %5658 = vmatprep.subr.mxu0 %v5559
  %5659 = vmatpush1.msra.mxu0 %v5558
  %5660 = vmatprep.subr.mxu0 %v5563
  %5661 = vmatpush1.msra.mxu0 %v5562
  %5662 = vmatprep.subr.mxu0 %v5567
  %5663 = vmatpush1.msra.mxu0 %v5566
  %5664 = vmatprep.subr.mxu0 %v5571
  %5665 = vmatpush1.msra.mxu0 %v5570
  %5666 = vmatprep.subr.mxu0 %v5575
  %5667 = vmatpush1.msra.mxu0 %v5574
  %5668 = vmatprep.subr.mxu0 %v5579
  %5669 = vmatpush1.msra.mxu0 %v5578
  %5670 = vmatprep.subr.mxu0 %v5583
  %5671 = vmatpush1.msra.mxu0 %v5582
  %5672 = vmatprep.subr.mxu0 %v5587
  %5673 = vmatpush1.msra.mxu0 %v5586
  %5674 = vmatprep.subr.mxu0 %v5591
  %5675 = vmatpush1.msra.mxu0 %v5590
  %5676 = vmatprep.subr.mxu0 %v5595
  %5677 = vmatpush1.msra.mxu0 %v5594
  %5678 = vmatprep.subr.mxu0 %v5599
  %5679 = vmatpush1.msra.mxu0 %v5598
  %5680 = vmatprep.subr.mxu0 %v5603
  %5681 = vmatpush1.msra.mxu0 %v5602
  %5682 = vmatprep.subr.mxu0 %v5607
  %5683 = vmatpush1.msra.mxu0 %v5606
  %5684 = vmatprep.subr.mxu0 %v5611
  %5685 = vmatpush1.msra.mxu0 %v5610
  %5686 = vmatprep.subr.mxu0 %v5615
  %5687 = vmatpush1.msra.mxu0 %v5614
  %5688 = vmatprep.subr.mxu0 %v5619
  %5689 = vmatpush1.msra.mxu0 %v5618
  %5690 = vmatprep.subr.mxu0 %v5623
  %5691 = vmatpush1.msra.mxu0 %v5622
  %5692 = vmatprep.subr.mxu0 %v5627
  %5693 = vmatpush1.msra.mxu0 %v5626
  %5694 = vmatprep.mubr.f32.mxu0 %v5262
  %5695 = vmatmul.mubr.f32.gmra.mrb[0].mxu0 %v5501
  %v5696 = vpop.f32.mrb[0].mxu0
  %v5697 = vadd.f32 %v816, %v5696
  %v5698 = vpop.f32.mrb[0].mxu0
  %v5699 = vadd.f32 %v820, %v5698
  %5700 = vdwg.mxu0
  %5701 = vmatprep.subr.mxu0 %v5505
  %5702 = vmatpush1.msra.mxu0 %v5504
  %5703 = vmatprep.subr.mxu0 %v5509
  %5704 = vmatpush1.msra.mxu0 %v5508
  %5705 = vmatprep.subr.mxu0 %v5513
  %5706 = vmatpush1.msra.mxu0 %v5512
  %5707 = vmatprep.subr.mxu0 %v5517
  %5708 = vmatpush1.msra.mxu0 %v5516
  %5709 = vmatprep.subr.mxu0 %v5521
  %5710 = vmatpush1.msra.mxu0 %v5520
  %5711 = vmatprep.subr.mxu0 %v5525
  %5712 = vmatpush1.msra.mxu0 %v5524
  %5713 = vmatprep.subr.mxu0 %v5529
  %5714 = vmatpush1.msra.mxu0 %v5528
  %5715 = vmatprep.subr.mxu0 %v5533
  %5716 = vmatpush1.msra.mxu0 %v5532
  %5717 = vmatprep.subr.mxu0 %v5537
  %5718 = vmatpush1.msra.mxu0 %v5536
  %5719 = vmatprep.subr.mxu0 %v5541
  %5720 = vmatpush1.msra.mxu0 %v5540
  %5721 = vmatprep.subr.mxu0 %v5545
  %5722 = vmatpush1.msra.mxu0 %v5544
  %5723 = vmatprep.subr.mxu0 %v5549
  %5724 = vmatpush1.msra.mxu0 %v5548
  %5725 = vmatprep.subr.mxu0 %v5553
  %5726 = vmatpush1.msra.mxu0 %v5552
  %5727 = vmatprep.subr.mxu0 %v5557
  %5728 = vmatpush1.msra.mxu0 %v5556
  %5729 = vmatprep.subr.mxu0 %v5561
  %5730 = vmatpush1.msra.mxu0 %v5560
  %5731 = vmatprep.subr.mxu0 %v5565
  %5732 = vmatpush1.msra.mxu0 %v5564
  %5733 = vmatprep.subr.mxu0 %v5569
  %5734 = vmatpush1.msra.mxu0 %v5568
  %5735 = vmatprep.subr.mxu0 %v5573
  %5736 = vmatpush1.msra.mxu0 %v5572
  %5737 = vmatprep.subr.mxu0 %v5577
  %5738 = vmatpush1.msra.mxu0 %v5576
  %5739 = vmatprep.subr.mxu0 %v5581
  %5740 = vmatpush1.msra.mxu0 %v5580
  %5741 = vmatprep.subr.mxu0 %v5585
  %5742 = vmatpush1.msra.mxu0 %v5584
  %5743 = vmatprep.subr.mxu0 %v5589
  %5744 = vmatpush1.msra.mxu0 %v5588
  %5745 = vmatprep.subr.mxu0 %v5593
  %5746 = vmatpush1.msra.mxu0 %v5592
  %5747 = vmatprep.subr.mxu0 %v5597
  %5748 = vmatpush1.msra.mxu0 %v5596
  %5749 = vmatprep.subr.mxu0 %v5601
  %5750 = vmatpush1.msra.mxu0 %v5600
  %5751 = vmatprep.subr.mxu0 %v5605
  %5752 = vmatpush1.msra.mxu0 %v5604
  %5753 = vmatprep.subr.mxu0 %v5609
  %5754 = vmatpush1.msra.mxu0 %v5608
  %5755 = vmatprep.subr.mxu0 %v5613
  %5756 = vmatpush1.msra.mxu0 %v5612
  %5757 = vmatprep.subr.mxu0 %v5617
  %5758 = vmatpush1.msra.mxu0 %v5616
  %5759 = vmatprep.subr.mxu0 %v5621
  %5760 = vmatpush1.msra.mxu0 %v5620
  %5761 = vmatprep.subr.mxu0 %v5625
  %5762 = vmatpush1.msra.mxu0 %v5624
  %5763 = vmatprep.subr.mxu0 %v5629
  %5764 = vmatpush1.msra.mxu0 %v5628
  %5765 = vmatprep.mubr.f32.mxu0 %v5262
  %5766 = vmatmul.mubr.f32.gmra.mrb[0].mxu0 %v5501
  %v5767 = vpop.f32.mrb[0].mxu0
  %v5768 = vadd.f32 %v824, %v5767
  %v5769 = vpop.f32.mrb[0].mxu0
  %v5770 = vadd.f32 %v828, %v5769
  %5771 = vdwg.mxu0
  %v5772 = vxor.u32 %v5697, 2147483648
  %v5773 = vxor.u32 %v5699, 2147483648
  %v5774 = vmul.f32 %v5772, 1.442695
  %v5775 = vpow.pop %v5774
  %v5776 = vmul.f32 %v5773, 1.442695
  %v5777 = vpow.pop %v5776
  %v5778 = vadd.f32 %v5775, 1.0
  %v5779 = vadd.f32 %v5777, 1.0
  %v5780 = vrcp.pop %v5778
  %v5781 = vmul.f32 1.0, %v5780
  %v5782 = vrcp.pop %v5779
  %v5783 = vmul.f32 1.0, %v5782
  %v5784 = vtanh.pop %v5768
  %v5785 = vxor.u32 %v5770, 2147483648
  %v5786 = vmul.f32 %v5785, 1.442695
  %v5787 = vpow.pop %v5786
  %v5788 = vadd.f32 %v5787, 1.0
  %v5789 = vrcp.pop %v5788
  %v5790 = vmul.f32 1.0, %v5789
  %v5791 = vmul.f32 %v5783, %v5260
  %v5792 = vmul.f32 %v5781, %v5784
  %v5793 = vadd.f32 %v5791, %v5792
  %v5794 = vtanh.pop %v5793
  %v5795 = vmul.f32 %v5790, %v5794
  %5796 = vst [vmem:[#allocation3 + $0x48] sm:$0xff] %v5795
  %v5797 = vld [vmem:[#allocation2 + $0x140] sm:$0xff]
  %v5798 = vld [vmem:[#allocation2 + $0x148] sm:$0xff]
  %v5799 = vld [vmem:[#allocation2 + $0x150] sm:$0xff]
  %v5800 = vld [vmem:[#allocation2 + $0x158] sm:$0xff]
  %v5801 = vld [vmem:[%s2] sm:$0xff]
  %v5802 = vld [vmem:[%s2 + $0x8] sm:$0xff]
  %v5803 = vld [vmem:[%s2 + $0x10] sm:$0xff]
  %v5804 = vld [vmem:[%s2 + $0x18] sm:$0xff]
  %v5805 = vld [vmem:[%s2 + $0x20] sm:$0xff]
  %v5806 = vld [vmem:[%s2 + $0x28] sm:$0xff]
  %v5807 = vld [vmem:[%s2 + $0x30] sm:$0xff]
  %v5808 = vld [vmem:[%s2 + $0x38] sm:$0xff]
  %v5809 = vld [vmem:[%s2 + $0x40] sm:$0xff]
  %v5810 = vld [vmem:[%s2 + $0x48] sm:$0xff]
  %v5811 = vld [vmem:[%s2 + $0x50] sm:$0xff]
  %v5812 = vld [vmem:[%s2 + $0x58] sm:$0xff]
  %v5813 = vld [vmem:[%s2 + $0x60] sm:$0xff]
  %v5814 = vld [vmem:[%s2 + $0x68] sm:$0xff]
  %v5815 = vld [vmem:[%s2 + $0x70] sm:$0xff]
  %v5816 = vld [vmem:[%s2 + $0x78] sm:$0xff]
  %v5817 = vld [vmem:[%s2 + $0x80] sm:$0xff]
  %v5818 = vld [vmem:[%s2 + $0x88] sm:$0xff]
  %v5819 = vld [vmem:[%s2 + $0x90] sm:$0xff]
  %v5820 = vld [vmem:[%s2 + $0x98] sm:$0xff]
  %v5821 = vld [vmem:[%s2 + $0xa0] sm:$0xff]
  %v5822 = vld [vmem:[%s2 + $0xa8] sm:$0xff]
  %v5823 = vld [vmem:[%s2 + $0xb0] sm:$0xff]
  %v5824 = vld [vmem:[%s2 + $0xb8] sm:$0xff]
  %v5825 = vld [vmem:[%s2 + $0xc0] sm:$0xff]
  %v5826 = vld [vmem:[%s2 + $0xc8] sm:$0xff]
  %v5827 = vld [vmem:[%s2 + $0xd0] sm:$0xff]
  %v5828 = vld [vmem:[%s2 + $0xd8] sm:$0xff]
  %v5829 = vld [vmem:[%s2 + $0xe0] sm:$0xff]
  %v5830 = vld [vmem:[%s2 + $0xe8] sm:$0xff]
  %v5831 = vld [vmem:[%s2 + $0xf0] sm:$0xff]
  %v5832 = vld [vmem:[%s2 + $0xf8] sm:$0xff]
  %v5833 = vld [vmem:[%s2 + $0x100] sm:$0xff]
  %v5834 = vld [vmem:[%s2 + $0x108] sm:$0xff]
  %v5835 = vld [vmem:[%s2 + $0x110] sm:$0xff]
  %v5836 = vld [vmem:[%s2 + $0x118] sm:$0xff]
  %v5837 = vld [vmem:[%s2 + $0x120] sm:$0xff]
  %v5838 = vld [vmem:[%s2 + $0x128] sm:$0xff]
  %v5839 = vld [vmem:[%s2 + $0x130] sm:$0xff]
  %v5840 = vld [vmem:[%s2 + $0x138] sm:$0xff]
  %v5841 = vld [vmem:[%s2 + $0x140] sm:$0xff]
  %v5842 = vld [vmem:[%s2 + $0x148] sm:$0xff]
  %v5843 = vld [vmem:[%s2 + $0x150] sm:$0xff]
  %v5844 = vld [vmem:[%s2 + $0x158] sm:$0xff]
  %v5845 = vld [vmem:[%s2 + $0x160] sm:$0xff]
  %v5846 = vld [vmem:[%s2 + $0x168] sm:$0xff]
  %v5847 = vld [vmem:[%s2 + $0x170] sm:$0xff]
  %v5848 = vld [vmem:[%s2 + $0x178] sm:$0xff]
  %v5849 = vld [vmem:[%s2 + $0x180] sm:$0xff]
  %v5850 = vld [vmem:[%s2 + $0x188] sm:$0xff]
  %v5851 = vld [vmem:[%s2 + $0x190] sm:$0xff]
  %v5852 = vld [vmem:[%s2 + $0x198] sm:$0xff]
  %v5853 = vld [vmem:[%s2 + $0x1a0] sm:$0xff]
  %v5854 = vld [vmem:[%s2 + $0x1a8] sm:$0xff]
  %v5855 = vld [vmem:[%s2 + $0x1b0] sm:$0xff]
  %v5856 = vld [vmem:[%s2 + $0x1b8] sm:$0xff]
  %v5857 = vld [vmem:[%s2 + $0x1c0] sm:$0xff]
  %v5858 = vld [vmem:[%s2 + $0x1c8] sm:$0xff]
  %v5859 = vld [vmem:[%s2 + $0x1d0] sm:$0xff]
  %v5860 = vld [vmem:[%s2 + $0x1d8] sm:$0xff]
  %v5861 = vld [vmem:[%s2 + $0x1e0] sm:$0xff]
  %v5862 = vld [vmem:[%s2 + $0x1e8] sm:$0xff]
  %v5863 = vld [vmem:[%s2 + $0x1f0] sm:$0xff]
  %v5864 = vld [vmem:[%s2 + $0x1f8] sm:$0xff]
  %5865 = vmatprep.subr.mxu0 %v5802
  %5866 = vmatpush1.msra.mxu0 %v5801
  %5867 = vmatprep.subr.mxu0 %v5806
  %5868 = vmatpush1.msra.mxu0 %v5805
  %5869 = vmatprep.subr.mxu0 %v5810
  %5870 = vmatpush1.msra.mxu0 %v5809
  %5871 = vmatprep.subr.mxu0 %v5814
  %5872 = vmatpush1.msra.mxu0 %v5813
  %5873 = vmatprep.subr.mxu0 %v5818
  %5874 = vmatpush1.msra.mxu0 %v5817
  %5875 = vmatprep.subr.mxu0 %v5822
  %5876 = vmatpush1.msra.mxu0 %v5821
  %5877 = vmatprep.subr.mxu0 %v5826
  %5878 = vmatpush1.msra.mxu0 %v5825
  %5879 = vmatprep.subr.mxu0 %v5830
  %5880 = vmatpush1.msra.mxu0 %v5829
  %5881 = vmatprep.subr.mxu0 %v5834
  %5882 = vmatpush1.msra.mxu0 %v5833
  %5883 = vmatprep.subr.mxu0 %v5838
  %5884 = vmatpush1.msra.mxu0 %v5837
  %5885 = vmatprep.subr.mxu0 %v5842
  %5886 = vmatpush1.msra.mxu0 %v5841
  %5887 = vmatprep.subr.mxu0 %v5846
  %5888 = vmatpush1.msra.mxu0 %v5845
  %5889 = vmatprep.subr.mxu0 %v5850
  %5890 = vmatpush1.msra.mxu0 %v5849
  %5891 = vmatprep.subr.mxu0 %v5854
  %5892 = vmatpush1.msra.mxu0 %v5853
  %5893 = vmatprep.subr.mxu0 %v5858
  %5894 = vmatpush1.msra.mxu0 %v5857
  %5895 = vmatprep.subr.mxu0 %v5862
  %5896 = vmatpush1.msra.mxu0 %v5861
  %5897 = vmatprep.subr.mxu0 0.0
  %5898 = vmatpush1.msra.mxu0 0.0
  %5899 = vmatprep.subr.mxu0 0.0
  %5900 = vmatpush1.msra.mxu0 0.0
  %5901 = vmatprep.subr.mxu0 0.0
  %5902 = vmatpush1.msra.mxu0 0.0
  %5903 = vmatprep.subr.mxu0 0.0
  %5904 = vmatpush1.msra.mxu0 0.0
  %5905 = vmatprep.subr.mxu0 0.0
  %5906 = vmatpush1.msra.mxu0 0.0
  %5907 = vmatprep.subr.mxu0 0.0
  %5908 = vmatpush1.msra.mxu0 0.0
  %5909 = vmatprep.subr.mxu0 0.0
  %5910 = vmatpush1.msra.mxu0 0.0
  %5911 = vmatprep.subr.mxu0 0.0
  %5912 = vmatpush1.msra.mxu0 0.0
  %5913 = vmatprep.subr.mxu0 0.0
  %5914 = vmatpush1.msra.mxu0 0.0
  %5915 = vmatprep.subr.mxu0 0.0
  %5916 = vmatpush1.msra.mxu0 0.0
  %5917 = vmatprep.subr.mxu0 0.0
  %5918 = vmatpush1.msra.mxu0 0.0
  %5919 = vmatprep.subr.mxu0 0.0
  %5920 = vmatpush1.msra.mxu0 0.0
  %5921 = vmatprep.subr.mxu0 0.0
  %5922 = vmatpush1.msra.mxu0 0.0
  %5923 = vmatprep.subr.mxu0 0.0
  %5924 = vmatpush1.msra.mxu0 0.0
  %5925 = vmatprep.subr.mxu0 0.0
  %5926 = vmatpush1.msra.mxu0 0.0
  %5927 = vmatprep.subr.mxu0 0.0
  %5928 = vmatpush1.msra.mxu0 0.0
  %5929 = vmatprep.mubr.f32.mxu0 0.0
  %5930 = vmatmul.mubr.f32.gmra.mrb[0].mxu0 %v5501
  %v5931 = vpop.f32.mrb[0].mxu0
  %v5932 = vadd.f32 0.0, %v5931
  %v5933 = vpop.f32.mrb[0].mxu0
  %v5934 = vadd.f32 0.0, %v5933
  %5935 = vdwg.mxu0
  %5936 = vmatprep.subr.mxu0 %v5804
  %5937 = vmatpush1.msra.mxu0 %v5803
  %5938 = vmatprep.subr.mxu0 %v5808
  %5939 = vmatpush1.msra.mxu0 %v5807
  %5940 = vmatprep.subr.mxu0 %v5812
  %5941 = vmatpush1.msra.mxu0 %v5811
  %5942 = vmatprep.subr.mxu0 %v5816
  %5943 = vmatpush1.msra.mxu0 %v5815
  %5944 = vmatprep.subr.mxu0 %v5820
  %5945 = vmatpush1.msra.mxu0 %v5819
  %5946 = vmatprep.subr.mxu0 %v5824
  %5947 = vmatpush1.msra.mxu0 %v5823
  %5948 = vmatprep.subr.mxu0 %v5828
  %5949 = vmatpush1.msra.mxu0 %v5827
  %5950 = vmatprep.subr.mxu0 %v5832
  %5951 = vmatpush1.msra.mxu0 %v5831
  %5952 = vmatprep.subr.mxu0 %v5836
  %5953 = vmatpush1.msra.mxu0 %v5835
  %5954 = vmatprep.subr.mxu0 %v5840
  %5955 = vmatpush1.msra.mxu0 %v5839
  %5956 = vmatprep.subr.mxu0 %v5844
  %5957 = vmatpush1.msra.mxu0 %v5843
  %5958 = vmatprep.subr.mxu0 %v5848
  %5959 = vmatpush1.msra.mxu0 %v5847
  %5960 = vmatprep.subr.mxu0 %v5852
  %5961 = vmatpush1.msra.mxu0 %v5851
  %5962 = vmatprep.subr.mxu0 %v5856
  %5963 = vmatpush1.msra.mxu0 %v5855
  %5964 = vmatprep.subr.mxu0 %v5860
  %5965 = vmatpush1.msra.mxu0 %v5859
  %5966 = vmatprep.subr.mxu0 %v5864
  %5967 = vmatpush1.msra.mxu0 %v5863
  %5968 = vmatprep.subr.mxu0 0.0
  %5969 = vmatpush1.msra.mxu0 0.0
  %5970 = vmatprep.subr.mxu0 0.0
  %5971 = vmatpush1.msra.mxu0 0.0
  %5972 = vmatprep.subr.mxu0 0.0
  %5973 = vmatpush1.msra.mxu0 0.0
  %5974 = vmatprep.subr.mxu0 0.0
  %5975 = vmatpush1.msra.mxu0 0.0
  %5976 = vmatprep.subr.mxu0 0.0
  %5977 = vmatpush1.msra.mxu0 0.0
  %5978 = vmatprep.subr.mxu0 0.0
  %5979 = vmatpush1.msra.mxu0 0.0
  %5980 = vmatprep.subr.mxu0 0.0
  %5981 = vmatpush1.msra.mxu0 0.0
  %5982 = vmatprep.subr.mxu0 0.0
  %5983 = vmatpush1.msra.mxu0 0.0
  %5984 = vmatprep.subr.mxu0 0.0
  %5985 = vmatpush1.msra.mxu0 0.0
  %5986 = vmatprep.subr.mxu0 0.0
  %5987 = vmatpush1.msra.mxu0 0.0
  %5988 = vmatprep.subr.mxu0 0.0
  %5989 = vmatpush1.msra.mxu0 0.0
  %5990 = vmatprep.subr.mxu0 0.0
  %5991 = vmatpush1.msra.mxu0 0.0
  %5992 = vmatprep.subr.mxu0 0.0
  %5993 = vmatpush1.msra.mxu0 0.0
  %5994 = vmatprep.subr.mxu0 0.0
  %5995 = vmatpush1.msra.mxu0 0.0
  %5996 = vmatprep.subr.mxu0 0.0
  %5997 = vmatpush1.msra.mxu0 0.0
  %5998 = vmatprep.subr.mxu0 0.0
  %5999 = vmatpush1.msra.mxu0 0.0
  %6000 = vmatprep.mubr.f32.mxu0 0.0
  %6001 = vmatmul.mubr.f32.gmra.mrb[0].mxu0 %v5501
  %v6002 = vpop.f32.mrb[0].mxu0
  %v6003 = vadd.f32 0.0, %v6002
  %v6004 = vpop.f32.mrb[0].mxu0
  %v6005 = vadd.f32 0.0, %v6004
  %6006 = vdwg.mxu0
  %v6007 = vadd.f32 %v5797, %v5932
  %v6008 = vadd.f32 %v5798, %v5934
  %v6009 = vadd.f32 %v5799, %v6003
  %v6010 = vadd.f32 %v5800, %v6005
  %v6011 = vxor.u32 %v6007, 2147483648
  %v6012 = vxor.u32 %v6008, 2147483648
  %v6013 = vmul.f32 %v6011, 1.442695
  %v6014 = vpow.pop %v6013
  %v6015 = vmul.f32 %v6012, 1.442695
  %v6016 = vpow.pop %v6015
  %v6017 = vadd.f32 %v6014, 1.0
  %v6018 = vadd.f32 %v6016, 1.0
  %v6019 = vrcp.pop %v6017
  %v6020 = vmul.f32 1.0, %v6019
  %v6021 = vrcp.pop %v6018
  %v6022 = vmul.f32 1.0, %v6021
  %v6023 = vtanh.pop %v6009
  %v6024 = vxor.u32 %v6010, 2147483648
  %v6025 = vmul.f32 %v6024, 1.442695
  %v6026 = vpow.pop %v6025
  %v6027 = vadd.f32 %v6026, 1.0
  %v6028 = vrcp.pop %v6027
  %v6029 = vmul.f32 1.0, %v6028
  %v6030 = vmul.f32 %v6022, %v5499
  %v6031 = vmul.f32 %v6020, %v6023
  %v6032 = vadd.f32 %v6030, %v6031
  %v6033 = vtanh.pop %v6032
  %v6034 = vmul.f32 %v6029, %v6033
  %v6035 = vld [vmem:[%s4] sm:$0xff]
  %v6036 = vld [vmem:[%s4 + $0x8] sm:$0xff]
  %v6037 = vld [vmem:[%s4 + $0x10] sm:$0xff]
  %v6038 = vld [vmem:[%s4 + $0x18] sm:$0xff]
  %v6039 = vld [vmem:[%s4 + $0x20] sm:$0xff]
  %v6040 = vld [vmem:[%s4 + $0x28] sm:$0xff]
  %v6041 = vld [vmem:[%s4 + $0x30] sm:$0xff]
  %v6042 = vld [vmem:[%s4 + $0x38] sm:$0xff]
  %v6043 = vld [vmem:[%s4 + $0x40] sm:$0xff]
  %v6044 = vld [vmem:[%s4 + $0x48] sm:$0xff]
  %v6045 = vld [vmem:[%s4 + $0x50] sm:$0xff]
  %v6046 = vld [vmem:[%s4 + $0x58] sm:$0xff]
  %v6047 = vld [vmem:[%s4 + $0x60] sm:$0xff]
  %v6048 = vld [vmem:[%s4 + $0x68] sm:$0xff]
  %v6049 = vld [vmem:[%s4 + $0x70] sm:$0xff]
  %v6050 = vld [vmem:[%s4 + $0x78] sm:$0xff]
  %v6051 = vld [vmem:[%s4 + $0x80] sm:$0xff]
  %v6052 = vld [vmem:[%s4 + $0x88] sm:$0xff]
  %v6053 = vld [vmem:[%s4 + $0x90] sm:$0xff]
  %v6054 = vld [vmem:[%s4 + $0x98] sm:$0xff]
  %v6055 = vld [vmem:[%s4 + $0xa0] sm:$0xff]
  %v6056 = vld [vmem:[%s4 + $0xa8] sm:$0xff]
  %v6057 = vld [vmem:[%s4 + $0xb0] sm:$0xff]
  %v6058 = vld [vmem:[%s4 + $0xb8] sm:$0xff]
  %v6059 = vld [vmem:[%s4 + $0xc0] sm:$0xff]
  %v6060 = vld [vmem:[%s4 + $0xc8] sm:$0xff]
  %v6061 = vld [vmem:[%s4 + $0xd0] sm:$0xff]
  %v6062 = vld [vmem:[%s4 + $0xd8] sm:$0xff]
  %v6063 = vld [vmem:[%s4 + $0xe0] sm:$0xff]
  %v6064 = vld [vmem:[%s4 + $0xe8] sm:$0xff]
  %v6065 = vld [vmem:[%s4 + $0xf0] sm:$0xff]
  %v6066 = vld [vmem:[%s4 + $0xf8] sm:$0xff]
  %v6067 = vld [vmem:[%s4 + $0x100] sm:$0xff]
  %v6068 = vld [vmem:[%s4 + $0x108] sm:$0xff]
  %v6069 = vld [vmem:[%s4 + $0x110] sm:$0xff]
  %v6070 = vld [vmem:[%s4 + $0x118] sm:$0xff]
  %v6071 = vld [vmem:[%s4 + $0x120] sm:$0xff]
  %v6072 = vld [vmem:[%s4 + $0x128] sm:$0xff]
  %v6073 = vld [vmem:[%s4 + $0x130] sm:$0xff]
  %v6074 = vld [vmem:[%s4 + $0x138] sm:$0xff]
  %v6075 = vld [vmem:[%s4 + $0x140] sm:$0xff]
  %v6076 = vld [vmem:[%s4 + $0x148] sm:$0xff]
  %v6077 = vld [vmem:[%s4 + $0x150] sm:$0xff]
  %v6078 = vld [vmem:[%s4 + $0x158] sm:$0xff]
  %v6079 = vld [vmem:[%s4 + $0x160] sm:$0xff]
  %v6080 = vld [vmem:[%s4 + $0x168] sm:$0xff]
  %v6081 = vld [vmem:[%s4 + $0x170] sm:$0xff]
  %v6082 = vld [vmem:[%s4 + $0x178] sm:$0xff]
  %v6083 = vld [vmem:[%s4 + $0x180] sm:$0xff]
  %v6084 = vld [vmem:[%s4 + $0x188] sm:$0xff]
  %v6085 = vld [vmem:[%s4 + $0x190] sm:$0xff]
  %v6086 = vld [vmem:[%s4 + $0x198] sm:$0xff]
  %v6087 = vld [vmem:[%s4 + $0x1a0] sm:$0xff]
  %v6088 = vld [vmem:[%s4 + $0x1a8] sm:$0xff]
  %v6089 = vld [vmem:[%s4 + $0x1b0] sm:$0xff]
  %v6090 = vld [vmem:[%s4 + $0x1b8] sm:$0xff]
  %v6091 = vld [vmem:[%s4 + $0x1c0] sm:$0xff]
  %v6092 = vld [vmem:[%s4 + $0x1c8] sm:$0xff]
  %v6093 = vld [vmem:[%s4 + $0x1d0] sm:$0xff]
  %v6094 = vld [vmem:[%s4 + $0x1d8] sm:$0xff]
  %v6095 = vld [vmem:[%s4 + $0x1e0] sm:$0xff]
  %v6096 = vld [vmem:[%s4 + $0x1e8] sm:$0xff]
  %v6097 = vld [vmem:[%s4 + $0x1f0] sm:$0xff]
  %v6098 = vld [vmem:[%s4 + $0x1f8] sm:$0xff]
  %v6099 = vld [vmem:[%s4 + $0x200] sm:$0xff]
  %v6100 = vld [vmem:[%s4 + $0x208] sm:$0xff]
  %v6101 = vld [vmem:[%s4 + $0x210] sm:$0xff]
  %v6102 = vld [vmem:[%s4 + $0x218] sm:$0xff]
  %v6103 = vld [vmem:[%s4 + $0x220] sm:$0xff]
  %v6104 = vld [vmem:[%s4 + $0x228] sm:$0xff]
  %v6105 = vld [vmem:[%s4 + $0x230] sm:$0xff]
  %v6106 = vld [vmem:[%s4 + $0x238] sm:$0xff]
  %v6107 = vld [vmem:[%s4 + $0x240] sm:$0xff]
  %v6108 = vld [vmem:[%s4 + $0x248] sm:$0xff]
  %v6109 = vld [vmem:[%s4 + $0x250] sm:$0xff]
  %v6110 = vld [vmem:[%s4 + $0x258] sm:$0xff]
  %v6111 = vld [vmem:[%s4 + $0x260] sm:$0xff]
  %v6112 = vld [vmem:[%s4 + $0x268] sm:$0xff]
  %v6113 = vld [vmem:[%s4 + $0x270] sm:$0xff]
  %v6114 = vld [vmem:[%s4 + $0x278] sm:$0xff]
  %v6115 = vld [vmem:[%s4 + $0x280] sm:$0xff]
  %v6116 = vld [vmem:[%s4 + $0x288] sm:$0xff]
  %v6117 = vld [vmem:[%s4 + $0x290] sm:$0xff]
  %v6118 = vld [vmem:[%s4 + $0x298] sm:$0xff]
  %v6119 = vld [vmem:[%s4 + $0x2a0] sm:$0xff]
  %v6120 = vld [vmem:[%s4 + $0x2a8] sm:$0xff]
  %v6121 = vld [vmem:[%s4 + $0x2b0] sm:$0xff]
  %v6122 = vld [vmem:[%s4 + $0x2b8] sm:$0xff]
  %v6123 = vld [vmem:[%s4 + $0x2c0] sm:$0xff]
  %v6124 = vld [vmem:[%s4 + $0x2c8] sm:$0xff]
  %v6125 = vld [vmem:[%s4 + $0x2d0] sm:$0xff]
  %v6126 = vld [vmem:[%s4 + $0x2d8] sm:$0xff]
  %v6127 = vld [vmem:[%s4 + $0x2e0] sm:$0xff]
  %v6128 = vld [vmem:[%s4 + $0x2e8] sm:$0xff]
  %v6129 = vld [vmem:[%s4 + $0x2f0] sm:$0xff]
  %v6130 = vld [vmem:[%s4 + $0x2f8] sm:$0xff]
  %v6131 = vld [vmem:[%s4 + $0x300] sm:$0xff]
  %v6132 = vld [vmem:[%s4 + $0x308] sm:$0xff]
  %v6133 = vld [vmem:[%s4 + $0x310] sm:$0xff]
  %v6134 = vld [vmem:[%s4 + $0x318] sm:$0xff]
  %v6135 = vld [vmem:[%s4 + $0x320] sm:$0xff]
  %v6136 = vld [vmem:[%s4 + $0x328] sm:$0xff]
  %v6137 = vld [vmem:[%s4 + $0x330] sm:$0xff]
  %v6138 = vld [vmem:[%s4 + $0x338] sm:$0xff]
  %v6139 = vld [vmem:[%s4 + $0x340] sm:$0xff]
  %v6140 = vld [vmem:[%s4 + $0x348] sm:$0xff]
  %v6141 = vld [vmem:[%s4 + $0x350] sm:$0xff]
  %v6142 = vld [vmem:[%s4 + $0x358] sm:$0xff]
  %v6143 = vld [vmem:[%s4 + $0x360] sm:$0xff]
  %v6144 = vld [vmem:[%s4 + $0x368] sm:$0xff]
  %v6145 = vld [vmem:[%s4 + $0x370] sm:$0xff]
  %v6146 = vld [vmem:[%s4 + $0x378] sm:$0xff]
  %v6147 = vld [vmem:[%s4 + $0x380] sm:$0xff]
  %v6148 = vld [vmem:[%s4 + $0x388] sm:$0xff]
  %v6149 = vld [vmem:[%s4 + $0x390] sm:$0xff]
  %v6150 = vld [vmem:[%s4 + $0x398] sm:$0xff]
  %v6151 = vld [vmem:[%s4 + $0x3a0] sm:$0xff]
  %v6152 = vld [vmem:[%s4 + $0x3a8] sm:$0xff]
  %v6153 = vld [vmem:[%s4 + $0x3b0] sm:$0xff]
  %v6154 = vld [vmem:[%s4 + $0x3b8] sm:$0xff]
  %v6155 = vld [vmem:[%s4 + $0x3c0] sm:$0xff]
  %v6156 = vld [vmem:[%s4 + $0x3c8] sm:$0xff]
  %v6157 = vld [vmem:[%s4 + $0x3d0] sm:$0xff]
  %v6158 = vld [vmem:[%s4 + $0x3d8] sm:$0xff]
  %v6159 = vld [vmem:[%s4 + $0x3e0] sm:$0xff]
  %v6160 = vld [vmem:[%s4 + $0x3e8] sm:$0xff]
  %v6161 = vld [vmem:[%s4 + $0x3f0] sm:$0xff]
  %v6162 = vld [vmem:[%s4 + $0x3f8] sm:$0xff]
  %6163 = vmatprep.subr.mxu0 %v6036
  %6164 = vmatpush1.msra.mxu0 %v6035
  %6165 = vmatprep.subr.mxu0 %v6040
  %6166 = vmatpush1.msra.mxu0 %v6039
  %6167 = vmatprep.subr.mxu0 %v6044
  %6168 = vmatpush1.msra.mxu0 %v6043
  %6169 = vmatprep.subr.mxu0 %v6048
  %6170 = vmatpush1.msra.mxu0 %v6047
  %6171 = vmatprep.subr.mxu0 %v6052
  %6172 = vmatpush1.msra.mxu0 %v6051
  %6173 = vmatprep.subr.mxu0 %v6056
  %6174 = vmatpush1.msra.mxu0 %v6055
  %6175 = vmatprep.subr.mxu0 %v6060
  %6176 = vmatpush1.msra.mxu0 %v6059
  %6177 = vmatprep.subr.mxu0 %v6064
  %6178 = vmatpush1.msra.mxu0 %v6063
  %6179 = vmatprep.subr.mxu0 %v6068
  %6180 = vmatpush1.msra.mxu0 %v6067
  %6181 = vmatprep.subr.mxu0 %v6072
  %6182 = vmatpush1.msra.mxu0 %v6071
  %6183 = vmatprep.subr.mxu0 %v6076
  %6184 = vmatpush1.msra.mxu0 %v6075
  %6185 = vmatprep.subr.mxu0 %v6080
  %6186 = vmatpush1.msra.mxu0 %v6079
  %6187 = vmatprep.subr.mxu0 %v6084
  %6188 = vmatpush1.msra.mxu0 %v6083
  %6189 = vmatprep.subr.mxu0 %v6088
  %6190 = vmatpush1.msra.mxu0 %v6087
  %6191 = vmatprep.subr.mxu0 %v6092
  %6192 = vmatpush1.msra.mxu0 %v6091
  %6193 = vmatprep.subr.mxu0 %v6096
  %6194 = vmatpush1.msra.mxu0 %v6095
  %6195 = vmatprep.subr.mxu0 %v6100
  %6196 = vmatpush1.msra.mxu0 %v6099
  %6197 = vmatprep.subr.mxu0 %v6104
  %6198 = vmatpush1.msra.mxu0 %v6103
  %6199 = vmatprep.subr.mxu0 %v6108
  %6200 = vmatpush1.msra.mxu0 %v6107
  %6201 = vmatprep.subr.mxu0 %v6112
  %6202 = vmatpush1.msra.mxu0 %v6111
  %6203 = vmatprep.subr.mxu0 %v6116
  %6204 = vmatpush1.msra.mxu0 %v6115
  %6205 = vmatprep.subr.mxu0 %v6120
  %6206 = vmatpush1.msra.mxu0 %v6119
  %6207 = vmatprep.subr.mxu0 %v6124
  %6208 = vmatpush1.msra.mxu0 %v6123
  %6209 = vmatprep.subr.mxu0 %v6128
  %6210 = vmatpush1.msra.mxu0 %v6127
  %6211 = vmatprep.subr.mxu0 %v6132
  %6212 = vmatpush1.msra.mxu0 %v6131
  %6213 = vmatprep.subr.mxu0 %v6136
  %6214 = vmatpush1.msra.mxu0 %v6135
  %6215 = vmatprep.subr.mxu0 %v6140
  %6216 = vmatpush1.msra.mxu0 %v6139
  %6217 = vmatprep.subr.mxu0 %v6144
  %6218 = vmatpush1.msra.mxu0 %v6143
  %6219 = vmatprep.subr.mxu0 %v6148
  %6220 = vmatpush1.msra.mxu0 %v6147
  %6221 = vmatprep.subr.mxu0 %v6152
  %6222 = vmatpush1.msra.mxu0 %v6151
  %6223 = vmatprep.subr.mxu0 %v6156
  %6224 = vmatpush1.msra.mxu0 %v6155
  %6225 = vmatprep.subr.mxu0 %v6160
  %6226 = vmatpush1.msra.mxu0 %v6159
  %6227 = vmatprep.mubr.f32.mxu0 %v5795
  %6228 = vmatmul.mubr.f32.gmra.mrb[0].mxu0 %v6034
  %v6229 = vpop.f32.mrb[0].mxu0
  %v6230 = vadd.f32 %v816, %v6229
  %v6231 = vpop.f32.mrb[0].mxu0
  %v6232 = vadd.f32 %v820, %v6231
  %6233 = vdwg.mxu0
  %6234 = vmatprep.subr.mxu0 %v6038
  %6235 = vmatpush1.msra.mxu0 %v6037
  %6236 = vmatprep.subr.mxu0 %v6042
  %6237 = vmatpush1.msra.mxu0 %v6041
  %6238 = vmatprep.subr.mxu0 %v6046
  %6239 = vmatpush1.msra.mxu0 %v6045
  %6240 = vmatprep.subr.mxu0 %v6050
  %6241 = vmatpush1.msra.mxu0 %v6049
  %6242 = vmatprep.subr.mxu0 %v6054
  %6243 = vmatpush1.msra.mxu0 %v6053
  %6244 = vmatprep.subr.mxu0 %v6058
  %6245 = vmatpush1.msra.mxu0 %v6057
  %6246 = vmatprep.subr.mxu0 %v6062
  %6247 = vmatpush1.msra.mxu0 %v6061
  %6248 = vmatprep.subr.mxu0 %v6066
  %6249 = vmatpush1.msra.mxu0 %v6065
  %6250 = vmatprep.subr.mxu0 %v6070
  %6251 = vmatpush1.msra.mxu0 %v6069
  %6252 = vmatprep.subr.mxu0 %v6074
  %6253 = vmatpush1.msra.mxu0 %v6073
  %6254 = vmatprep.subr.mxu0 %v6078
  %6255 = vmatpush1.msra.mxu0 %v6077
  %6256 = vmatprep.subr.mxu0 %v6082
  %6257 = vmatpush1.msra.mxu0 %v6081
  %6258 = vmatprep.subr.mxu0 %v6086
  %6259 = vmatpush1.msra.mxu0 %v6085
  %6260 = vmatprep.subr.mxu0 %v6090
  %6261 = vmatpush1.msra.mxu0 %v6089
  %6262 = vmatprep.subr.mxu0 %v6094
  %6263 = vmatpush1.msra.mxu0 %v6093
  %6264 = vmatprep.subr.mxu0 %v6098
  %6265 = vmatpush1.msra.mxu0 %v6097
  %6266 = vmatprep.subr.mxu0 %v6102
  %6267 = vmatpush1.msra.mxu0 %v6101
  %6268 = vmatprep.subr.mxu0 %v6106
  %6269 = vmatpush1.msra.mxu0 %v6105
  %6270 = vmatprep.subr.mxu0 %v6110
  %6271 = vmatpush1.msra.mxu0 %v6109
  %6272 = vmatprep.subr.mxu0 %v6114
  %6273 = vmatpush1.msra.mxu0 %v6113
  %6274 = vmatprep.subr.mxu0 %v6118
  %6275 = vmatpush1.msra.mxu0 %v6117
  %6276 = vmatprep.subr.mxu0 %v6122
  %6277 = vmatpush1.msra.mxu0 %v6121
  %6278 = vmatprep.subr.mxu0 %v6126
  %6279 = vmatpush1.msra.mxu0 %v6125
  %6280 = vmatprep.subr.mxu0 %v6130
  %6281 = vmatpush1.msra.mxu0 %v6129
  %6282 = vmatprep.subr.mxu0 %v6134
  %6283 = vmatpush1.msra.mxu0 %v6133
  %6284 = vmatprep.subr.mxu0 %v6138
  %6285 = vmatpush1.msra.mxu0 %v6137
  %6286 = vmatprep.subr.mxu0 %v6142
  %6287 = vmatpush1.msra.mxu0 %v6141
  %6288 = vmatprep.subr.mxu0 %v6146
  %6289 = vmatpush1.msra.mxu0 %v6145
  %6290 = vmatprep.subr.mxu0 %v6150
  %6291 = vmatpush1.msra.mxu0 %v6149
  %6292 = vmatprep.subr.mxu0 %v6154
  %6293 = vmatpush1.msra.mxu0 %v6153
  %6294 = vmatprep.subr.mxu0 %v6158
  %6295 = vmatpush1.msra.mxu0 %v6157
  %6296 = vmatprep.subr.mxu0 %v6162
  %6297 = vmatpush1.msra.mxu0 %v6161
  %6298 = vmatprep.mubr.f32.mxu0 %v5795
  %6299 = vmatmul.mubr.f32.gmra.mrb[0].mxu0 %v6034
  %v6300 = vpop.f32.mrb[0].mxu0
  %v6301 = vadd.f32 %v824, %v6300
  %v6302 = vpop.f32.mrb[0].mxu0
  %v6303 = vadd.f32 %v828, %v6302
  %6304 = vdwg.mxu0
  %v6305 = vxor.u32 %v6230, 2147483648
  %v6306 = vxor.u32 %v6232, 2147483648
  %v6307 = vmul.f32 %v6305, 1.442695
  %v6308 = vpow.pop %v6307
  %v6309 = vmul.f32 %v6306, 1.442695
  %v6310 = vpow.pop %v6309
  %v6311 = vadd.f32 %v6308, 1.0
  %v6312 = vadd.f32 %v6310, 1.0
  %v6313 = vrcp.pop %v6311
  %v6314 = vmul.f32 1.0, %v6313
  %v6315 = vrcp.pop %v6312
  %v6316 = vmul.f32 1.0, %v6315
  %v6317 = vtanh.pop %v6301
  %v6318 = vxor.u32 %v6303, 2147483648
  %v6319 = vmul.f32 %v6318, 1.442695
  %v6320 = vpow.pop %v6319
  %v6321 = vadd.f32 %v6320, 1.0
  %v6322 = vrcp.pop %v6321
  %v6323 = vmul.f32 1.0, %v6322
  %v6324 = vmul.f32 %v6316, %v5793
  %v6325 = vmul.f32 %v6314, %v6317
  %v6326 = vadd.f32 %v6324, %v6325
  %v6327 = vtanh.pop %v6326
  %v6328 = vmul.f32 %v6323, %v6327
  %6329 = vst [vmem:[#allocation3 + $0x50] sm:$0xff] %v6328
  %v6330 = vld [vmem:[#allocation2 + $0x160] sm:$0xff]
  %v6331 = vld [vmem:[#allocation2 + $0x168] sm:$0xff]
  %v6332 = vld [vmem:[#allocation2 + $0x170] sm:$0xff]
  %v6333 = vld [vmem:[#allocation2 + $0x178] sm:$0xff]
  %v6334 = vld [vmem:[%s2] sm:$0xff]
  %v6335 = vld [vmem:[%s2 + $0x8] sm:$0xff]
  %v6336 = vld [vmem:[%s2 + $0x10] sm:$0xff]
  %v6337 = vld [vmem:[%s2 + $0x18] sm:$0xff]
  %v6338 = vld [vmem:[%s2 + $0x20] sm:$0xff]
  %v6339 = vld [vmem:[%s2 + $0x28] sm:$0xff]
  %v6340 = vld [vmem:[%s2 + $0x30] sm:$0xff]
  %v6341 = vld [vmem:[%s2 + $0x38] sm:$0xff]
  %v6342 = vld [vmem:[%s2 + $0x40] sm:$0xff]
  %v6343 = vld [vmem:[%s2 + $0x48] sm:$0xff]
  %v6344 = vld [vmem:[%s2 + $0x50] sm:$0xff]
  %v6345 = vld [vmem:[%s2 + $0x58] sm:$0xff]
  %v6346 = vld [vmem:[%s2 + $0x60] sm:$0xff]
  %v6347 = vld [vmem:[%s2 + $0x68] sm:$0xff]
  %v6348 = vld [vmem:[%s2 + $0x70] sm:$0xff]
  %v6349 = vld [vmem:[%s2 + $0x78] sm:$0xff]
  %v6350 = vld [vmem:[%s2 + $0x80] sm:$0xff]
  %v6351 = vld [vmem:[%s2 + $0x88] sm:$0xff]
  %v6352 = vld [vmem:[%s2 + $0x90] sm:$0xff]
  %v6353 = vld [vmem:[%s2 + $0x98] sm:$0xff]
  %v6354 = vld [vmem:[%s2 + $0xa0] sm:$0xff]
  %v6355 = vld [vmem:[%s2 + $0xa8] sm:$0xff]
  %v6356 = vld [vmem:[%s2 + $0xb0] sm:$0xff]
  %v6357 = vld [vmem:[%s2 + $0xb8] sm:$0xff]
  %v6358 = vld [vmem:[%s2 + $0xc0] sm:$0xff]
  %v6359 = vld [vmem:[%s2 + $0xc8] sm:$0xff]
  %v6360 = vld [vmem:[%s2 + $0xd0] sm:$0xff]
  %v6361 = vld [vmem:[%s2 + $0xd8] sm:$0xff]
  %v6362 = vld [vmem:[%s2 + $0xe0] sm:$0xff]
  %v6363 = vld [vmem:[%s2 + $0xe8] sm:$0xff]
  %v6364 = vld [vmem:[%s2 + $0xf0] sm:$0xff]
  %v6365 = vld [vmem:[%s2 + $0xf8] sm:$0xff]
  %v6366 = vld [vmem:[%s2 + $0x100] sm:$0xff]
  %v6367 = vld [vmem:[%s2 + $0x108] sm:$0xff]
  %v6368 = vld [vmem:[%s2 + $0x110] sm:$0xff]
  %v6369 = vld [vmem:[%s2 + $0x118] sm:$0xff]
  %v6370 = vld [vmem:[%s2 + $0x120] sm:$0xff]
  %v6371 = vld [vmem:[%s2 + $0x128] sm:$0xff]
  %v6372 = vld [vmem:[%s2 + $0x130] sm:$0xff]
  %v6373 = vld [vmem:[%s2 + $0x138] sm:$0xff]
  %v6374 = vld [vmem:[%s2 + $0x140] sm:$0xff]
  %v6375 = vld [vmem:[%s2 + $0x148] sm:$0xff]
  %v6376 = vld [vmem:[%s2 + $0x150] sm:$0xff]
  %v6377 = vld [vmem:[%s2 + $0x158] sm:$0xff]
  %v6378 = vld [vmem:[%s2 + $0x160] sm:$0xff]
  %v6379 = vld [vmem:[%s2 + $0x168] sm:$0xff]
  %v6380 = vld [vmem:[%s2 + $0x170] sm:$0xff]
  %v6381 = vld [vmem:[%s2 + $0x178] sm:$0xff]
  %v6382 = vld [vmem:[%s2 + $0x180] sm:$0xff]
  %v6383 = vld [vmem:[%s2 + $0x188] sm:$0xff]
  %v6384 = vld [vmem:[%s2 + $0x190] sm:$0xff]
  %v6385 = vld [vmem:[%s2 + $0x198] sm:$0xff]
  %v6386 = vld [vmem:[%s2 + $0x1a0] sm:$0xff]
  %v6387 = vld [vmem:[%s2 + $0x1a8] sm:$0xff]
  %v6388 = vld [vmem:[%s2 + $0x1b0] sm:$0xff]
  %v6389 = vld [vmem:[%s2 + $0x1b8] sm:$0xff]
  %v6390 = vld [vmem:[%s2 + $0x1c0] sm:$0xff]
  %v6391 = vld [vmem:[%s2 + $0x1c8] sm:$0xff]
  %v6392 = vld [vmem:[%s2 + $0x1d0] sm:$0xff]
  %v6393 = vld [vmem:[%s2 + $0x1d8] sm:$0xff]
  %v6394 = vld [vmem:[%s2 + $0x1e0] sm:$0xff]
  %v6395 = vld [vmem:[%s2 + $0x1e8] sm:$0xff]
  %v6396 = vld [vmem:[%s2 + $0x1f0] sm:$0xff]
  %v6397 = vld [vmem:[%s2 + $0x1f8] sm:$0xff]
  %6398 = vmatprep.subr.mxu0 %v6335
  %6399 = vmatpush1.msra.mxu0 %v6334
  %6400 = vmatprep.subr.mxu0 %v6339
  %6401 = vmatpush1.msra.mxu0 %v6338
  %6402 = vmatprep.subr.mxu0 %v6343
  %6403 = vmatpush1.msra.mxu0 %v6342
  %6404 = vmatprep.subr.mxu0 %v6347
  %6405 = vmatpush1.msra.mxu0 %v6346
  %6406 = vmatprep.subr.mxu0 %v6351
  %6407 = vmatpush1.msra.mxu0 %v6350
  %6408 = vmatprep.subr.mxu0 %v6355
  %6409 = vmatpush1.msra.mxu0 %v6354
  %6410 = vmatprep.subr.mxu0 %v6359
  %6411 = vmatpush1.msra.mxu0 %v6358
  %6412 = vmatprep.subr.mxu0 %v6363
  %6413 = vmatpush1.msra.mxu0 %v6362
  %6414 = vmatprep.subr.mxu0 %v6367
  %6415 = vmatpush1.msra.mxu0 %v6366
  %6416 = vmatprep.subr.mxu0 %v6371
  %6417 = vmatpush1.msra.mxu0 %v6370
  %6418 = vmatprep.subr.mxu0 %v6375
  %6419 = vmatpush1.msra.mxu0 %v6374
  %6420 = vmatprep.subr.mxu0 %v6379
  %6421 = vmatpush1.msra.mxu0 %v6378
  %6422 = vmatprep.subr.mxu0 %v6383
  %6423 = vmatpush1.msra.mxu0 %v6382
  %6424 = vmatprep.subr.mxu0 %v6387
  %6425 = vmatpush1.msra.mxu0 %v6386
  %6426 = vmatprep.subr.mxu0 %v6391
  %6427 = vmatpush1.msra.mxu0 %v6390
  %6428 = vmatprep.subr.mxu0 %v6395
  %6429 = vmatpush1.msra.mxu0 %v6394
  %6430 = vmatprep.subr.mxu0 0.0
  %6431 = vmatpush1.msra.mxu0 0.0
  %6432 = vmatprep.subr.mxu0 0.0
  %6433 = vmatpush1.msra.mxu0 0.0
  %6434 = vmatprep.subr.mxu0 0.0
  %6435 = vmatpush1.msra.mxu0 0.0
  %6436 = vmatprep.subr.mxu0 0.0
  %6437 = vmatpush1.msra.mxu0 0.0
  %6438 = vmatprep.subr.mxu0 0.0
  %6439 = vmatpush1.msra.mxu0 0.0
  %6440 = vmatprep.subr.mxu0 0.0
  %6441 = vmatpush1.msra.mxu0 0.0
  %6442 = vmatprep.subr.mxu0 0.0
  %6443 = vmatpush1.msra.mxu0 0.0
  %6444 = vmatprep.subr.mxu0 0.0
  %6445 = vmatpush1.msra.mxu0 0.0
  %6446 = vmatprep.subr.mxu0 0.0
  %6447 = vmatpush1.msra.mxu0 0.0
  %6448 = vmatprep.subr.mxu0 0.0
  %6449 = vmatpush1.msra.mxu0 0.0
  %6450 = vmatprep.subr.mxu0 0.0
  %6451 = vmatpush1.msra.mxu0 0.0
  %6452 = vmatprep.subr.mxu0 0.0
  %6453 = vmatpush1.msra.mxu0 0.0
  %6454 = vmatprep.subr.mxu0 0.0
  %6455 = vmatpush1.msra.mxu0 0.0
  %6456 = vmatprep.subr.mxu0 0.0
  %6457 = vmatpush1.msra.mxu0 0.0
  %6458 = vmatprep.subr.mxu0 0.0
  %6459 = vmatpush1.msra.mxu0 0.0
  %6460 = vmatprep.subr.mxu0 0.0
  %6461 = vmatpush1.msra.mxu0 0.0
  %6462 = vmatprep.mubr.f32.mxu0 0.0
  %6463 = vmatmul.mubr.f32.gmra.mrb[0].mxu0 %v6034
  %v6464 = vpop.f32.mrb[0].mxu0
  %v6465 = vadd.f32 0.0, %v6464
  %v6466 = vpop.f32.mrb[0].mxu0
  %v6467 = vadd.f32 0.0, %v6466
  %6468 = vdwg.mxu0
  %6469 = vmatprep.subr.mxu0 %v6337
  %6470 = vmatpush1.msra.mxu0 %v6336
  %6471 = vmatprep.subr.mxu0 %v6341
  %6472 = vmatpush1.msra.mxu0 %v6340
  %6473 = vmatprep.subr.mxu0 %v6345
  %6474 = vmatpush1.msra.mxu0 %v6344
  %6475 = vmatprep.subr.mxu0 %v6349
  %6476 = vmatpush1.msra.mxu0 %v6348
  %6477 = vmatprep.subr.mxu0 %v6353
  %6478 = vmatpush1.msra.mxu0 %v6352
  %6479 = vmatprep.subr.mxu0 %v6357
  %6480 = vmatpush1.msra.mxu0 %v6356
  %6481 = vmatprep.subr.mxu0 %v6361
  %6482 = vmatpush1.msra.mxu0 %v6360
  %6483 = vmatprep.subr.mxu0 %v6365
  %6484 = vmatpush1.msra.mxu0 %v6364
  %6485 = vmatprep.subr.mxu0 %v6369
  %6486 = vmatpush1.msra.mxu0 %v6368
  %6487 = vmatprep.subr.mxu0 %v6373
  %6488 = vmatpush1.msra.mxu0 %v6372
  %6489 = vmatprep.subr.mxu0 %v6377
  %6490 = vmatpush1.msra.mxu0 %v6376
  %6491 = vmatprep.subr.mxu0 %v6381
  %6492 = vmatpush1.msra.mxu0 %v6380
  %6493 = vmatprep.subr.mxu0 %v6385
  %6494 = vmatpush1.msra.mxu0 %v6384
  %6495 = vmatprep.subr.mxu0 %v6389
  %6496 = vmatpush1.msra.mxu0 %v6388
  %6497 = vmatprep.subr.mxu0 %v6393
  %6498 = vmatpush1.msra.mxu0 %v6392
  %6499 = vmatprep.subr.mxu0 %v6397
  %6500 = vmatpush1.msra.mxu0 %v6396
  %6501 = vmatprep.subr.mxu0 0.0
  %6502 = vmatpush1.msra.mxu0 0.0
  %6503 = vmatprep.subr.mxu0 0.0
  %6504 = vmatpush1.msra.mxu0 0.0
  %6505 = vmatprep.subr.mxu0 0.0
  %6506 = vmatpush1.msra.mxu0 0.0
  %6507 = vmatprep.subr.mxu0 0.0
  %6508 = vmatpush1.msra.mxu0 0.0
  %6509 = vmatprep.subr.mxu0 0.0
  %6510 = vmatpush1.msra.mxu0 0.0
  %6511 = vmatprep.subr.mxu0 0.0
  %6512 = vmatpush1.msra.mxu0 0.0
  %6513 = vmatprep.subr.mxu0 0.0
  %6514 = vmatpush1.msra.mxu0 0.0
  %6515 = vmatprep.subr.mxu0 0.0
  %6516 = vmatpush1.msra.mxu0 0.0
  %6517 = vmatprep.subr.mxu0 0.0
  %6518 = vmatpush1.msra.mxu0 0.0
  %6519 = vmatprep.subr.mxu0 0.0
  %6520 = vmatpush1.msra.mxu0 0.0
  %6521 = vmatprep.subr.mxu0 0.0
  %6522 = vmatpush1.msra.mxu0 0.0
  %6523 = vmatprep.subr.mxu0 0.0
  %6524 = vmatpush1.msra.mxu0 0.0
  %6525 = vmatprep.subr.mxu0 0.0
  %6526 = vmatpush1.msra.mxu0 0.0
  %6527 = vmatprep.subr.mxu0 0.0
  %6528 = vmatpush1.msra.mxu0 0.0
  %6529 = vmatprep.subr.mxu0 0.0
  %6530 = vmatpush1.msra.mxu0 0.0
  %6531 = vmatprep.subr.mxu0 0.0
  %6532 = vmatpush1.msra.mxu0 0.0
  %6533 = vmatprep.mubr.f32.mxu0 0.0
  %6534 = vmatmul.mubr.f32.gmra.mrb[0].mxu0 %v6034
  %v6535 = vpop.f32.mrb[0].mxu0
  %v6536 = vadd.f32 0.0, %v6535
  %v6537 = vpop.f32.mrb[0].mxu0
  %v6538 = vadd.f32 0.0, %v6537
  %6539 = vdwg.mxu0
  %v6540 = vadd.f32 %v6330, %v6465
  %v6541 = vadd.f32 %v6331, %v6467
  %v6542 = vadd.f32 %v6332, %v6536
  %v6543 = vadd.f32 %v6333, %v6538
  %v6544 = vxor.u32 %v6540, 2147483648
  %v6545 = vxor.u32 %v6541, 2147483648
  %v6546 = vmul.f32 %v6544, 1.442695
  %v6547 = vpow.pop %v6546
  %v6548 = vmul.f32 %v6545, 1.442695
  %v6549 = vpow.pop %v6548
  %v6550 = vadd.f32 %v6547, 1.0
  %v6551 = vadd.f32 %v6549, 1.0
  %v6552 = vrcp.pop %v6550
  %v6553 = vmul.f32 1.0, %v6552
  %v6554 = vrcp.pop %v6551
  %v6555 = vmul.f32 1.0, %v6554
  %v6556 = vtanh.pop %v6542
  %v6557 = vxor.u32 %v6543, 2147483648
  %v6558 = vmul.f32 %v6557, 1.442695
  %v6559 = vpow.pop %v6558
  %v6560 = vadd.f32 %v6559, 1.0
  %v6561 = vrcp.pop %v6560
  %v6562 = vmul.f32 1.0, %v6561
  %v6563 = vmul.f32 %v6555, %v6032
  %v6564 = vmul.f32 %v6553, %v6556
  %v6565 = vadd.f32 %v6563, %v6564
  %v6566 = vtanh.pop %v6565
  %v6567 = vmul.f32 %v6562, %v6566
  %v6568 = vld [vmem:[%s4] sm:$0xff]
  %v6569 = vld [vmem:[%s4 + $0x8] sm:$0xff]
  %v6570 = vld [vmem:[%s4 + $0x10] sm:$0xff]
  %v6571 = vld [vmem:[%s4 + $0x18] sm:$0xff]
  %v6572 = vld [vmem:[%s4 + $0x20] sm:$0xff]
  %v6573 = vld [vmem:[%s4 + $0x28] sm:$0xff]
  %v6574 = vld [vmem:[%s4 + $0x30] sm:$0xff]
  %v6575 = vld [vmem:[%s4 + $0x38] sm:$0xff]
  %v6576 = vld [vmem:[%s4 + $0x40] sm:$0xff]
  %v6577 = vld [vmem:[%s4 + $0x48] sm:$0xff]
  %v6578 = vld [vmem:[%s4 + $0x50] sm:$0xff]
  %v6579 = vld [vmem:[%s4 + $0x58] sm:$0xff]
  %v6580 = vld [vmem:[%s4 + $0x60] sm:$0xff]
  %v6581 = vld [vmem:[%s4 + $0x68] sm:$0xff]
  %v6582 = vld [vmem:[%s4 + $0x70] sm:$0xff]
  %v6583 = vld [vmem:[%s4 + $0x78] sm:$0xff]
  %v6584 = vld [vmem:[%s4 + $0x80] sm:$0xff]
  %v6585 = vld [vmem:[%s4 + $0x88] sm:$0xff]
  %v6586 = vld [vmem:[%s4 + $0x90] sm:$0xff]
  %v6587 = vld [vmem:[%s4 + $0x98] sm:$0xff]
  %v6588 = vld [vmem:[%s4 + $0xa0] sm:$0xff]
  %v6589 = vld [vmem:[%s4 + $0xa8] sm:$0xff]
  %v6590 = vld [vmem:[%s4 + $0xb0] sm:$0xff]
  %v6591 = vld [vmem:[%s4 + $0xb8] sm:$0xff]
  %v6592 = vld [vmem:[%s4 + $0xc0] sm:$0xff]
  %v6593 = vld [vmem:[%s4 + $0xc8] sm:$0xff]
  %v6594 = vld [vmem:[%s4 + $0xd0] sm:$0xff]
  %v6595 = vld [vmem:[%s4 + $0xd8] sm:$0xff]
  %v6596 = vld [vmem:[%s4 + $0xe0] sm:$0xff]
  %v6597 = vld [vmem:[%s4 + $0xe8] sm:$0xff]
  %v6598 = vld [vmem:[%s4 + $0xf0] sm:$0xff]
  %v6599 = vld [vmem:[%s4 + $0xf8] sm:$0xff]
  %v6600 = vld [vmem:[%s4 + $0x100] sm:$0xff]
  %v6601 = vld [vmem:[%s4 + $0x108] sm:$0xff]
  %v6602 = vld [vmem:[%s4 + $0x110] sm:$0xff]
  %v6603 = vld [vmem:[%s4 + $0x118] sm:$0xff]
  %v6604 = vld [vmem:[%s4 + $0x120] sm:$0xff]
  %v6605 = vld [vmem:[%s4 + $0x128] sm:$0xff]
  %v6606 = vld [vmem:[%s4 + $0x130] sm:$0xff]
  %v6607 = vld [vmem:[%s4 + $0x138] sm:$0xff]
  %v6608 = vld [vmem:[%s4 + $0x140] sm:$0xff]
  %v6609 = vld [vmem:[%s4 + $0x148] sm:$0xff]
  %v6610 = vld [vmem:[%s4 + $0x150] sm:$0xff]
  %v6611 = vld [vmem:[%s4 + $0x158] sm:$0xff]
  %v6612 = vld [vmem:[%s4 + $0x160] sm:$0xff]
  %v6613 = vld [vmem:[%s4 + $0x168] sm:$0xff]
  %v6614 = vld [vmem:[%s4 + $0x170] sm:$0xff]
  %v6615 = vld [vmem:[%s4 + $0x178] sm:$0xff]
  %v6616 = vld [vmem:[%s4 + $0x180] sm:$0xff]
  %v6617 = vld [vmem:[%s4 + $0x188] sm:$0xff]
  %v6618 = vld [vmem:[%s4 + $0x190] sm:$0xff]
  %v6619 = vld [vmem:[%s4 + $0x198] sm:$0xff]
  %v6620 = vld [vmem:[%s4 + $0x1a0] sm:$0xff]
  %v6621 = vld [vmem:[%s4 + $0x1a8] sm:$0xff]
  %v6622 = vld [vmem:[%s4 + $0x1b0] sm:$0xff]
  %v6623 = vld [vmem:[%s4 + $0x1b8] sm:$0xff]
  %v6624 = vld [vmem:[%s4 + $0x1c0] sm:$0xff]
  %v6625 = vld [vmem:[%s4 + $0x1c8] sm:$0xff]
  %v6626 = vld [vmem:[%s4 + $0x1d0] sm:$0xff]
  %v6627 = vld [vmem:[%s4 + $0x1d8] sm:$0xff]
  %v6628 = vld [vmem:[%s4 + $0x1e0] sm:$0xff]
  %v6629 = vld [vmem:[%s4 + $0x1e8] sm:$0xff]
  %v6630 = vld [vmem:[%s4 + $0x1f0] sm:$0xff]
  %v6631 = vld [vmem:[%s4 + $0x1f8] sm:$0xff]
  %v6632 = vld [vmem:[%s4 + $0x200] sm:$0xff]
  %v6633 = vld [vmem:[%s4 + $0x208] sm:$0xff]
  %v6634 = vld [vmem:[%s4 + $0x210] sm:$0xff]
  %v6635 = vld [vmem:[%s4 + $0x218] sm:$0xff]
  %v6636 = vld [vmem:[%s4 + $0x220] sm:$0xff]
  %v6637 = vld [vmem:[%s4 + $0x228] sm:$0xff]
  %v6638 = vld [vmem:[%s4 + $0x230] sm:$0xff]
  %v6639 = vld [vmem:[%s4 + $0x238] sm:$0xff]
  %v6640 = vld [vmem:[%s4 + $0x240] sm:$0xff]
  %v6641 = vld [vmem:[%s4 + $0x248] sm:$0xff]
  %v6642 = vld [vmem:[%s4 + $0x250] sm:$0xff]
  %v6643 = vld [vmem:[%s4 + $0x258] sm:$0xff]
  %v6644 = vld [vmem:[%s4 + $0x260] sm:$0xff]
  %v6645 = vld [vmem:[%s4 + $0x268] sm:$0xff]
  %v6646 = vld [vmem:[%s4 + $0x270] sm:$0xff]
  %v6647 = vld [vmem:[%s4 + $0x278] sm:$0xff]
  %v6648 = vld [vmem:[%s4 + $0x280] sm:$0xff]
  %v6649 = vld [vmem:[%s4 + $0x288] sm:$0xff]
  %v6650 = vld [vmem:[%s4 + $0x290] sm:$0xff]
  %v6651 = vld [vmem:[%s4 + $0x298] sm:$0xff]
  %v6652 = vld [vmem:[%s4 + $0x2a0] sm:$0xff]
  %v6653 = vld [vmem:[%s4 + $0x2a8] sm:$0xff]
  %v6654 = vld [vmem:[%s4 + $0x2b0] sm:$0xff]
  %v6655 = vld [vmem:[%s4 + $0x2b8] sm:$0xff]
  %v6656 = vld [vmem:[%s4 + $0x2c0] sm:$0xff]
  %v6657 = vld [vmem:[%s4 + $0x2c8] sm:$0xff]
  %v6658 = vld [vmem:[%s4 + $0x2d0] sm:$0xff]
  %v6659 = vld [vmem:[%s4 + $0x2d8] sm:$0xff]
  %v6660 = vld [vmem:[%s4 + $0x2e0] sm:$0xff]
  %v6661 = vld [vmem:[%s4 + $0x2e8] sm:$0xff]
  %v6662 = vld [vmem:[%s4 + $0x2f0] sm:$0xff]
  %v6663 = vld [vmem:[%s4 + $0x2f8] sm:$0xff]
  %v6664 = vld [vmem:[%s4 + $0x300] sm:$0xff]
  %v6665 = vld [vmem:[%s4 + $0x308] sm:$0xff]
  %v6666 = vld [vmem:[%s4 + $0x310] sm:$0xff]
  %v6667 = vld [vmem:[%s4 + $0x318] sm:$0xff]
  %v6668 = vld [vmem:[%s4 + $0x320] sm:$0xff]
  %v6669 = vld [vmem:[%s4 + $0x328] sm:$0xff]
  %v6670 = vld [vmem:[%s4 + $0x330] sm:$0xff]
  %v6671 = vld [vmem:[%s4 + $0x338] sm:$0xff]
  %v6672 = vld [vmem:[%s4 + $0x340] sm:$0xff]
  %v6673 = vld [vmem:[%s4 + $0x348] sm:$0xff]
  %v6674 = vld [vmem:[%s4 + $0x350] sm:$0xff]
  %v6675 = vld [vmem:[%s4 + $0x358] sm:$0xff]
  %v6676 = vld [vmem:[%s4 + $0x360] sm:$0xff]
  %v6677 = vld [vmem:[%s4 + $0x368] sm:$0xff]
  %v6678 = vld [vmem:[%s4 + $0x370] sm:$0xff]
  %v6679 = vld [vmem:[%s4 + $0x378] sm:$0xff]
  %v6680 = vld [vmem:[%s4 + $0x380] sm:$0xff]
  %v6681 = vld [vmem:[%s4 + $0x388] sm:$0xff]
  %v6682 = vld [vmem:[%s4 + $0x390] sm:$0xff]
  %v6683 = vld [vmem:[%s4 + $0x398] sm:$0xff]
  %v6684 = vld [vmem:[%s4 + $0x3a0] sm:$0xff]
  %v6685 = vld [vmem:[%s4 + $0x3a8] sm:$0xff]
  %v6686 = vld [vmem:[%s4 + $0x3b0] sm:$0xff]
  %v6687 = vld [vmem:[%s4 + $0x3b8] sm:$0xff]
  %v6688 = vld [vmem:[%s4 + $0x3c0] sm:$0xff]
  %v6689 = vld [vmem:[%s4 + $0x3c8] sm:$0xff]
  %v6690 = vld [vmem:[%s4 + $0x3d0] sm:$0xff]
  %v6691 = vld [vmem:[%s4 + $0x3d8] sm:$0xff]
  %v6692 = vld [vmem:[%s4 + $0x3e0] sm:$0xff]
  %v6693 = vld [vmem:[%s4 + $0x3e8] sm:$0xff]
  %v6694 = vld [vmem:[%s4 + $0x3f0] sm:$0xff]
  %v6695 = vld [vmem:[%s4 + $0x3f8] sm:$0xff]
  %6696 = vmatprep.subr.mxu0 %v6569
  %6697 = vmatpush1.msra.mxu0 %v6568
  %6698 = vmatprep.subr.mxu0 %v6573
  %6699 = vmatpush1.msra.mxu0 %v6572
  %6700 = vmatprep.subr.mxu0 %v6577
  %6701 = vmatpush1.msra.mxu0 %v6576
  %6702 = vmatprep.subr.mxu0 %v6581
  %6703 = vmatpush1.msra.mxu0 %v6580
  %6704 = vmatprep.subr.mxu0 %v6585
  %6705 = vmatpush1.msra.mxu0 %v6584
  %6706 = vmatprep.subr.mxu0 %v6589
  %6707 = vmatpush1.msra.mxu0 %v6588
  %6708 = vmatprep.subr.mxu0 %v6593
  %6709 = vmatpush1.msra.mxu0 %v6592
  %6710 = vmatprep.subr.mxu0 %v6597
  %6711 = vmatpush1.msra.mxu0 %v6596
  %6712 = vmatprep.subr.mxu0 %v6601
  %6713 = vmatpush1.msra.mxu0 %v6600
  %6714 = vmatprep.subr.mxu0 %v6605
  %6715 = vmatpush1.msra.mxu0 %v6604
  %6716 = vmatprep.subr.mxu0 %v6609
  %6717 = vmatpush1.msra.mxu0 %v6608
  %6718 = vmatprep.subr.mxu0 %v6613
  %6719 = vmatpush1.msra.mxu0 %v6612
  %6720 = vmatprep.subr.mxu0 %v6617
  %6721 = vmatpush1.msra.mxu0 %v6616
  %6722 = vmatprep.subr.mxu0 %v6621
  %6723 = vmatpush1.msra.mxu0 %v6620
  %6724 = vmatprep.subr.mxu0 %v6625
  %6725 = vmatpush1.msra.mxu0 %v6624
  %6726 = vmatprep.subr.mxu0 %v6629
  %6727 = vmatpush1.msra.mxu0 %v6628
  %6728 = vmatprep.subr.mxu0 %v6633
  %6729 = vmatpush1.msra.mxu0 %v6632
  %6730 = vmatprep.subr.mxu0 %v6637
  %6731 = vmatpush1.msra.mxu0 %v6636
  %6732 = vmatprep.subr.mxu0 %v6641
  %6733 = vmatpush1.msra.mxu0 %v6640
  %6734 = vmatprep.subr.mxu0 %v6645
  %6735 = vmatpush1.msra.mxu0 %v6644
  %6736 = vmatprep.subr.mxu0 %v6649
  %6737 = vmatpush1.msra.mxu0 %v6648
  %6738 = vmatprep.subr.mxu0 %v6653
  %6739 = vmatpush1.msra.mxu0 %v6652
  %6740 = vmatprep.subr.mxu0 %v6657
  %6741 = vmatpush1.msra.mxu0 %v6656
  %6742 = vmatprep.subr.mxu0 %v6661
  %6743 = vmatpush1.msra.mxu0 %v6660
  %6744 = vmatprep.subr.mxu0 %v6665
  %6745 = vmatpush1.msra.mxu0 %v6664
  %6746 = vmatprep.subr.mxu0 %v6669
  %6747 = vmatpush1.msra.mxu0 %v6668
  %6748 = vmatprep.subr.mxu0 %v6673
  %6749 = vmatpush1.msra.mxu0 %v6672
  %6750 = vmatprep.subr.mxu0 %v6677
  %6751 = vmatpush1.msra.mxu0 %v6676
  %6752 = vmatprep.subr.mxu0 %v6681
  %6753 = vmatpush1.msra.mxu0 %v6680
  %6754 = vmatprep.subr.mxu0 %v6685
  %6755 = vmatpush1.msra.mxu0 %v6684
  %6756 = vmatprep.subr.mxu0 %v6689
  %6757 = vmatpush1.msra.mxu0 %v6688
  %6758 = vmatprep.subr.mxu0 %v6693
  %6759 = vmatpush1.msra.mxu0 %v6692
  %6760 = vmatprep.mubr.f32.mxu0 %v6328
  %6761 = vmatmul.mubr.f32.gmra.mrb[0].mxu0 %v6567
  %v6762 = vpop.f32.mrb[0].mxu0
  %v6763 = vadd.f32 %v816, %v6762
  %v6764 = vpop.f32.mrb[0].mxu0
  %v6765 = vadd.f32 %v820, %v6764
  %6766 = vdwg.mxu0
  %6767 = vmatprep.subr.mxu0 %v6571
  %6768 = vmatpush1.msra.mxu0 %v6570
  %6769 = vmatprep.subr.mxu0 %v6575
  %6770 = vmatpush1.msra.mxu0 %v6574
  %6771 = vmatprep.subr.mxu0 %v6579
  %6772 = vmatpush1.msra.mxu0 %v6578
  %6773 = vmatprep.subr.mxu0 %v6583
  %6774 = vmatpush1.msra.mxu0 %v6582
  %6775 = vmatprep.subr.mxu0 %v6587
  %6776 = vmatpush1.msra.mxu0 %v6586
  %6777 = vmatprep.subr.mxu0 %v6591
  %6778 = vmatpush1.msra.mxu0 %v6590
  %6779 = vmatprep.subr.mxu0 %v6595
  %6780 = vmatpush1.msra.mxu0 %v6594
  %6781 = vmatprep.subr.mxu0 %v6599
  %6782 = vmatpush1.msra.mxu0 %v6598
  %6783 = vmatprep.subr.mxu0 %v6603
  %6784 = vmatpush1.msra.mxu0 %v6602
  %6785 = vmatprep.subr.mxu0 %v6607
  %6786 = vmatpush1.msra.mxu0 %v6606
  %6787 = vmatprep.subr.mxu0 %v6611
  %6788 = vmatpush1.msra.mxu0 %v6610
  %6789 = vmatprep.subr.mxu0 %v6615
  %6790 = vmatpush1.msra.mxu0 %v6614
  %6791 = vmatprep.subr.mxu0 %v6619
  %6792 = vmatpush1.msra.mxu0 %v6618
  %6793 = vmatprep.subr.mxu0 %v6623
  %6794 = vmatpush1.msra.mxu0 %v6622
  %6795 = vmatprep.subr.mxu0 %v6627
  %6796 = vmatpush1.msra.mxu0 %v6626
  %6797 = vmatprep.subr.mxu0 %v6631
  %6798 = vmatpush1.msra.mxu0 %v6630
  %6799 = vmatprep.subr.mxu0 %v6635
  %6800 = vmatpush1.msra.mxu0 %v6634
  %6801 = vmatprep.subr.mxu0 %v6639
  %6802 = vmatpush1.msra.mxu0 %v6638
  %6803 = vmatprep.subr.mxu0 %v6643
  %6804 = vmatpush1.msra.mxu0 %v6642
  %6805 = vmatprep.subr.mxu0 %v6647
  %6806 = vmatpush1.msra.mxu0 %v6646
  %6807 = vmatprep.subr.mxu0 %v6651
  %6808 = vmatpush1.msra.mxu0 %v6650
  %6809 = vmatprep.subr.mxu0 %v6655
  %6810 = vmatpush1.msra.mxu0 %v6654
  %6811 = vmatprep.subr.mxu0 %v6659
  %6812 = vmatpush1.msra.mxu0 %v6658
  %6813 = vmatprep.subr.mxu0 %v6663
  %6814 = vmatpush1.msra.mxu0 %v6662
  %6815 = vmatprep.subr.mxu0 %v6667
  %6816 = vmatpush1.msra.mxu0 %v6666
  %6817 = vmatprep.subr.mxu0 %v6671
  %6818 = vmatpush1.msra.mxu0 %v6670
  %6819 = vmatprep.subr.mxu0 %v6675
  %6820 = vmatpush1.msra.mxu0 %v6674
  %6821 = vmatprep.subr.mxu0 %v6679
  %6822 = vmatpush1.msra.mxu0 %v6678
  %6823 = vmatprep.subr.mxu0 %v6683
  %6824 = vmatpush1.msra.mxu0 %v6682
  %6825 = vmatprep.subr.mxu0 %v6687
  %6826 = vmatpush1.msra.mxu0 %v6686
  %6827 = vmatprep.subr.mxu0 %v6691
  %6828 = vmatpush1.msra.mxu0 %v6690
  %6829 = vmatprep.subr.mxu0 %v6695
  %6830 = vmatpush1.msra.mxu0 %v6694
  %6831 = vmatprep.mubr.f32.mxu0 %v6328
  %6832 = vmatmul.mubr.f32.gmra.mrb[0].mxu0 %v6567
  %v6833 = vpop.f32.mrb[0].mxu0
  %v6834 = vadd.f32 %v824, %v6833
  %v6835 = vpop.f32.mrb[0].mxu0
  %v6836 = vadd.f32 %v828, %v6835
  %6837 = vdwg.mxu0
  %v6838 = vxor.u32 %v6763, 2147483648
  %v6839 = vxor.u32 %v6765, 2147483648
  %v6840 = vmul.f32 %v6838, 1.442695
  %v6841 = vpow.pop %v6840
  %v6842 = vmul.f32 %v6839, 1.442695
  %v6843 = vpow.pop %v6842
  %v6844 = vadd.f32 %v6841, 1.0
  %v6845 = vadd.f32 %v6843, 1.0
  %v6846 = vrcp.pop %v6844
  %v6847 = vmul.f32 1.0, %v6846
  %v6848 = vrcp.pop %v6845
  %v6849 = vmul.f32 1.0, %v6848
  %v6850 = vtanh.pop %v6834
  %v6851 = vxor.u32 %v6836, 2147483648
  %v6852 = vmul.f32 %v6851, 1.442695
  %v6853 = vpow.pop %v6852
  %v6854 = vadd.f32 %v6853, 1.0
  %v6855 = vrcp.pop %v6854
  %v6856 = vmul.f32 1.0, %v6855
  %v6857 = vmul.f32 %v6849, %v6326
  %v6858 = vmul.f32 %v6847, %v6850
  %v6859 = vadd.f32 %v6857, %v6858
  %v6860 = vtanh.pop %v6859
  %v6861 = vmul.f32 %v6856, %v6860
  %6862 = vst [vmem:[#allocation3 + $0x58] sm:$0xff] %v6861
  %v6863 = vld [vmem:[#allocation3] sm:$0xff]
  %v6864 = vld [vmem:[#allocation3 + $0x8] sm:$0xff]
  %v6865 = vld [vmem:[#allocation3 + $0x10] sm:$0xff]
  %v6866 = vld [vmem:[#allocation3 + $0x18] sm:$0xff]
  %v6867 = vld [vmem:[#allocation3 + $0x20] sm:$0xff]
  %v6868 = vld [vmem:[#allocation3 + $0x28] sm:$0xff]
  %v6869 = vld [vmem:[#allocation3 + $0x30] sm:$0xff]
  %v6870 = vld [vmem:[#allocation3 + $0x38] sm:$0xff]
  %v6871 = vld [vmem:[#allocation3 + $0x40] sm:$0xff]
  %v6872 = vld [vmem:[#allocation3 + $0x48] sm:$0xff]
  %v6873 = vld [vmem:[#allocation3 + $0x50] sm:$0xff]
  %v6874 = vld [vmem:[#allocation3 + $0x58] sm:$0xff]
  %v6875 = vld [vmem:[%s6] sm:$0xff]
  %v6876 = vld [vmem:[%s6 + $0x8] sm:$0xff]
  %v6877 = vld [vmem:[%s6 + $0x10] sm:$0xff]
  %v6878 = vld [vmem:[%s6 + $0x18] sm:$0xff]
  %v6879 = vld [vmem:[%s6 + $0x20] sm:$0xff]
  %v6880 = vld [vmem:[%s6 + $0x28] sm:$0xff]
  %v6881 = vld [vmem:[%s6 + $0x30] sm:$0xff]
  %v6882 = vld [vmem:[%s6 + $0x38] sm:$0xff]
  %v6883 = vld [vmem:[%s6 + $0x40] sm:$0xff]
  %v6884 = vld [vmem:[%s6 + $0x48] sm:$0xff]
  %v6885 = vld [vmem:[%s6 + $0x50] sm:$0xff]
  %v6886 = vld [vmem:[%s6 + $0x58] sm:$0xff]
  %v6887 = vld [vmem:[%s6 + $0x60] sm:$0xff]
  %v6888 = vld [vmem:[%s6 + $0x68] sm:$0xff]
  %v6889 = vld [vmem:[%s6 + $0x70] sm:$0xff]
  %v6890 = vld [vmem:[%s6 + $0x78] sm:$0xff]
  %v6891 = vld [vmem:[#allocation4] sm:$0x1]
  %v6893 = vlaneseq
  %v6894 = vshrl.u32 %v6893, 7
  %v6895 = vsub.s32 0, %v6894
  %v6896 = vrot.slane %v6891, %v6895
  %6898 = vmatprep.subr.mxu0 0.0
  %6899 = vmatpush1.msra.mxu0 %v6875
  %6900 = vmatprep.subr.mxu0 0.0
  %6901 = vmatpush1.msra.mxu0 %v6876
  %6902 = vmatprep.subr.mxu0 0.0
  %6903 = vmatpush1.msra.mxu0 %v6877
  %6904 = vmatprep.subr.mxu0 0.0
  %6905 = vmatpush1.msra.mxu0 %v6878
  %6906 = vmatprep.subr.mxu0 0.0
  %6907 = vmatpush1.msra.mxu0 %v6879
  %6908 = vmatprep.subr.mxu0 0.0
  %6909 = vmatpush1.msra.mxu0 %v6880
  %6910 = vmatprep.subr.mxu0 0.0
  %6911 = vmatpush1.msra.mxu0 %v6881
  %6912 = vmatprep.subr.mxu0 0.0
  %6913 = vmatpush1.msra.mxu0 %v6882
  %6914 = vmatprep.subr.mxu0 0.0
  %6915 = vmatpush1.msra.mxu0 %v6883
  %6916 = vmatprep.subr.mxu0 0.0
  %6917 = vmatpush1.msra.mxu0 %v6884
  %6918 = vmatprep.subr.mxu0 0.0
  %6919 = vmatpush1.msra.mxu0 %v6885
  %6920 = vmatprep.subr.mxu0 0.0
  %6921 = vmatpush1.msra.mxu0 %v6886
  %6922 = vmatprep.subr.mxu0 0.0
  %6923 = vmatpush1.msra.mxu0 %v6887
  %6924 = vmatprep.subr.mxu0 0.0
  %6925 = vmatpush1.msra.mxu0 %v6888
  %6926 = vmatprep.subr.mxu0 0.0
  %6927 = vmatpush1.msra.mxu0 %v6889
  %6928 = vmatprep.subr.mxu0 0.0
  %6929 = vmatpush1.msra.mxu0 %v6890
  %6930 = vmatprep.subr.mxu0 0.0
  %6931 = vmatpush1.msra.mxu0 0.0
  %6932 = vmatprep.subr.mxu0 0.0
  %6933 = vmatpush1.msra.mxu0 0.0
  %6934 = vmatprep.subr.mxu0 0.0
  %6935 = vmatpush1.msra.mxu0 0.0
  %6936 = vmatprep.subr.mxu0 0.0
  %6937 = vmatpush1.msra.mxu0 0.0
  %6938 = vmatprep.subr.mxu0 0.0
  %6939 = vmatpush1.msra.mxu0 0.0
  %6940 = vmatprep.subr.mxu0 0.0
  %6941 = vmatpush1.msra.mxu0 0.0
  %6942 = vmatprep.subr.mxu0 0.0
  %6943 = vmatpush1.msra.mxu0 0.0
  %6944 = vmatprep.subr.mxu0 0.0
  %6945 = vmatpush1.msra.mxu0 0.0
  %6946 = vmatprep.subr.mxu0 0.0
  %6947 = vmatpush1.msra.mxu0 0.0
  %6948 = vmatprep.subr.mxu0 0.0
  %6949 = vmatpush1.msra.mxu0 0.0
  %6950 = vmatprep.subr.mxu0 0.0
  %6951 = vmatpush1.msra.mxu0 0.0
  %6952 = vmatprep.subr.mxu0 0.0
  %6953 = vmatpush1.msra.mxu0 0.0
  %6954 = vmatprep.subr.mxu0 0.0
  %6955 = vmatpush1.msra.mxu0 0.0
  %6956 = vmatprep.subr.mxu0 0.0
  %6957 = vmatpush1.msra.mxu0 0.0
  %6958 = vmatprep.subr.mxu0 0.0
  %6959 = vmatpush1.msra.mxu0 0.0
  %6960 = vmatprep.subr.mxu0 0.0
  %6961 = vmatpush1.msra.mxu0 0.0
  %6962 = vmatprep.mubr.f32.mxu0 0.0
  %6963 = vmatmul.mubr.f32.gmra.mrb[0].mxu0 %v6863
  %v6964 = vpop.f32.mrb[0].mxu0
  %v6965 = vadd.f32 %v6896, %v6964
  %v6966 = vpop.f32.mrb[0].mxu0
  %6967 = vmatprep.mubr.f32.mxu0 0.0
  %6968 = vmatmul.mubr.f32.gmra.mrb[0].mxu0 %v6864
  %v6969 = vpop.f32.mrb[0].mxu0
  %v6970 = vadd.f32 %v6896, %v6969
  %v6971 = vpop.f32.mrb[0].mxu0
  %6972 = vmatprep.mubr.f32.mxu0 0.0
  %6973 = vmatmul.mubr.f32.gmra.mrb[0].mxu0 %v6865
  %v6974 = vpop.f32.mrb[0].mxu0
  %v6975 = vadd.f32 %v6896, %v6974
  %v6976 = vpop.f32.mrb[0].mxu0
  %6977 = vmatprep.mubr.f32.mxu0 0.0
  %6978 = vmatmul.mubr.f32.gmra.mrb[0].mxu0 %v6866
  %v6979 = vpop.f32.mrb[0].mxu0
  %v6980 = vadd.f32 %v6896, %v6979
  %v6981 = vpop.f32.mrb[0].mxu0
  %6982 = vmatprep.mubr.f32.mxu0 0.0
  %6983 = vmatmul.mubr.f32.gmra.mrb[0].mxu0 %v6867
  %v6984 = vpop.f32.mrb[0].mxu0
  %v6985 = vadd.f32 %v6896, %v6984
  %v6986 = vpop.f32.mrb[0].mxu0
  %6987 = vmatprep.mubr.f32.mxu0 0.0
  %6988 = vmatmul.mubr.f32.gmra.mrb[0].mxu0 %v6868
  %v6989 = vpop.f32.mrb[0].mxu0
  %v6990 = vadd.f32 %v6896, %v6989
  %v6991 = vpop.f32.mrb[0].mxu0
  %6992 = vmatprep.mubr.f32.mxu0 0.0
  %6993 = vmatmul.mubr.f32.gmra.mrb[0].mxu0 %v6869
  %v6994 = vpop.f32.mrb[0].mxu0
  %v6995 = vadd.f32 %v6896, %v6994
  %v6996 = vpop.f32.mrb[0].mxu0
  %6997 = vmatprep.mubr.f32.mxu0 0.0
  %6998 = vmatmul.mubr.f32.gmra.mrb[0].mxu0 %v6870
  %v6999 = vpop.f32.mrb[0].mxu0
  %v7000 = vadd.f32 %v6896, %v6999
  %v7001 = vpop.f32.mrb[0].mxu0
  %7002 = vmatprep.mubr.f32.mxu0 0.0
  %7003 = vmatmul.mubr.f32.gmra.mrb[0].mxu0 %v6871
  %v7004 = vpop.f32.mrb[0].mxu0
  %v7005 = vadd.f32 %v6896, %v7004
  %v7006 = vpop.f32.mrb[0].mxu0
  %7007 = vmatprep.mubr.f32.mxu0 0.0
  %7008 = vmatmul.mubr.f32.gmra.mrb[0].mxu0 %v6872
  %v7009 = vpop.f32.mrb[0].mxu0
  %v7010 = vadd.f32 %v6896, %v7009
  %v7011 = vpop.f32.mrb[0].mxu0
  %7012 = vmatprep.mubr.f32.mxu0 0.0
  %7013 = vmatmul.mubr.f32.gmra.mrb[0].mxu0 %v6873
  %v7014 = vpop.f32.mrb[0].mxu0
  %v7015 = vadd.f32 %v6896, %v7014
  %v7016 = vpop.f32.mrb[0].mxu0
  %7017 = vmatprep.mubr.f32.mxu0 0.0
  %7018 = vmatmul.mubr.f32.gmra.mrb[0].mxu0 %v6874
  %v7019 = vpop.f32.mrb[0].mxu0
  %v7020 = vadd.f32 %v6896, %v7019
  %v7021 = vpop.f32.mrb[0].mxu0
  %7022 = vdwg.mxu0
  %v7023 = vmax.f32 %v6965, 0.0
  %v7024 = vmax.f32 %v6970, 0.0
  %v7025 = vmax.f32 %v6975, 0.0
  %v7026 = vmax.f32 %v6980, 0.0
  %v7027 = vmax.f32 %v6985, 0.0
  %v7028 = vmax.f32 %v6990, 0.0
  %v7029 = vmax.f32 %v6995, 0.0
  %v7030 = vmax.f32 %v7000, 0.0
  %v7031 = vmax.f32 %v7005, 0.0
  %v7032 = vmax.f32 %v7010, 0.0
  %v7033 = vmax.f32 %v7015, 0.0
  %v7034 = vmax.f32 %v7020, 0.0
  %7035 = vxpose.xlu0.b32.start [1/16] %v7023, 128
  %7036 = vxpose.xlu0.b32.cont [2/16] 0.0, 128
  %7037 = vxpose.xlu0.b32.cont [3/16] 0.0, 128
  %7038 = vxpose.xlu0.b32.cont [4/16] 0.0, 128
  %7039 = vxpose.xlu0.b32.cont [5/16] 0.0, 128
  %7040 = vxpose.xlu0.b32.cont [6/16] 0.0, 128
  %7041 = vxpose.xlu0.b32.cont [7/16] 0.0, 128
  %7042 = vxpose.xlu0.b32.cont [8/16] 0.0, 128
  %7043 = vxpose.xlu0.b32.cont [9/16] 0.0, 128
  %7044 = vxpose.xlu0.b32.cont [10/16] 0.0, 128
  %7045 = vxpose.xlu0.b32.cont [11/16] 0.0, 128
  %7046 = vxpose.xlu0.b32.cont [12/16] 0.0, 128
  %7047 = vxpose.xlu0.b32.cont [13/16] 0.0, 128
  %7048 = vxpose.xlu0.b32.cont [14/16] 0.0, 128
  %7049 = vxpose.xlu0.b32.cont [15/16] 0.0, 128
  %7050 = vxpose.xlu0.b32.end [16/16] 0.0, 128
  %v7051 = vpop.trf.xlu0
  %v7052 = vpop.trf.xlu0
  %v7053 = vpop.trf.xlu0
  %v7054 = vpop.trf.xlu0
  %v7055 = vpop.trf.xlu0
  %v7056 = vpop.trf.xlu0
  %v7057 = vpop.trf.xlu0
  %v7058 = vpop.trf.xlu0
  %v7059 = vpop.trf.xlu0
  %v7060 = vpop.trf.xlu0
  %v7061 = vpop.trf.xlu0
  %v7062 = vpop.trf.xlu0
  %v7063 = vpop.trf.xlu0
  %v7064 = vpop.trf.xlu0
  %v7065 = vpop.trf.xlu0
  %v7066 = vpop.trf.xlu0
  %7067 = vxpose.xlu0.b32.start [1/16] %v7024, 128
  %7068 = vxpose.xlu0.b32.cont [2/16] 0.0, 128
  %7069 = vxpose.xlu0.b32.cont [3/16] 0.0, 128
  %7070 = vxpose.xlu0.b32.cont [4/16] 0.0, 128
  %7071 = vxpose.xlu0.b32.cont [5/16] 0.0, 128
  %7072 = vxpose.xlu0.b32.cont [6/16] 0.0, 128
  %7073 = vxpose.xlu0.b32.cont [7/16] 0.0, 128
  %7074 = vxpose.xlu0.b32.cont [8/16] 0.0, 128
  %7075 = vxpose.xlu0.b32.cont [9/16] 0.0, 128
  %7076 = vxpose.xlu0.b32.cont [10/16] 0.0, 128
  %7077 = vxpose.xlu0.b32.cont [11/16] 0.0, 128
  %7078 = vxpose.xlu0.b32.cont [12/16] 0.0, 128
  %7079 = vxpose.xlu0.b32.cont [13/16] 0.0, 128
  %7080 = vxpose.xlu0.b32.cont [14/16] 0.0, 128
  %7081 = vxpose.xlu0.b32.cont [15/16] 0.0, 128
  %7082 = vxpose.xlu0.b32.end [16/16] 0.0, 128
  %v7083 = vpop.trf.xlu0
  %v7084 = vpop.trf.xlu0
  %v7085 = vpop.trf.xlu0
  %v7086 = vpop.trf.xlu0
  %v7087 = vpop.trf.xlu0
  %v7088 = vpop.trf.xlu0
  %v7089 = vpop.trf.xlu0
  %v7090 = vpop.trf.xlu0
  %v7091 = vpop.trf.xlu0
  %v7092 = vpop.trf.xlu0
  %v7093 = vpop.trf.xlu0
  %v7094 = vpop.trf.xlu0
  %v7095 = vpop.trf.xlu0
  %v7096 = vpop.trf.xlu0
  %v7097 = vpop.trf.xlu0
  %v7098 = vpop.trf.xlu0
  %7099 = vxpose.xlu0.b32.start [1/16] %v7025, 128
  %7100 = vxpose.xlu0.b32.cont [2/16] 0.0, 128
  %7101 = vxpose.xlu0.b32.cont [3/16] 0.0, 128
  %7102 = vxpose.xlu0.b32.cont [4/16] 0.0, 128
  %7103 = vxpose.xlu0.b32.cont [5/16] 0.0, 128
  %7104 = vxpose.xlu0.b32.cont [6/16] 0.0, 128
  %7105 = vxpose.xlu0.b32.cont [7/16] 0.0, 128
  %7106 = vxpose.xlu0.b32.cont [8/16] 0.0, 128
  %7107 = vxpose.xlu0.b32.cont [9/16] 0.0, 128
  %7108 = vxpose.xlu0.b32.cont [10/16] 0.0, 128
  %7109 = vxpose.xlu0.b32.cont [11/16] 0.0, 128
  %7110 = vxpose.xlu0.b32.cont [12/16] 0.0, 128
  %7111 = vxpose.xlu0.b32.cont [13/16] 0.0, 128
  %7112 = vxpose.xlu0.b32.cont [14/16] 0.0, 128
  %7113 = vxpose.xlu0.b32.cont [15/16] 0.0, 128
  %7114 = vxpose.xlu0.b32.end [16/16] 0.0, 128
  %v7115 = vpop.trf.xlu0
  %v7116 = vpop.trf.xlu0
  %v7117 = vpop.trf.xlu0
  %v7118 = vpop.trf.xlu0
  %v7119 = vpop.trf.xlu0
  %v7120 = vpop.trf.xlu0
  %v7121 = vpop.trf.xlu0
  %v7122 = vpop.trf.xlu0
  %v7123 = vpop.trf.xlu0
  %v7124 = vpop.trf.xlu0
  %v7125 = vpop.trf.xlu0
  %v7126 = vpop.trf.xlu0
  %v7127 = vpop.trf.xlu0
  %v7128 = vpop.trf.xlu0
  %v7129 = vpop.trf.xlu0
  %v7130 = vpop.trf.xlu0
  %7131 = vxpose.xlu0.b32.start [1/16] %v7026, 128
  %7132 = vxpose.xlu0.b32.cont [2/16] 0.0, 128
  %7133 = vxpose.xlu0.b32.cont [3/16] 0.0, 128
  %7134 = vxpose.xlu0.b32.cont [4/16] 0.0, 128
  %7135 = vxpose.xlu0.b32.cont [5/16] 0.0, 128
  %7136 = vxpose.xlu0.b32.cont [6/16] 0.0, 128
  %7137 = vxpose.xlu0.b32.cont [7/16] 0.0, 128
  %7138 = vxpose.xlu0.b32.cont [8/16] 0.0, 128
  %7139 = vxpose.xlu0.b32.cont [9/16] 0.0, 128
  %7140 = vxpose.xlu0.b32.cont [10/16] 0.0, 128
  %7141 = vxpose.xlu0.b32.cont [11/16] 0.0, 128
  %7142 = vxpose.xlu0.b32.cont [12/16] 0.0, 128
  %7143 = vxpose.xlu0.b32.cont [13/16] 0.0, 128
  %7144 = vxpose.xlu0.b32.cont [14/16] 0.0, 128
  %7145 = vxpose.xlu0.b32.cont [15/16] 0.0, 128
  %7146 = vxpose.xlu0.b32.end [16/16] 0.0, 128
  %v7147 = vpop.trf.xlu0
  %v7148 = vpop.trf.xlu0
  %v7149 = vpop.trf.xlu0
  %v7150 = vpop.trf.xlu0
  %v7151 = vpop.trf.xlu0
  %v7152 = vpop.trf.xlu0
  %v7153 = vpop.trf.xlu0
  %v7154 = vpop.trf.xlu0
  %v7155 = vpop.trf.xlu0
  %v7156 = vpop.trf.xlu0
  %v7157 = vpop.trf.xlu0
  %v7158 = vpop.trf.xlu0
  %v7159 = vpop.trf.xlu0
  %v7160 = vpop.trf.xlu0
  %v7161 = vpop.trf.xlu0
  %v7162 = vpop.trf.xlu0
  %7163 = vxpose.xlu0.b32.start [1/16] %v7027, 128
  %7164 = vxpose.xlu0.b32.cont [2/16] 0.0, 128
  %7165 = vxpose.xlu0.b32.cont [3/16] 0.0, 128
  %7166 = vxpose.xlu0.b32.cont [4/16] 0.0, 128
  %7167 = vxpose.xlu0.b32.cont [5/16] 0.0, 128
  %7168 = vxpose.xlu0.b32.cont [6/16] 0.0, 128
  %7169 = vxpose.xlu0.b32.cont [7/16] 0.0, 128
  %7170 = vxpose.xlu0.b32.cont [8/16] 0.0, 128
  %7171 = vxpose.xlu0.b32.cont [9/16] 0.0, 128
  %7172 = vxpose.xlu0.b32.cont [10/16] 0.0, 128
  %7173 = vxpose.xlu0.b32.cont [11/16] 0.0, 128
  %7174 = vxpose.xlu0.b32.cont [12/16] 0.0, 128
  %7175 = vxpose.xlu0.b32.cont [13/16] 0.0, 128
  %7176 = vxpose.xlu0.b32.cont [14/16] 0.0, 128
  %7177 = vxpose.xlu0.b32.cont [15/16] 0.0, 128
  %7178 = vxpose.xlu0.b32.end [16/16] 0.0, 128
  %v7179 = vpop.trf.xlu0
  %v7180 = vpop.trf.xlu0
  %v7181 = vpop.trf.xlu0
  %v7182 = vpop.trf.xlu0
  %v7183 = vpop.trf.xlu0
  %v7184 = vpop.trf.xlu0
  %v7185 = vpop.trf.xlu0
  %v7186 = vpop.trf.xlu0
  %v7187 = vpop.trf.xlu0
  %v7188 = vpop.trf.xlu0
  %v7189 = vpop.trf.xlu0
  %v7190 = vpop.trf.xlu0
  %v7191 = vpop.trf.xlu0
  %v7192 = vpop.trf.xlu0
  %v7193 = vpop.trf.xlu0
  %v7194 = vpop.trf.xlu0
  %7195 = vxpose.xlu0.b32.start [1/16] %v7028, 128
  %7196 = vxpose.xlu0.b32.cont [2/16] 0.0, 128
  %7197 = vxpose.xlu0.b32.cont [3/16] 0.0, 128
  %7198 = vxpose.xlu0.b32.cont [4/16] 0.0, 128
  %7199 = vxpose.xlu0.b32.cont [5/16] 0.0, 128
  %7200 = vxpose.xlu0.b32.cont [6/16] 0.0, 128
  %7201 = vxpose.xlu0.b32.cont [7/16] 0.0, 128
  %7202 = vxpose.xlu0.b32.cont [8/16] 0.0, 128
  %7203 = vxpose.xlu0.b32.cont [9/16] 0.0, 128
  %7204 = vxpose.xlu0.b32.cont [10/16] 0.0, 128
  %7205 = vxpose.xlu0.b32.cont [11/16] 0.0, 128
  %7206 = vxpose.xlu0.b32.cont [12/16] 0.0, 128
  %7207 = vxpose.xlu0.b32.cont [13/16] 0.0, 128
  %7208 = vxpose.xlu0.b32.cont [14/16] 0.0, 128
  %7209 = vxpose.xlu0.b32.cont [15/16] 0.0, 128
  %7210 = vxpose.xlu0.b32.end [16/16] 0.0, 128
  %v7211 = vpop.trf.xlu0
  %v7212 = vpop.trf.xlu0
  %v7213 = vpop.trf.xlu0
  %v7214 = vpop.trf.xlu0
  %v7215 = vpop.trf.xlu0
  %v7216 = vpop.trf.xlu0
  %v7217 = vpop.trf.xlu0
  %v7218 = vpop.trf.xlu0
  %v7219 = vpop.trf.xlu0
  %v7220 = vpop.trf.xlu0
  %v7221 = vpop.trf.xlu0
  %v7222 = vpop.trf.xlu0
  %v7223 = vpop.trf.xlu0
  %v7224 = vpop.trf.xlu0
  %v7225 = vpop.trf.xlu0
  %v7226 = vpop.trf.xlu0
  %7227 = vxpose.xlu0.b32.start [1/16] %v7029, 128
  %7228 = vxpose.xlu0.b32.cont [2/16] 0.0, 128
  %7229 = vxpose.xlu0.b32.cont [3/16] 0.0, 128
  %7230 = vxpose.xlu0.b32.cont [4/16] 0.0, 128
  %7231 = vxpose.xlu0.b32.cont [5/16] 0.0, 128
  %7232 = vxpose.xlu0.b32.cont [6/16] 0.0, 128
  %7233 = vxpose.xlu0.b32.cont [7/16] 0.0, 128
  %7234 = vxpose.xlu0.b32.cont [8/16] 0.0, 128
  %7235 = vxpose.xlu0.b32.cont [9/16] 0.0, 128
  %7236 = vxpose.xlu0.b32.cont [10/16] 0.0, 128
  %7237 = vxpose.xlu0.b32.cont [11/16] 0.0, 128
  %7238 = vxpose.xlu0.b32.cont [12/16] 0.0, 128
  %7239 = vxpose.xlu0.b32.cont [13/16] 0.0, 128
  %7240 = vxpose.xlu0.b32.cont [14/16] 0.0, 128
  %7241 = vxpose.xlu0.b32.cont [15/16] 0.0, 128
  %7242 = vxpose.xlu0.b32.end [16/16] 0.0, 128
  %v7243 = vpop.trf.xlu0
  %v7244 = vpop.trf.xlu0
  %v7245 = vpop.trf.xlu0
  %v7246 = vpop.trf.xlu0
  %v7247 = vpop.trf.xlu0
  %v7248 = vpop.trf.xlu0
  %v7249 = vpop.trf.xlu0
  %v7250 = vpop.trf.xlu0
  %v7251 = vpop.trf.xlu0
  %v7252 = vpop.trf.xlu0
  %v7253 = vpop.trf.xlu0
  %v7254 = vpop.trf.xlu0
  %v7255 = vpop.trf.xlu0
  %v7256 = vpop.trf.xlu0
  %v7257 = vpop.trf.xlu0
  %v7258 = vpop.trf.xlu0
  %7259 = vxpose.xlu0.b32.start [1/16] %v7030, 128
  %7260 = vxpose.xlu0.b32.cont [2/16] 0.0, 128
  %7261 = vxpose.xlu0.b32.cont [3/16] 0.0, 128
  %7262 = vxpose.xlu0.b32.cont [4/16] 0.0, 128
  %7263 = vxpose.xlu0.b32.cont [5/16] 0.0, 128
  %7264 = vxpose.xlu0.b32.cont [6/16] 0.0, 128
  %7265 = vxpose.xlu0.b32.cont [7/16] 0.0, 128
  %7266 = vxpose.xlu0.b32.cont [8/16] 0.0, 128
  %7267 = vxpose.xlu0.b32.cont [9/16] 0.0, 128
  %7268 = vxpose.xlu0.b32.cont [10/16] 0.0, 128
  %7269 = vxpose.xlu0.b32.cont [11/16] 0.0, 128
  %7270 = vxpose.xlu0.b32.cont [12/16] 0.0, 128
  %7271 = vxpose.xlu0.b32.cont [13/16] 0.0, 128
  %7272 = vxpose.xlu0.b32.cont [14/16] 0.0, 128
  %7273 = vxpose.xlu0.b32.cont [15/16] 0.0, 128
  %7274 = vxpose.xlu0.b32.end [16/16] 0.0, 128
  %v7275 = vpop.trf.xlu0
  %v7276 = vpop.trf.xlu0
  %v7277 = vpop.trf.xlu0
  %v7278 = vpop.trf.xlu0
  %v7279 = vpop.trf.xlu0
  %v7280 = vpop.trf.xlu0
  %v7281 = vpop.trf.xlu0
  %v7282 = vpop.trf.xlu0
  %v7283 = vpop.trf.xlu0
  %v7284 = vpop.trf.xlu0
  %v7285 = vpop.trf.xlu0
  %v7286 = vpop.trf.xlu0
  %v7287 = vpop.trf.xlu0
  %v7288 = vpop.trf.xlu0
  %v7289 = vpop.trf.xlu0
  %v7290 = vpop.trf.xlu0
  %7291 = vxpose.xlu0.b32.start [1/16] %v7031, 128
  %7292 = vxpose.xlu0.b32.cont [2/16] 0.0, 128
  %7293 = vxpose.xlu0.b32.cont [3/16] 0.0, 128
  %7294 = vxpose.xlu0.b32.cont [4/16] 0.0, 128
  %7295 = vxpose.xlu0.b32.cont [5/16] 0.0, 128
  %7296 = vxpose.xlu0.b32.cont [6/16] 0.0, 128
  %7297 = vxpose.xlu0.b32.cont [7/16] 0.0, 128
  %7298 = vxpose.xlu0.b32.cont [8/16] 0.0, 128
  %7299 = vxpose.xlu0.b32.cont [9/16] 0.0, 128
  %7300 = vxpose.xlu0.b32.cont [10/16] 0.0, 128
  %7301 = vxpose.xlu0.b32.cont [11/16] 0.0, 128
  %7302 = vxpose.xlu0.b32.cont [12/16] 0.0, 128
  %7303 = vxpose.xlu0.b32.cont [13/16] 0.0, 128
  %7304 = vxpose.xlu0.b32.cont [14/16] 0.0, 128
  %7305 = vxpose.xlu0.b32.cont [15/16] 0.0, 128
  %7306 = vxpose.xlu0.b32.end [16/16] 0.0, 128
  %v7307 = vpop.trf.xlu0
  %v7308 = vpop.trf.xlu0
  %v7309 = vpop.trf.xlu0
  %v7310 = vpop.trf.xlu0
  %v7311 = vpop.trf.xlu0
  %v7312 = vpop.trf.xlu0
  %v7313 = vpop.trf.xlu0
  %v7314 = vpop.trf.xlu0
  %v7315 = vpop.trf.xlu0
  %v7316 = vpop.trf.xlu0
  %v7317 = vpop.trf.xlu0
  %v7318 = vpop.trf.xlu0
  %v7319 = vpop.trf.xlu0
  %v7320 = vpop.trf.xlu0
  %v7321 = vpop.trf.xlu0
  %v7322 = vpop.trf.xlu0
  %7323 = vxpose.xlu0.b32.start [1/16] %v7032, 128
  %7324 = vxpose.xlu0.b32.cont [2/16] 0.0, 128
  %7325 = vxpose.xlu0.b32.cont [3/16] 0.0, 128
  %7326 = vxpose.xlu0.b32.cont [4/16] 0.0, 128
  %7327 = vxpose.xlu0.b32.cont [5/16] 0.0, 128
  %7328 = vxpose.xlu0.b32.cont [6/16] 0.0, 128
  %7329 = vxpose.xlu0.b32.cont [7/16] 0.0, 128
  %7330 = vxpose.xlu0.b32.cont [8/16] 0.0, 128
  %7331 = vxpose.xlu0.b32.cont [9/16] 0.0, 128
  %7332 = vxpose.xlu0.b32.cont [10/16] 0.0, 128
  %7333 = vxpose.xlu0.b32.cont [11/16] 0.0, 128
  %7334 = vxpose.xlu0.b32.cont [12/16] 0.0, 128
  %7335 = vxpose.xlu0.b32.cont [13/16] 0.0, 128
  %7336 = vxpose.xlu0.b32.cont [14/16] 0.0, 128
  %7337 = vxpose.xlu0.b32.cont [15/16] 0.0, 128
  %7338 = vxpose.xlu0.b32.end [16/16] 0.0, 128
  %v7339 = vpop.trf.xlu0
  %v7340 = vpop.trf.xlu0
  %v7341 = vpop.trf.xlu0
  %v7342 = vpop.trf.xlu0
  %v7343 = vpop.trf.xlu0
  %v7344 = vpop.trf.xlu0
  %v7345 = vpop.trf.xlu0
  %v7346 = vpop.trf.xlu0
  %v7347 = vpop.trf.xlu0
  %v7348 = vpop.trf.xlu0
  %v7349 = vpop.trf.xlu0
  %v7350 = vpop.trf.xlu0
  %v7351 = vpop.trf.xlu0
  %v7352 = vpop.trf.xlu0
  %v7353 = vpop.trf.xlu0
  %v7354 = vpop.trf.xlu0
  %7355 = vxpose.xlu0.b32.start [1/16] %v7033, 128
  %7356 = vxpose.xlu0.b32.cont [2/16] 0.0, 128
  %7357 = vxpose.xlu0.b32.cont [3/16] 0.0, 128
  %7358 = vxpose.xlu0.b32.cont [4/16] 0.0, 128
  %7359 = vxpose.xlu0.b32.cont [5/16] 0.0, 128
  %7360 = vxpose.xlu0.b32.cont [6/16] 0.0, 128
  %7361 = vxpose.xlu0.b32.cont [7/16] 0.0, 128
  %7362 = vxpose.xlu0.b32.cont [8/16] 0.0, 128
  %7363 = vxpose.xlu0.b32.cont [9/16] 0.0, 128
  %7364 = vxpose.xlu0.b32.cont [10/16] 0.0, 128
  %7365 = vxpose.xlu0.b32.cont [11/16] 0.0, 128
  %7366 = vxpose.xlu0.b32.cont [12/16] 0.0, 128
  %7367 = vxpose.xlu0.b32.cont [13/16] 0.0, 128
  %7368 = vxpose.xlu0.b32.cont [14/16] 0.0, 128
  %7369 = vxpose.xlu0.b32.cont [15/16] 0.0, 128
  %7370 = vxpose.xlu0.b32.end [16/16] 0.0, 128
  %v7371 = vpop.trf.xlu0
  %v7372 = vpop.trf.xlu0
  %v7373 = vpop.trf.xlu0
  %v7374 = vpop.trf.xlu0
  %v7375 = vpop.trf.xlu0
  %v7376 = vpop.trf.xlu0
  %v7377 = vpop.trf.xlu0
  %v7378 = vpop.trf.xlu0
  %v7379 = vpop.trf.xlu0
  %v7380 = vpop.trf.xlu0
  %v7381 = vpop.trf.xlu0
  %v7382 = vpop.trf.xlu0
  %v7383 = vpop.trf.xlu0
  %v7384 = vpop.trf.xlu0
  %v7385 = vpop.trf.xlu0
  %v7386 = vpop.trf.xlu0
  %7387 = vxpose.xlu0.b32.start [1/16] %v7034, 128
  %7388 = vxpose.xlu0.b32.cont [2/16] 0.0, 128
  %7389 = vxpose.xlu0.b32.cont [3/16] 0.0, 128
  %7390 = vxpose.xlu0.b32.cont [4/16] 0.0, 128
  %7391 = vxpose.xlu0.b32.cont [5/16] 0.0, 128
  %7392 = vxpose.xlu0.b32.cont [6/16] 0.0, 128
  %7393 = vxpose.xlu0.b32.cont [7/16] 0.0, 128
  %7394 = vxpose.xlu0.b32.cont [8/16] 0.0, 128
  %7395 = vxpose.xlu0.b32.cont [9/16] 0.0, 128
  %7396 = vxpose.xlu0.b32.cont [10/16] 0.0, 128
  %7397 = vxpose.xlu0.b32.cont [11/16] 0.0, 128
  %7398 = vxpose.xlu0.b32.cont [12/16] 0.0, 128
  %7399 = vxpose.xlu0.b32.cont [13/16] 0.0, 128
  %7400 = vxpose.xlu0.b32.cont [14/16] 0.0, 128
  %7401 = vxpose.xlu0.b32.cont [15/16] 0.0, 128
  %7402 = vxpose.xlu0.b32.end [16/16] 0.0, 128
  %v7403 = vpop.trf.xlu0
  %v7404 = vpop.trf.xlu0
  %v7405 = vpop.trf.xlu0
  %v7406 = vpop.trf.xlu0
  %v7407 = vpop.trf.xlu0
  %v7408 = vpop.trf.xlu0
  %v7409 = vpop.trf.xlu0
  %v7410 = vpop.trf.xlu0
  %v7411 = vpop.trf.xlu0
  %v7412 = vpop.trf.xlu0
  %v7413 = vpop.trf.xlu0
  %v7414 = vpop.trf.xlu0
  %v7415 = vpop.trf.xlu0
  %v7416 = vpop.trf.xlu0
  %v7417 = vpop.trf.xlu0
  %v7418 = vpop.trf.xlu0
  %v7419 = vcombine.low %v7051, %v7115
  %v7421 = vunpack.c.l.s4 1983009808
  %v7422 = vunpack.c.0.s8 %v7421
  %v7423 = vlaneseq
  %v7424 = vshrl.u32 %v7423, 7
  %v7425 = vsub.s32 %v7422, %v7424
  %v7426 = vrot.slane %v7419, %v7425
  %v7427 = vcombine.low %v7083, %v7147
  %v7429 = vunpack.c.l.s4 1983009808
  %v7430 = vunpack.c.0.s8 %v7429
  %v7431 = vlaneseq
  %v7432 = vshrl.u32 %v7431, 7
  %v7433 = vsub.s32 %v7430, %v7432
  %v7434 = vrot.slane %v7427, %v7433
  %v7435 = vcombine.low %v7179, %v7243
  %v7437 = vunpack.c.l.s4 1983009808
  %v7438 = vunpack.c.0.s8 %v7437
  %v7439 = vlaneseq
  %v7440 = vshrl.u32 %v7439, 7
  %v7441 = vsub.s32 %v7438, %v7440
  %v7442 = vrot.slane %v7435, %v7441
  %v7443 = vcombine.low %v7211, %v7275
  %v7445 = vunpack.c.l.s4 1983009808
  %v7446 = vunpack.c.0.s8 %v7445
  %v7447 = vlaneseq
  %v7448 = vshrl.u32 %v7447, 7
  %v7449 = vsub.s32 %v7446, %v7448
  %v7450 = vrot.slane %v7443, %v7449
  %v7451 = vcombine.low %v7426, %v7434
  %v7453 = vunpack.c.l.s4 1934713408
  %v7454 = vunpack.c.0.s8 %v7453
  %v7455 = vlaneseq
  %v7456 = vshrl.u32 %v7455, 7
  %v7457 = vsub.s32 %v7454, %v7456
  %v7458 = vrot.slane %v7451, %v7457
  %v7459 = vcombine.low %v7442, %v7450
  %v7461 = vunpack.c.l.s4 1934713408
  %v7462 = vunpack.c.0.s8 %v7461
  %v7463 = vlaneseq
  %v7464 = vshrl.u32 %v7463, 7
  %v7465 = vsub.s32 %v7462, %v7464
  %v7466 = vrot.slane %v7459, %v7465
  %v7467 = vcombine.low %v7458, %v7466
  %v7468 = vcombine.low %v7307, %v7371
  %v7470 = vunpack.c.l.s4 1983009808
  %v7471 = vunpack.c.0.s8 %v7470
  %v7472 = vlaneseq
  %v7473 = vshrl.u32 %v7472, 7
  %v7474 = vsub.s32 %v7471, %v7473
  %v7475 = vrot.slane %v7468, %v7474
  %v7476 = vcombine.low %v7339, %v7403
  %v7478 = vunpack.c.l.s4 1983009808
  %v7479 = vunpack.c.0.s8 %v7478
  %v7480 = vlaneseq
  %v7481 = vshrl.u32 %v7480, 7
  %v7482 = vsub.s32 %v7479, %v7481
  %v7483 = vrot.slane %v7476, %v7482
  %v7484 = vcombine.low %v7475, %v7483
  %v7486 = vunpack.c.l.s4 1934713408
  %v7487 = vunpack.c.0.s8 %v7486
  %v7488 = vlaneseq
  %v7489 = vshrl.u32 %v7488, 7
  %v7490 = vsub.s32 %v7487, %v7489
  %v7491 = vrot.slane %v7484, %v7490
  %7492 = vxpose.xlu0.b32.start [1/16] %v7467, 128
  %7493 = vxpose.xlu0.b32.cont [2/16] %v7491, 128
  %7494 = vxpose.xlu0.b32.cont [3/16] 0.0, 128
  %7495 = vxpose.xlu0.b32.cont [4/16] 0.0, 128
  %7496 = vxpose.xlu0.b32.cont [5/16] 0.0, 128
  %7497 = vxpose.xlu0.b32.cont [6/16] 0.0, 128
  %7498 = vxpose.xlu0.b32.cont [7/16] 0.0, 128
  %7499 = vxpose.xlu0.b32.cont [8/16] 0.0, 128
  %7500 = vxpose.xlu0.b32.cont [9/16] 0.0, 128
  %7501 = vxpose.xlu0.b32.cont [10/16] 0.0, 128
  %7502 = vxpose.xlu0.b32.cont [11/16] 0.0, 128
  %7503 = vxpose.xlu0.b32.cont [12/16] 0.0, 128
  %7504 = vxpose.xlu0.b32.cont [13/16] 0.0, 128
  %7505 = vxpose.xlu0.b32.cont [14/16] 0.0, 128
  %7506 = vxpose.xlu0.b32.cont [15/16] 0.0, 128
  %7507 = vxpose.xlu0.b32.end [16/16] 0.0, 128
  %v7508 = vpop.trf.xlu0
  %v7509 = vpop.trf.xlu0
  %v7510 = vpop.trf.xlu0
  %v7511 = vpop.trf.xlu0
  %v7512 = vpop.trf.xlu0
  %v7513 = vpop.trf.xlu0
  %v7514 = vpop.trf.xlu0
  %v7515 = vpop.trf.xlu0
  %v7516 = vpop.trf.xlu0
  %v7517 = vpop.trf.xlu0
  %v7518 = vpop.trf.xlu0
  %v7519 = vpop.trf.xlu0
  %v7520 = vpop.trf.xlu0
  %v7521 = vpop.trf.xlu0
  %v7522 = vpop.trf.xlu0
  %v7523 = vpop.trf.xlu0
  %v7524 = vcombine.high %v7508, 0.0
  %v7526 = vunpack.c.l.s4 1983009808
  %v7527 = vunpack.c.0.s8 %v7526
  %v7528 = vlaneseq
  %v7529 = vshrl.u32 %v7528, 7
  %v7530 = vsub.s32 %v7527, %v7529
  %v7531 = vrot.slane %v7508, %v7530
  %v7533 = vunpack.c.l.s4 1983009808
  %v7534 = vunpack.c.0.s8 %v7533
  %v7535 = vlaneseq
  %v7536 = vshrl.u32 %v7535, 7
  %v7537 = vsub.s32 %v7534, %v7536
  %v7538 = vrot.slane %v7524, %v7537
  %v7539 = vcombine.high %v7531, 0.0
  %v7541 = vunpack.c.l.s4 1934713408
  %v7542 = vunpack.c.0.s8 %v7541
  %v7543 = vlaneseq
  %v7544 = vshrl.u32 %v7543, 7
  %v7545 = vsub.s32 %v7542, %v7544
  %v7546 = vrot.slane %v7531, %v7545
  %v7548 = vunpack.c.l.s4 1934713408
  %v7549 = vunpack.c.0.s8 %v7548
  %v7550 = vlaneseq
  %v7551 = vshrl.u32 %v7550, 7
  %v7552 = vsub.s32 %v7549, %v7551
  %v7553 = vrot.slane %v7539, %v7552
  %v7554 = vcombine.high %v7538, 0.0
  %v7556 = vunpack.c.l.s4 1934713408
  %v7557 = vunpack.c.0.s8 %v7556
  %v7558 = vlaneseq
  %v7559 = vshrl.u32 %v7558, 7
  %v7560 = vsub.s32 %v7557, %v7559
  %v7561 = vrot.slane %v7538, %v7560
  %v7563 = vunpack.c.l.s4 1934713408
  %v7564 = vunpack.c.0.s8 %v7563
  %v7565 = vlaneseq
  %v7566 = vshrl.u32 %v7565, 7
  %v7567 = vsub.s32 %v7564, %v7566
  %v7568 = vrot.slane %v7554, %v7567
  %v7569 = vcombine.high %v7546, 0.0
  %v7570 = vcombine.high %v7553, 0.0
  %v7571 = vcombine.high %v7561, 0.0
  %v7572 = vcombine.high %v7568, 0.0
  %v7573 = vld [vmem:[%s8] sm:$0x7]
  %v7574 = vld [vmem:[%s9] sm:$0x7]
  %7576 = vset.pattern.permute.xlu0 0
  %7577 = vperm.xlu0 %7576, %v7574
  %v7578 = vpop.permute.xlu0 %7577
  %v7588 = vrot.slane %v7569, 7
  %vm7589 = vcmask 1041409
  %v7590 = vsel %vm7589, %v7588, %v7546
  %v7591 = vrot.slane %v7553, 6
  %vm7592 = vcmask 1042434
  %v7593 = vsel %vm7592, %v7591, %v7590
  %v7594 = vrot.slane %v7570, 5
  %vm7595 = vcmask 1043459
  %v7596 = vsel %vm7595, %v7594, %v7593
  %v7597 = vrot.slane %v7561, 4
  %vm7598 = vcmask 1044484
  %v7599 = vsel %vm7598, %v7597, %v7596
  %v7600 = vrot.slane %v7571, 3
  %vm7601 = vcmask 1045509
  %v7602 = vsel %vm7601, %v7600, %v7599
  %v7603 = vrot.slane %v7568, 2
  %vm7604 = vcmask 1046534
  %v7605 = vsel %vm7604, %v7603, %v7602
  %v7606 = vrot.slane %v7572, 1
  %vm7607 = vcmask 1047559
  %v7608 = vsel %vm7607, %v7606, %v7605
  %vm7609 = vcmask 97280
  %v7611 = vsel %vm7609, %v7573, 0
  %v7613 = vsel %vm7609, %v7608, 0
  %7615 = vmatprep.subr.mxu0 0.0
  %7616 = vmatpush1.xpose.msra.mxu0 %v7613
  %7617 = vmatprep.subr.mxu0 0.0
  %7618 = vmatpush1.xpose.msra.mxu0 0.0
  %7619 = vmatprep.subr.mxu0 0.0
  %7620 = vmatpush1.xpose.msra.mxu0 0.0
  %7621 = vmatprep.subr.mxu0 0.0
  %7622 = vmatpush1.xpose.msra.mxu0 0.0
  %7623 = vmatprep.subr.mxu0 0.0
  %7624 = vmatpush1.xpose.msra.mxu0 0.0
  %7625 = vmatprep.subr.mxu0 0.0
  %7626 = vmatpush1.xpose.msra.mxu0 0.0
  %7627 = vmatprep.subr.mxu0 0.0
  %7628 = vmatpush1.xpose.msra.mxu0 0.0
  %7629 = vmatprep.subr.mxu0 0.0
  %7630 = vmatpush1.xpose.msra.mxu0 0.0
  %7631 = vmatprep.subr.mxu0 0.0
  %7632 = vmatpush1.xpose.msra.mxu0 0.0
  %7633 = vmatprep.subr.mxu0 0.0
  %7634 = vmatpush1.xpose.msra.mxu0 0.0
  %7635 = vmatprep.subr.mxu0 0.0
  %7636 = vmatpush1.xpose.msra.mxu0 0.0
  %7637 = vmatprep.subr.mxu0 0.0
  %7638 = vmatpush1.xpose.msra.mxu0 0.0
  %7639 = vmatprep.subr.mxu0 0.0
  %7640 = vmatpush1.xpose.msra.mxu0 0.0
  %7641 = vmatprep.subr.mxu0 0.0
  %7642 = vmatpush1.xpose.msra.mxu0 0.0
  %7643 = vmatprep.subr.mxu0 0.0
  %7644 = vmatpush1.xpose.msra.mxu0 0.0
  %7645 = vmatprep.subr.mxu0 0.0
  %7646 = vmatpush1.xpose.msra.mxu0 0.0
  %7647 = vmatprep.subr.mxu0 0.0
  %7648 = vmatpush1.xpose.msra.mxu0 0.0
  %7649 = vmatprep.subr.mxu0 0.0
  %7650 = vmatpush1.xpose.msra.mxu0 0.0
  %7651 = vmatprep.subr.mxu0 0.0
  %7652 = vmatpush1.xpose.msra.mxu0 0.0
  %7653 = vmatprep.subr.mxu0 0.0
  %7654 = vmatpush1.xpose.msra.mxu0 0.0
  %7655 = vmatprep.subr.mxu0 0.0
  %7656 = vmatpush1.xpose.msra.mxu0 0.0
  %7657 = vmatprep.subr.mxu0 0.0
  %7658 = vmatpush1.xpose.msra.mxu0 0.0
  %7659 = vmatprep.subr.mxu0 0.0
  %7660 = vmatpush1.xpose.msra.mxu0 0.0
  %7661 = vmatprep.subr.mxu0 0.0
  %7662 = vmatpush1.xpose.msra.mxu0 0.0
  %7663 = vmatprep.subr.mxu0 0.0
  %7664 = vmatpush1.xpose.msra.mxu0 0.0
  %7665 = vmatprep.subr.mxu0 0.0
  %7666 = vmatpush1.xpose.msra.mxu0 0.0
  %7667 = vmatprep.subr.mxu0 0.0
  %7668 = vmatpush1.xpose.msra.mxu0 0.0
  %7669 = vmatprep.subr.mxu0 0.0
  %7670 = vmatpush1.xpose.msra.mxu0 0.0
  %7671 = vmatprep.subr.mxu0 0.0
  %7672 = vmatpush1.xpose.msra.mxu0 0.0
  %7673 = vmatprep.subr.mxu0 0.0
  %7674 = vmatpush1.xpose.msra.mxu0 0.0
  %7675 = vmatprep.subr.mxu0 0.0
  %7676 = vmatpush1.xpose.msra.mxu0 0.0
  %7677 = vmatprep.subr.mxu0 0.0
  %7678 = vmatpush1.xpose.msra.mxu0 0.0
  %7679 = vmatprep.mubr.f32.mxu0 0.0
  %7680 = vmatmul.mubr.f32.gmra.mrb[0].mxu0 %v7611
  %v7681 = vpop.f32.mrb[0].mxu0
  %v7682 = vadd.f32 %v7578, %v7681
  %v7683 = vpop.f32.mrb[0].mxu0
  %7684 = vdwg.mxu0
  %vm7685 = vcmask 59392
  %7686 = vst.msk [vmem:[%s10] sm:$0x7] %vm7685, %v7682
  // Predicated region
  $region42: #{lstm_forward.1} parent=0 // pred_check
    _
  $region43: #{lstm_forward.1} parent=0 // pred_check_branch
    %7688 = sbr.rel (0) target = $region45
  $region44: #{lstm_forward.1} parent=0 // pred_region
    _
  $region45: #{lstm_forward.1} parent=0 // pred_fallthru
    _
  // Predicated region
  $region46: #{lstm_forward.1} parent=0 // pred_check
    _
  $region47: #{lstm_forward.1} parent=0 // pred_check_branch
    %7690 = sbr.rel (0) target = $region49
  $region48: #{lstm_forward.1} parent=0 // pred_region
    _
  $region49: #{lstm_forward.1} parent=0 // pred_fallthru
    _

</llo_original>
